<compile_context>
chip_gen: v7x
topology: tpu7x:2x2x1
jax: 0.10.0
libtpu: 0.0.40
codegen_flags: <defaults>
</compile_context>

<pallas_src>
import jax
import jax.numpy as jnp
from jax import lax
from jax.experimental import pallas as pl
from jax.experimental.pallas import tpu as pltpu

BN_EPS = 1e-5  # PyTorch BatchNorm2d default eps


def _vmem():
    return pl.BlockSpec(memory_space=pltpu.MemorySpace.VMEM)


# ----------------------------- fused kernel -----------------------------

def _fused_forward_kernel(x_ref, t1_ref, g1_ref, bt1_ref, fold1_ref,
                          t2_ref, g2_ref, bt2_ref, fold2_ref,
                          wfc_ref, bfc_ref, o_ref):
    f32 = jnp.float32
    bf16 = jnp.bfloat16

    xb = x_ref[...]                       # (32, B, 32) bf16, padded input
    B = xb.shape[1]

    # ---------- layer 1: Conv2d(1, 16, 5, pad=2) as 5 MXU matmuls ------------
    # acc1[(h, b), 128*r + 16*q + c] = conv1 output at W = 4*q + r  (q < 7;
    # q = 7 lane groups are exactly 0 because T1 has zero columns there).
    acc1 = jnp.zeros((28 * B, 512), f32)
    for di in range(5):
        lhs = xb[di:di + 28].reshape(28 * B, 32)
        acc1 = acc1 + jnp.dot(lhs, t1_ref[di], preferred_element_type=f32)

    # BatchNorm (training mode, biased batch stats).  Per-channel sums via two
    # small MXU dots against a 0/1 fold matrix; stats stay in f32.
    n1 = float(B * 28 * 28)
    fold1 = fold1_ref[...]                                     # (512, 16)
    s1 = jnp.dot(acc1, fold1, preferred_element_type=f32).sum(
        axis=0, keepdims=True)                                 # (1, 16)
    ss1 = jnp.dot(acc1 * acc1, fold1, preferred_element_type=f32).sum(
        axis=0, keepdims=True)
    mean1 = s1 / n1
    var1 = ss1 / n1 - mean1 * mean1
    scale1 = lax.rsqrt(var1 + BN_EPS) * g1_ref[...]            # (1, 16)
    shift1 = bt1_ref[...] - mean1 * scale1
    # Spread to the 512-lane layout; q = 7 groups are zeroed so that invalid
    # lanes stay 0 after affine+ReLU (they become layer-2's W zero-padding).
    z16 = jnp.zeros((1, 16), f32)
    scale1l = jnp.concatenate([scale1] * 7 + [z16], axis=1)    # (1, 128)
    shift1l = jnp.concatenate([shift1] * 7 + [z16], axis=1)
    scale1l = jnp.concatenate([scale1l] * 4, axis=1)           # (1, 512)
    shift1l = jnp.concatenate([shift1l] * 4, axis=1)
    y1 = jnp.maximum(acc1 * scale1l + shift1l, 0.0)            # (28B, 512)

    # ---------- MaxPool2d(2), layer 1 ----------------------------------------
    # W-step: vreg-aligned lane-slice max over phase pairs; H-step: leading-dim
    # reshape + max.
    p_e = jnp.maximum(y1[:, 0:128], y1[:, 128:256])    # pooled W' = 2q
    p_o = jnp.maximum(y1[:, 256:384], y1[:, 384:512])  # pooled W' = 2q + 1
    p_e = jnp.max(p_e.reshape(14, 2, B, 128), axis=1)  # (14, B, 128)
    p_o = jnp.max(p_o.reshape(14, 2, B, 128), axis=1)

    # ---------- layer-2 input buffer (18, B, 288), bf16 ----------------------
    # Lane = 144*parity + 16*qp + c, padded W position wp = 2*qp + parity.
    # The explicit 16-lane zero blocks are wp = 0, 1 and the (already zero)
    # q = 7 groups of p_e / p_o are wp = 16, 17 -> conv2 W padding.
    zc = jnp.zeros((14, B, 16), f32)
    h_mid = jnp.concatenate([zc, p_e, zc, p_o], axis=-1)       # (14, B, 288)
    zr = jnp.zeros((2, B, 288), f32)
    h1 = jnp.concatenate([zr, h_mid, zr], axis=0).astype(bf16)  # (18, B, 288)

    # ---------- layer 2: Conv2d(16, 32, 5, pad=2) as 5 bf16 MXU matmuls ------
    # acc2[(h', b), 256*parity + 32*t + co] = conv2 output at W' = 2*t + parity.
    acc2 = jnp.zeros((14 * B, 512), f32)
    for di in range(5):
        lhs = h1[di:di + 14].reshape(14 * B, 288)
        acc2 = acc2 + jnp.dot(lhs, t2_ref[di], preferred_element_type=f32)

    n2 = float(B * 14 * 14)
    fold2 = fold2_ref[...]                                     # (512, 32)
    s2 = jnp.dot(acc2, fold2, preferred_element_type=f32).sum(
        axis=0, keepdims=True)                                 # (1, 32)
    ss2 = jnp.dot(acc2 * acc2, fold2, preferred_element_type=f32).sum(
        axis=0, keepdims=True)
    mean2 = s2 / n2
    var2 = ss2 / n2 - mean2 * mean2
    scale2 = lax.rsqrt(var2 + BN_EPS) * g2_ref[...]            # (1, 32)
    shift2 = bt2_ref[...] - mean2 * scale2
    z32 = jnp.zeros((1, 32), f32)
    scale2l = jnp.concatenate([scale2] * 7 + [z32], axis=1)    # (1, 256)
    shift2l = jnp.concatenate([shift2] * 7 + [z32], axis=1)
    scale2l = jnp.concatenate([scale2l] * 2, axis=1)           # (1, 512)
    shift2l = jnp.concatenate([shift2l] * 2, axis=1)
    y2 = jnp.maximum(acc2 * scale2l + shift2l, 0.0)            # (14B, 512)

    # ---------- MaxPool2d(2), layer 2 ----------------------------------------
    q2 = jnp.maximum(y2[:, 0:256], y2[:, 256:512])             # (14B, 256)
    feat = jnp.max(q2.reshape(7, 2, B, 256), axis=1)           # (7, B, 256)

    # ---------- fc: Linear(1568, 10) as ONE matmul ---------------------------
    # feat_flat lane = 256*u + 32*t + co (t = 7 lane groups are zero; the fc
    # weight has zero rows there).  Pieces are 2-vreg wide -> aligned concat.
    feat_flat = jnp.concatenate([feat[u] for u in range(7)], axis=-1)  # (B,1792)
    logits = jnp.dot(feat_flat.astype(bf16), wfc_ref[...],
                     preferred_element_type=f32) + bfc_ref[...]
    o_ref[...] = logits


# ----------------------------- wrapper -----------------------------

def fashion_mnist_cnn_forward(x_nchw, params):
    B, C, H, W = x_nchw.shape
    assert (C, H, W) == (1, 28, 28), "FashionMNISTCNN expects (B, 1, 28, 28)"
    f32 = jnp.float32
    bf16 = jnp.bfloat16

    # Layer-1 input in (H_pad, B, W_pad) = (32, B, 32), zero-padded by 2.
    xpad = jnp.pad(x_nchw[:, 0].astype(f32), ((0, 0), (2, 2), (2, 2)))
    xbuf = jnp.transpose(xpad, (1, 0, 2)).astype(bf16)           # (32, B, 32)

    # ---- banded ("Toeplitz") conv weights: conv == a few big matmuls --------
    # T1[di, wp, 128*r + 16*q + c] = w1[c, 0, di, wp - (4q + r)] if the tap is
    # inside the 5-wide kernel (and q < 7), else 0.
    w1t = jnp.transpose(params['w1'][:, 0], (1, 2, 0))           # (5, 5, 16)
    dj1 = jnp.arange(32)[None, :] - jnp.arange(28)[:, None]      # (28, 32)
    v1 = ((dj1 >= 0) & (dj1 <= 4)).astype(f32)
    G1 = w1t[:, jnp.clip(dj1, 0, 4), :] * v1[None, :, :, None]   # (5,28,32,16)
    order28 = (4 * jnp.arange(7)[None, :] + jnp.arange(4)[:, None]).reshape(-1)
    G1 = G1[:, order28].reshape(5, 4, 7, 32, 16)                 # (di,r,q,wp,c)
    G1 = jnp.pad(G1, ((0, 0), (0, 0), (0, 1), (0, 0), (0, 0)))   # q: 7 -> 8
    T1 = jnp.transpose(G1, (0, 3, 1, 2, 4)).reshape(5, 32, 512).astype(bf16)

    # T2[di, 144*jin + 16*qin + c, 256*jo + 32*t + co]
    #   = w2[co, c, di, (2*qin + jin) - (2*t + jo)]  when the tap is valid.
    w2t = jnp.transpose(params['w2'], (2, 3, 1, 0))              # (5,5,16,32)
    dj2 = jnp.arange(18)[None, :] - jnp.arange(14)[:, None]      # (14, 18)
    v2 = ((dj2 >= 0) & (dj2 <= 4)).astype(f32)
    G2 = w2t[:, jnp.clip(dj2, 0, 4)] * v2[None, :, :, None, None]  # (5,14,18,16,32)
    order14 = (2 * jnp.arange(7)[None, :] + jnp.arange(2)[:, None]).reshape(-1)
    order18 = (2 * jnp.arange(9)[None, :] + jnp.arange(2)[:, None]).reshape(-1)
    G2 = G2[:, order14][:, :, order18].reshape(5, 2, 7, 2, 9, 16, 32)
    G2 = jnp.pad(G2, ((0, 0), (0, 0), (0, 1), (0, 0), (0, 0), (0, 0), (0, 0)))
    T2 = jnp.transpose(G2, (0, 3, 4, 5, 1, 2, 6)).reshape(5, 288, 512).astype(bf16)

    # 0/1 fold matrices: sum the valid lane groups of each layer into channels.
    fold1 = jnp.tile(
        jnp.concatenate([jnp.tile(jnp.eye(16, dtype=f32), (7, 1)),
                         jnp.zeros((16, 16), f32)], axis=0), (4, 1))   # (512,16)
    fold2 = jnp.tile(
        jnp.concatenate([jnp.tile(jnp.eye(32, dtype=f32), (7, 1)),
                         jnp.zeros((32, 32), f32)], axis=0), (2, 1))   # (512,32)

    # FC weight packed to the kernel's (u, t, co) feature lane order
    # (PyTorch flatten index = co*49 + u*7 + t); t = 7 rows are zero.
    wfc_r = jnp.transpose(params['wfc'].reshape(10, 32, 7, 7), (2, 3, 1, 0))
    wfc_p = jnp.pad(wfc_r, ((0, 0), (0, 1), (0, 0), (0, 0)))
    wfc_p = wfc_p.reshape(7 * 8 * 32, 10).astype(bf16)                 # (1792,10)

    # Conv biases are omitted: per-channel biases cancel exactly in the
    # training-mode BatchNorm mean subtraction.
    args = (xbuf, T1,
            params['g1'].reshape(1, 16), params['bt1'].reshape(1, 16), fold1,
            T2,
            params['g2'].reshape(1, 32), params['bt2'].reshape(1, 32), fold2,
            wfc_p, params['bfc'].reshape(1, 10))

    return pl.pallas_call(
        _fused_forward_kernel,
        out_shape=jax.ShapeDtypeStruct((B, 10), f32),
        in_specs=[_vmem()] * len(args),
        out_specs=_vmem(),
    )(*args)


# ------------------- pure-JAX reference for verification -------------------

def reference_forward(x_nchw, params):
    def conv(x, w, b):
        y = jax.lax.conv_general_dilated(
            x, w, window_strides=(1, 1), padding=((2, 2), (2, 2)),
            dimension_numbers=('NCHW', 'OIHW', 'NCHW'),
            precision=jax.lax.Precision.HIGHEST)
        return y + b[None, :, None, None]

    def bn(x, g, bt):
        mean = jnp.mean(x, axis=(0, 2, 3), keepdims=True)
        var = jnp.mean((x - mean) ** 2, axis=(0, 2, 3), keepdims=True)
        return (x - mean) / jnp.sqrt(var + BN_EPS) * g[None, :, None, None] \
            + bt[None, :, None, None]

    def pool(x):
        B, C, H, W = x.shape
        return jnp.max(x.reshape(B, C, H // 2, 2, W // 2, 2), axis=(3, 5))

    h = pool(jnp.maximum(bn(conv(x_nchw, params['w1'], params['b1']),
                            params['g1'], params['bt1']), 0.0))
    h = pool(jnp.maximum(bn(conv(h, params['w2'], params['b2']),
                            params['g2'], params['bt2']), 0.0))
    flat = h.reshape(h.shape[0], -1)
    return jnp.dot(flat, params['wfc'].T,
                   precision=jax.lax.Precision.HIGHEST) + params['bfc']


if __name__ == "__main__":
    key = jax.random.PRNGKey(0)
    keys = jax.random.split(key, 11)
    # Deterministic synthetic parameters (shapes match the PyTorch module).
    params = {
        'w1': 0.10 * jax.random.normal(keys[0], (16, 1, 5, 5), jnp.float32),
        'b1': 0.10 * jax.random.normal(keys[1], (16,), jnp.float32),
        'g1': 1.0 + 0.10 * jax.random.normal(keys[2], (16,), jnp.float32),
        'bt1': 0.10 * jax.random.normal(keys[3], (16,), jnp.float32),
        'w2': 0.05 * jax.random.normal(keys[4], (32, 16, 5, 5), jnp.float32),
        'b2': 0.10 * jax.random.normal(keys[5], (32,), jnp.float32),
        'g2': 1.0 + 0.10 * jax.random.normal(keys[6], (32,), jnp.float32),
        'bt2': 0.10 * jax.random.normal(keys[7], (32,), jnp.float32),
        'wfc': 0.05 * jax.random.normal(keys[8], (10, 7 * 7 * 32), jnp.float32),
        'bfc': 0.10 * jax.random.normal(keys[9], (10,), jnp.float32),
    }
    # fc expects 7*7*32 features => spatial must be 28x28 (FashionMNIST); B=2.
    x = jax.random.normal(keys[10], (2, 1, 28, 28), jnp.float32)

    out = jax.jit(fashion_mnist_cnn_forward)(x, params)
    out = jax.block_until_ready(out)
    assert out.shape == (2, 10) and out.dtype == jnp.float32

    ref = reference_forward(x, params)
    max_diff = float(jnp.max(jnp.abs(out - ref)))
    # bf16 MXU operands (conv2 / fc) => small numerical drift vs. the f32
    # HIGHEST-precision reference; any structural bug would produce O(1) error.
    assert jnp.allclose(out, ref, rtol=2e-2, atol=5e-2), \
        f"mismatch, max abs diff = {max_diff}"

    print("KERNEL_OK")
</pallas_src>

<mosaic_0001>
module attributes {stable_mosaic.version = 11 : i64} {
  func.func @_fused_forward_kernel(%arg0: memref<32x2x32xbf16, #tpu.memory_space<vmem>>, %arg1: memref<5x32x512xbf16, #tpu.memory_space<vmem>>, %arg2: memref<1x16xf32, #tpu.memory_space<vmem>>, %arg3: memref<1x16xf32, #tpu.memory_space<vmem>>, %arg4: memref<512x16xf32, #tpu.memory_space<vmem>>, %arg5: memref<5x288x512xbf16, #tpu.memory_space<vmem>>, %arg6: memref<1x32xf32, #tpu.memory_space<vmem>>, %arg7: memref<1x32xf32, #tpu.memory_space<vmem>>, %arg8: memref<512x32xf32, #tpu.memory_space<vmem>>, %arg9: memref<1792x10xbf16, #tpu.memory_space<vmem>>, %arg10: memref<1x10xf32, #tpu.memory_space<vmem>>, %arg11: memref<2x10xf32, #tpu.memory_space<vmem>>) attributes {dimension_semantics = [], scalar_prefetch = 0 : i64, scratch_operands = 0 : i64, tpu.core_type = #tpu.core_type<tc>} {
    %c0 = arith.constant 0 : index
    %c0_0 = arith.constant 0 : index
    %c0_1 = arith.constant 0 : index
    %0 = vector.load %arg0[%c0, %c0_0, %c0_1] : memref<32x2x32xbf16, #tpu.memory_space<vmem>>, vector<32x2x32xbf16>
    %cst = arith.constant 0.000000e+00 : f32
    %1 = vector.broadcast %cst : f32 to vector<56x512xf32>
    %2 = vector.extract_strided_slice %0 {offsets = [0, 0, 0], sizes = [28, 2, 32], strides = [1, 1, 1]} : vector<32x2x32xbf16> to vector<28x2x32xbf16>
    %3 = vector.shape_cast %2 : vector<28x2x32xbf16> to vector<56x32xbf16>
    %c0_2 = arith.constant 0 : index
    %c0_3 = arith.constant 0 : index
    %c0_4 = arith.constant 0 : index
    %4 = vector.load %arg1[%c0_2, %c0_3, %c0_4] : memref<5x32x512xbf16, #tpu.memory_space<vmem>>, vector<1x32x512xbf16>
    %5 = vector.shape_cast %4 : vector<1x32x512xbf16> to vector<32x512xbf16>
    %cst_5 = arith.constant dense<0.000000e+00> : vector<56x512xf32>
    %6 = tpu.matmul %3, %5, %cst_5 {dimension_numbers = #tpu.dot_dimension_numbers<[1], [0], [0], [1], [0, 0, 1, 1], [], []>} : vector<56x32xbf16>, vector<32x512xbf16>, vector<56x512xf32> -> vector<56x512xf32>
    %7 = arith.addf %1, %6 : vector<56x512xf32>
    %8 = vector.extract_strided_slice %0 {offsets = [1, 0, 0], sizes = [28, 2, 32], strides = [1, 1, 1]} : vector<32x2x32xbf16> to vector<28x2x32xbf16>
    %9 = vector.shape_cast %8 : vector<28x2x32xbf16> to vector<56x32xbf16>
    %c1 = arith.constant 1 : index
    %c0_6 = arith.constant 0 : index
    %c0_7 = arith.constant 0 : index
    %10 = vector.load %arg1[%c1, %c0_6, %c0_7] : memref<5x32x512xbf16, #tpu.memory_space<vmem>>, vector<1x32x512xbf16>
    %11 = vector.shape_cast %10 : vector<1x32x512xbf16> to vector<32x512xbf16>
    %cst_8 = arith.constant dense<0.000000e+00> : vector<56x512xf32>
    %12 = tpu.matmul %9, %11, %cst_8 {dimension_numbers = #tpu.dot_dimension_numbers<[1], [0], [0], [1], [0, 0, 1, 1], [], []>} : vector<56x32xbf16>, vector<32x512xbf16>, vector<56x512xf32> -> vector<56x512xf32>
    %13 = arith.addf %7, %12 : vector<56x512xf32>
    %14 = vector.extract_strided_slice %0 {offsets = [2, 0, 0], sizes = [28, 2, 32], strides = [1, 1, 1]} : vector<32x2x32xbf16> to vector<28x2x32xbf16>
    %15 = vector.shape_cast %14 : vector<28x2x32xbf16> to vector<56x32xbf16>
    %c2 = arith.constant 2 : index
    %c0_9 = arith.constant 0 : index
    %c0_10 = arith.constant 0 : index
    %16 = vector.load %arg1[%c2, %c0_9, %c0_10] : memref<5x32x512xbf16, #tpu.memory_space<vmem>>, vector<1x32x512xbf16>
    %17 = vector.shape_cast %16 : vector<1x32x512xbf16> to vector<32x512xbf16>
    %cst_11 = arith.constant dense<0.000000e+00> : vector<56x512xf32>
    %18 = tpu.matmul %15, %17, %cst_11 {dimension_numbers = #tpu.dot_dimension_numbers<[1], [0], [0], [1], [0, 0, 1, 1], [], []>} : vector<56x32xbf16>, vector<32x512xbf16>, vector<56x512xf32> -> vector<56x512xf32>
    %19 = arith.addf %13, %18 : vector<56x512xf32>
    %20 = vector.extract_strided_slice %0 {offsets = [3, 0, 0], sizes = [28, 2, 32], strides = [1, 1, 1]} : vector<32x2x32xbf16> to vector<28x2x32xbf16>
    %21 = vector.shape_cast %20 : vector<28x2x32xbf16> to vector<56x32xbf16>
    %c3 = arith.constant 3 : index
    %c0_12 = arith.constant 0 : index
    %c0_13 = arith.constant 0 : index
    %22 = vector.load %arg1[%c3, %c0_12, %c0_13] : memref<5x32x512xbf16, #tpu.memory_space<vmem>>, vector<1x32x512xbf16>
    %23 = vector.shape_cast %22 : vector<1x32x512xbf16> to vector<32x512xbf16>
    %cst_14 = arith.constant dense<0.000000e+00> : vector<56x512xf32>
    %24 = tpu.matmul %21, %23, %cst_14 {dimension_numbers = #tpu.dot_dimension_numbers<[1], [0], [0], [1], [0, 0, 1, 1], [], []>} : vector<56x32xbf16>, vector<32x512xbf16>, vector<56x512xf32> -> vector<56x512xf32>
    %25 = arith.addf %19, %24 : vector<56x512xf32>
    %26 = vector.extract_strided_slice %0 {offsets = [4, 0, 0], sizes = [28, 2, 32], strides = [1, 1, 1]} : vector<32x2x32xbf16> to vector<28x2x32xbf16>
    %27 = vector.shape_cast %26 : vector<28x2x32xbf16> to vector<56x32xbf16>
    %c4 = arith.constant 4 : index
    %c0_15 = arith.constant 0 : index
    %c0_16 = arith.constant 0 : index
    %28 = vector.load %arg1[%c4, %c0_15, %c0_16] : memref<5x32x512xbf16, #tpu.memory_space<vmem>>, vector<1x32x512xbf16>
    %29 = vector.shape_cast %28 : vector<1x32x512xbf16> to vector<32x512xbf16>
    %cst_17 = arith.constant dense<0.000000e+00> : vector<56x512xf32>
    %30 = tpu.matmul %27, %29, %cst_17 {dimension_numbers = #tpu.dot_dimension_numbers<[1], [0], [0], [1], [0, 0, 1, 1], [], []>} : vector<56x32xbf16>, vector<32x512xbf16>, vector<56x512xf32> -> vector<56x512xf32>
    %31 = arith.addf %25, %30 : vector<56x512xf32>
    %c0_18 = arith.constant 0 : index
    %c0_19 = arith.constant 0 : index
    %32 = vector.load %arg4[%c0_18, %c0_19] : memref<512x16xf32, #tpu.memory_space<vmem>>, vector<512x16xf32>
    %cst_20 = arith.constant dense<0.000000e+00> : vector<56x16xf32>
    %33 = tpu.matmul %31, %32, %cst_20 {dimension_numbers = #tpu.dot_dimension_numbers<[1], [0], [0], [1], [0, 0, 1, 1], [], []>} : vector<56x512xf32>, vector<512x16xf32>, vector<56x16xf32> -> vector<56x16xf32>
    %cst_21 = arith.constant dense<0.000000e+00> : vector<16xf32>
    %34 = vector.multi_reduction <add>, %33, %cst_21 [0] : vector<56x16xf32> to vector<16xf32>
    %35 = vector.shape_cast %34 : vector<16xf32> to vector<1x16xf32>
    %36 = arith.mulf %31, %31 : vector<56x512xf32>
    %cst_22 = arith.constant dense<0.000000e+00> : vector<56x16xf32>
    %37 = tpu.matmul %36, %32, %cst_22 {dimension_numbers = #tpu.dot_dimension_numbers<[1], [0], [0], [1], [0, 0, 1, 1], [], []>} : vector<56x512xf32>, vector<512x16xf32>, vector<56x16xf32> -> vector<56x16xf32>
    %cst_23 = arith.constant dense<0.000000e+00> : vector<16xf32>
    %38 = vector.multi_reduction <add>, %37, %cst_23 [0] : vector<56x16xf32> to vector<16xf32>
    %39 = vector.shape_cast %38 : vector<16xf32> to vector<1x16xf32>
    %cst_24 = arith.constant 1.568000e+03 : f32
    %40 = vector.broadcast %cst_24 : f32 to vector<1x16xf32>
    %41 = arith.divf %35, %40 : vector<1x16xf32>
    %cst_25 = arith.constant 1.568000e+03 : f32
    %42 = vector.broadcast %cst_25 : f32 to vector<1x16xf32>
    %43 = arith.divf %39, %42 : vector<1x16xf32>
    %44 = arith.mulf %41, %41 : vector<1x16xf32>
    %45 = arith.subf %43, %44 : vector<1x16xf32>
    %cst_26 = arith.constant 9.99999974E-6 : f32
    %46 = vector.broadcast %cst_26 : f32 to vector<1x16xf32>
    %47 = arith.addf %45, %46 : vector<1x16xf32>
    %48 = math.rsqrt %47 : vector<1x16xf32>
    %c0_27 = arith.constant 0 : index
    %c0_28 = arith.constant 0 : index
    %49 = vector.load %arg2[%c0_27, %c0_28] : memref<1x16xf32, #tpu.memory_space<vmem>>, vector<1x16xf32>
    %50 = arith.mulf %48, %49 : vector<1x16xf32>
    %c0_29 = arith.constant 0 : index
    %c0_30 = arith.constant 0 : index
    %51 = vector.load %arg3[%c0_29, %c0_30] : memref<1x16xf32, #tpu.memory_space<vmem>>, vector<1x16xf32>
    %52 = arith.mulf %41, %50 : vector<1x16xf32>
    %53 = arith.subf %51, %52 : vector<1x16xf32>
    %cst_31 = arith.constant 0.000000e+00 : f32
    %54 = vector.broadcast %cst_31 : f32 to vector<1x16xf32>
    %55 = tpu.concatenate %50, %50, %50, %50, %50, %50, %50, %54 in 1 : vector<1x16xf32>, vector<1x16xf32>, vector<1x16xf32>, vector<1x16xf32>, vector<1x16xf32>, vector<1x16xf32>, vector<1x16xf32>, vector<1x16xf32> -> vector<1x128xf32>
    %56 = tpu.concatenate %53, %53, %53, %53, %53, %53, %53, %54 in 1 : vector<1x16xf32>, vector<1x16xf32>, vector<1x16xf32>, vector<1x16xf32>, vector<1x16xf32>, vector<1x16xf32>, vector<1x16xf32>, vector<1x16xf32> -> vector<1x128xf32>
    %57 = tpu.concatenate %55, %55, %55, %55 in 1 : vector<1x128xf32>, vector<1x128xf32>, vector<1x128xf32>, vector<1x128xf32> -> vector<1x512xf32>
    %58 = tpu.concatenate %56, %56, %56, %56 in 1 : vector<1x128xf32>, vector<1x128xf32>, vector<1x128xf32>, vector<1x128xf32> -> vector<1x512xf32>
    %59 = vector.broadcast %57 : vector<1x512xf32> to vector<56x512xf32>
    %60 = arith.mulf %31, %59 : vector<56x512xf32>
    %61 = vector.broadcast %58 : vector<1x512xf32> to vector<56x512xf32>
    %62 = arith.addf %60, %61 : vector<56x512xf32>
    %cst_32 = arith.constant 0.000000e+00 : f32
    %63 = vector.broadcast %cst_32 : f32 to vector<56x512xf32>
    %64 = arith.maximumf %62, %63 : vector<56x512xf32>
    %65 = vector.extract_strided_slice %64 {offsets = [0, 0], sizes = [56, 128], strides = [1, 1]} : vector<56x512xf32> to vector<56x128xf32>
    %66 = vector.extract_strided_slice %64 {offsets = [0, 128], sizes = [56, 128], strides = [1, 1]} : vector<56x512xf32> to vector<56x128xf32>
    %67 = arith.maximumf %65, %66 : vector<56x128xf32>
    %68 = vector.extract_strided_slice %64 {offsets = [0, 256], sizes = [56, 128], strides = [1, 1]} : vector<56x512xf32> to vector<56x128xf32>
    %69 = vector.extract_strided_slice %64 {offsets = [0, 384], sizes = [56, 128], strides = [1, 1]} : vector<56x512xf32> to vector<56x128xf32>
    %70 = arith.maximumf %68, %69 : vector<56x128xf32>
    %71 = vector.shape_cast %67 : vector<56x128xf32> to vector<14x2x2x128xf32>
    %cst_33 = arith.constant dense<0xFF800000> : vector<14x2x128xf32>
    %72 = vector.multi_reduction <maximumf>, %71, %cst_33 [1] : vector<14x2x2x128xf32> to vector<14x2x128xf32>
    %73 = vector.shape_cast %70 : vector<56x128xf32> to vector<14x2x2x128xf32>
    %cst_34 = arith.constant dense<0xFF800000> : vector<14x2x128xf32>
    %74 = vector.multi_reduction <maximumf>, %73, %cst_34 [1] : vector<14x2x2x128xf32> to vector<14x2x128xf32>
    %cst_35 = arith.constant 0.000000e+00 : f32
    %75 = vector.broadcast %cst_35 : f32 to vector<14x2x16xf32>
    %76 = tpu.concatenate %75, %72, %75, %74 in 2 : vector<14x2x16xf32>, vector<14x2x128xf32>, vector<14x2x16xf32>, vector<14x2x128xf32> -> vector<14x2x288xf32>
    %cst_36 = arith.constant 0.000000e+00 : f32
    %77 = vector.broadcast %cst_36 : f32 to vector<2x2x288xf32>
    %78 = tpu.concatenate %77, %76, %77 in 0 : vector<2x2x288xf32>, vector<14x2x288xf32>, vector<2x2x288xf32> -> vector<18x2x288xf32>
    %79 = arith.truncf %78 : vector<18x2x288xf32> to vector<18x2x288xbf16>
    %cst_37 = arith.constant 0.000000e+00 : f32
    %80 = vector.broadcast %cst_37 : f32 to vector<28x512xf32>
    %81 = vector.extract_strided_slice %79 {offsets = [0, 0, 0], sizes = [14, 2, 288], strides = [1, 1, 1]} : vector<18x2x288xbf16> to vector<14x2x288xbf16>
    %82 = vector.shape_cast %81 : vector<14x2x288xbf16> to vector<28x288xbf16>
    %c0_38 = arith.constant 0 : index
    %c0_39 = arith.constant 0 : index
    %c0_40 = arith.constant 0 : index
    %83 = vector.load %arg5[%c0_38, %c0_39, %c0_40] : memref<5x288x512xbf16, #tpu.memory_space<vmem>>, vector<1x288x512xbf16>
    %84 = vector.shape_cast %83 : vector<1x288x512xbf16> to vector<288x512xbf16>
    %cst_41 = arith.constant dense<0.000000e+00> : vector<28x512xf32>
    %85 = tpu.matmul %82, %84, %cst_41 {dimension_numbers = #tpu.dot_dimension_numbers<[1], [0], [0], [1], [0, 0, 1, 1], [], []>} : vector<28x288xbf16>, vector<288x512xbf16>, vector<28x512xf32> -> vector<28x512xf32>
    %86 = arith.addf %80, %85 : vector<28x512xf32>
    %87 = vector.extract_strided_slice %79 {offsets = [1, 0, 0], sizes = [14, 2, 288], strides = [1, 1, 1]} : vector<18x2x288xbf16> to vector<14x2x288xbf16>
    %88 = vector.shape_cast %87 : vector<14x2x288xbf16> to vector<28x288xbf16>
    %c1_42 = arith.constant 1 : index
    %c0_43 = arith.constant 0 : index
    %c0_44 = arith.constant 0 : index
    %89 = vector.load %arg5[%c1_42, %c0_43, %c0_44] : memref<5x288x512xbf16, #tpu.memory_space<vmem>>, vector<1x288x512xbf16>
    %90 = vector.shape_cast %89 : vector<1x288x512xbf16> to vector<288x512xbf16>
    %cst_45 = arith.constant dense<0.000000e+00> : vector<28x512xf32>
    %91 = tpu.matmul %88, %90, %cst_45 {dimension_numbers = #tpu.dot_dimension_numbers<[1], [0], [0], [1], [0, 0, 1, 1], [], []>} : vector<28x288xbf16>, vector<288x512xbf16>, vector<28x512xf32> -> vector<28x512xf32>
    %92 = arith.addf %86, %91 : vector<28x512xf32>
    %93 = vector.extract_strided_slice %79 {offsets = [2, 0, 0], sizes = [14, 2, 288], strides = [1, 1, 1]} : vector<18x2x288xbf16> to vector<14x2x288xbf16>
    %94 = vector.shape_cast %93 : vector<14x2x288xbf16> to vector<28x288xbf16>
    %c2_46 = arith.constant 2 : index
    %c0_47 = arith.constant 0 : index
    %c0_48 = arith.constant 0 : index
    %95 = vector.load %arg5[%c2_46, %c0_47, %c0_48] : memref<5x288x512xbf16, #tpu.memory_space<vmem>>, vector<1x288x512xbf16>
    %96 = vector.shape_cast %95 : vector<1x288x512xbf16> to vector<288x512xbf16>
    %cst_49 = arith.constant dense<0.000000e+00> : vector<28x512xf32>
    %97 = tpu.matmul %94, %96, %cst_49 {dimension_numbers = #tpu.dot_dimension_numbers<[1], [0], [0], [1], [0, 0, 1, 1], [], []>} : vector<28x288xbf16>, vector<288x512xbf16>, vector<28x512xf32> -> vector<28x512xf32>
    %98 = arith.addf %92, %97 : vector<28x512xf32>
    %99 = vector.extract_strided_slice %79 {offsets = [3, 0, 0], sizes = [14, 2, 288], strides = [1, 1, 1]} : vector<18x2x288xbf16> to vector<14x2x288xbf16>
    %100 = vector.shape_cast %99 : vector<14x2x288xbf16> to vector<28x288xbf16>
    %c3_50 = arith.constant 3 : index
    %c0_51 = arith.constant 0 : index
    %c0_52 = arith.constant 0 : index
    %101 = vector.load %arg5[%c3_50, %c0_51, %c0_52] : memref<5x288x512xbf16, #tpu.memory_space<vmem>>, vector<1x288x512xbf16>
    %102 = vector.shape_cast %101 : vector<1x288x512xbf16> to vector<288x512xbf16>
    %cst_53 = arith.constant dense<0.000000e+00> : vector<28x512xf32>
    %103 = tpu.matmul %100, %102, %cst_53 {dimension_numbers = #tpu.dot_dimension_numbers<[1], [0], [0], [1], [0, 0, 1, 1], [], []>} : vector<28x288xbf16>, vector<288x512xbf16>, vector<28x512xf32> -> vector<28x512xf32>
    %104 = arith.addf %98, %103 : vector<28x512xf32>
    %105 = vector.extract_strided_slice %79 {offsets = [4, 0, 0], sizes = [14, 2, 288], strides = [1, 1, 1]} : vector<18x2x288xbf16> to vector<14x2x288xbf16>
    %106 = vector.shape_cast %105 : vector<14x2x288xbf16> to vector<28x288xbf16>
    %c4_54 = arith.constant 4 : index
    %c0_55 = arith.constant 0 : index
    %c0_56 = arith.constant 0 : index
    %107 = vector.load %arg5[%c4_54, %c0_55, %c0_56] : memref<5x288x512xbf16, #tpu.memory_space<vmem>>, vector<1x288x512xbf16>
    %108 = vector.shape_cast %107 : vector<1x288x512xbf16> to vector<288x512xbf16>
    %cst_57 = arith.constant dense<0.000000e+00> : vector<28x512xf32>
    %109 = tpu.matmul %106, %108, %cst_57 {dimension_numbers = #tpu.dot_dimension_numbers<[1], [0], [0], [1], [0, 0, 1, 1], [], []>} : vector<28x288xbf16>, vector<288x512xbf16>, vector<28x512xf32> -> vector<28x512xf32>
    %110 = arith.addf %104, %109 : vector<28x512xf32>
    %c0_58 = arith.constant 0 : index
    %c0_59 = arith.constant 0 : index
    %111 = vector.load %arg8[%c0_58, %c0_59] : memref<512x32xf32, #tpu.memory_space<vmem>>, vector<512x32xf32>
    %cst_60 = arith.constant dense<0.000000e+00> : vector<28x32xf32>
    %112 = tpu.matmul %110, %111, %cst_60 {dimension_numbers = #tpu.dot_dimension_numbers<[1], [0], [0], [1], [0, 0, 1, 1], [], []>} : vector<28x512xf32>, vector<512x32xf32>, vector<28x32xf32> -> vector<28x32xf32>
    %cst_61 = arith.constant dense<0.000000e+00> : vector<32xf32>
    %113 = vector.multi_reduction <add>, %112, %cst_61 [0] : vector<28x32xf32> to vector<32xf32>
    %114 = vector.shape_cast %113 : vector<32xf32> to vector<1x32xf32>
    %115 = arith.mulf %110, %110 : vector<28x512xf32>
    %cst_62 = arith.constant dense<0.000000e+00> : vector<28x32xf32>
    %116 = tpu.matmul %115, %111, %cst_62 {dimension_numbers = #tpu.dot_dimension_numbers<[1], [0], [0], [1], [0, 0, 1, 1], [], []>} : vector<28x512xf32>, vector<512x32xf32>, vector<28x32xf32> -> vector<28x32xf32>
    %cst_63 = arith.constant dense<0.000000e+00> : vector<32xf32>
    %117 = vector.multi_reduction <add>, %116, %cst_63 [0] : vector<28x32xf32> to vector<32xf32>
    %118 = vector.shape_cast %117 : vector<32xf32> to vector<1x32xf32>
    %cst_64 = arith.constant 3.920000e+02 : f32
    %119 = vector.broadcast %cst_64 : f32 to vector<1x32xf32>
    %120 = arith.divf %114, %119 : vector<1x32xf32>
    %cst_65 = arith.constant 3.920000e+02 : f32
    %121 = vector.broadcast %cst_65 : f32 to vector<1x32xf32>
    %122 = arith.divf %118, %121 : vector<1x32xf32>
    %123 = arith.mulf %120, %120 : vector<1x32xf32>
    %124 = arith.subf %122, %123 : vector<1x32xf32>
    %cst_66 = arith.constant 9.99999974E-6 : f32
    %125 = vector.broadcast %cst_66 : f32 to vector<1x32xf32>
    %126 = arith.addf %124, %125 : vector<1x32xf32>
    %127 = math.rsqrt %126 : vector<1x32xf32>
    %c0_67 = arith.constant 0 : index
    %c0_68 = arith.constant 0 : index
    %128 = vector.load %arg6[%c0_67, %c0_68] : memref<1x32xf32, #tpu.memory_space<vmem>>, vector<1x32xf32>
    %129 = arith.mulf %127, %128 : vector<1x32xf32>
    %c0_69 = arith.constant 0 : index
    %c0_70 = arith.constant 0 : index
    %130 = vector.load %arg7[%c0_69, %c0_70] : memref<1x32xf32, #tpu.memory_space<vmem>>, vector<1x32xf32>
    %131 = arith.mulf %120, %129 : vector<1x32xf32>
    %132 = arith.subf %130, %131 : vector<1x32xf32>
    %cst_71 = arith.constant 0.000000e+00 : f32
    %133 = vector.broadcast %cst_71 : f32 to vector<1x32xf32>
    %134 = tpu.concatenate %129, %129, %129, %129, %129, %129, %129, %133 in 1 : vector<1x32xf32>, vector<1x32xf32>, vector<1x32xf32>, vector<1x32xf32>, vector<1x32xf32>, vector<1x32xf32>, vector<1x32xf32>, vector<1x32xf32> -> vector<1x256xf32>
    %135 = tpu.concatenate %132, %132, %132, %132, %132, %132, %132, %133 in 1 : vector<1x32xf32>, vector<1x32xf32>, vector<1x32xf32>, vector<1x32xf32>, vector<1x32xf32>, vector<1x32xf32>, vector<1x32xf32>, vector<1x32xf32> -> vector<1x256xf32>
    %136 = tpu.concatenate %134, %134 in 1 : vector<1x256xf32>, vector<1x256xf32> -> vector<1x512xf32>
    %137 = tpu.concatenate %135, %135 in 1 : vector<1x256xf32>, vector<1x256xf32> -> vector<1x512xf32>
    %138 = vector.broadcast %136 : vector<1x512xf32> to vector<28x512xf32>
    %139 = arith.mulf %110, %138 : vector<28x512xf32>
    %140 = vector.broadcast %137 : vector<1x512xf32> to vector<28x512xf32>
    %141 = arith.addf %139, %140 : vector<28x512xf32>
    %cst_72 = arith.constant 0.000000e+00 : f32
    %142 = vector.broadcast %cst_72 : f32 to vector<28x512xf32>
    %143 = arith.maximumf %141, %142 : vector<28x512xf32>
    %144 = vector.extract_strided_slice %143 {offsets = [0, 0], sizes = [28, 256], strides = [1, 1]} : vector<28x512xf32> to vector<28x256xf32>
    %145 = vector.extract_strided_slice %143 {offsets = [0, 256], sizes = [28, 256], strides = [1, 1]} : vector<28x512xf32> to vector<28x256xf32>
    %146 = arith.maximumf %144, %145 : vector<28x256xf32>
    %147 = vector.shape_cast %146 : vector<28x256xf32> to vector<7x2x2x256xf32>
    %cst_73 = arith.constant dense<0xFF800000> : vector<7x2x256xf32>
    %148 = vector.multi_reduction <maximumf>, %147, %cst_73 [1] : vector<7x2x2x256xf32> to vector<7x2x256xf32>
    %149 = vector.extract_strided_slice %148 {offsets = [0, 0, 0], sizes = [1, 2, 256], strides = [1, 1, 1]} : vector<7x2x256xf32> to vector<1x2x256xf32>
    %150 = vector.shape_cast %149 : vector<1x2x256xf32> to vector<2x256xf32>
    %151 = vector.extract_strided_slice %148 {offsets = [1, 0, 0], sizes = [1, 2, 256], strides = [1, 1, 1]} : vector<7x2x256xf32> to vector<1x2x256xf32>
    %152 = vector.shape_cast %151 : vector<1x2x256xf32> to vector<2x256xf32>
    %153 = vector.extract_strided_slice %148 {offsets = [2, 0, 0], sizes = [1, 2, 256], strides = [1, 1, 1]} : vector<7x2x256xf32> to vector<1x2x256xf32>
    %154 = vector.shape_cast %153 : vector<1x2x256xf32> to vector<2x256xf32>
    %155 = vector.extract_strided_slice %148 {offsets = [3, 0, 0], sizes = [1, 2, 256], strides = [1, 1, 1]} : vector<7x2x256xf32> to vector<1x2x256xf32>
    %156 = vector.shape_cast %155 : vector<1x2x256xf32> to vector<2x256xf32>
    %157 = vector.extract_strided_slice %148 {offsets = [4, 0, 0], sizes = [1, 2, 256], strides = [1, 1, 1]} : vector<7x2x256xf32> to vector<1x2x256xf32>
    %158 = vector.shape_cast %157 : vector<1x2x256xf32> to vector<2x256xf32>
    %159 = vector.extract_strided_slice %148 {offsets = [5, 0, 0], sizes = [1, 2, 256], strides = [1, 1, 1]} : vector<7x2x256xf32> to vector<1x2x256xf32>
    %160 = vector.shape_cast %159 : vector<1x2x256xf32> to vector<2x256xf32>
    %161 = vector.extract_strided_slice %148 {offsets = [6, 0, 0], sizes = [1, 2, 256], strides = [1, 1, 1]} : vector<7x2x256xf32> to vector<1x2x256xf32>
    %162 = vector.shape_cast %161 : vector<1x2x256xf32> to vector<2x256xf32>
    %163 = tpu.concatenate %150, %152, %154, %156, %158, %160, %162 in 1 : vector<2x256xf32>, vector<2x256xf32>, vector<2x256xf32>, vector<2x256xf32>, vector<2x256xf32>, vector<2x256xf32>, vector<2x256xf32> -> vector<2x1792xf32>
    %164 = arith.truncf %163 : vector<2x1792xf32> to vector<2x1792xbf16>
    %c0_74 = arith.constant 0 : index
    %c0_75 = arith.constant 0 : index
    %165 = vector.load %arg9[%c0_74, %c0_75] : memref<1792x10xbf16, #tpu.memory_space<vmem>>, vector<1792x10xbf16>
    %cst_76 = arith.constant dense<0.000000e+00> : vector<2x10xf32>
    %166 = tpu.matmul %164, %165, %cst_76 {dimension_numbers = #tpu.dot_dimension_numbers<[1], [0], [0], [1], [0, 0, 1, 1], [], []>} : vector<2x1792xbf16>, vector<1792x10xbf16>, vector<2x10xf32> -> vector<2x10xf32>
    %c0_77 = arith.constant 0 : index
    %c0_78 = arith.constant 0 : index
    %167 = vector.load %arg10[%c0_77, %c0_78] : memref<1x10xf32, #tpu.memory_space<vmem>>, vector<1x10xf32>
    %168 = vector.broadcast %167 : vector<1x10xf32> to vector<2x10xf32>
    %169 = arith.addf %166, %168 : vector<2x10xf32>
    %c0_79 = arith.constant 0 : index
    %c0_80 = arith.constant 0 : index
    %170 = vector.load %arg11[%c0_79, %c0_80] : memref<2x10xf32, #tpu.memory_space<vmem>>, vector<2x10xf32>
    tpu.vector_store %arg11[%c0_79, %c0_80], %169 {strides = array<i32>} : memref<2x10xf32, #tpu.memory_space<vmem>>, vector<2x10xf32>,
    return
  }
}

</mosaic_0001>

<llo_original>
// kernel: fashion_mnist_cnn_forward.1
$region0: #{fashion_mnist_cnn_forward.1}
  #allocation0 [shape = 'u32[]', space=smem, size = 0x4, offset = 0x4, fixed_abs, tag = 'smem constant byte address 0x4 - core index']
  #allocation1 [shape = 'u32[144,128]{1,0:T(1,128)}', space=vmem, size = 0x12000, scoped, tag = 'internal scratch']
  %s0 = inlined_call_operand.vmem [shape: bf16[32,2,32], index: 0, kind: input, shape index: {}]
  %s1 = inlined_call_operand.vmem [shape: bf16[5,32,512], index: 1, kind: input, shape index: {}]
  %s2 = inlined_call_operand.vmem [shape: f32[1,16], index: 2, kind: input, shape index: {}]
  %s3 = inlined_call_operand.vmem [shape: f32[1,16], index: 3, kind: input, shape index: {}]
  %s4 = inlined_call_operand.vmem [shape: f32[512,16], index: 4, kind: input, shape index: {}]
  %s5 = inlined_call_operand.vmem [shape: bf16[5,288,512], index: 5, kind: input, shape index: {}]
  %s6 = inlined_call_operand.vmem [shape: f32[1,32], index: 6, kind: input, shape index: {}]
  %s7 = inlined_call_operand.vmem [shape: f32[1,32], index: 7, kind: input, shape index: {}]
  %s8 = inlined_call_operand.vmem [shape: f32[512,32], index: 8, kind: input, shape index: {}]
  %s9 = inlined_call_operand.vmem [shape: bf16[1792,10], index: 9, kind: input, shape index: {}]
  %s10 = inlined_call_operand.vmem [shape: f32[1,10], index: 10, kind: input, shape index: {}]
  %s11 = inlined_call_operand.hbm [shape: f32[2,10], index: 11, kind: output, shape index: {}]
  %s12 = sld [smem:[#allocation0]]
  $region54: #{fashion_mnist_cnn_forward.1} parent=0
    _
  %s14 = ssub.s32 1, %s12
  %s15 = scalar_select 0, %s14, %s12
  $region1: #{fashion_mnist_cnn_forward.1} parent=0
    #allocation2 [shape = 'u8[1024]{0}', space=vmem, size = 0x400, scoped, tag = 'output window, operand 0, single buffered']
    #allocation3 [shape = 's32[1]{0}', space=sflag, size = 0x4, scoped, tag = 'scoped memory for fashion_mnist_cnn_forward.1']
    %16 = vsyncpa [#allocation3], 0
    // Predicated region
    $region2: #{fashion_mnist_cnn_forward.1} parent=1 // pred_check
      _
    $region3: #{fashion_mnist_cnn_forward.1} parent=1 // pred_check_branch
      %18 = sbr.rel (0) target = $region5
    $region4: #{fashion_mnist_cnn_forward.1} parent=1 // pred_region
      _
    $region5: #{fashion_mnist_cnn_forward.1} parent=1 // pred_fallthru
      _
    // Predicated region
    $region6: #{fashion_mnist_cnn_forward.1} parent=1 // pred_check
      _
    $region7: #{fashion_mnist_cnn_forward.1} parent=1 // pred_check_branch
      %20 = sbr.rel (0) target = $region9
    $region8: #{fashion_mnist_cnn_forward.1} parent=1 // pred_region
      _
    $region9: #{fashion_mnist_cnn_forward.1} parent=1 // pred_fallthru
      _
    // Predicated region
    $region10: #{fashion_mnist_cnn_forward.1} parent=1 // pred_check
      _
    $region11: #{fashion_mnist_cnn_forward.1} parent=1 // pred_check_branch
      %22 = sbr.rel (0) target = $region13
    $region12: #{fashion_mnist_cnn_forward.1} parent=1 // pred_region
      _
    $region13: #{fashion_mnist_cnn_forward.1} parent=1 // pred_fallthru
      _
    // Predicated region
    $region14: #{fashion_mnist_cnn_forward.1} parent=1 // pred_check
      _
    $region15: #{fashion_mnist_cnn_forward.1} parent=1 // pred_check_branch
      %24 = sbr.rel (0) target = $region17
    $region16: #{fashion_mnist_cnn_forward.1} parent=1 // pred_region
      _
    $region17: #{fashion_mnist_cnn_forward.1} parent=1 // pred_fallthru
      _
    // Predicated region
    $region18: #{fashion_mnist_cnn_forward.1} parent=1 // pred_check
      _
    $region19: #{fashion_mnist_cnn_forward.1} parent=1 // pred_check_branch
      %26 = sbr.rel (0) target = $region21
    $region20: #{fashion_mnist_cnn_forward.1} parent=1 // pred_region
      _
    $region21: #{fashion_mnist_cnn_forward.1} parent=1 // pred_fallthru
      _
    // Predicated region
    $region22: #{fashion_mnist_cnn_forward.1} parent=1 // pred_check
      _
    $region23: #{fashion_mnist_cnn_forward.1} parent=1 // pred_check_branch
      %28 = sbr.rel (0) target = $region25
    $region24: #{fashion_mnist_cnn_forward.1} parent=1 // pred_region
      _
    $region25: #{fashion_mnist_cnn_forward.1} parent=1 // pred_fallthru
      _
    // Predicated region
    $region26: #{fashion_mnist_cnn_forward.1} parent=1 // pred_check
      _
    $region27: #{fashion_mnist_cnn_forward.1} parent=1 // pred_check_branch
      %30 = sbr.rel (0) target = $region29
    $region28: #{fashion_mnist_cnn_forward.1} parent=1 // pred_region
      _
    $region29: #{fashion_mnist_cnn_forward.1} parent=1 // pred_fallthru
      _
    // Predicated region
    $region30: #{fashion_mnist_cnn_forward.1} parent=1 // pred_check
      _
    $region31: #{fashion_mnist_cnn_forward.1} parent=1 // pred_check_branch
      %32 = sbr.rel (0) target = $region33
    $region32: #{fashion_mnist_cnn_forward.1} parent=1 // pred_region
      _
    $region33: #{fashion_mnist_cnn_forward.1} parent=1 // pred_fallthru
      _
    // Predicated region
    $region34: #{fashion_mnist_cnn_forward.1} parent=1 // pred_check
      _
    $region35: #{fashion_mnist_cnn_forward.1} parent=1 // pred_check_branch
      %34 = sbr.rel (0) target = $region37
    $region36: #{fashion_mnist_cnn_forward.1} parent=1 // pred_region
      _
    $region37: #{fashion_mnist_cnn_forward.1} parent=1 // pred_fallthru
      _
    // Predicated region
    $region38: #{fashion_mnist_cnn_forward.1} parent=1 // pred_check
      _
    $region39: #{fashion_mnist_cnn_forward.1} parent=1 // pred_check_branch
      %36 = sbr.rel (0) target = $region41
    $region40: #{fashion_mnist_cnn_forward.1} parent=1 // pred_region
      _
    $region41: #{fashion_mnist_cnn_forward.1} parent=1 // pred_fallthru
      _
    // Predicated region
    $region42: #{fashion_mnist_cnn_forward.1} parent=1 // pred_check
      _
    $region43: #{fashion_mnist_cnn_forward.1} parent=1 // pred_check_branch
      %38 = sbr.rel (0) target = $region45
    $region44: #{fashion_mnist_cnn_forward.1} parent=1 // pred_region
      _
    $region45: #{fashion_mnist_cnn_forward.1} parent=1 // pred_fallthru
      _
    %v40 = vld [vmem:[%s0] sm:$0x1]
    %v41 = vld [vmem:[%s0 + $0x1] sm:$0x1]
    %v42 = vld [vmem:[%s0 + $0x2] sm:$0x1]
    %v43 = vld [vmem:[%s0 + $0x3] sm:$0x1]
    %v44 = vld [vmem:[%s0 + $0x4] sm:$0x1]
    %v45 = vld [vmem:[%s0 + $0x5] sm:$0x1]
    %v46 = vld [vmem:[%s0 + $0x6] sm:$0x1]
    %v47 = vld [vmem:[%s0 + $0x7] sm:$0x1]
    %v48 = vld [vmem:[%s0 + $0x8] sm:$0x1]
    %v49 = vld [vmem:[%s0 + $0x9] sm:$0x1]
    %v50 = vld [vmem:[%s0 + $0xa] sm:$0x1]
    %v51 = vld [vmem:[%s0 + $0xb] sm:$0x1]
    %v52 = vld [vmem:[%s0 + $0xc] sm:$0x1]
    %v53 = vld [vmem:[%s0 + $0xd] sm:$0x1]
    %v54 = vld [vmem:[%s0 + $0xe] sm:$0x1]
    %v55 = vld [vmem:[%s0 + $0xf] sm:$0x1]
    %v56 = vld [vmem:[%s0 + $0x10] sm:$0x1]
    %v57 = vld [vmem:[%s0 + $0x11] sm:$0x1]
    %v58 = vld [vmem:[%s0 + $0x12] sm:$0x1]
    %v59 = vld [vmem:[%s0 + $0x13] sm:$0x1]
    %v60 = vld [vmem:[%s0 + $0x14] sm:$0x1]
    %v61 = vld [vmem:[%s0 + $0x15] sm:$0x1]
    %v62 = vld [vmem:[%s0 + $0x16] sm:$0x1]
    %v63 = vld [vmem:[%s0 + $0x17] sm:$0x1]
    %v64 = vld [vmem:[%s0 + $0x18] sm:$0x1]
    %v65 = vld [vmem:[%s0 + $0x19] sm:$0x1]
    %v66 = vld [vmem:[%s0 + $0x1a] sm:$0x1]
    %v67 = vld [vmem:[%s0 + $0x1b] sm:$0x1]
    %v68 = vld [vmem:[%s0 + $0x1c] sm:$0x1]
    %v69 = vld [vmem:[%s0 + $0x1d] sm:$0x1]
    %v70 = vld [vmem:[%s0 + $0x1e] sm:$0x1]
    %v71 = vld [vmem:[%s0 + $0x1f] sm:$0x1]
    %v72 = vld [vmem:[%s1] sm:$0xff]
    %v73 = vld [vmem:[%s1 + $0x8] sm:$0xff]
    %v74 = vld [vmem:[%s1 + $0x10] sm:$0xff]
    %v75 = vld [vmem:[%s1 + $0x18] sm:$0xff]
    %v76 = vld [vmem:[%s1 + $0x20] sm:$0xff]
    %v77 = vld [vmem:[%s1 + $0x28] sm:$0xff]
    %v78 = vld [vmem:[%s1 + $0x30] sm:$0xff]
    %v79 = vld [vmem:[%s1 + $0x38] sm:$0xff]
    %s80 = scalar_lea.vmem %s1, 64
    %v81 = vld [vmem:[%s80] sm:$0xff]
    %v82 = vld [vmem:[%s80 + $0x8] sm:$0xff]
    %v83 = vld [vmem:[%s80 + $0x10] sm:$0xff]
    %v84 = vld [vmem:[%s80 + $0x18] sm:$0xff]
    %v85 = vld [vmem:[%s80 + $0x20] sm:$0xff]
    %v86 = vld [vmem:[%s80 + $0x28] sm:$0xff]
    %v87 = vld [vmem:[%s80 + $0x30] sm:$0xff]
    %v88 = vld [vmem:[%s80 + $0x38] sm:$0xff]
    %v117 = vcombine.low %v41, %v42
    %v118 = vcombine.low %v43, %v44
    %v119 = vcombine.low %v45, %v46
    %v120 = vcombine.low %v47, %v48
    %v122 = vunpack.c.l.s4 1966171168
    %v123 = vunpack.c.0.s8 %v122
    %v124 = vlaneseq
    %v125 = vshrl.u32 %v124, 7
    %v126 = vsub.s32 %v123, %v125
    %v127 = vrot.slane %v117, %v126
    %v129 = vunpack.c.l.s4 1966171168
    %v130 = vunpack.c.0.s8 %v129
    %v131 = vlaneseq
    %v132 = vshrl.u32 %v131, 7
    %v133 = vsub.s32 %v130, %v132
    %v134 = vrot.slane %v118, %v133
    %v136 = vunpack.c.l.s4 1966171168
    %v137 = vunpack.c.0.s8 %v136
    %v138 = vlaneseq
    %v139 = vshrl.u32 %v138, 7
    %v140 = vsub.s32 %v137, %v139
    %v141 = vrot.slane %v119, %v140
    %v143 = vunpack.c.l.s4 1966171168
    %v144 = vunpack.c.0.s8 %v143
    %v145 = vlaneseq
    %v146 = vshrl.u32 %v145, 7
    %v147 = vsub.s32 %v144, %v146
    %v148 = vrot.slane %v120, %v147
    %v149 = vcombine.low %v127, %v134
    %v150 = vcombine.low %v141, %v148
    %v152 = vunpack.c.l.s4 1966171168
    %v153 = vunpack.c.0.s8 %v152
    %v154 = vlaneseq
    %v155 = vshrl.u32 %v154, 7
    %v156 = vsub.s32 %v153, %v155
    %v157 = vrot.slane %v149, %v156
    %v159 = vunpack.c.l.s4 1966171168
    %v160 = vunpack.c.0.s8 %v159
    %v161 = vlaneseq
    %v162 = vshrl.u32 %v161, 7
    %v163 = vsub.s32 %v160, %v162
    %v164 = vrot.slane %v150, %v163
    %v165 = vcombine.low %v157, %v164
    %v166 = vcombine.low %v49, %v50
    %v167 = vcombine.low %v51, %v52
    %v168 = vcombine.low %v53, %v54
    %v169 = vcombine.low %v55, %v56
    %v171 = vunpack.c.l.s4 1966171168
    %v172 = vunpack.c.0.s8 %v171
    %v173 = vlaneseq
    %v174 = vshrl.u32 %v173, 7
    %v175 = vsub.s32 %v172, %v174
    %v176 = vrot.slane %v166, %v175
    %v178 = vunpack.c.l.s4 1966171168
    %v179 = vunpack.c.0.s8 %v178
    %v180 = vlaneseq
    %v181 = vshrl.u32 %v180, 7
    %v182 = vsub.s32 %v179, %v181
    %v183 = vrot.slane %v167, %v182
    %v185 = vunpack.c.l.s4 1966171168
    %v186 = vunpack.c.0.s8 %v185
    %v187 = vlaneseq
    %v188 = vshrl.u32 %v187, 7
    %v189 = vsub.s32 %v186, %v188
    %v190 = vrot.slane %v168, %v189
    %v192 = vunpack.c.l.s4 1966171168
    %v193 = vunpack.c.0.s8 %v192
    %v194 = vlaneseq
    %v195 = vshrl.u32 %v194, 7
    %v196 = vsub.s32 %v193, %v195
    %v197 = vrot.slane %v169, %v196
    %v198 = vcombine.low %v176, %v183
    %v199 = vcombine.low %v190, %v197
    %v201 = vunpack.c.l.s4 1966171168
    %v202 = vunpack.c.0.s8 %v201
    %v203 = vlaneseq
    %v204 = vshrl.u32 %v203, 7
    %v205 = vsub.s32 %v202, %v204
    %v206 = vrot.slane %v198, %v205
    %v208 = vunpack.c.l.s4 1966171168
    %v209 = vunpack.c.0.s8 %v208
    %v210 = vlaneseq
    %v211 = vshrl.u32 %v210, 7
    %v212 = vsub.s32 %v209, %v211
    %v213 = vrot.slane %v199, %v212
    %v214 = vcombine.low %v206, %v213
    %v215 = vcombine.low %v57, %v58
    %v216 = vcombine.low %v59, %v60
    %v217 = vcombine.low %v61, %v62
    %v218 = vcombine.low %v63, %v64
    %v220 = vunpack.c.l.s4 1966171168
    %v221 = vunpack.c.0.s8 %v220
    %v222 = vlaneseq
    %v223 = vshrl.u32 %v222, 7
    %v224 = vsub.s32 %v221, %v223
    %v225 = vrot.slane %v215, %v224
    %v227 = vunpack.c.l.s4 1966171168
    %v228 = vunpack.c.0.s8 %v227
    %v229 = vlaneseq
    %v230 = vshrl.u32 %v229, 7
    %v231 = vsub.s32 %v228, %v230
    %v232 = vrot.slane %v216, %v231
    %v234 = vunpack.c.l.s4 1966171168
    %v235 = vunpack.c.0.s8 %v234
    %v236 = vlaneseq
    %v237 = vshrl.u32 %v236, 7
    %v238 = vsub.s32 %v235, %v237
    %v239 = vrot.slane %v217, %v238
    %v241 = vunpack.c.l.s4 1966171168
    %v242 = vunpack.c.0.s8 %v241
    %v243 = vlaneseq
    %v244 = vshrl.u32 %v243, 7
    %v245 = vsub.s32 %v242, %v244
    %v246 = vrot.slane %v218, %v245
    %v247 = vcombine.low %v225, %v232
    %v248 = vcombine.low %v239, %v246
    %v250 = vunpack.c.l.s4 1966171168
    %v251 = vunpack.c.0.s8 %v250
    %v252 = vlaneseq
    %v253 = vshrl.u32 %v252, 7
    %v254 = vsub.s32 %v251, %v253
    %v255 = vrot.slane %v247, %v254
    %v257 = vunpack.c.l.s4 1966171168
    %v258 = vunpack.c.0.s8 %v257
    %v259 = vlaneseq
    %v260 = vshrl.u32 %v259, 7
    %v261 = vsub.s32 %v258, %v260
    %v262 = vrot.slane %v248, %v261
    %v263 = vcombine.low %v255, %v262
    %v264 = vcombine.low %v65, %v66
    %v265 = vcombine.low %v67, %v68
    %v267 = vunpack.c.l.s4 1966171168
    %v268 = vunpack.c.0.s8 %v267
    %v269 = vlaneseq
    %v270 = vshrl.u32 %v269, 7
    %v271 = vsub.s32 %v268, %v270
    %v272 = vrot.slane %v264, %v271
    %v274 = vunpack.c.l.s4 1966171168
    %v275 = vunpack.c.0.s8 %v274
    %v276 = vlaneseq
    %v277 = vshrl.u32 %v276, 7
    %v278 = vsub.s32 %v275, %v277
    %v279 = vrot.slane %v265, %v278
    %v280 = vcombine.low %v272, %v279
    %v282 = vunpack.c.l.s4 1966171168
    %v283 = vunpack.c.0.s8 %v282
    %v284 = vlaneseq
    %v285 = vshrl.u32 %v284, 7
    %v286 = vsub.s32 %v283, %v285
    %v287 = vrot.slane %v280, %v286
    %v296 = vunpack.c.l.b16 %v81
    %v297 = vunpack.c.h.b16 %v81
    %v298 = vunpack.c.l.b16 %v82
    %v299 = vunpack.c.h.b16 %v82
    %v300 = vunpack.c.l.b16 %v83
    %v301 = vunpack.c.h.b16 %v83
    %v302 = vunpack.c.l.b16 %v84
    %v303 = vunpack.c.h.b16 %v84
    %v304 = vunpack.c.l.b16 %v85
    %v305 = vunpack.c.h.b16 %v85
    %v306 = vunpack.c.l.b16 %v86
    %v307 = vunpack.c.h.b16 %v86
    %v308 = vunpack.c.l.b16 %v87
    %v309 = vunpack.c.h.b16 %v87
    %v310 = vunpack.c.l.b16 %v88
    %v311 = vunpack.c.h.b16 %v88
    %v312 = vpack.c.b16 %v300, %v296
    %v313 = vpack.c.b16 %v301, %v297
    %v314 = vpack.c.b16 %v302, %v298
    %v315 = vpack.c.b16 %v303, %v299
    %v316 = vpack.c.b16 %v308, %v304
    %v317 = vpack.c.b16 %v309, %v305
    %v318 = vpack.c.b16 %v310, %v306
    %v319 = vpack.c.b16 %v311, %v307
    %vm328 = vcmask 261120
    %v330 = vsel %vm328, %v165, 0
    %v333 = vsel %vm328, %v214, 0
    %v336 = vsel %vm328, %v263, 0
    %v339 = vsel %vm328, %v287, 0
    %341 = vmatprep.subr.bf16.mxu0 %v313
    %342 = vmatpush1.bf16.msra.mxu0 %v312
    %343 = vmatprep.subr.bf16.mxu0 %v317
    %344 = vmatpush1.bf16.msra.mxu0 %v316
    %345 = vmatprep.subr.bf16.mxu0 0
    %346 = vmatpush1.bf16.msra.mxu0 0
    %347 = vmatprep.subr.bf16.mxu0 0
    %348 = vmatpush1.bf16.msra.mxu0 0
    %349 = vmatprep.subr.bf16.mxu0 0
    %350 = vmatpush1.bf16.msra.mxu0 0
    %351 = vmatprep.subr.bf16.mxu0 0
    %352 = vmatpush1.bf16.msra.mxu0 0
    %353 = vmatprep.subr.bf16.mxu0 0
    %354 = vmatpush1.bf16.msra.mxu0 0
    %355 = vmatprep.subr.bf16.mxu0 0
    %356 = vmatpush1.bf16.msra.mxu0 0
    %357 = vmatprep.subr.bf16.mxu0 0
    %358 = vmatpush1.bf16.msra.mxu0 0
    %359 = vmatprep.subr.bf16.mxu0 0
    %360 = vmatpush1.bf16.msra.mxu0 0
    %361 = vmatprep.subr.bf16.mxu0 0
    %362 = vmatpush1.bf16.msra.mxu0 0
    %363 = vmatprep.subr.bf16.mxu0 0
    %364 = vmatpush1.bf16.msra.mxu0 0
    %365 = vmatprep.subr.bf16.mxu0 0
    %366 = vmatpush1.bf16.msra.mxu0 0
    %367 = vmatprep.subr.bf16.mxu0 0
    %368 = vmatpush1.bf16.msra.mxu0 0
    %369 = vmatprep.subr.bf16.mxu0 0
    %370 = vmatpush1.bf16.msra.mxu0 0
    %371 = vmatprep.subr.bf16.mxu0 0
    %372 = vmatpush1.bf16.msra.mxu0 0
    %373 = vmatprep.mubr.bf16.mxu0 0
    %374 = vmatmul.mubr.bf16.gmra.mrb[0].mxu0 %v330
    %v375 = vpop.f32.mrb[0].mxu0
    %v376 = vadd.f32 0.0, %v375
    %v377 = vpop.f32.mrb[0].mxu0
    %v378 = vadd.f32 0.0, %v377
    %v379 = vpop.f32.mrb[0].mxu0
    %v380 = vadd.f32 0.0, %v379
    %v381 = vpop.f32.mrb[0].mxu0
    %v382 = vadd.f32 0.0, %v381
    %383 = vmatprep.mubr.bf16.mxu0 0
    %384 = vmatmul.mubr.bf16.gmra.mrb[0].mxu0 %v333
    %v385 = vpop.f32.mrb[0].mxu0
    %v386 = vadd.f32 0.0, %v385
    %v387 = vpop.f32.mrb[0].mxu0
    %v388 = vadd.f32 0.0, %v387
    %v389 = vpop.f32.mrb[0].mxu0
    %v390 = vadd.f32 0.0, %v389
    %v391 = vpop.f32.mrb[0].mxu0
    %v392 = vadd.f32 0.0, %v391
    %393 = vmatprep.mubr.bf16.mxu0 0
    %394 = vmatmul.mubr.bf16.gmra.mrb[0].mxu0 %v336
    %v395 = vpop.f32.mrb[0].mxu0
    %v396 = vadd.f32 0.0, %v395
    %v397 = vpop.f32.mrb[0].mxu0
    %v398 = vadd.f32 0.0, %v397
    %v399 = vpop.f32.mrb[0].mxu0
    %v400 = vadd.f32 0.0, %v399
    %v401 = vpop.f32.mrb[0].mxu0
    %v402 = vadd.f32 0.0, %v401
    %403 = vmatprep.mubr.bf16.mxu0 0
    %404 = vmatmul.mubr.bf16.gmra.mrb[0].mxu0 %v339
    %v405 = vpop.f32.mrb[0].mxu0
    %v406 = vadd.f32 0.0, %v405
    %v407 = vpop.f32.mrb[0].mxu0
    %v408 = vadd.f32 0.0, %v407
    %v409 = vpop.f32.mrb[0].mxu0
    %v410 = vpop.f32.mrb[0].mxu0
    %411 = vdwg.mxu0
    %412 = vmatprep.subr.bf16.mxu0 %v315
    %413 = vmatpush1.bf16.msra.mxu0 %v314
    %414 = vmatprep.subr.bf16.mxu0 %v319
    %415 = vmatpush1.bf16.msra.mxu0 %v318
    %416 = vmatprep.subr.bf16.mxu0 0
    %417 = vmatpush1.bf16.msra.mxu0 0
    %418 = vmatprep.subr.bf16.mxu0 0
    %419 = vmatpush1.bf16.msra.mxu0 0
    %420 = vmatprep.subr.bf16.mxu0 0
    %421 = vmatpush1.bf16.msra.mxu0 0
    %422 = vmatprep.subr.bf16.mxu0 0
    %423 = vmatpush1.bf16.msra.mxu0 0
    %424 = vmatprep.subr.bf16.mxu0 0
    %425 = vmatpush1.bf16.msra.mxu0 0
    %426 = vmatprep.subr.bf16.mxu0 0
    %427 = vmatpush1.bf16.msra.mxu0 0
    %428 = vmatprep.subr.bf16.mxu0 0
    %429 = vmatpush1.bf16.msra.mxu0 0
    %430 = vmatprep.subr.bf16.mxu0 0
    %431 = vmatpush1.bf16.msra.mxu0 0
    %432 = vmatprep.subr.bf16.mxu0 0
    %433 = vmatpush1.bf16.msra.mxu0 0
    %434 = vmatprep.subr.bf16.mxu0 0
    %435 = vmatpush1.bf16.msra.mxu0 0
    %436 = vmatprep.subr.bf16.mxu0 0
    %437 = vmatpush1.bf16.msra.mxu0 0
    %438 = vmatprep.subr.bf16.mxu0 0
    %439 = vmatpush1.bf16.msra.mxu0 0
    %440 = vmatprep.subr.bf16.mxu0 0
    %441 = vmatpush1.bf16.msra.mxu0 0
    %442 = vmatprep.subr.bf16.mxu0 0
    %443 = vmatpush1.bf16.msra.mxu0 0
    %444 = vmatprep.mubr.bf16.mxu0 0
    %445 = vmatmul.mubr.bf16.gmra.mrb[0].mxu0 %v330
    %v446 = vpop.f32.mrb[0].mxu0
    %v447 = vadd.f32 0.0, %v446
    %v448 = vpop.f32.mrb[0].mxu0
    %v449 = vadd.f32 0.0, %v448
    %v450 = vpop.f32.mrb[0].mxu0
    %v451 = vadd.f32 0.0, %v450
    %v452 = vpop.f32.mrb[0].mxu0
    %v453 = vadd.f32 0.0, %v452
    %454 = vmatprep.mubr.bf16.mxu0 0
    %455 = vmatmul.mubr.bf16.gmra.mrb[0].mxu0 %v333
    %v456 = vpop.f32.mrb[0].mxu0
    %v457 = vadd.f32 0.0, %v456
    %v458 = vpop.f32.mrb[0].mxu0
    %v459 = vadd.f32 0.0, %v458
    %v460 = vpop.f32.mrb[0].mxu0
    %v461 = vadd.f32 0.0, %v460
    %v462 = vpop.f32.mrb[0].mxu0
    %v463 = vadd.f32 0.0, %v462
    %464 = vmatprep.mubr.bf16.mxu0 0
    %465 = vmatmul.mubr.bf16.gmra.mrb[0].mxu0 %v336
    %v466 = vpop.f32.mrb[0].mxu0
    %v467 = vadd.f32 0.0, %v466
    %v468 = vpop.f32.mrb[0].mxu0
    %v469 = vadd.f32 0.0, %v468
    %v470 = vpop.f32.mrb[0].mxu0
    %v471 = vadd.f32 0.0, %v470
    %v472 = vpop.f32.mrb[0].mxu0
    %v473 = vadd.f32 0.0, %v472
    %474 = vmatprep.mubr.bf16.mxu0 0
    %475 = vmatmul.mubr.bf16.gmra.mrb[0].mxu0 %v339
    %v476 = vpop.f32.mrb[0].mxu0
    %v477 = vadd.f32 0.0, %v476
    %v478 = vpop.f32.mrb[0].mxu0
    %v479 = vadd.f32 0.0, %v478
    %v480 = vpop.f32.mrb[0].mxu0
    %v481 = vpop.f32.mrb[0].mxu0
    %482 = vdwg.mxu0
    %v484 = vcombine.low %v40, %v41
    %v485 = vcombine.low %v42, %v43
    %v486 = vcombine.low %v44, %v45
    %v487 = vcombine.low %v46, %v47
    %v489 = vunpack.c.l.s4 1966171168
    %v490 = vunpack.c.0.s8 %v489
    %v491 = vlaneseq
    %v492 = vshrl.u32 %v491, 7
    %v493 = vsub.s32 %v490, %v492
    %v494 = vrot.slane %v484, %v493
    %v496 = vunpack.c.l.s4 1966171168
    %v497 = vunpack.c.0.s8 %v496
    %v498 = vlaneseq
    %v499 = vshrl.u32 %v498, 7
    %v500 = vsub.s32 %v497, %v499
    %v501 = vrot.slane %v485, %v500
    %v503 = vunpack.c.l.s4 1966171168
    %v504 = vunpack.c.0.s8 %v503
    %v505 = vlaneseq
    %v506 = vshrl.u32 %v505, 7
    %v507 = vsub.s32 %v504, %v506
    %v508 = vrot.slane %v486, %v507
    %v510 = vunpack.c.l.s4 1966171168
    %v511 = vunpack.c.0.s8 %v510
    %v512 = vlaneseq
    %v513 = vshrl.u32 %v512, 7
    %v514 = vsub.s32 %v511, %v513
    %v515 = vrot.slane %v487, %v514
    %v516 = vcombine.low %v494, %v501
    %v517 = vcombine.low %v508, %v515
    %v519 = vunpack.c.l.s4 1966171168
    %v520 = vunpack.c.0.s8 %v519
    %v521 = vlaneseq
    %v522 = vshrl.u32 %v521, 7
    %v523 = vsub.s32 %v520, %v522
    %v524 = vrot.slane %v516, %v523
    %v526 = vunpack.c.l.s4 1966171168
    %v527 = vunpack.c.0.s8 %v526
    %v528 = vlaneseq
    %v529 = vshrl.u32 %v528, 7
    %v530 = vsub.s32 %v527, %v529
    %v531 = vrot.slane %v517, %v530
    %v532 = vcombine.low %v524, %v531
    %v533 = vcombine.low %v48, %v49
    %v534 = vcombine.low %v50, %v51
    %v535 = vcombine.low %v52, %v53
    %v536 = vcombine.low %v54, %v55
    %v538 = vunpack.c.l.s4 1966171168
    %v539 = vunpack.c.0.s8 %v538
    %v540 = vlaneseq
    %v541 = vshrl.u32 %v540, 7
    %v542 = vsub.s32 %v539, %v541
    %v543 = vrot.slane %v533, %v542
    %v545 = vunpack.c.l.s4 1966171168
    %v546 = vunpack.c.0.s8 %v545
    %v547 = vlaneseq
    %v548 = vshrl.u32 %v547, 7
    %v549 = vsub.s32 %v546, %v548
    %v550 = vrot.slane %v534, %v549
    %v552 = vunpack.c.l.s4 1966171168
    %v553 = vunpack.c.0.s8 %v552
    %v554 = vlaneseq
    %v555 = vshrl.u32 %v554, 7
    %v556 = vsub.s32 %v553, %v555
    %v557 = vrot.slane %v535, %v556
    %v559 = vunpack.c.l.s4 1966171168
    %v560 = vunpack.c.0.s8 %v559
    %v561 = vlaneseq
    %v562 = vshrl.u32 %v561, 7
    %v563 = vsub.s32 %v560, %v562
    %v564 = vrot.slane %v536, %v563
    %v565 = vcombine.low %v543, %v550
    %v566 = vcombine.low %v557, %v564
    %v568 = vunpack.c.l.s4 1966171168
    %v569 = vunpack.c.0.s8 %v568
    %v570 = vlaneseq
    %v571 = vshrl.u32 %v570, 7
    %v572 = vsub.s32 %v569, %v571
    %v573 = vrot.slane %v565, %v572
    %v575 = vunpack.c.l.s4 1966171168
    %v576 = vunpack.c.0.s8 %v575
    %v577 = vlaneseq
    %v578 = vshrl.u32 %v577, 7
    %v579 = vsub.s32 %v576, %v578
    %v580 = vrot.slane %v566, %v579
    %v581 = vcombine.low %v573, %v580
    %v582 = vcombine.low %v56, %v57
    %v583 = vcombine.low %v58, %v59
    %v584 = vcombine.low %v60, %v61
    %v585 = vcombine.low %v62, %v63
    %v587 = vunpack.c.l.s4 1966171168
    %v588 = vunpack.c.0.s8 %v587
    %v589 = vlaneseq
    %v590 = vshrl.u32 %v589, 7
    %v591 = vsub.s32 %v588, %v590
    %v592 = vrot.slane %v582, %v591
    %v594 = vunpack.c.l.s4 1966171168
    %v595 = vunpack.c.0.s8 %v594
    %v596 = vlaneseq
    %v597 = vshrl.u32 %v596, 7
    %v598 = vsub.s32 %v595, %v597
    %v599 = vrot.slane %v583, %v598
    %v601 = vunpack.c.l.s4 1966171168
    %v602 = vunpack.c.0.s8 %v601
    %v603 = vlaneseq
    %v604 = vshrl.u32 %v603, 7
    %v605 = vsub.s32 %v602, %v604
    %v606 = vrot.slane %v584, %v605
    %v608 = vunpack.c.l.s4 1966171168
    %v609 = vunpack.c.0.s8 %v608
    %v610 = vlaneseq
    %v611 = vshrl.u32 %v610, 7
    %v612 = vsub.s32 %v609, %v611
    %v613 = vrot.slane %v585, %v612
    %v614 = vcombine.low %v592, %v599
    %v615 = vcombine.low %v606, %v613
    %v617 = vunpack.c.l.s4 1966171168
    %v618 = vunpack.c.0.s8 %v617
    %v619 = vlaneseq
    %v620 = vshrl.u32 %v619, 7
    %v621 = vsub.s32 %v618, %v620
    %v622 = vrot.slane %v614, %v621
    %v624 = vunpack.c.l.s4 1966171168
    %v625 = vunpack.c.0.s8 %v624
    %v626 = vlaneseq
    %v627 = vshrl.u32 %v626, 7
    %v628 = vsub.s32 %v625, %v627
    %v629 = vrot.slane %v615, %v628
    %v630 = vcombine.low %v622, %v629
    %v631 = vcombine.low %v64, %v65
    %v632 = vcombine.low %v66, %v67
    %v634 = vunpack.c.l.s4 1966171168
    %v635 = vunpack.c.0.s8 %v634
    %v636 = vlaneseq
    %v637 = vshrl.u32 %v636, 7
    %v638 = vsub.s32 %v635, %v637
    %v639 = vrot.slane %v631, %v638
    %v641 = vunpack.c.l.s4 1966171168
    %v642 = vunpack.c.0.s8 %v641
    %v643 = vlaneseq
    %v644 = vshrl.u32 %v643, 7
    %v645 = vsub.s32 %v642, %v644
    %v646 = vrot.slane %v632, %v645
    %v647 = vcombine.low %v639, %v646
    %v649 = vunpack.c.l.s4 1966171168
    %v650 = vunpack.c.0.s8 %v649
    %v651 = vlaneseq
    %v652 = vshrl.u32 %v651, 7
    %v653 = vsub.s32 %v650, %v652
    %v654 = vrot.slane %v647, %v653
    %v663 = vunpack.c.l.b16 %v72
    %v664 = vunpack.c.h.b16 %v72
    %v665 = vunpack.c.l.b16 %v73
    %v666 = vunpack.c.h.b16 %v73
    %v667 = vunpack.c.l.b16 %v74
    %v668 = vunpack.c.h.b16 %v74
    %v669 = vunpack.c.l.b16 %v75
    %v670 = vunpack.c.h.b16 %v75
    %v671 = vunpack.c.l.b16 %v76
    %v672 = vunpack.c.h.b16 %v76
    %v673 = vunpack.c.l.b16 %v77
    %v674 = vunpack.c.h.b16 %v77
    %v675 = vunpack.c.l.b16 %v78
    %v676 = vunpack.c.h.b16 %v78
    %v677 = vunpack.c.l.b16 %v79
    %v678 = vunpack.c.h.b16 %v79
    %v679 = vpack.c.b16 %v667, %v663
    %v680 = vpack.c.b16 %v668, %v664
    %v681 = vpack.c.b16 %v669, %v665
    %v682 = vpack.c.b16 %v670, %v666
    %v683 = vpack.c.b16 %v675, %v671
    %v684 = vpack.c.b16 %v676, %v672
    %v685 = vpack.c.b16 %v677, %v673
    %v686 = vpack.c.b16 %v678, %v674
    %v696 = vsel %vm328, %v532, 0
    %v699 = vsel %vm328, %v581, 0
    %v702 = vsel %vm328, %v630, 0
    %v705 = vsel %vm328, %v654, 0
    %707 = vmatprep.subr.bf16.mxu0 %v680
    %708 = vmatpush1.bf16.msra.mxu0 %v679
    %709 = vmatprep.subr.bf16.mxu0 %v684
    %710 = vmatpush1.bf16.msra.mxu0 %v683
    %711 = vmatprep.subr.bf16.mxu0 0
    %712 = vmatpush1.bf16.msra.mxu0 0
    %713 = vmatprep.subr.bf16.mxu0 0
    %714 = vmatpush1.bf16.msra.mxu0 0
    %715 = vmatprep.subr.bf16.mxu0 0
    %716 = vmatpush1.bf16.msra.mxu0 0
    %717 = vmatprep.subr.bf16.mxu0 0
    %718 = vmatpush1.bf16.msra.mxu0 0
    %719 = vmatprep.subr.bf16.mxu0 0
    %720 = vmatpush1.bf16.msra.mxu0 0
    %721 = vmatprep.subr.bf16.mxu0 0
    %722 = vmatpush1.bf16.msra.mxu0 0
    %723 = vmatprep.subr.bf16.mxu0 0
    %724 = vmatpush1.bf16.msra.mxu0 0
    %725 = vmatprep.subr.bf16.mxu0 0
    %726 = vmatpush1.bf16.msra.mxu0 0
    %727 = vmatprep.subr.bf16.mxu0 0
    %728 = vmatpush1.bf16.msra.mxu0 0
    %729 = vmatprep.subr.bf16.mxu0 0
    %730 = vmatpush1.bf16.msra.mxu0 0
    %731 = vmatprep.subr.bf16.mxu0 0
    %732 = vmatpush1.bf16.msra.mxu0 0
    %733 = vmatprep.subr.bf16.mxu0 0
    %734 = vmatpush1.bf16.msra.mxu0 0
    %735 = vmatprep.subr.bf16.mxu0 0
    %736 = vmatpush1.bf16.msra.mxu0 0
    %737 = vmatprep.subr.bf16.mxu0 0
    %738 = vmatpush1.bf16.msra.mxu0 0
    %739 = vmatprep.mubr.bf16.mxu0 0
    %740 = vmatmul.mubr.bf16.gmra.mrb[0].mxu0 %v696
    %v741 = vpop.f32.mrb[0].mxu0
    %v742 = vadd.f32 %v376, %v741
    %v743 = vpop.f32.mrb[0].mxu0
    %v744 = vadd.f32 %v378, %v743
    %v745 = vpop.f32.mrb[0].mxu0
    %v746 = vadd.f32 %v380, %v745
    %v747 = vpop.f32.mrb[0].mxu0
    %v748 = vadd.f32 %v382, %v747
    %749 = vmatprep.mubr.bf16.mxu0 0
    %750 = vmatmul.mubr.bf16.gmra.mrb[0].mxu0 %v699
    %v751 = vpop.f32.mrb[0].mxu0
    %v752 = vadd.f32 %v386, %v751
    %v753 = vpop.f32.mrb[0].mxu0
    %v754 = vadd.f32 %v388, %v753
    %v755 = vpop.f32.mrb[0].mxu0
    %v756 = vadd.f32 %v390, %v755
    %v757 = vpop.f32.mrb[0].mxu0
    %v758 = vadd.f32 %v392, %v757
    %759 = vmatprep.mubr.bf16.mxu0 0
    %760 = vmatmul.mubr.bf16.gmra.mrb[0].mxu0 %v702
    %v761 = vpop.f32.mrb[0].mxu0
    %v762 = vadd.f32 %v396, %v761
    %v763 = vpop.f32.mrb[0].mxu0
    %v764 = vadd.f32 %v398, %v763
    %v765 = vpop.f32.mrb[0].mxu0
    %v766 = vadd.f32 %v400, %v765
    %v767 = vpop.f32.mrb[0].mxu0
    %v768 = vadd.f32 %v402, %v767
    %769 = vmatprep.mubr.bf16.mxu0 0
    %770 = vmatmul.mubr.bf16.gmra.mrb[0].mxu0 %v705
    %v771 = vpop.f32.mrb[0].mxu0
    %v772 = vadd.f32 %v406, %v771
    %v773 = vpop.f32.mrb[0].mxu0
    %v774 = vadd.f32 %v408, %v773
    %v775 = vpop.f32.mrb[0].mxu0
    %v776 = vpop.f32.mrb[0].mxu0
    %777 = vdwg.mxu0
    %778 = vmatprep.subr.bf16.mxu0 %v682
    %779 = vmatpush1.bf16.msra.mxu0 %v681
    %780 = vmatprep.subr.bf16.mxu0 %v686
    %781 = vmatpush1.bf16.msra.mxu0 %v685
    %782 = vmatprep.subr.bf16.mxu0 0
    %783 = vmatpush1.bf16.msra.mxu0 0
    %784 = vmatprep.subr.bf16.mxu0 0
    %785 = vmatpush1.bf16.msra.mxu0 0
    %786 = vmatprep.subr.bf16.mxu0 0
    %787 = vmatpush1.bf16.msra.mxu0 0
    %788 = vmatprep.subr.bf16.mxu0 0
    %789 = vmatpush1.bf16.msra.mxu0 0
    %790 = vmatprep.subr.bf16.mxu0 0
    %791 = vmatpush1.bf16.msra.mxu0 0
    %792 = vmatprep.subr.bf16.mxu0 0
    %793 = vmatpush1.bf16.msra.mxu0 0
    %794 = vmatprep.subr.bf16.mxu0 0
    %795 = vmatpush1.bf16.msra.mxu0 0
    %796 = vmatprep.subr.bf16.mxu0 0
    %797 = vmatpush1.bf16.msra.mxu0 0
    %798 = vmatprep.subr.bf16.mxu0 0
    %799 = vmatpush1.bf16.msra.mxu0 0
    %800 = vmatprep.subr.bf16.mxu0 0
    %801 = vmatpush1.bf16.msra.mxu0 0
    %802 = vmatprep.subr.bf16.mxu0 0
    %803 = vmatpush1.bf16.msra.mxu0 0
    %804 = vmatprep.subr.bf16.mxu0 0
    %805 = vmatpush1.bf16.msra.mxu0 0
    %806 = vmatprep.subr.bf16.mxu0 0
    %807 = vmatpush1.bf16.msra.mxu0 0
    %808 = vmatprep.subr.bf16.mxu0 0
    %809 = vmatpush1.bf16.msra.mxu0 0
    %810 = vmatprep.mubr.bf16.mxu0 0
    %811 = vmatmul.mubr.bf16.gmra.mrb[0].mxu0 %v696
    %v812 = vpop.f32.mrb[0].mxu0
    %v813 = vadd.f32 %v447, %v812
    %v814 = vpop.f32.mrb[0].mxu0
    %v815 = vadd.f32 %v449, %v814
    %v816 = vpop.f32.mrb[0].mxu0
    %v817 = vadd.f32 %v451, %v816
    %v818 = vpop.f32.mrb[0].mxu0
    %v819 = vadd.f32 %v453, %v818
    %820 = vmatprep.mubr.bf16.mxu0 0
    %821 = vmatmul.mubr.bf16.gmra.mrb[0].mxu0 %v699
    %v822 = vpop.f32.mrb[0].mxu0
    %v823 = vadd.f32 %v457, %v822
    %v824 = vpop.f32.mrb[0].mxu0
    %v825 = vadd.f32 %v459, %v824
    %v826 = vpop.f32.mrb[0].mxu0
    %v827 = vadd.f32 %v461, %v826
    %v828 = vpop.f32.mrb[0].mxu0
    %v829 = vadd.f32 %v463, %v828
    %830 = vmatprep.mubr.bf16.mxu0 0
    %831 = vmatmul.mubr.bf16.gmra.mrb[0].mxu0 %v702
    %v832 = vpop.f32.mrb[0].mxu0
    %v833 = vadd.f32 %v467, %v832
    %v834 = vpop.f32.mrb[0].mxu0
    %v835 = vadd.f32 %v469, %v834
    %v836 = vpop.f32.mrb[0].mxu0
    %v837 = vadd.f32 %v471, %v836
    %v838 = vpop.f32.mrb[0].mxu0
    %v839 = vadd.f32 %v473, %v838
    %840 = vmatprep.mubr.bf16.mxu0 0
    %841 = vmatmul.mubr.bf16.gmra.mrb[0].mxu0 %v705
    %v842 = vpop.f32.mrb[0].mxu0
    %v843 = vadd.f32 %v477, %v842
    %v844 = vpop.f32.mrb[0].mxu0
    %v845 = vadd.f32 %v479, %v844
    %v846 = vpop.f32.mrb[0].mxu0
    %v847 = vpop.f32.mrb[0].mxu0
    %848 = vdwg.mxu0
    %s849 = scalar_lea.vmem %s1, 128
    %v850 = vld [vmem:[%s849] sm:$0xff]
    %v851 = vld [vmem:[%s849 + $0x8] sm:$0xff]
    %v852 = vld [vmem:[%s849 + $0x10] sm:$0xff]
    %v853 = vld [vmem:[%s849 + $0x18] sm:$0xff]
    %v854 = vld [vmem:[%s849 + $0x20] sm:$0xff]
    %v855 = vld [vmem:[%s849 + $0x28] sm:$0xff]
    %v856 = vld [vmem:[%s849 + $0x30] sm:$0xff]
    %v857 = vld [vmem:[%s849 + $0x38] sm:$0xff]
    %v859 = vcombine.low %v501, %v508
    %v860 = vcombine.low %v515, %v543
    %v862 = vunpack.c.l.s4 1966171168
    %v863 = vunpack.c.0.s8 %v862
    %v864 = vlaneseq
    %v865 = vshrl.u32 %v864, 7
    %v866 = vsub.s32 %v863, %v865
    %v867 = vrot.slane %v859, %v866
    %v869 = vunpack.c.l.s4 1966171168
    %v870 = vunpack.c.0.s8 %v869
    %v871 = vlaneseq
    %v872 = vshrl.u32 %v871, 7
    %v873 = vsub.s32 %v870, %v872
    %v874 = vrot.slane %v860, %v873
    %v875 = vcombine.low %v867, %v874
    %v876 = vcombine.low %v550, %v557
    %v877 = vcombine.low %v564, %v592
    %v879 = vunpack.c.l.s4 1966171168
    %v880 = vunpack.c.0.s8 %v879
    %v881 = vlaneseq
    %v882 = vshrl.u32 %v881, 7
    %v883 = vsub.s32 %v880, %v882
    %v884 = vrot.slane %v876, %v883
    %v886 = vunpack.c.l.s4 1966171168
    %v887 = vunpack.c.0.s8 %v886
    %v888 = vlaneseq
    %v889 = vshrl.u32 %v888, 7
    %v890 = vsub.s32 %v887, %v889
    %v891 = vrot.slane %v877, %v890
    %v892 = vcombine.low %v884, %v891
    %v893 = vcombine.low %v599, %v606
    %v894 = vcombine.low %v613, %v639
    %v896 = vunpack.c.l.s4 1966171168
    %v897 = vunpack.c.0.s8 %v896
    %v898 = vlaneseq
    %v899 = vshrl.u32 %v898, 7
    %v900 = vsub.s32 %v897, %v899
    %v901 = vrot.slane %v893, %v900
    %v903 = vunpack.c.l.s4 1966171168
    %v904 = vunpack.c.0.s8 %v903
    %v905 = vlaneseq
    %v906 = vshrl.u32 %v905, 7
    %v907 = vsub.s32 %v904, %v906
    %v908 = vrot.slane %v894, %v907
    %v909 = vcombine.low %v901, %v908
    %v910 = vcombine.low %v68, %v69
    %v912 = vunpack.c.l.s4 1966171168
    %v913 = vunpack.c.0.s8 %v912
    %v914 = vlaneseq
    %v915 = vshrl.u32 %v914, 7
    %v916 = vsub.s32 %v913, %v915
    %v917 = vrot.slane %v910, %v916
    %v918 = vcombine.low %v646, %v917
    %v920 = vunpack.c.l.s4 1966171168
    %v921 = vunpack.c.0.s8 %v920
    %v922 = vlaneseq
    %v923 = vshrl.u32 %v922, 7
    %v924 = vsub.s32 %v921, %v923
    %v925 = vrot.slane %v918, %v924
    %v934 = vunpack.c.l.b16 %v850
    %v935 = vunpack.c.h.b16 %v850
    %v936 = vunpack.c.l.b16 %v851
    %v937 = vunpack.c.h.b16 %v851
    %v938 = vunpack.c.l.b16 %v852
    %v939 = vunpack.c.h.b16 %v852
    %v940 = vunpack.c.l.b16 %v853
    %v941 = vunpack.c.h.b16 %v853
    %v942 = vunpack.c.l.b16 %v854
    %v943 = vunpack.c.h.b16 %v854
    %v944 = vunpack.c.l.b16 %v855
    %v945 = vunpack.c.h.b16 %v855
    %v946 = vunpack.c.l.b16 %v856
    %v947 = vunpack.c.h.b16 %v856
    %v948 = vunpack.c.l.b16 %v857
    %v949 = vunpack.c.h.b16 %v857
    %v950 = vpack.c.b16 %v938, %v934
    %v951 = vpack.c.b16 %v939, %v935
    %v952 = vpack.c.b16 %v940, %v936
    %v953 = vpack.c.b16 %v941, %v937
    %v954 = vpack.c.b16 %v946, %v942
    %v955 = vpack.c.b16 %v947, %v943
    %v956 = vpack.c.b16 %v948, %v944
    %v957 = vpack.c.b16 %v949, %v945
    %v967 = vsel %vm328, %v875, 0
    %v970 = vsel %vm328, %v892, 0
    %v973 = vsel %vm328, %v909, 0
    %v976 = vsel %vm328, %v925, 0
    %978 = vmatprep.subr.bf16.mxu0 %v951
    %979 = vmatpush1.bf16.msra.mxu0 %v950
    %980 = vmatprep.subr.bf16.mxu0 %v955
    %981 = vmatpush1.bf16.msra.mxu0 %v954
    %982 = vmatprep.subr.bf16.mxu0 0
    %983 = vmatpush1.bf16.msra.mxu0 0
    %984 = vmatprep.subr.bf16.mxu0 0
    %985 = vmatpush1.bf16.msra.mxu0 0
    %986 = vmatprep.subr.bf16.mxu0 0
    %987 = vmatpush1.bf16.msra.mxu0 0
    %988 = vmatprep.subr.bf16.mxu0 0
    %989 = vmatpush1.bf16.msra.mxu0 0
    %990 = vmatprep.subr.bf16.mxu0 0
    %991 = vmatpush1.bf16.msra.mxu0 0
    %992 = vmatprep.subr.bf16.mxu0 0
    %993 = vmatpush1.bf16.msra.mxu0 0
    %994 = vmatprep.subr.bf16.mxu0 0
    %995 = vmatpush1.bf16.msra.mxu0 0
    %996 = vmatprep.subr.bf16.mxu0 0
    %997 = vmatpush1.bf16.msra.mxu0 0
    %998 = vmatprep.subr.bf16.mxu0 0
    %999 = vmatpush1.bf16.msra.mxu0 0
    %1000 = vmatprep.subr.bf16.mxu0 0
    %1001 = vmatpush1.bf16.msra.mxu0 0
    %1002 = vmatprep.subr.bf16.mxu0 0
    %1003 = vmatpush1.bf16.msra.mxu0 0
    %1004 = vmatprep.subr.bf16.mxu0 0
    %1005 = vmatpush1.bf16.msra.mxu0 0
    %1006 = vmatprep.subr.bf16.mxu0 0
    %1007 = vmatpush1.bf16.msra.mxu0 0
    %1008 = vmatprep.subr.bf16.mxu0 0
    %1009 = vmatpush1.bf16.msra.mxu0 0
    %1010 = vmatprep.mubr.bf16.mxu0 0
    %1011 = vmatmul.mubr.bf16.gmra.mrb[0].mxu0 %v967
    %v1012 = vpop.f32.mrb[0].mxu0
    %v1013 = vadd.f32 0.0, %v1012
    %v1014 = vpop.f32.mrb[0].mxu0
    %v1015 = vadd.f32 0.0, %v1014
    %v1016 = vpop.f32.mrb[0].mxu0
    %v1017 = vadd.f32 0.0, %v1016
    %v1018 = vpop.f32.mrb[0].mxu0
    %v1019 = vadd.f32 0.0, %v1018
    %1020 = vmatprep.mubr.bf16.mxu0 0
    %1021 = vmatmul.mubr.bf16.gmra.mrb[0].mxu0 %v970
    %v1022 = vpop.f32.mrb[0].mxu0
    %v1023 = vadd.f32 0.0, %v1022
    %v1024 = vpop.f32.mrb[0].mxu0
    %v1025 = vadd.f32 0.0, %v1024
    %v1026 = vpop.f32.mrb[0].mxu0
    %v1027 = vadd.f32 0.0, %v1026
    %v1028 = vpop.f32.mrb[0].mxu0
    %v1029 = vadd.f32 0.0, %v1028
    %1030 = vmatprep.mubr.bf16.mxu0 0
    %1031 = vmatmul.mubr.bf16.gmra.mrb[0].mxu0 %v973
    %v1032 = vpop.f32.mrb[0].mxu0
    %v1033 = vadd.f32 0.0, %v1032
    %v1034 = vpop.f32.mrb[0].mxu0
    %v1035 = vadd.f32 0.0, %v1034
    %v1036 = vpop.f32.mrb[0].mxu0
    %v1037 = vadd.f32 0.0, %v1036
    %v1038 = vpop.f32.mrb[0].mxu0
    %v1039 = vadd.f32 0.0, %v1038
    %1040 = vmatprep.mubr.bf16.mxu0 0
    %1041 = vmatmul.mubr.bf16.gmra.mrb[0].mxu0 %v976
    %v1042 = vpop.f32.mrb[0].mxu0
    %v1043 = vadd.f32 0.0, %v1042
    %v1044 = vpop.f32.mrb[0].mxu0
    %v1045 = vadd.f32 0.0, %v1044
    %v1046 = vpop.f32.mrb[0].mxu0
    %v1047 = vpop.f32.mrb[0].mxu0
    %1048 = vdwg.mxu0
    %1049 = vmatprep.subr.bf16.mxu0 %v953
    %1050 = vmatpush1.bf16.msra.mxu0 %v952
    %1051 = vmatprep.subr.bf16.mxu0 %v957
    %1052 = vmatpush1.bf16.msra.mxu0 %v956
    %1053 = vmatprep.subr.bf16.mxu0 0
    %1054 = vmatpush1.bf16.msra.mxu0 0
    %1055 = vmatprep.subr.bf16.mxu0 0
    %1056 = vmatpush1.bf16.msra.mxu0 0
    %1057 = vmatprep.subr.bf16.mxu0 0
    %1058 = vmatpush1.bf16.msra.mxu0 0
    %1059 = vmatprep.subr.bf16.mxu0 0
    %1060 = vmatpush1.bf16.msra.mxu0 0
    %1061 = vmatprep.subr.bf16.mxu0 0
    %1062 = vmatpush1.bf16.msra.mxu0 0
    %1063 = vmatprep.subr.bf16.mxu0 0
    %1064 = vmatpush1.bf16.msra.mxu0 0
    %1065 = vmatprep.subr.bf16.mxu0 0
    %1066 = vmatpush1.bf16.msra.mxu0 0
    %1067 = vmatprep.subr.bf16.mxu0 0
    %1068 = vmatpush1.bf16.msra.mxu0 0
    %1069 = vmatprep.subr.bf16.mxu0 0
    %1070 = vmatpush1.bf16.msra.mxu0 0
    %1071 = vmatprep.subr.bf16.mxu0 0
    %1072 = vmatpush1.bf16.msra.mxu0 0
    %1073 = vmatprep.subr.bf16.mxu0 0
    %1074 = vmatpush1.bf16.msra.mxu0 0
    %1075 = vmatprep.subr.bf16.mxu0 0
    %1076 = vmatpush1.bf16.msra.mxu0 0
    %1077 = vmatprep.subr.bf16.mxu0 0
    %1078 = vmatpush1.bf16.msra.mxu0 0
    %1079 = vmatprep.subr.bf16.mxu0 0
    %1080 = vmatpush1.bf16.msra.mxu0 0
    %1081 = vmatprep.mubr.bf16.mxu0 0
    %1082 = vmatmul.mubr.bf16.gmra.mrb[0].mxu0 %v967
    %v1083 = vpop.f32.mrb[0].mxu0
    %v1084 = vadd.f32 0.0, %v1083
    %v1085 = vpop.f32.mrb[0].mxu0
    %v1086 = vadd.f32 0.0, %v1085
    %v1087 = vpop.f32.mrb[0].mxu0
    %v1088 = vadd.f32 0.0, %v1087
    %v1089 = vpop.f32.mrb[0].mxu0
    %v1090 = vadd.f32 0.0, %v1089
    %1091 = vmatprep.mubr.bf16.mxu0 0
    %1092 = vmatmul.mubr.bf16.gmra.mrb[0].mxu0 %v970
    %v1093 = vpop.f32.mrb[0].mxu0
    %v1094 = vadd.f32 0.0, %v1093
    %v1095 = vpop.f32.mrb[0].mxu0
    %v1096 = vadd.f32 0.0, %v1095
    %v1097 = vpop.f32.mrb[0].mxu0
    %v1098 = vadd.f32 0.0, %v1097
    %v1099 = vpop.f32.mrb[0].mxu0
    %v1100 = vadd.f32 0.0, %v1099
    %1101 = vmatprep.mubr.bf16.mxu0 0
    %1102 = vmatmul.mubr.bf16.gmra.mrb[0].mxu0 %v973
    %v1103 = vpop.f32.mrb[0].mxu0
    %v1104 = vadd.f32 0.0, %v1103
    %v1105 = vpop.f32.mrb[0].mxu0
    %v1106 = vadd.f32 0.0, %v1105
    %v1107 = vpop.f32.mrb[0].mxu0
    %v1108 = vadd.f32 0.0, %v1107
    %v1109 = vpop.f32.mrb[0].mxu0
    %v1110 = vadd.f32 0.0, %v1109
    %1111 = vmatprep.mubr.bf16.mxu0 0
    %1112 = vmatmul.mubr.bf16.gmra.mrb[0].mxu0 %v976
    %v1113 = vpop.f32.mrb[0].mxu0
    %v1114 = vadd.f32 0.0, %v1113
    %v1115 = vpop.f32.mrb[0].mxu0
    %v1116 = vadd.f32 0.0, %v1115
    %v1117 = vpop.f32.mrb[0].mxu0
    %v1118 = vpop.f32.mrb[0].mxu0
    %1119 = vdwg.mxu0
    %v1120 = vadd.f32 %v742, %v1013
    %v1121 = vadd.f32 %v744, %v1015
    %v1122 = vadd.f32 %v813, %v1084
    %v1123 = vadd.f32 %v815, %v1086
    %v1124 = vadd.f32 %v746, %v1017
    %v1125 = vadd.f32 %v748, %v1019
    %v1126 = vadd.f32 %v817, %v1088
    %v1127 = vadd.f32 %v819, %v1090
    %v1128 = vadd.f32 %v752, %v1023
    %v1129 = vadd.f32 %v754, %v1025
    %v1130 = vadd.f32 %v823, %v1094
    %v1131 = vadd.f32 %v825, %v1096
    %v1132 = vadd.f32 %v756, %v1027
    %v1133 = vadd.f32 %v758, %v1029
    %v1134 = vadd.f32 %v827, %v1098
    %v1135 = vadd.f32 %v829, %v1100
    %v1136 = vadd.f32 %v762, %v1033
    %v1137 = vadd.f32 %v764, %v1035
    %v1138 = vadd.f32 %v833, %v1104
    %v1139 = vadd.f32 %v835, %v1106
    %v1140 = vadd.f32 %v766, %v1037
    %v1141 = vadd.f32 %v768, %v1039
    %v1142 = vadd.f32 %v837, %v1108
    %v1143 = vadd.f32 %v839, %v1110
    %v1144 = vadd.f32 %v772, %v1043
    %v1145 = vadd.f32 %v774, %v1045
    %v1146 = vadd.f32 %v843, %v1114
    %v1147 = vadd.f32 %v845, %v1116
    %s1148 = scalar_lea.vmem %s1, 192
    %v1149 = vld [vmem:[%s1148] sm:$0xff]
    %v1150 = vld [vmem:[%s1148 + $0x8] sm:$0xff]
    %v1151 = vld [vmem:[%s1148 + $0x10] sm:$0xff]
    %v1152 = vld [vmem:[%s1148 + $0x18] sm:$0xff]
    %v1153 = vld [vmem:[%s1148 + $0x20] sm:$0xff]
    %v1154 = vld [vmem:[%s1148 + $0x28] sm:$0xff]
    %v1155 = vld [vmem:[%s1148 + $0x30] sm:$0xff]
    %v1156 = vld [vmem:[%s1148 + $0x38] sm:$0xff]
    %v1158 = vcombine.low %v134, %v141
    %v1159 = vcombine.low %v148, %v176
    %v1161 = vunpack.c.l.s4 1966171168
    %v1162 = vunpack.c.0.s8 %v1161
    %v1163 = vlaneseq
    %v1164 = vshrl.u32 %v1163, 7
    %v1165 = vsub.s32 %v1162, %v1164
    %v1166 = vrot.slane %v1158, %v1165
    %v1168 = vunpack.c.l.s4 1966171168
    %v1169 = vunpack.c.0.s8 %v1168
    %v1170 = vlaneseq
    %v1171 = vshrl.u32 %v1170, 7
    %v1172 = vsub.s32 %v1169, %v1171
    %v1173 = vrot.slane %v1159, %v1172
    %v1174 = vcombine.low %v1166, %v1173
    %v1175 = vcombine.low %v183, %v190
    %v1176 = vcombine.low %v197, %v225
    %v1178 = vunpack.c.l.s4 1966171168
    %v1179 = vunpack.c.0.s8 %v1178
    %v1180 = vlaneseq
    %v1181 = vshrl.u32 %v1180, 7
    %v1182 = vsub.s32 %v1179, %v1181
    %v1183 = vrot.slane %v1175, %v1182
    %v1185 = vunpack.c.l.s4 1966171168
    %v1186 = vunpack.c.0.s8 %v1185
    %v1187 = vlaneseq
    %v1188 = vshrl.u32 %v1187, 7
    %v1189 = vsub.s32 %v1186, %v1188
    %v1190 = vrot.slane %v1176, %v1189
    %v1191 = vcombine.low %v1183, %v1190
    %v1192 = vcombine.low %v232, %v239
    %v1193 = vcombine.low %v246, %v272
    %v1195 = vunpack.c.l.s4 1966171168
    %v1196 = vunpack.c.0.s8 %v1195
    %v1197 = vlaneseq
    %v1198 = vshrl.u32 %v1197, 7
    %v1199 = vsub.s32 %v1196, %v1198
    %v1200 = vrot.slane %v1192, %v1199
    %v1202 = vunpack.c.l.s4 1966171168
    %v1203 = vunpack.c.0.s8 %v1202
    %v1204 = vlaneseq
    %v1205 = vshrl.u32 %v1204, 7
    %v1206 = vsub.s32 %v1203, %v1205
    %v1207 = vrot.slane %v1193, %v1206
    %v1208 = vcombine.low %v1200, %v1207
    %v1209 = vcombine.low %v69, %v70
    %v1211 = vunpack.c.l.s4 1966171168
    %v1212 = vunpack.c.0.s8 %v1211
    %v1213 = vlaneseq
    %v1214 = vshrl.u32 %v1213, 7
    %v1215 = vsub.s32 %v1212, %v1214
    %v1216 = vrot.slane %v1209, %v1215
    %v1217 = vcombine.low %v279, %v1216
    %v1219 = vunpack.c.l.s4 1966171168
    %v1220 = vunpack.c.0.s8 %v1219
    %v1221 = vlaneseq
    %v1222 = vshrl.u32 %v1221, 7
    %v1223 = vsub.s32 %v1220, %v1222
    %v1224 = vrot.slane %v1217, %v1223
    %v1233 = vunpack.c.l.b16 %v1149
    %v1234 = vunpack.c.h.b16 %v1149
    %v1235 = vunpack.c.l.b16 %v1150
    %v1236 = vunpack.c.h.b16 %v1150
    %v1237 = vunpack.c.l.b16 %v1151
    %v1238 = vunpack.c.h.b16 %v1151
    %v1239 = vunpack.c.l.b16 %v1152
    %v1240 = vunpack.c.h.b16 %v1152
    %v1241 = vunpack.c.l.b16 %v1153
    %v1242 = vunpack.c.h.b16 %v1153
    %v1243 = vunpack.c.l.b16 %v1154
    %v1244 = vunpack.c.h.b16 %v1154
    %v1245 = vunpack.c.l.b16 %v1155
    %v1246 = vunpack.c.h.b16 %v1155
    %v1247 = vunpack.c.l.b16 %v1156
    %v1248 = vunpack.c.h.b16 %v1156
    %v1249 = vpack.c.b16 %v1237, %v1233
    %v1250 = vpack.c.b16 %v1238, %v1234
    %v1251 = vpack.c.b16 %v1239, %v1235
    %v1252 = vpack.c.b16 %v1240, %v1236
    %v1253 = vpack.c.b16 %v1245, %v1241
    %v1254 = vpack.c.b16 %v1246, %v1242
    %v1255 = vpack.c.b16 %v1247, %v1243
    %v1256 = vpack.c.b16 %v1248, %v1244
    %v1266 = vsel %vm328, %v1174, 0
    %v1269 = vsel %vm328, %v1191, 0
    %v1272 = vsel %vm328, %v1208, 0
    %v1275 = vsel %vm328, %v1224, 0
    %1277 = vmatprep.subr.bf16.mxu0 %v1250
    %1278 = vmatpush1.bf16.msra.mxu0 %v1249
    %1279 = vmatprep.subr.bf16.mxu0 %v1254
    %1280 = vmatpush1.bf16.msra.mxu0 %v1253
    %1281 = vmatprep.subr.bf16.mxu0 0
    %1282 = vmatpush1.bf16.msra.mxu0 0
    %1283 = vmatprep.subr.bf16.mxu0 0
    %1284 = vmatpush1.bf16.msra.mxu0 0
    %1285 = vmatprep.subr.bf16.mxu0 0
    %1286 = vmatpush1.bf16.msra.mxu0 0
    %1287 = vmatprep.subr.bf16.mxu0 0
    %1288 = vmatpush1.bf16.msra.mxu0 0
    %1289 = vmatprep.subr.bf16.mxu0 0
    %1290 = vmatpush1.bf16.msra.mxu0 0
    %1291 = vmatprep.subr.bf16.mxu0 0
    %1292 = vmatpush1.bf16.msra.mxu0 0
    %1293 = vmatprep.subr.bf16.mxu0 0
    %1294 = vmatpush1.bf16.msra.mxu0 0
    %1295 = vmatprep.subr.bf16.mxu0 0
    %1296 = vmatpush1.bf16.msra.mxu0 0
    %1297 = vmatprep.subr.bf16.mxu0 0
    %1298 = vmatpush1.bf16.msra.mxu0 0
    %1299 = vmatprep.subr.bf16.mxu0 0
    %1300 = vmatpush1.bf16.msra.mxu0 0
    %1301 = vmatprep.subr.bf16.mxu0 0
    %1302 = vmatpush1.bf16.msra.mxu0 0
    %1303 = vmatprep.subr.bf16.mxu0 0
    %1304 = vmatpush1.bf16.msra.mxu0 0
    %1305 = vmatprep.subr.bf16.mxu0 0
    %1306 = vmatpush1.bf16.msra.mxu0 0
    %1307 = vmatprep.subr.bf16.mxu0 0
    %1308 = vmatpush1.bf16.msra.mxu0 0
    %1309 = vmatprep.mubr.bf16.mxu0 0
    %1310 = vmatmul.mubr.bf16.gmra.mrb[0].mxu0 %v1266
    %v1311 = vpop.f32.mrb[0].mxu0
    %v1312 = vadd.f32 0.0, %v1311
    %v1313 = vpop.f32.mrb[0].mxu0
    %v1314 = vadd.f32 0.0, %v1313
    %v1315 = vpop.f32.mrb[0].mxu0
    %v1316 = vadd.f32 0.0, %v1315
    %v1317 = vpop.f32.mrb[0].mxu0
    %v1318 = vadd.f32 0.0, %v1317
    %1319 = vmatprep.mubr.bf16.mxu0 0
    %1320 = vmatmul.mubr.bf16.gmra.mrb[0].mxu0 %v1269
    %v1321 = vpop.f32.mrb[0].mxu0
    %v1322 = vadd.f32 0.0, %v1321
    %v1323 = vpop.f32.mrb[0].mxu0
    %v1324 = vadd.f32 0.0, %v1323
    %v1325 = vpop.f32.mrb[0].mxu0
    %v1326 = vadd.f32 0.0, %v1325
    %v1327 = vpop.f32.mrb[0].mxu0
    %v1328 = vadd.f32 0.0, %v1327
    %1329 = vmatprep.mubr.bf16.mxu0 0
    %1330 = vmatmul.mubr.bf16.gmra.mrb[0].mxu0 %v1272
    %v1331 = vpop.f32.mrb[0].mxu0
    %v1332 = vadd.f32 0.0, %v1331
    %v1333 = vpop.f32.mrb[0].mxu0
    %v1334 = vadd.f32 0.0, %v1333
    %v1335 = vpop.f32.mrb[0].mxu0
    %v1336 = vadd.f32 0.0, %v1335
    %v1337 = vpop.f32.mrb[0].mxu0
    %v1338 = vadd.f32 0.0, %v1337
    %1339 = vmatprep.mubr.bf16.mxu0 0
    %1340 = vmatmul.mubr.bf16.gmra.mrb[0].mxu0 %v1275
    %v1341 = vpop.f32.mrb[0].mxu0
    %v1342 = vadd.f32 0.0, %v1341
    %v1343 = vpop.f32.mrb[0].mxu0
    %v1344 = vadd.f32 0.0, %v1343
    %v1345 = vpop.f32.mrb[0].mxu0
    %v1346 = vpop.f32.mrb[0].mxu0
    %1347 = vdwg.mxu0
    %1348 = vmatprep.subr.bf16.mxu0 %v1252
    %1349 = vmatpush1.bf16.msra.mxu0 %v1251
    %1350 = vmatprep.subr.bf16.mxu0 %v1256
    %1351 = vmatpush1.bf16.msra.mxu0 %v1255
    %1352 = vmatprep.subr.bf16.mxu0 0
    %1353 = vmatpush1.bf16.msra.mxu0 0
    %1354 = vmatprep.subr.bf16.mxu0 0
    %1355 = vmatpush1.bf16.msra.mxu0 0
    %1356 = vmatprep.subr.bf16.mxu0 0
    %1357 = vmatpush1.bf16.msra.mxu0 0
    %1358 = vmatprep.subr.bf16.mxu0 0
    %1359 = vmatpush1.bf16.msra.mxu0 0
    %1360 = vmatprep.subr.bf16.mxu0 0
    %1361 = vmatpush1.bf16.msra.mxu0 0
    %1362 = vmatprep.subr.bf16.mxu0 0
    %1363 = vmatpush1.bf16.msra.mxu0 0
    %1364 = vmatprep.subr.bf16.mxu0 0
    %1365 = vmatpush1.bf16.msra.mxu0 0
    %1366 = vmatprep.subr.bf16.mxu0 0
    %1367 = vmatpush1.bf16.msra.mxu0 0
    %1368 = vmatprep.subr.bf16.mxu0 0
    %1369 = vmatpush1.bf16.msra.mxu0 0
    %1370 = vmatprep.subr.bf16.mxu0 0
    %1371 = vmatpush1.bf16.msra.mxu0 0
    %1372 = vmatprep.subr.bf16.mxu0 0
    %1373 = vmatpush1.bf16.msra.mxu0 0
    %1374 = vmatprep.subr.bf16.mxu0 0
    %1375 = vmatpush1.bf16.msra.mxu0 0
    %1376 = vmatprep.subr.bf16.mxu0 0
    %1377 = vmatpush1.bf16.msra.mxu0 0
    %1378 = vmatprep.subr.bf16.mxu0 0
    %1379 = vmatpush1.bf16.msra.mxu0 0
    %1380 = vmatprep.mubr.bf16.mxu0 0
    %1381 = vmatmul.mubr.bf16.gmra.mrb[0].mxu0 %v1266
    %v1382 = vpop.f32.mrb[0].mxu0
    %v1383 = vadd.f32 0.0, %v1382
    %v1384 = vpop.f32.mrb[0].mxu0
    %v1385 = vadd.f32 0.0, %v1384
    %v1386 = vpop.f32.mrb[0].mxu0
    %v1387 = vadd.f32 0.0, %v1386
    %v1388 = vpop.f32.mrb[0].mxu0
    %v1389 = vadd.f32 0.0, %v1388
    %1390 = vmatprep.mubr.bf16.mxu0 0
    %1391 = vmatmul.mubr.bf16.gmra.mrb[0].mxu0 %v1269
    %v1392 = vpop.f32.mrb[0].mxu0
    %v1393 = vadd.f32 0.0, %v1392
    %v1394 = vpop.f32.mrb[0].mxu0
    %v1395 = vadd.f32 0.0, %v1394
    %v1396 = vpop.f32.mrb[0].mxu0
    %v1397 = vadd.f32 0.0, %v1396
    %v1398 = vpop.f32.mrb[0].mxu0
    %v1399 = vadd.f32 0.0, %v1398
    %1400 = vmatprep.mubr.bf16.mxu0 0
    %1401 = vmatmul.mubr.bf16.gmra.mrb[0].mxu0 %v1272
    %v1402 = vpop.f32.mrb[0].mxu0
    %v1403 = vadd.f32 0.0, %v1402
    %v1404 = vpop.f32.mrb[0].mxu0
    %v1405 = vadd.f32 0.0, %v1404
    %v1406 = vpop.f32.mrb[0].mxu0
    %v1407 = vadd.f32 0.0, %v1406
    %v1408 = vpop.f32.mrb[0].mxu0
    %v1409 = vadd.f32 0.0, %v1408
    %1410 = vmatprep.mubr.bf16.mxu0 0
    %1411 = vmatmul.mubr.bf16.gmra.mrb[0].mxu0 %v1275
    %v1412 = vpop.f32.mrb[0].mxu0
    %v1413 = vadd.f32 0.0, %v1412
    %v1414 = vpop.f32.mrb[0].mxu0
    %v1415 = vadd.f32 0.0, %v1414
    %v1416 = vpop.f32.mrb[0].mxu0
    %v1417 = vpop.f32.mrb[0].mxu0
    %1418 = vdwg.mxu0
    %v1419 = vadd.f32 %v1120, %v1312
    %v1420 = vadd.f32 %v1121, %v1314
    %v1421 = vadd.f32 %v1122, %v1383
    %v1422 = vadd.f32 %v1123, %v1385
    %v1423 = vadd.f32 %v1124, %v1316
    %v1424 = vadd.f32 %v1125, %v1318
    %v1425 = vadd.f32 %v1126, %v1387
    %v1426 = vadd.f32 %v1127, %v1389
    %v1427 = vadd.f32 %v1128, %v1322
    %v1428 = vadd.f32 %v1129, %v1324
    %v1429 = vadd.f32 %v1130, %v1393
    %v1430 = vadd.f32 %v1131, %v1395
    %v1431 = vadd.f32 %v1132, %v1326
    %v1432 = vadd.f32 %v1133, %v1328
    %v1433 = vadd.f32 %v1134, %v1397
    %v1434 = vadd.f32 %v1135, %v1399
    %v1435 = vadd.f32 %v1136, %v1332
    %v1436 = vadd.f32 %v1137, %v1334
    %v1437 = vadd.f32 %v1138, %v1403
    %v1438 = vadd.f32 %v1139, %v1405
    %v1439 = vadd.f32 %v1140, %v1336
    %v1440 = vadd.f32 %v1141, %v1338
    %v1441 = vadd.f32 %v1142, %v1407
    %v1442 = vadd.f32 %v1143, %v1409
    %v1443 = vadd.f32 %v1144, %v1342
    %v1444 = vadd.f32 %v1145, %v1344
    %v1445 = vadd.f32 %v1146, %v1413
    %v1446 = vadd.f32 %v1147, %v1415
    %s1447 = scalar_lea.vmem %s1, 256
    %v1448 = vld [vmem:[%s1447] sm:$0xff]
    %v1449 = vld [vmem:[%s1447 + $0x8] sm:$0xff]
    %v1450 = vld [vmem:[%s1447 + $0x10] sm:$0xff]
    %v1451 = vld [vmem:[%s1447 + $0x18] sm:$0xff]
    %v1452 = vld [vmem:[%s1447 + $0x20] sm:$0xff]
    %v1453 = vld [vmem:[%s1447 + $0x28] sm:$0xff]
    %v1454 = vld [vmem:[%s1447 + $0x30] sm:$0xff]
    %v1455 = vld [vmem:[%s1447 + $0x38] sm:$0xff]
    %v1457 = vcombine.low %v531, %v573
    %v1458 = vcombine.low %v580, %v622
    %v1459 = vcombine.low %v629, %v654
    %v1460 = vcombine.low %v70, %v71
    %v1462 = vunpack.c.l.s4 1966171168
    %v1463 = vunpack.c.0.s8 %v1462
    %v1464 = vlaneseq
    %v1465 = vshrl.u32 %v1464, 7
    %v1466 = vsub.s32 %v1463, %v1465
    %v1467 = vrot.slane %v1460, %v1466
    %v1468 = vcombine.low %v917, %v1467
    %v1470 = vunpack.c.l.s4 1966171168
    %v1471 = vunpack.c.0.s8 %v1470
    %v1472 = vlaneseq
    %v1473 = vshrl.u32 %v1472, 7
    %v1474 = vsub.s32 %v1471, %v1473
    %v1475 = vrot.slane %v1468, %v1474
    %v1484 = vunpack.c.l.b16 %v1448
    %v1485 = vunpack.c.h.b16 %v1448
    %v1486 = vunpack.c.l.b16 %v1449
    %v1487 = vunpack.c.h.b16 %v1449
    %v1488 = vunpack.c.l.b16 %v1450
    %v1489 = vunpack.c.h.b16 %v1450
    %v1490 = vunpack.c.l.b16 %v1451
    %v1491 = vunpack.c.h.b16 %v1451
    %v1492 = vunpack.c.l.b16 %v1452
    %v1493 = vunpack.c.h.b16 %v1452
    %v1494 = vunpack.c.l.b16 %v1453
    %v1495 = vunpack.c.h.b16 %v1453
    %v1496 = vunpack.c.l.b16 %v1454
    %v1497 = vunpack.c.h.b16 %v1454
    %v1498 = vunpack.c.l.b16 %v1455
    %v1499 = vunpack.c.h.b16 %v1455
    %v1500 = vpack.c.b16 %v1488, %v1484
    %v1501 = vpack.c.b16 %v1489, %v1485
    %v1502 = vpack.c.b16 %v1490, %v1486
    %v1503 = vpack.c.b16 %v1491, %v1487
    %v1504 = vpack.c.b16 %v1496, %v1492
    %v1505 = vpack.c.b16 %v1497, %v1493
    %v1506 = vpack.c.b16 %v1498, %v1494
    %v1507 = vpack.c.b16 %v1499, %v1495
    %v1517 = vsel %vm328, %v1457, 0
    %v1520 = vsel %vm328, %v1458, 0
    %v1523 = vsel %vm328, %v1459, 0
    %v1526 = vsel %vm328, %v1475, 0
    %1528 = vmatprep.subr.bf16.mxu0 %v1501
    %1529 = vmatpush1.bf16.msra.mxu0 %v1500
    %1530 = vmatprep.subr.bf16.mxu0 %v1505
    %1531 = vmatpush1.bf16.msra.mxu0 %v1504
    %1532 = vmatprep.subr.bf16.mxu0 0
    %1533 = vmatpush1.bf16.msra.mxu0 0
    %1534 = vmatprep.subr.bf16.mxu0 0
    %1535 = vmatpush1.bf16.msra.mxu0 0
    %1536 = vmatprep.subr.bf16.mxu0 0
    %1537 = vmatpush1.bf16.msra.mxu0 0
    %1538 = vmatprep.subr.bf16.mxu0 0
    %1539 = vmatpush1.bf16.msra.mxu0 0
    %1540 = vmatprep.subr.bf16.mxu0 0
    %1541 = vmatpush1.bf16.msra.mxu0 0
    %1542 = vmatprep.subr.bf16.mxu0 0
    %1543 = vmatpush1.bf16.msra.mxu0 0
    %1544 = vmatprep.subr.bf16.mxu0 0
    %1545 = vmatpush1.bf16.msra.mxu0 0
    %1546 = vmatprep.subr.bf16.mxu0 0
    %1547 = vmatpush1.bf16.msra.mxu0 0
    %1548 = vmatprep.subr.bf16.mxu0 0
    %1549 = vmatpush1.bf16.msra.mxu0 0
    %1550 = vmatprep.subr.bf16.mxu0 0
    %1551 = vmatpush1.bf16.msra.mxu0 0
    %1552 = vmatprep.subr.bf16.mxu0 0
    %1553 = vmatpush1.bf16.msra.mxu0 0
    %1554 = vmatprep.subr.bf16.mxu0 0
    %1555 = vmatpush1.bf16.msra.mxu0 0
    %1556 = vmatprep.subr.bf16.mxu0 0
    %1557 = vmatpush1.bf16.msra.mxu0 0
    %1558 = vmatprep.subr.bf16.mxu0 0
    %1559 = vmatpush1.bf16.msra.mxu0 0
    %1560 = vmatprep.mubr.bf16.mxu0 0
    %1561 = vmatmul.mubr.bf16.gmra.mrb[0].mxu0 %v1517
    %v1562 = vpop.f32.mrb[0].mxu0
    %v1563 = vadd.f32 0.0, %v1562
    %v1564 = vpop.f32.mrb[0].mxu0
    %v1565 = vadd.f32 0.0, %v1564
    %v1566 = vpop.f32.mrb[0].mxu0
    %v1567 = vadd.f32 0.0, %v1566
    %v1568 = vpop.f32.mrb[0].mxu0
    %v1569 = vadd.f32 0.0, %v1568
    %1570 = vmatprep.mubr.bf16.mxu0 0
    %1571 = vmatmul.mubr.bf16.gmra.mrb[0].mxu0 %v1520
    %v1572 = vpop.f32.mrb[0].mxu0
    %v1573 = vadd.f32 0.0, %v1572
    %v1574 = vpop.f32.mrb[0].mxu0
    %v1575 = vadd.f32 0.0, %v1574
    %v1576 = vpop.f32.mrb[0].mxu0
    %v1577 = vadd.f32 0.0, %v1576
    %v1578 = vpop.f32.mrb[0].mxu0
    %v1579 = vadd.f32 0.0, %v1578
    %1580 = vmatprep.mubr.bf16.mxu0 0
    %1581 = vmatmul.mubr.bf16.gmra.mrb[0].mxu0 %v1523
    %v1582 = vpop.f32.mrb[0].mxu0
    %v1583 = vadd.f32 0.0, %v1582
    %v1584 = vpop.f32.mrb[0].mxu0
    %v1585 = vadd.f32 0.0, %v1584
    %v1586 = vpop.f32.mrb[0].mxu0
    %v1587 = vadd.f32 0.0, %v1586
    %v1588 = vpop.f32.mrb[0].mxu0
    %v1589 = vadd.f32 0.0, %v1588
    %1590 = vmatprep.mubr.bf16.mxu0 0
    %1591 = vmatmul.mubr.bf16.gmra.mrb[0].mxu0 %v1526
    %v1592 = vpop.f32.mrb[0].mxu0
    %v1593 = vadd.f32 0.0, %v1592
    %v1594 = vpop.f32.mrb[0].mxu0
    %v1595 = vadd.f32 0.0, %v1594
    %v1596 = vpop.f32.mrb[0].mxu0
    %v1597 = vpop.f32.mrb[0].mxu0
    %1598 = vdwg.mxu0
    %1599 = vmatprep.subr.bf16.mxu0 %v1503
    %1600 = vmatpush1.bf16.msra.mxu0 %v1502
    %1601 = vmatprep.subr.bf16.mxu0 %v1507
    %1602 = vmatpush1.bf16.msra.mxu0 %v1506
    %1603 = vmatprep.subr.bf16.mxu0 0
    %1604 = vmatpush1.bf16.msra.mxu0 0
    %1605 = vmatprep.subr.bf16.mxu0 0
    %1606 = vmatpush1.bf16.msra.mxu0 0
    %1607 = vmatprep.subr.bf16.mxu0 0
    %1608 = vmatpush1.bf16.msra.mxu0 0
    %1609 = vmatprep.subr.bf16.mxu0 0
    %1610 = vmatpush1.bf16.msra.mxu0 0
    %1611 = vmatprep.subr.bf16.mxu0 0
    %1612 = vmatpush1.bf16.msra.mxu0 0
    %1613 = vmatprep.subr.bf16.mxu0 0
    %1614 = vmatpush1.bf16.msra.mxu0 0
    %1615 = vmatprep.subr.bf16.mxu0 0
    %1616 = vmatpush1.bf16.msra.mxu0 0
    %1617 = vmatprep.subr.bf16.mxu0 0
    %1618 = vmatpush1.bf16.msra.mxu0 0
    %1619 = vmatprep.subr.bf16.mxu0 0
    %1620 = vmatpush1.bf16.msra.mxu0 0
    %1621 = vmatprep.subr.bf16.mxu0 0
    %1622 = vmatpush1.bf16.msra.mxu0 0
    %1623 = vmatprep.subr.bf16.mxu0 0
    %1624 = vmatpush1.bf16.msra.mxu0 0
    %1625 = vmatprep.subr.bf16.mxu0 0
    %1626 = vmatpush1.bf16.msra.mxu0 0
    %1627 = vmatprep.subr.bf16.mxu0 0
    %1628 = vmatpush1.bf16.msra.mxu0 0
    %1629 = vmatprep.subr.bf16.mxu0 0
    %1630 = vmatpush1.bf16.msra.mxu0 0
    %1631 = vmatprep.mubr.bf16.mxu0 0
    %1632 = vmatmul.mubr.bf16.gmra.mrb[0].mxu0 %v1517
    %v1633 = vpop.f32.mrb[0].mxu0
    %v1634 = vadd.f32 0.0, %v1633
    %v1635 = vpop.f32.mrb[0].mxu0
    %v1636 = vadd.f32 0.0, %v1635
    %v1637 = vpop.f32.mrb[0].mxu0
    %v1638 = vadd.f32 0.0, %v1637
    %v1639 = vpop.f32.mrb[0].mxu0
    %v1640 = vadd.f32 0.0, %v1639
    %1641 = vmatprep.mubr.bf16.mxu0 0
    %1642 = vmatmul.mubr.bf16.gmra.mrb[0].mxu0 %v1520
    %v1643 = vpop.f32.mrb[0].mxu0
    %v1644 = vadd.f32 0.0, %v1643
    %v1645 = vpop.f32.mrb[0].mxu0
    %v1646 = vadd.f32 0.0, %v1645
    %v1647 = vpop.f32.mrb[0].mxu0
    %v1648 = vadd.f32 0.0, %v1647
    %v1649 = vpop.f32.mrb[0].mxu0
    %v1650 = vadd.f32 0.0, %v1649
    %1651 = vmatprep.mubr.bf16.mxu0 0
    %1652 = vmatmul.mubr.bf16.gmra.mrb[0].mxu0 %v1523
    %v1653 = vpop.f32.mrb[0].mxu0
    %v1654 = vadd.f32 0.0, %v1653
    %v1655 = vpop.f32.mrb[0].mxu0
    %v1656 = vadd.f32 0.0, %v1655
    %v1657 = vpop.f32.mrb[0].mxu0
    %v1658 = vadd.f32 0.0, %v1657
    %v1659 = vpop.f32.mrb[0].mxu0
    %v1660 = vadd.f32 0.0, %v1659
    %1661 = vmatprep.mubr.bf16.mxu0 0
    %1662 = vmatmul.mubr.bf16.gmra.mrb[0].mxu0 %v1526
    %v1663 = vpop.f32.mrb[0].mxu0
    %v1664 = vadd.f32 0.0, %v1663
    %v1665 = vpop.f32.mrb[0].mxu0
    %v1666 = vadd.f32 0.0, %v1665
    %v1667 = vpop.f32.mrb[0].mxu0
    %v1668 = vpop.f32.mrb[0].mxu0
    %1669 = vdwg.mxu0
    %v1670 = vadd.f32 %v1419, %v1563
    %v1671 = vadd.f32 %v1420, %v1565
    %v1672 = vadd.f32 %v1421, %v1634
    %v1673 = vadd.f32 %v1422, %v1636
    %v1674 = vadd.f32 %v1423, %v1567
    %v1675 = vadd.f32 %v1424, %v1569
    %v1676 = vadd.f32 %v1425, %v1638
    %v1677 = vadd.f32 %v1426, %v1640
    %v1678 = vadd.f32 %v1427, %v1573
    %v1679 = vadd.f32 %v1428, %v1575
    %v1680 = vadd.f32 %v1429, %v1644
    %v1681 = vadd.f32 %v1430, %v1646
    %v1682 = vadd.f32 %v1431, %v1577
    %v1683 = vadd.f32 %v1432, %v1579
    %v1684 = vadd.f32 %v1433, %v1648
    %v1685 = vadd.f32 %v1434, %v1650
    %v1686 = vadd.f32 %v1435, %v1583
    %v1687 = vadd.f32 %v1436, %v1585
    %v1688 = vadd.f32 %v1437, %v1654
    %v1689 = vadd.f32 %v1438, %v1656
    %v1690 = vadd.f32 %v1439, %v1587
    %v1691 = vadd.f32 %v1440, %v1589
    %v1692 = vadd.f32 %v1441, %v1658
    %v1693 = vadd.f32 %v1442, %v1660
    %v1694 = vadd.f32 %v1443, %v1593
    %v1695 = vadd.f32 %v1444, %v1595
    %v1696 = vadd.f32 %v1445, %v1664
    %v1697 = vadd.f32 %v1446, %v1666
    %v1698 = vld [vmem:[%s4] sm:$0xff]
    %v1699 = vld [vmem:[%s4 + $0x8] sm:$0xff]
    %v1700 = vld [vmem:[%s4 + $0x10] sm:$0xff]
    %v1701 = vld [vmem:[%s4 + $0x18] sm:$0xff]
    %v1702 = vld [vmem:[%s4 + $0x20] sm:$0xff]
    %v1703 = vld [vmem:[%s4 + $0x28] sm:$0xff]
    %v1704 = vld [vmem:[%s4 + $0x30] sm:$0xff]
    %v1705 = vld [vmem:[%s4 + $0x38] sm:$0xff]
    %v1706 = vld [vmem:[%s4 + $0x40] sm:$0xff]
    %v1707 = vld [vmem:[%s4 + $0x48] sm:$0xff]
    %v1708 = vld [vmem:[%s4 + $0x50] sm:$0xff]
    %v1709 = vld [vmem:[%s4 + $0x58] sm:$0xff]
    %v1710 = vld [vmem:[%s4 + $0x60] sm:$0xff]
    %v1711 = vld [vmem:[%s4 + $0x68] sm:$0xff]
    %v1712 = vld [vmem:[%s4 + $0x70] sm:$0xff]
    %v1713 = vld [vmem:[%s4 + $0x78] sm:$0xff]
    %v1714 = vld [vmem:[%s4 + $0x80] sm:$0xff]
    %v1715 = vld [vmem:[%s4 + $0x88] sm:$0xff]
    %v1716 = vld [vmem:[%s4 + $0x90] sm:$0xff]
    %v1717 = vld [vmem:[%s4 + $0x98] sm:$0xff]
    %v1718 = vld [vmem:[%s4 + $0xa0] sm:$0xff]
    %v1719 = vld [vmem:[%s4 + $0xa8] sm:$0xff]
    %v1720 = vld [vmem:[%s4 + $0xb0] sm:$0xff]
    %v1721 = vld [vmem:[%s4 + $0xb8] sm:$0xff]
    %v1722 = vld [vmem:[%s4 + $0xc0] sm:$0xff]
    %v1723 = vld [vmem:[%s4 + $0xc8] sm:$0xff]
    %v1724 = vld [vmem:[%s4 + $0xd0] sm:$0xff]
    %v1725 = vld [vmem:[%s4 + $0xd8] sm:$0xff]
    %v1726 = vld [vmem:[%s4 + $0xe0] sm:$0xff]
    %v1727 = vld [vmem:[%s4 + $0xe8] sm:$0xff]
    %v1728 = vld [vmem:[%s4 + $0xf0] sm:$0xff]
    %v1729 = vld [vmem:[%s4 + $0xf8] sm:$0xff]
    %v1730 = vld [vmem:[%s4 + $0x100] sm:$0xff]
    %v1731 = vld [vmem:[%s4 + $0x108] sm:$0xff]
    %v1732 = vld [vmem:[%s4 + $0x110] sm:$0xff]
    %v1733 = vld [vmem:[%s4 + $0x118] sm:$0xff]
    %v1734 = vld [vmem:[%s4 + $0x120] sm:$0xff]
    %v1735 = vld [vmem:[%s4 + $0x128] sm:$0xff]
    %v1736 = vld [vmem:[%s4 + $0x130] sm:$0xff]
    %v1737 = vld [vmem:[%s4 + $0x138] sm:$0xff]
    %v1738 = vld [vmem:[%s4 + $0x140] sm:$0xff]
    %v1739 = vld [vmem:[%s4 + $0x148] sm:$0xff]
    %v1740 = vld [vmem:[%s4 + $0x150] sm:$0xff]
    %v1741 = vld [vmem:[%s4 + $0x158] sm:$0xff]
    %v1742 = vld [vmem:[%s4 + $0x160] sm:$0xff]
    %v1743 = vld [vmem:[%s4 + $0x168] sm:$0xff]
    %v1744 = vld [vmem:[%s4 + $0x170] sm:$0xff]
    %v1745 = vld [vmem:[%s4 + $0x178] sm:$0xff]
    %v1746 = vld [vmem:[%s4 + $0x180] sm:$0xff]
    %v1747 = vld [vmem:[%s4 + $0x188] sm:$0xff]
    %v1748 = vld [vmem:[%s4 + $0x190] sm:$0xff]
    %v1749 = vld [vmem:[%s4 + $0x198] sm:$0xff]
    %v1750 = vld [vmem:[%s4 + $0x1a0] sm:$0xff]
    %v1751 = vld [vmem:[%s4 + $0x1a8] sm:$0xff]
    %v1752 = vld [vmem:[%s4 + $0x1b0] sm:$0xff]
    %v1753 = vld [vmem:[%s4 + $0x1b8] sm:$0xff]
    %v1754 = vld [vmem:[%s4 + $0x1c0] sm:$0xff]
    %v1755 = vld [vmem:[%s4 + $0x1c8] sm:$0xff]
    %v1756 = vld [vmem:[%s4 + $0x1d0] sm:$0xff]
    %v1757 = vld [vmem:[%s4 + $0x1d8] sm:$0xff]
    %v1758 = vld [vmem:[%s4 + $0x1e0] sm:$0xff]
    %v1759 = vld [vmem:[%s4 + $0x1e8] sm:$0xff]
    %v1760 = vld [vmem:[%s4 + $0x1f0] sm:$0xff]
    %v1761 = vld [vmem:[%s4 + $0x1f8] sm:$0xff]
    %1762 = vmatprep.subr.mxu0 0.0
    %1763 = vmatpush1.msra.mxu0 %v1698
    %1764 = vmatprep.subr.mxu0 0.0
    %1765 = vmatpush1.msra.mxu0 %v1699
    %1766 = vmatprep.subr.mxu0 0.0
    %1767 = vmatpush1.msra.mxu0 %v1700
    %1768 = vmatprep.subr.mxu0 0.0
    %1769 = vmatpush1.msra.mxu0 %v1701
    %1770 = vmatprep.subr.mxu0 0.0
    %1771 = vmatpush1.msra.mxu0 %v1702
    %1772 = vmatprep.subr.mxu0 0.0
    %1773 = vmatpush1.msra.mxu0 %v1703
    %1774 = vmatprep.subr.mxu0 0.0
    %1775 = vmatpush1.msra.mxu0 %v1704
    %1776 = vmatprep.subr.mxu0 0.0
    %1777 = vmatpush1.msra.mxu0 %v1705
    %1778 = vmatprep.subr.mxu0 0.0
    %1779 = vmatpush1.msra.mxu0 %v1706
    %1780 = vmatprep.subr.mxu0 0.0
    %1781 = vmatpush1.msra.mxu0 %v1707
    %1782 = vmatprep.subr.mxu0 0.0
    %1783 = vmatpush1.msra.mxu0 %v1708
    %1784 = vmatprep.subr.mxu0 0.0
    %1785 = vmatpush1.msra.mxu0 %v1709
    %1786 = vmatprep.subr.mxu0 0.0
    %1787 = vmatpush1.msra.mxu0 %v1710
    %1788 = vmatprep.subr.mxu0 0.0
    %1789 = vmatpush1.msra.mxu0 %v1711
    %1790 = vmatprep.subr.mxu0 0.0
    %1791 = vmatpush1.msra.mxu0 %v1712
    %1792 = vmatprep.subr.mxu0 0.0
    %1793 = vmatpush1.msra.mxu0 %v1713
    %1794 = vmatprep.subr.mxu0 0.0
    %1795 = vmatpush1.msra.mxu0 %v1714
    %1796 = vmatprep.subr.mxu0 0.0
    %1797 = vmatpush1.msra.mxu0 %v1715
    %1798 = vmatprep.subr.mxu0 0.0
    %1799 = vmatpush1.msra.mxu0 %v1716
    %1800 = vmatprep.subr.mxu0 0.0
    %1801 = vmatpush1.msra.mxu0 %v1717
    %1802 = vmatprep.subr.mxu0 0.0
    %1803 = vmatpush1.msra.mxu0 %v1718
    %1804 = vmatprep.subr.mxu0 0.0
    %1805 = vmatpush1.msra.mxu0 %v1719
    %1806 = vmatprep.subr.mxu0 0.0
    %1807 = vmatpush1.msra.mxu0 %v1720
    %1808 = vmatprep.subr.mxu0 0.0
    %1809 = vmatpush1.msra.mxu0 %v1721
    %1810 = vmatprep.subr.mxu0 0.0
    %1811 = vmatpush1.msra.mxu0 %v1722
    %1812 = vmatprep.subr.mxu0 0.0
    %1813 = vmatpush1.msra.mxu0 %v1723
    %1814 = vmatprep.subr.mxu0 0.0
    %1815 = vmatpush1.msra.mxu0 %v1724
    %1816 = vmatprep.subr.mxu0 0.0
    %1817 = vmatpush1.msra.mxu0 %v1725
    %1818 = vmatprep.subr.mxu0 0.0
    %1819 = vmatpush1.msra.mxu0 %v1726
    %1820 = vmatprep.subr.mxu0 0.0
    %1821 = vmatpush1.msra.mxu0 %v1727
    %1822 = vmatprep.subr.mxu0 0.0
    %1823 = vmatpush1.msra.mxu0 %v1728
    %1824 = vmatprep.subr.mxu0 0.0
    %1825 = vmatpush1.msra.mxu0 %v1729
    %1826 = vmatprep.mubr.f32.mxu0 %v1671
    %1827 = vmatmul.mubr.f32.gmra.mrb[0].mxu0 %v1670
    %v1828 = vpop.f32.mrb[0].mxu0
    %v1829 = vadd.f32 0.0, %v1828
    %v1830 = vpop.f32.mrb[0].mxu0
    %1831 = vmatprep.mubr.f32.mxu0 %v1675
    %1832 = vmatmul.mubr.f32.gmra.mrb[0].mxu0 %v1674
    %v1833 = vpop.f32.mrb[0].mxu0
    %v1834 = vadd.f32 0.0, %v1833
    %v1835 = vpop.f32.mrb[0].mxu0
    %1836 = vmatprep.mubr.f32.mxu0 %v1679
    %1837 = vmatmul.mubr.f32.gmra.mrb[0].mxu0 %v1678
    %v1838 = vpop.f32.mrb[0].mxu0
    %v1839 = vadd.f32 0.0, %v1838
    %v1840 = vpop.f32.mrb[0].mxu0
    %1841 = vmatprep.mubr.f32.mxu0 %v1683
    %1842 = vmatmul.mubr.f32.gmra.mrb[0].mxu0 %v1682
    %v1843 = vpop.f32.mrb[0].mxu0
    %v1844 = vadd.f32 0.0, %v1843
    %v1845 = vpop.f32.mrb[0].mxu0
    %1846 = vmatprep.mubr.f32.mxu0 %v1687
    %1847 = vmatmul.mubr.f32.gmra.mrb[0].mxu0 %v1686
    %v1848 = vpop.f32.mrb[0].mxu0
    %v1849 = vadd.f32 0.0, %v1848
    %v1850 = vpop.f32.mrb[0].mxu0
    %1851 = vmatprep.mubr.f32.mxu0 %v1691
    %1852 = vmatmul.mubr.f32.gmra.mrb[0].mxu0 %v1690
    %v1853 = vpop.f32.mrb[0].mxu0
    %v1854 = vadd.f32 0.0, %v1853
    %v1855 = vpop.f32.mrb[0].mxu0
    %1856 = vmatprep.mubr.f32.mxu0 %v1695
    %1857 = vmatmul.mubr.f32.gmra.mrb[0].mxu0 %v1694
    %v1858 = vpop.f32.mrb[0].mxu0
    %v1859 = vadd.f32 0.0, %v1858
    %v1860 = vpop.f32.mrb[0].mxu0
    %1861 = vdwg.mxu0
    %1862 = vmatprep.subr.mxu0 0.0
    %1863 = vmatpush1.msra.mxu0 %v1730
    %1864 = vmatprep.subr.mxu0 0.0
    %1865 = vmatpush1.msra.mxu0 %v1731
    %1866 = vmatprep.subr.mxu0 0.0
    %1867 = vmatpush1.msra.mxu0 %v1732
    %1868 = vmatprep.subr.mxu0 0.0
    %1869 = vmatpush1.msra.mxu0 %v1733
    %1870 = vmatprep.subr.mxu0 0.0
    %1871 = vmatpush1.msra.mxu0 %v1734
    %1872 = vmatprep.subr.mxu0 0.0
    %1873 = vmatpush1.msra.mxu0 %v1735
    %1874 = vmatprep.subr.mxu0 0.0
    %1875 = vmatpush1.msra.mxu0 %v1736
    %1876 = vmatprep.subr.mxu0 0.0
    %1877 = vmatpush1.msra.mxu0 %v1737
    %1878 = vmatprep.subr.mxu0 0.0
    %1879 = vmatpush1.msra.mxu0 %v1738
    %1880 = vmatprep.subr.mxu0 0.0
    %1881 = vmatpush1.msra.mxu0 %v1739
    %1882 = vmatprep.subr.mxu0 0.0
    %1883 = vmatpush1.msra.mxu0 %v1740
    %1884 = vmatprep.subr.mxu0 0.0
    %1885 = vmatpush1.msra.mxu0 %v1741
    %1886 = vmatprep.subr.mxu0 0.0
    %1887 = vmatpush1.msra.mxu0 %v1742
    %1888 = vmatprep.subr.mxu0 0.0
    %1889 = vmatpush1.msra.mxu0 %v1743
    %1890 = vmatprep.subr.mxu0 0.0
    %1891 = vmatpush1.msra.mxu0 %v1744
    %1892 = vmatprep.subr.mxu0 0.0
    %1893 = vmatpush1.msra.mxu0 %v1745
    %1894 = vmatprep.subr.mxu0 0.0
    %1895 = vmatpush1.msra.mxu0 %v1746
    %1896 = vmatprep.subr.mxu0 0.0
    %1897 = vmatpush1.msra.mxu0 %v1747
    %1898 = vmatprep.subr.mxu0 0.0
    %1899 = vmatpush1.msra.mxu0 %v1748
    %1900 = vmatprep.subr.mxu0 0.0
    %1901 = vmatpush1.msra.mxu0 %v1749
    %1902 = vmatprep.subr.mxu0 0.0
    %1903 = vmatpush1.msra.mxu0 %v1750
    %1904 = vmatprep.subr.mxu0 0.0
    %1905 = vmatpush1.msra.mxu0 %v1751
    %1906 = vmatprep.subr.mxu0 0.0
    %1907 = vmatpush1.msra.mxu0 %v1752
    %1908 = vmatprep.subr.mxu0 0.0
    %1909 = vmatpush1.msra.mxu0 %v1753
    %1910 = vmatprep.subr.mxu0 0.0
    %1911 = vmatpush1.msra.mxu0 %v1754
    %1912 = vmatprep.subr.mxu0 0.0
    %1913 = vmatpush1.msra.mxu0 %v1755
    %1914 = vmatprep.subr.mxu0 0.0
    %1915 = vmatpush1.msra.mxu0 %v1756
    %1916 = vmatprep.subr.mxu0 0.0
    %1917 = vmatpush1.msra.mxu0 %v1757
    %1918 = vmatprep.subr.mxu0 0.0
    %1919 = vmatpush1.msra.mxu0 %v1758
    %1920 = vmatprep.subr.mxu0 0.0
    %1921 = vmatpush1.msra.mxu0 %v1759
    %1922 = vmatprep.subr.mxu0 0.0
    %1923 = vmatpush1.msra.mxu0 %v1760
    %1924 = vmatprep.subr.mxu0 0.0
    %1925 = vmatpush1.msra.mxu0 %v1761
    %1926 = vmatprep.mubr.f32.mxu0 %v1673
    %1927 = vmatmul.mubr.f32.gmra.mrb[0].mxu0 %v1672
    %v1928 = vpop.f32.mrb[0].mxu0
    %v1929 = vadd.f32 %v1829, %v1928
    %v1930 = vpop.f32.mrb[0].mxu0
    %1931 = vmatprep.mubr.f32.mxu0 %v1677
    %1932 = vmatmul.mubr.f32.gmra.mrb[0].mxu0 %v1676
    %v1933 = vpop.f32.mrb[0].mxu0
    %v1934 = vadd.f32 %v1834, %v1933
    %v1935 = vpop.f32.mrb[0].mxu0
    %1936 = vmatprep.mubr.f32.mxu0 %v1681
    %1937 = vmatmul.mubr.f32.gmra.mrb[0].mxu0 %v1680
    %v1938 = vpop.f32.mrb[0].mxu0
    %v1939 = vadd.f32 %v1839, %v1938
    %v1940 = vpop.f32.mrb[0].mxu0
    %1941 = vmatprep.mubr.f32.mxu0 %v1685
    %1942 = vmatmul.mubr.f32.gmra.mrb[0].mxu0 %v1684
    %v1943 = vpop.f32.mrb[0].mxu0
    %v1944 = vadd.f32 %v1844, %v1943
    %v1945 = vpop.f32.mrb[0].mxu0
    %1946 = vmatprep.mubr.f32.mxu0 %v1689
    %1947 = vmatmul.mubr.f32.gmra.mrb[0].mxu0 %v1688
    %v1948 = vpop.f32.mrb[0].mxu0
    %v1949 = vadd.f32 %v1849, %v1948
    %v1950 = vpop.f32.mrb[0].mxu0
    %1951 = vmatprep.mubr.f32.mxu0 %v1693
    %1952 = vmatmul.mubr.f32.gmra.mrb[0].mxu0 %v1692
    %v1953 = vpop.f32.mrb[0].mxu0
    %v1954 = vadd.f32 %v1854, %v1953
    %v1955 = vpop.f32.mrb[0].mxu0
    %1956 = vmatprep.mubr.f32.mxu0 %v1697
    %1957 = vmatmul.mubr.f32.gmra.mrb[0].mxu0 %v1696
    %v1958 = vpop.f32.mrb[0].mxu0
    %v1959 = vadd.f32 %v1859, %v1958
    %v1960 = vpop.f32.mrb[0].mxu0
    %1961 = vdwg.mxu0
    %vm1962 = vcmask 130048
    %v1963 = vsel %vm1962, %v1929, 0.0
    %v1964 = vsel %vm1962, %v1934, 0.0
    %v1965 = vadd.f32 %v1963, %v1964
    %v1966 = vsel %vm1962, %v1939, 0.0
    %v1967 = vadd.f32 %v1965, %v1966
    %v1968 = vsel %vm1962, %v1944, 0.0
    %v1969 = vadd.f32 %v1967, %v1968
    %v1970 = vsel %vm1962, %v1949, 0.0
    %v1971 = vadd.f32 %v1969, %v1970
    %v1972 = vsel %vm1962, %v1954, 0.0
    %v1973 = vadd.f32 %v1971, %v1972
    %v1974 = vsel %vm1962, %v1959, 0.0
    %v1975 = vadd.f32 %v1973, %v1974
    %v1976 = vrot.slane %v1975, 4
    %v1977 = vadd.f32 %v1975, %v1976
    %v1978 = vrot.slane %v1977, 2
    %v1979 = vadd.f32 %v1977, %v1978
    %v1980 = vrot.slane %v1979, 1
    %v1981 = vadd.f32 %v1979, %v1980
    %v1982 = vmul.f32 %v1670, %v1670
    %v1983 = vmul.f32 %v1671, %v1671
    %v1984 = vmul.f32 %v1672, %v1672
    %v1985 = vmul.f32 %v1673, %v1673
    %v1986 = vmul.f32 %v1674, %v1674
    %v1987 = vmul.f32 %v1675, %v1675
    %v1988 = vmul.f32 %v1676, %v1676
    %v1989 = vmul.f32 %v1677, %v1677
    %v1990 = vmul.f32 %v1678, %v1678
    %v1991 = vmul.f32 %v1679, %v1679
    %v1992 = vmul.f32 %v1680, %v1680
    %v1993 = vmul.f32 %v1681, %v1681
    %v1994 = vmul.f32 %v1682, %v1682
    %v1995 = vmul.f32 %v1683, %v1683
    %v1996 = vmul.f32 %v1684, %v1684
    %v1997 = vmul.f32 %v1685, %v1685
    %v1998 = vmul.f32 %v1686, %v1686
    %v1999 = vmul.f32 %v1687, %v1687
    %v2000 = vmul.f32 %v1688, %v1688
    %v2001 = vmul.f32 %v1689, %v1689
    %v2002 = vmul.f32 %v1690, %v1690
    %v2003 = vmul.f32 %v1691, %v1691
    %v2004 = vmul.f32 %v1692, %v1692
    %v2005 = vmul.f32 %v1693, %v1693
    %v2006 = vmul.f32 %v1694, %v1694
    %v2007 = vmul.f32 %v1695, %v1695
    %v2008 = vmul.f32 %v1696, %v1696
    %v2009 = vmul.f32 %v1697, %v1697
    %2010 = vmatprep.subr.mxu0 0.0
    %2011 = vmatpush1.msra.mxu0 %v1698
    %2012 = vmatprep.subr.mxu0 0.0
    %2013 = vmatpush1.msra.mxu0 %v1699
    %2014 = vmatprep.subr.mxu0 0.0
    %2015 = vmatpush1.msra.mxu0 %v1700
    %2016 = vmatprep.subr.mxu0 0.0
    %2017 = vmatpush1.msra.mxu0 %v1701
    %2018 = vmatprep.subr.mxu0 0.0
    %2019 = vmatpush1.msra.mxu0 %v1702
    %2020 = vmatprep.subr.mxu0 0.0
    %2021 = vmatpush1.msra.mxu0 %v1703
    %2022 = vmatprep.subr.mxu0 0.0
    %2023 = vmatpush1.msra.mxu0 %v1704
    %2024 = vmatprep.subr.mxu0 0.0
    %2025 = vmatpush1.msra.mxu0 %v1705
    %2026 = vmatprep.subr.mxu0 0.0
    %2027 = vmatpush1.msra.mxu0 %v1706
    %2028 = vmatprep.subr.mxu0 0.0
    %2029 = vmatpush1.msra.mxu0 %v1707
    %2030 = vmatprep.subr.mxu0 0.0
    %2031 = vmatpush1.msra.mxu0 %v1708
    %2032 = vmatprep.subr.mxu0 0.0
    %2033 = vmatpush1.msra.mxu0 %v1709
    %2034 = vmatprep.subr.mxu0 0.0
    %2035 = vmatpush1.msra.mxu0 %v1710
    %2036 = vmatprep.subr.mxu0 0.0
    %2037 = vmatpush1.msra.mxu0 %v1711
    %2038 = vmatprep.subr.mxu0 0.0
    %2039 = vmatpush1.msra.mxu0 %v1712
    %2040 = vmatprep.subr.mxu0 0.0
    %2041 = vmatpush1.msra.mxu0 %v1713
    %2042 = vmatprep.subr.mxu0 0.0
    %2043 = vmatpush1.msra.mxu0 %v1714
    %2044 = vmatprep.subr.mxu0 0.0
    %2045 = vmatpush1.msra.mxu0 %v1715
    %2046 = vmatprep.subr.mxu0 0.0
    %2047 = vmatpush1.msra.mxu0 %v1716
    %2048 = vmatprep.subr.mxu0 0.0
    %2049 = vmatpush1.msra.mxu0 %v1717
    %2050 = vmatprep.subr.mxu0 0.0
    %2051 = vmatpush1.msra.mxu0 %v1718
    %2052 = vmatprep.subr.mxu0 0.0
    %2053 = vmatpush1.msra.mxu0 %v1719
    %2054 = vmatprep.subr.mxu0 0.0
    %2055 = vmatpush1.msra.mxu0 %v1720
    %2056 = vmatprep.subr.mxu0 0.0
    %2057 = vmatpush1.msra.mxu0 %v1721
    %2058 = vmatprep.subr.mxu0 0.0
    %2059 = vmatpush1.msra.mxu0 %v1722
    %2060 = vmatprep.subr.mxu0 0.0
    %2061 = vmatpush1.msra.mxu0 %v1723
    %2062 = vmatprep.subr.mxu0 0.0
    %2063 = vmatpush1.msra.mxu0 %v1724
    %2064 = vmatprep.subr.mxu0 0.0
    %2065 = vmatpush1.msra.mxu0 %v1725
    %2066 = vmatprep.subr.mxu0 0.0
    %2067 = vmatpush1.msra.mxu0 %v1726
    %2068 = vmatprep.subr.mxu0 0.0
    %2069 = vmatpush1.msra.mxu0 %v1727
    %2070 = vmatprep.subr.mxu0 0.0
    %2071 = vmatpush1.msra.mxu0 %v1728
    %2072 = vmatprep.subr.mxu0 0.0
    %2073 = vmatpush1.msra.mxu0 %v1729
    %2074 = vmatprep.mubr.f32.mxu0 %v1983
    %2075 = vmatmul.mubr.f32.gmra.mrb[0].mxu0 %v1982
    %v2076 = vpop.f32.mrb[0].mxu0
    %v2077 = vadd.f32 0.0, %v2076
    %v2078 = vpop.f32.mrb[0].mxu0
    %2079 = vmatprep.mubr.f32.mxu0 %v1987
    %2080 = vmatmul.mubr.f32.gmra.mrb[0].mxu0 %v1986
    %v2081 = vpop.f32.mrb[0].mxu0
    %v2082 = vadd.f32 0.0, %v2081
    %v2083 = vpop.f32.mrb[0].mxu0
    %2084 = vmatprep.mubr.f32.mxu0 %v1991
    %2085 = vmatmul.mubr.f32.gmra.mrb[0].mxu0 %v1990
    %v2086 = vpop.f32.mrb[0].mxu0
    %v2087 = vadd.f32 0.0, %v2086
    %v2088 = vpop.f32.mrb[0].mxu0
    %2089 = vmatprep.mubr.f32.mxu0 %v1995
    %2090 = vmatmul.mubr.f32.gmra.mrb[0].mxu0 %v1994
    %v2091 = vpop.f32.mrb[0].mxu0
    %v2092 = vadd.f32 0.0, %v2091
    %v2093 = vpop.f32.mrb[0].mxu0
    %2094 = vmatprep.mubr.f32.mxu0 %v1999
    %2095 = vmatmul.mubr.f32.gmra.mrb[0].mxu0 %v1998
    %v2096 = vpop.f32.mrb[0].mxu0
    %v2097 = vadd.f32 0.0, %v2096
    %v2098 = vpop.f32.mrb[0].mxu0
    %2099 = vmatprep.mubr.f32.mxu0 %v2003
    %2100 = vmatmul.mubr.f32.gmra.mrb[0].mxu0 %v2002
    %v2101 = vpop.f32.mrb[0].mxu0
    %v2102 = vadd.f32 0.0, %v2101
    %v2103 = vpop.f32.mrb[0].mxu0
    %2104 = vmatprep.mubr.f32.mxu0 %v2007
    %2105 = vmatmul.mubr.f32.gmra.mrb[0].mxu0 %v2006
    %v2106 = vpop.f32.mrb[0].mxu0
    %v2107 = vadd.f32 0.0, %v2106
    %v2108 = vpop.f32.mrb[0].mxu0
    %2109 = vdwg.mxu0
    %2110 = vmatprep.subr.mxu0 0.0
    %2111 = vmatpush1.msra.mxu0 %v1730
    %2112 = vmatprep.subr.mxu0 0.0
    %2113 = vmatpush1.msra.mxu0 %v1731
    %2114 = vmatprep.subr.mxu0 0.0
    %2115 = vmatpush1.msra.mxu0 %v1732
    %2116 = vmatprep.subr.mxu0 0.0
    %2117 = vmatpush1.msra.mxu0 %v1733
    %2118 = vmatprep.subr.mxu0 0.0
    %2119 = vmatpush1.msra.mxu0 %v1734
    %2120 = vmatprep.subr.mxu0 0.0
    %2121 = vmatpush1.msra.mxu0 %v1735
    %2122 = vmatprep.subr.mxu0 0.0
    %2123 = vmatpush1.msra.mxu0 %v1736
    %2124 = vmatprep.subr.mxu0 0.0
    %2125 = vmatpush1.msra.mxu0 %v1737
    %2126 = vmatprep.subr.mxu0 0.0
    %2127 = vmatpush1.msra.mxu0 %v1738
    %2128 = vmatprep.subr.mxu0 0.0
    %2129 = vmatpush1.msra.mxu0 %v1739
    %2130 = vmatprep.subr.mxu0 0.0
    %2131 = vmatpush1.msra.mxu0 %v1740
    %2132 = vmatprep.subr.mxu0 0.0
    %2133 = vmatpush1.msra.mxu0 %v1741
    %2134 = vmatprep.subr.mxu0 0.0
    %2135 = vmatpush1.msra.mxu0 %v1742
    %2136 = vmatprep.subr.mxu0 0.0
    %2137 = vmatpush1.msra.mxu0 %v1743
    %2138 = vmatprep.subr.mxu0 0.0
    %2139 = vmatpush1.msra.mxu0 %v1744
    %2140 = vmatprep.subr.mxu0 0.0
    %2141 = vmatpush1.msra.mxu0 %v1745
    %2142 = vmatprep.subr.mxu0 0.0
    %2143 = vmatpush1.msra.mxu0 %v1746
    %2144 = vmatprep.subr.mxu0 0.0
    %2145 = vmatpush1.msra.mxu0 %v1747
    %2146 = vmatprep.subr.mxu0 0.0
    %2147 = vmatpush1.msra.mxu0 %v1748
    %2148 = vmatprep.subr.mxu0 0.0
    %2149 = vmatpush1.msra.mxu0 %v1749
    %2150 = vmatprep.subr.mxu0 0.0
    %2151 = vmatpush1.msra.mxu0 %v1750
    %2152 = vmatprep.subr.mxu0 0.0
    %2153 = vmatpush1.msra.mxu0 %v1751
    %2154 = vmatprep.subr.mxu0 0.0
    %2155 = vmatpush1.msra.mxu0 %v1752
    %2156 = vmatprep.subr.mxu0 0.0
    %2157 = vmatpush1.msra.mxu0 %v1753
    %2158 = vmatprep.subr.mxu0 0.0
    %2159 = vmatpush1.msra.mxu0 %v1754
    %2160 = vmatprep.subr.mxu0 0.0
    %2161 = vmatpush1.msra.mxu0 %v1755
    %2162 = vmatprep.subr.mxu0 0.0
    %2163 = vmatpush1.msra.mxu0 %v1756
    %2164 = vmatprep.subr.mxu0 0.0
    %2165 = vmatpush1.msra.mxu0 %v1757
    %2166 = vmatprep.subr.mxu0 0.0
    %2167 = vmatpush1.msra.mxu0 %v1758
    %2168 = vmatprep.subr.mxu0 0.0
    %2169 = vmatpush1.msra.mxu0 %v1759
    %2170 = vmatprep.subr.mxu0 0.0
    %2171 = vmatpush1.msra.mxu0 %v1760
    %2172 = vmatprep.subr.mxu0 0.0
    %2173 = vmatpush1.msra.mxu0 %v1761
    %2174 = vmatprep.mubr.f32.mxu0 %v1985
    %2175 = vmatmul.mubr.f32.gmra.mrb[0].mxu0 %v1984
    %v2176 = vpop.f32.mrb[0].mxu0
    %v2177 = vadd.f32 %v2077, %v2176
    %v2178 = vpop.f32.mrb[0].mxu0
    %2179 = vmatprep.mubr.f32.mxu0 %v1989
    %2180 = vmatmul.mubr.f32.gmra.mrb[0].mxu0 %v1988
    %v2181 = vpop.f32.mrb[0].mxu0
    %v2182 = vadd.f32 %v2082, %v2181
    %v2183 = vpop.f32.mrb[0].mxu0
    %2184 = vmatprep.mubr.f32.mxu0 %v1993
    %2185 = vmatmul.mubr.f32.gmra.mrb[0].mxu0 %v1992
    %v2186 = vpop.f32.mrb[0].mxu0
    %v2187 = vadd.f32 %v2087, %v2186
    %v2188 = vpop.f32.mrb[0].mxu0
    %2189 = vmatprep.mubr.f32.mxu0 %v1997
    %2190 = vmatmul.mubr.f32.gmra.mrb[0].mxu0 %v1996
    %v2191 = vpop.f32.mrb[0].mxu0
    %v2192 = vadd.f32 %v2092, %v2191
    %v2193 = vpop.f32.mrb[0].mxu0
    %2194 = vmatprep.mubr.f32.mxu0 %v2001
    %2195 = vmatmul.mubr.f32.gmra.mrb[0].mxu0 %v2000
    %v2196 = vpop.f32.mrb[0].mxu0
    %v2197 = vadd.f32 %v2097, %v2196
    %v2198 = vpop.f32.mrb[0].mxu0
    %2199 = vmatprep.mubr.f32.mxu0 %v2005
    %2200 = vmatmul.mubr.f32.gmra.mrb[0].mxu0 %v2004
    %v2201 = vpop.f32.mrb[0].mxu0
    %v2202 = vadd.f32 %v2102, %v2201
    %v2203 = vpop.f32.mrb[0].mxu0
    %2204 = vmatprep.mubr.f32.mxu0 %v2009
    %2205 = vmatmul.mubr.f32.gmra.mrb[0].mxu0 %v2008
    %v2206 = vpop.f32.mrb[0].mxu0
    %v2207 = vadd.f32 %v2107, %v2206
    %v2208 = vpop.f32.mrb[0].mxu0
    %2209 = vdwg.mxu0
    %v2210 = vsel %vm1962, %v2177, 0.0
    %v2211 = vsel %vm1962, %v2182, 0.0
    %v2212 = vadd.f32 %v2210, %v2211
    %v2213 = vsel %vm1962, %v2187, 0.0
    %v2214 = vadd.f32 %v2212, %v2213
    %v2215 = vsel %vm1962, %v2192, 0.0
    %v2216 = vadd.f32 %v2214, %v2215
    %v2217 = vsel %vm1962, %v2197, 0.0
    %v2218 = vadd.f32 %v2216, %v2217
    %v2219 = vsel %vm1962, %v2202, 0.0
    %v2220 = vadd.f32 %v2218, %v2219
    %v2221 = vsel %vm1962, %v2207, 0.0
    %v2222 = vadd.f32 %v2220, %v2221
    %v2223 = vrot.slane %v2222, 4
    %v2224 = vadd.f32 %v2222, %v2223
    %v2225 = vrot.slane %v2224, 2
    %v2226 = vadd.f32 %v2224, %v2225
    %v2227 = vrot.slane %v2226, 1
    %v2228 = vadd.f32 %v2226, %v2227
    %v2229 = vrcp.pop 1568.0
    %v2230 = vmul.f32 %v1981, %v2229
    %v2231 = vmul.f32 %v2228, %v2229
    %v2232 = vmul.f32 %v2230, %v2230
    %v2233 = vsub.f32 %v2231, %v2232
    %v2234 = vadd.f32 %v2233, 1e-05
    %v2235 = vrsqrt.pop %v2234
    %v2236 = vld [vmem:[%s2] sm:$0x1]
    %v2237 = vmul.f32 %v2235, %v2236
    %v2238 = vld [vmem:[%s3] sm:$0x1]
    %v2239 = vmul.f32 %v2230, %v2237
    %v2240 = vsub.f32 %v2238, %v2239
    %2242 = vrot.lane.b32.xlu0 %v2237, 16
    %v2243 = vpop.permute.xlu0 %2242
    %2245 = vrot.lane.b32.xlu0 %v2237, 32
    %v2246 = vpop.permute.xlu0 %2245
    %2248 = vrot.lane.b32.xlu0 %v2237, 48
    %v2249 = vpop.permute.xlu0 %2248
    %2251 = vrot.lane.b32.xlu0 %v2237, 64
    %v2252 = vpop.permute.xlu0 %2251
    %2254 = vrot.lane.b32.xlu0 %v2237, 80
    %v2255 = vpop.permute.xlu0 %2254
    %2257 = vrot.lane.b32.xlu0 %v2237, 96
    %v2258 = vpop.permute.xlu0 %2257
    %v2260 = vsel %vm1962, %v2237, %v2243
    %v2261 = vsel %vm328, %v2260, %v2246
    %vm2262 = vcmask 392192
    %v2263 = vsel %vm2262, %v2261, %v2249
    %vm2264 = vcmask 523264
    %v2265 = vsel %vm2264, %v2263, %v2252
    %vm2266 = vcmask 654336
    %v2267 = vsel %vm2266, %v2265, %v2255
    %vm2268 = vcmask 785408
    %v2269 = vsel %vm2268, %v2267, %v2258
    %vm2270 = vcmask 916480
    %v2271 = vsel %vm2270, %v2269, 0.0
    %v2273 = vlaneseq
    %v2274 = vshrl.u32 %v2273, 7
    %v2275 = vsub.s32 0, %v2274
    %v2276 = vrot.slane %v2240, %v2275
    %2277 = vrot.lane.b32.xlu0 %v2276, 16
    %v2278 = vpop.permute.xlu0 %2277
    %2280 = vrot.lane.b32.xlu0 %v2276, 32
    %v2281 = vpop.permute.xlu0 %2280
    %2283 = vrot.lane.b32.xlu0 %v2276, 48
    %v2284 = vpop.permute.xlu0 %2283
    %2286 = vrot.lane.b32.xlu0 %v2276, 64
    %v2287 = vpop.permute.xlu0 %2286
    %2289 = vrot.lane.b32.xlu0 %v2276, 80
    %v2290 = vpop.permute.xlu0 %2289
    %2292 = vrot.lane.b32.xlu0 %v2276, 96
    %v2293 = vpop.permute.xlu0 %2292
    %v2295 = vsel %vm1962, %v2240, %v2278
    %v2296 = vsel %vm328, %v2295, %v2281
    %v2297 = vsel %vm2262, %v2296, %v2284
    %v2298 = vsel %vm2264, %v2297, %v2287
    %v2299 = vsel %vm2266, %v2298, %v2290
    %v2300 = vsel %vm2268, %v2299, %v2293
    %v2301 = vsel %vm2270, %v2300, 0.0
    %v2302 = vlaneseq
    %v2303 = vshrl.u32 %v2302, 7
    %v2304 = vsub.s32 0, %v2303
    %v2305 = vrot.slane %v2271, %v2304
    %v2306 = vmul.f32 %v1670, %v2305
    %v2307 = vmul.f32 %v1671, %v2305
    %v2308 = vmul.f32 %v1672, %v2305
    %v2309 = vmul.f32 %v1673, %v2305
    %v2310 = vmul.f32 %v1674, %v2305
    %v2311 = vmul.f32 %v1675, %v2305
    %v2312 = vmul.f32 %v1676, %v2305
    %v2313 = vmul.f32 %v1677, %v2305
    %v2314 = vmul.f32 %v1678, %v2305
    %v2315 = vmul.f32 %v1679, %v2305
    %v2316 = vmul.f32 %v1680, %v2305
    %v2317 = vmul.f32 %v1681, %v2305
    %v2318 = vmul.f32 %v1682, %v2305
    %v2319 = vmul.f32 %v1683, %v2305
    %v2320 = vmul.f32 %v1684, %v2305
    %v2321 = vmul.f32 %v1685, %v2305
    %v2322 = vmul.f32 %v1686, %v2305
    %v2323 = vmul.f32 %v1687, %v2305
    %v2324 = vmul.f32 %v1688, %v2305
    %v2325 = vmul.f32 %v1689, %v2305
    %v2326 = vmul.f32 %v1690, %v2305
    %v2327 = vmul.f32 %v1691, %v2305
    %v2328 = vmul.f32 %v1692, %v2305
    %v2329 = vmul.f32 %v1693, %v2305
    %v2330 = vmul.f32 %v1694, %v2305
    %v2331 = vmul.f32 %v1695, %v2305
    %v2332 = vmul.f32 %v1696, %v2305
    %v2333 = vmul.f32 %v1697, %v2305
    %v2334 = vlaneseq
    %v2335 = vshrl.u32 %v2334, 7
    %v2336 = vsub.s32 0, %v2335
    %v2337 = vrot.slane %v2301, %v2336
    %v2338 = vadd.f32 %v2306, %v2337
    %v2339 = vadd.f32 %v2307, %v2337
    %v2340 = vadd.f32 %v2308, %v2337
    %v2341 = vadd.f32 %v2309, %v2337
    %v2342 = vadd.f32 %v2310, %v2337
    %v2343 = vadd.f32 %v2311, %v2337
    %v2344 = vadd.f32 %v2312, %v2337
    %v2345 = vadd.f32 %v2313, %v2337
    %v2346 = vadd.f32 %v2314, %v2337
    %v2347 = vadd.f32 %v2315, %v2337
    %v2348 = vadd.f32 %v2316, %v2337
    %v2349 = vadd.f32 %v2317, %v2337
    %v2350 = vadd.f32 %v2318, %v2337
    %v2351 = vadd.f32 %v2319, %v2337
    %v2352 = vadd.f32 %v2320, %v2337
    %v2353 = vadd.f32 %v2321, %v2337
    %v2354 = vadd.f32 %v2322, %v2337
    %v2355 = vadd.f32 %v2323, %v2337
    %v2356 = vadd.f32 %v2324, %v2337
    %v2357 = vadd.f32 %v2325, %v2337
    %v2358 = vadd.f32 %v2326, %v2337
    %v2359 = vadd.f32 %v2327, %v2337
    %v2360 = vadd.f32 %v2328, %v2337
    %v2361 = vadd.f32 %v2329, %v2337
    %v2362 = vadd.f32 %v2330, %v2337
    %v2363 = vadd.f32 %v2331, %v2337
    %v2364 = vadd.f32 %v2332, %v2337
    %v2365 = vadd.f32 %v2333, %v2337
    %v2366 = vmax.f32 %v2338, 0.0
    %v2367 = vmax.f32 %v2339, 0.0
    %v2368 = vmax.f32 %v2340, 0.0
    %v2369 = vmax.f32 %v2341, 0.0
    %v2370 = vmax.f32 %v2342, 0.0
    %v2371 = vmax.f32 %v2343, 0.0
    %v2372 = vmax.f32 %v2344, 0.0
    %v2373 = vmax.f32 %v2345, 0.0
    %v2374 = vmax.f32 %v2346, 0.0
    %v2375 = vmax.f32 %v2347, 0.0
    %v2376 = vmax.f32 %v2348, 0.0
    %v2377 = vmax.f32 %v2349, 0.0
    %v2378 = vmax.f32 %v2350, 0.0
    %v2379 = vmax.f32 %v2351, 0.0
    %v2380 = vmax.f32 %v2352, 0.0
    %v2381 = vmax.f32 %v2353, 0.0
    %v2382 = vmax.f32 %v2354, 0.0
    %v2383 = vmax.f32 %v2355, 0.0
    %v2384 = vmax.f32 %v2356, 0.0
    %v2385 = vmax.f32 %v2357, 0.0
    %v2386 = vmax.f32 %v2358, 0.0
    %v2387 = vmax.f32 %v2359, 0.0
    %v2388 = vmax.f32 %v2360, 0.0
    %v2389 = vmax.f32 %v2361, 0.0
    %v2390 = vmax.f32 %v2362, 0.0
    %v2391 = vmax.f32 %v2363, 0.0
    %v2392 = vmax.f32 %v2364, 0.0
    %v2393 = vmax.f32 %v2365, 0.0
    %v2394 = vmax.f32 %v2366, %v2367
    %v2395 = vmax.f32 %v2370, %v2371
    %v2396 = vmax.f32 %v2374, %v2375
    %v2397 = vmax.f32 %v2378, %v2379
    %v2398 = vmax.f32 %v2382, %v2383
    %v2399 = vmax.f32 %v2386, %v2387
    %v2400 = vmax.f32 %v2390, %v2391
    %v2401 = vmax.f32 %v2368, %v2369
    %v2402 = vmax.f32 %v2372, %v2373
    %v2403 = vmax.f32 %v2376, %v2377
    %v2404 = vmax.f32 %v2380, %v2381
    %v2405 = vmax.f32 %v2384, %v2385
    %v2406 = vmax.f32 %v2388, %v2389
    %v2407 = vmax.f32 %v2392, %v2393
    %v2415 = vcombine.high %v2394, %v2394
    %v2417 = vunpack.c.l.s4 1983009808
    %v2418 = vunpack.c.0.s8 %v2417
    %v2419 = vlaneseq
    %v2420 = vshrl.u32 %v2419, 7
    %v2421 = vsub.s32 %v2418, %v2420
    %v2422 = vrot.slane %v2394, %v2421
    %v2424 = vunpack.c.l.s4 1983009808
    %v2425 = vunpack.c.0.s8 %v2424
    %v2426 = vlaneseq
    %v2427 = vshrl.u32 %v2426, 7
    %v2428 = vsub.s32 %v2425, %v2427
    %v2429 = vrot.slane %v2415, %v2428
    %v2430 = vcombine.high %v2422, %v2422
    %v2431 = vcombine.high %v2429, %v2429
    %v2432 = vcombine.high %v2395, %v2395
    %v2434 = vunpack.c.l.s4 1983009808
    %v2435 = vunpack.c.0.s8 %v2434
    %v2436 = vlaneseq
    %v2437 = vshrl.u32 %v2436, 7
    %v2438 = vsub.s32 %v2435, %v2437
    %v2439 = vrot.slane %v2395, %v2438
    %v2441 = vunpack.c.l.s4 1983009808
    %v2442 = vunpack.c.0.s8 %v2441
    %v2443 = vlaneseq
    %v2444 = vshrl.u32 %v2443, 7
    %v2445 = vsub.s32 %v2442, %v2444
    %v2446 = vrot.slane %v2432, %v2445
    %v2447 = vcombine.high %v2439, %v2439
    %v2448 = vcombine.high %v2446, %v2446
    %v2449 = vcombine.high %v2396, %v2396
    %v2451 = vunpack.c.l.s4 1983009808
    %v2452 = vunpack.c.0.s8 %v2451
    %v2453 = vlaneseq
    %v2454 = vshrl.u32 %v2453, 7
    %v2455 = vsub.s32 %v2452, %v2454
    %v2456 = vrot.slane %v2396, %v2455
    %v2458 = vunpack.c.l.s4 1983009808
    %v2459 = vunpack.c.0.s8 %v2458
    %v2460 = vlaneseq
    %v2461 = vshrl.u32 %v2460, 7
    %v2462 = vsub.s32 %v2459, %v2461
    %v2463 = vrot.slane %v2449, %v2462
    %v2464 = vcombine.high %v2456, %v2456
    %v2465 = vcombine.high %v2463, %v2463
    %v2466 = vcombine.high %v2397, %v2397
    %v2468 = vunpack.c.l.s4 1983009808
    %v2469 = vunpack.c.0.s8 %v2468
    %v2470 = vlaneseq
    %v2471 = vshrl.u32 %v2470, 7
    %v2472 = vsub.s32 %v2469, %v2471
    %v2473 = vrot.slane %v2397, %v2472
    %v2475 = vunpack.c.l.s4 1983009808
    %v2476 = vunpack.c.0.s8 %v2475
    %v2477 = vlaneseq
    %v2478 = vshrl.u32 %v2477, 7
    %v2479 = vsub.s32 %v2476, %v2478
    %v2480 = vrot.slane %v2466, %v2479
    %v2481 = vcombine.high %v2473, %v2473
    %v2482 = vcombine.high %v2480, %v2480
    %v2483 = vcombine.high %v2398, %v2398
    %v2485 = vunpack.c.l.s4 1983009808
    %v2486 = vunpack.c.0.s8 %v2485
    %v2487 = vlaneseq
    %v2488 = vshrl.u32 %v2487, 7
    %v2489 = vsub.s32 %v2486, %v2488
    %v2490 = vrot.slane %v2398, %v2489
    %v2492 = vunpack.c.l.s4 1983009808
    %v2493 = vunpack.c.0.s8 %v2492
    %v2494 = vlaneseq
    %v2495 = vshrl.u32 %v2494, 7
    %v2496 = vsub.s32 %v2493, %v2495
    %v2497 = vrot.slane %v2483, %v2496
    %v2498 = vcombine.high %v2490, %v2490
    %v2499 = vcombine.high %v2497, %v2497
    %v2500 = vcombine.high %v2399, %v2399
    %v2502 = vunpack.c.l.s4 1983009808
    %v2503 = vunpack.c.0.s8 %v2502
    %v2504 = vlaneseq
    %v2505 = vshrl.u32 %v2504, 7
    %v2506 = vsub.s32 %v2503, %v2505
    %v2507 = vrot.slane %v2399, %v2506
    %v2509 = vunpack.c.l.s4 1983009808
    %v2510 = vunpack.c.0.s8 %v2509
    %v2511 = vlaneseq
    %v2512 = vshrl.u32 %v2511, 7
    %v2513 = vsub.s32 %v2510, %v2512
    %v2514 = vrot.slane %v2500, %v2513
    %v2515 = vcombine.high %v2507, %v2507
    %v2516 = vcombine.high %v2514, %v2514
    %v2517 = vcombine.high %v2400, %v2400
    %v2519 = vunpack.c.l.s4 1983009808
    %v2520 = vunpack.c.0.s8 %v2519
    %v2521 = vlaneseq
    %v2522 = vshrl.u32 %v2521, 7
    %v2523 = vsub.s32 %v2520, %v2522
    %v2524 = vrot.slane %v2400, %v2523
    %v2526 = vunpack.c.l.s4 1983009808
    %v2527 = vunpack.c.0.s8 %v2526
    %v2528 = vlaneseq
    %v2529 = vshrl.u32 %v2528, 7
    %v2530 = vsub.s32 %v2527, %v2529
    %v2531 = vrot.slane %v2517, %v2530
    %v2532 = vcombine.high %v2524, %v2524
    %v2533 = vcombine.high %v2531, %v2531
    %vm2562 = vcmask 1041408
    %v2563 = vsel %vm2562, %v2422, -inf
    %v2564 = vsel %vm2562, %v2430, -inf
    %v2565 = vmax.f32 %v2563, %v2564
    %v2566 = vsel %vm2562, %v2429, -inf
    %v2567 = vsel %vm2562, %v2431, -inf
    %v2568 = vmax.f32 %v2566, %v2567
    %v2569 = vsel %vm2562, %v2439, -inf
    %v2570 = vsel %vm2562, %v2447, -inf
    %v2571 = vmax.f32 %v2569, %v2570
    %v2572 = vsel %vm2562, %v2446, -inf
    %v2573 = vsel %vm2562, %v2448, -inf
    %v2574 = vmax.f32 %v2572, %v2573
    %v2575 = vsel %vm2562, %v2456, -inf
    %v2576 = vsel %vm2562, %v2464, -inf
    %v2577 = vmax.f32 %v2575, %v2576
    %v2578 = vsel %vm2562, %v2463, -inf
    %v2579 = vsel %vm2562, %v2465, -inf
    %v2580 = vmax.f32 %v2578, %v2579
    %v2581 = vsel %vm2562, %v2473, -inf
    %v2582 = vsel %vm2562, %v2481, -inf
    %v2583 = vmax.f32 %v2581, %v2582
    %v2584 = vsel %vm2562, %v2480, -inf
    %v2585 = vsel %vm2562, %v2482, -inf
    %v2586 = vmax.f32 %v2584, %v2585
    %v2587 = vsel %vm2562, %v2490, -inf
    %v2588 = vsel %vm2562, %v2498, -inf
    %v2589 = vmax.f32 %v2587, %v2588
    %v2590 = vsel %vm2562, %v2497, -inf
    %v2591 = vsel %vm2562, %v2499, -inf
    %v2592 = vmax.f32 %v2590, %v2591
    %v2593 = vsel %vm2562, %v2507, -inf
    %v2594 = vsel %vm2562, %v2515, -inf
    %v2595 = vmax.f32 %v2593, %v2594
    %v2596 = vsel %vm2562, %v2514, -inf
    %v2597 = vsel %vm2562, %v2516, -inf
    %v2598 = vmax.f32 %v2596, %v2597
    %v2599 = vsel %vm2562, %v2524, -inf
    %v2600 = vsel %vm2562, %v2532, -inf
    %v2601 = vmax.f32 %v2599, %v2600
    %v2602 = vsel %vm2562, %v2531, -inf
    %v2603 = vsel %vm2562, %v2533, -inf
    %v2604 = vmax.f32 %v2602, %v2603
    %v2612 = vcombine.high %v2401, %v2401
    %v2614 = vunpack.c.l.s4 1983009808
    %v2615 = vunpack.c.0.s8 %v2614
    %v2616 = vlaneseq
    %v2617 = vshrl.u32 %v2616, 7
    %v2618 = vsub.s32 %v2615, %v2617
    %v2619 = vrot.slane %v2401, %v2618
    %v2621 = vunpack.c.l.s4 1983009808
    %v2622 = vunpack.c.0.s8 %v2621
    %v2623 = vlaneseq
    %v2624 = vshrl.u32 %v2623, 7
    %v2625 = vsub.s32 %v2622, %v2624
    %v2626 = vrot.slane %v2612, %v2625
    %v2627 = vcombine.high %v2619, %v2619
    %v2628 = vcombine.high %v2626, %v2626
    %v2629 = vcombine.high %v2402, %v2402
    %v2631 = vunpack.c.l.s4 1983009808
    %v2632 = vunpack.c.0.s8 %v2631
    %v2633 = vlaneseq
    %v2634 = vshrl.u32 %v2633, 7
    %v2635 = vsub.s32 %v2632, %v2634
    %v2636 = vrot.slane %v2402, %v2635
    %v2638 = vunpack.c.l.s4 1983009808
    %v2639 = vunpack.c.0.s8 %v2638
    %v2640 = vlaneseq
    %v2641 = vshrl.u32 %v2640, 7
    %v2642 = vsub.s32 %v2639, %v2641
    %v2643 = vrot.slane %v2629, %v2642
    %v2644 = vcombine.high %v2636, %v2636
    %v2645 = vcombine.high %v2643, %v2643
    %v2646 = vcombine.high %v2403, %v2403
    %v2648 = vunpack.c.l.s4 1983009808
    %v2649 = vunpack.c.0.s8 %v2648
    %v2650 = vlaneseq
    %v2651 = vshrl.u32 %v2650, 7
    %v2652 = vsub.s32 %v2649, %v2651
    %v2653 = vrot.slane %v2403, %v2652
    %v2655 = vunpack.c.l.s4 1983009808
    %v2656 = vunpack.c.0.s8 %v2655
    %v2657 = vlaneseq
    %v2658 = vshrl.u32 %v2657, 7
    %v2659 = vsub.s32 %v2656, %v2658
    %v2660 = vrot.slane %v2646, %v2659
    %v2661 = vcombine.high %v2653, %v2653
    %v2662 = vcombine.high %v2660, %v2660
    %v2663 = vcombine.high %v2404, %v2404
    %v2665 = vunpack.c.l.s4 1983009808
    %v2666 = vunpack.c.0.s8 %v2665
    %v2667 = vlaneseq
    %v2668 = vshrl.u32 %v2667, 7
    %v2669 = vsub.s32 %v2666, %v2668
    %v2670 = vrot.slane %v2404, %v2669
    %v2672 = vunpack.c.l.s4 1983009808
    %v2673 = vunpack.c.0.s8 %v2672
    %v2674 = vlaneseq
    %v2675 = vshrl.u32 %v2674, 7
    %v2676 = vsub.s32 %v2673, %v2675
    %v2677 = vrot.slane %v2663, %v2676
    %v2678 = vcombine.high %v2670, %v2670
    %v2679 = vcombine.high %v2677, %v2677
    %v2680 = vcombine.high %v2405, %v2405
    %v2682 = vunpack.c.l.s4 1983009808
    %v2683 = vunpack.c.0.s8 %v2682
    %v2684 = vlaneseq
    %v2685 = vshrl.u32 %v2684, 7
    %v2686 = vsub.s32 %v2683, %v2685
    %v2687 = vrot.slane %v2405, %v2686
    %v2689 = vunpack.c.l.s4 1983009808
    %v2690 = vunpack.c.0.s8 %v2689
    %v2691 = vlaneseq
    %v2692 = vshrl.u32 %v2691, 7
    %v2693 = vsub.s32 %v2690, %v2692
    %v2694 = vrot.slane %v2680, %v2693
    %v2695 = vcombine.high %v2687, %v2687
    %v2696 = vcombine.high %v2694, %v2694
    %v2697 = vcombine.high %v2406, %v2406
    %v2699 = vunpack.c.l.s4 1983009808
    %v2700 = vunpack.c.0.s8 %v2699
    %v2701 = vlaneseq
    %v2702 = vshrl.u32 %v2701, 7
    %v2703 = vsub.s32 %v2700, %v2702
    %v2704 = vrot.slane %v2406, %v2703
    %v2706 = vunpack.c.l.s4 1983009808
    %v2707 = vunpack.c.0.s8 %v2706
    %v2708 = vlaneseq
    %v2709 = vshrl.u32 %v2708, 7
    %v2710 = vsub.s32 %v2707, %v2709
    %v2711 = vrot.slane %v2697, %v2710
    %v2712 = vcombine.high %v2704, %v2704
    %v2713 = vcombine.high %v2711, %v2711
    %v2714 = vcombine.high %v2407, %v2407
    %v2716 = vunpack.c.l.s4 1983009808
    %v2717 = vunpack.c.0.s8 %v2716
    %v2718 = vlaneseq
    %v2719 = vshrl.u32 %v2718, 7
    %v2720 = vsub.s32 %v2717, %v2719
    %v2721 = vrot.slane %v2407, %v2720
    %v2723 = vunpack.c.l.s4 1983009808
    %v2724 = vunpack.c.0.s8 %v2723
    %v2725 = vlaneseq
    %v2726 = vshrl.u32 %v2725, 7
    %v2727 = vsub.s32 %v2724, %v2726
    %v2728 = vrot.slane %v2714, %v2727
    %v2729 = vcombine.high %v2721, %v2721
    %v2730 = vcombine.high %v2728, %v2728
    %v2759 = vsel %vm2562, %v2619, -inf
    %v2760 = vsel %vm2562, %v2627, -inf
    %v2761 = vmax.f32 %v2759, %v2760
    %v2762 = vsel %vm2562, %v2626, -inf
    %v2763 = vsel %vm2562, %v2628, -inf
    %v2764 = vmax.f32 %v2762, %v2763
    %v2765 = vsel %vm2562, %v2636, -inf
    %v2766 = vsel %vm2562, %v2644, -inf
    %v2767 = vmax.f32 %v2765, %v2766
    %v2768 = vsel %vm2562, %v2643, -inf
    %v2769 = vsel %vm2562, %v2645, -inf
    %v2770 = vmax.f32 %v2768, %v2769
    %v2771 = vsel %vm2562, %v2653, -inf
    %v2772 = vsel %vm2562, %v2661, -inf
    %v2773 = vmax.f32 %v2771, %v2772
    %v2774 = vsel %vm2562, %v2660, -inf
    %v2775 = vsel %vm2562, %v2662, -inf
    %v2776 = vmax.f32 %v2774, %v2775
    %v2777 = vsel %vm2562, %v2670, -inf
    %v2778 = vsel %vm2562, %v2678, -inf
    %v2779 = vmax.f32 %v2777, %v2778
    %v2780 = vsel %vm2562, %v2677, -inf
    %v2781 = vsel %vm2562, %v2679, -inf
    %v2782 = vmax.f32 %v2780, %v2781
    %v2783 = vsel %vm2562, %v2687, -inf
    %v2784 = vsel %vm2562, %v2695, -inf
    %v2785 = vmax.f32 %v2783, %v2784
    %v2786 = vsel %vm2562, %v2694, -inf
    %v2787 = vsel %vm2562, %v2696, -inf
    %v2788 = vmax.f32 %v2786, %v2787
    %v2789 = vsel %vm2562, %v2704, -inf
    %v2790 = vsel %vm2562, %v2712, -inf
    %v2791 = vmax.f32 %v2789, %v2790
    %v2792 = vsel %vm2562, %v2711, -inf
    %v2793 = vsel %vm2562, %v2713, -inf
    %v2794 = vmax.f32 %v2792, %v2793
    %v2795 = vsel %vm2562, %v2721, -inf
    %v2796 = vsel %vm2562, %v2729, -inf
    %v2797 = vmax.f32 %v2795, %v2796
    %v2798 = vsel %vm2562, %v2728, -inf
    %v2799 = vsel %vm2562, %v2730, -inf
    %v2800 = vmax.f32 %v2798, %v2799
    %v2816 = vunpack.c.l.s4 1983009808
    %v2817 = vunpack.c.0.s8 %v2816
    %v2818 = vlaneseq
    %v2819 = vshrl.u32 %v2818, 7
    %v2820 = vsub.s32 %v2817, %v2819
    %v2821 = vrot.slane %v2565, %v2820
    %v2823 = vunpack.c.l.s4 1983009808
    %v2824 = vunpack.c.0.s8 %v2823
    %v2825 = vlaneseq
    %v2826 = vshrl.u32 %v2825, 7
    %v2827 = vsub.s32 %v2824, %v2826
    %v2828 = vrot.slane %v2568, %v2827
    %v2830 = vunpack.c.l.s4 1983009808
    %v2831 = vunpack.c.0.s8 %v2830
    %v2832 = vlaneseq
    %v2833 = vshrl.u32 %v2832, 7
    %v2834 = vsub.s32 %v2831, %v2833
    %v2835 = vrot.slane %v2571, %v2834
    %v2837 = vunpack.c.l.s4 1983009808
    %v2838 = vunpack.c.0.s8 %v2837
    %v2839 = vlaneseq
    %v2840 = vshrl.u32 %v2839, 7
    %v2841 = vsub.s32 %v2838, %v2840
    %v2842 = vrot.slane %v2574, %v2841
    %v2844 = vunpack.c.l.s4 1983009808
    %v2845 = vunpack.c.0.s8 %v2844
    %v2846 = vlaneseq
    %v2847 = vshrl.u32 %v2846, 7
    %v2848 = vsub.s32 %v2845, %v2847
    %v2849 = vrot.slane %v2577, %v2848
    %v2851 = vunpack.c.l.s4 1983009808
    %v2852 = vunpack.c.0.s8 %v2851
    %v2853 = vlaneseq
    %v2854 = vshrl.u32 %v2853, 7
    %v2855 = vsub.s32 %v2852, %v2854
    %v2856 = vrot.slane %v2580, %v2855
    %v2858 = vunpack.c.l.s4 1983009808
    %v2859 = vunpack.c.0.s8 %v2858
    %v2860 = vlaneseq
    %v2861 = vshrl.u32 %v2860, 7
    %v2862 = vsub.s32 %v2859, %v2861
    %v2863 = vrot.slane %v2583, %v2862
    %v2865 = vunpack.c.l.s4 1983009808
    %v2866 = vunpack.c.0.s8 %v2865
    %v2867 = vlaneseq
    %v2868 = vshrl.u32 %v2867, 7
    %v2869 = vsub.s32 %v2866, %v2868
    %v2870 = vrot.slane %v2586, %v2869
    %v2872 = vunpack.c.l.s4 1983009808
    %v2873 = vunpack.c.0.s8 %v2872
    %v2874 = vlaneseq
    %v2875 = vshrl.u32 %v2874, 7
    %v2876 = vsub.s32 %v2873, %v2875
    %v2877 = vrot.slane %v2589, %v2876
    %v2879 = vunpack.c.l.s4 1983009808
    %v2880 = vunpack.c.0.s8 %v2879
    %v2881 = vlaneseq
    %v2882 = vshrl.u32 %v2881, 7
    %v2883 = vsub.s32 %v2880, %v2882
    %v2884 = vrot.slane %v2592, %v2883
    %v2886 = vunpack.c.l.s4 1983009808
    %v2887 = vunpack.c.0.s8 %v2886
    %v2888 = vlaneseq
    %v2889 = vshrl.u32 %v2888, 7
    %v2890 = vsub.s32 %v2887, %v2889
    %v2891 = vrot.slane %v2595, %v2890
    %v2893 = vunpack.c.l.s4 1983009808
    %v2894 = vunpack.c.0.s8 %v2893
    %v2895 = vlaneseq
    %v2896 = vshrl.u32 %v2895, 7
    %v2897 = vsub.s32 %v2894, %v2896
    %v2898 = vrot.slane %v2598, %v2897
    %v2900 = vunpack.c.l.s4 1983009808
    %v2901 = vunpack.c.0.s8 %v2900
    %v2902 = vlaneseq
    %v2903 = vshrl.u32 %v2902, 7
    %v2904 = vsub.s32 %v2901, %v2903
    %v2905 = vrot.slane %v2601, %v2904
    %v2907 = vunpack.c.l.s4 1983009808
    %v2908 = vunpack.c.0.s8 %v2907
    %v2909 = vlaneseq
    %v2910 = vshrl.u32 %v2909, 7
    %v2911 = vsub.s32 %v2908, %v2910
    %v2912 = vrot.slane %v2604, %v2911
    %2913 = vrot.lane.b32.xlu0 %v2821, 16
    %v2914 = vpop.permute.xlu0 %2913
    %2915 = vrot.lane.b32.xlu0 %v2828, 16
    %v2916 = vpop.permute.xlu0 %2915
    %2917 = vrot.lane.b32.xlu0 %v2835, 16
    %v2918 = vpop.permute.xlu0 %2917
    %2919 = vrot.lane.b32.xlu0 %v2842, 16
    %v2920 = vpop.permute.xlu0 %2919
    %2921 = vrot.lane.b32.xlu0 %v2849, 16
    %v2922 = vpop.permute.xlu0 %2921
    %2923 = vrot.lane.b32.xlu0 %v2856, 16
    %v2924 = vpop.permute.xlu0 %2923
    %2925 = vrot.lane.b32.xlu0 %v2863, 16
    %v2926 = vpop.permute.xlu0 %2925
    %2927 = vrot.lane.b32.xlu0 %v2870, 16
    %v2928 = vpop.permute.xlu0 %2927
    %2929 = vrot.lane.b32.xlu0 %v2877, 16
    %v2930 = vpop.permute.xlu0 %2929
    %2931 = vrot.lane.b32.xlu0 %v2884, 16
    %v2932 = vpop.permute.xlu0 %2931
    %2933 = vrot.lane.b32.xlu0 %v2891, 16
    %v2934 = vpop.permute.xlu0 %2933
    %2935 = vrot.lane.b32.xlu0 %v2898, 16
    %v2936 = vpop.permute.xlu0 %2935
    %2937 = vrot.lane.b32.xlu0 %v2905, 16
    %v2938 = vpop.permute.xlu0 %2937
    %2939 = vrot.lane.b32.xlu0 %v2912, 16
    %v2940 = vpop.permute.xlu0 %2939
    %v2970 = vunpack.c.l.s4 1983009808
    %v2971 = vunpack.c.0.s8 %v2970
    %v2972 = vlaneseq
    %v2973 = vshrl.u32 %v2972, 7
    %v2974 = vsub.s32 %v2971, %v2973
    %v2975 = vrot.slane %v2761, %v2974
    %v2977 = vunpack.c.l.s4 1983009808
    %v2978 = vunpack.c.0.s8 %v2977
    %v2979 = vlaneseq
    %v2980 = vshrl.u32 %v2979, 7
    %v2981 = vsub.s32 %v2978, %v2980
    %v2982 = vrot.slane %v2764, %v2981
    %v2984 = vunpack.c.l.s4 1983009808
    %v2985 = vunpack.c.0.s8 %v2984
    %v2986 = vlaneseq
    %v2987 = vshrl.u32 %v2986, 7
    %v2988 = vsub.s32 %v2985, %v2987
    %v2989 = vrot.slane %v2767, %v2988
    %v2991 = vunpack.c.l.s4 1983009808
    %v2992 = vunpack.c.0.s8 %v2991
    %v2993 = vlaneseq
    %v2994 = vshrl.u32 %v2993, 7
    %v2995 = vsub.s32 %v2992, %v2994
    %v2996 = vrot.slane %v2770, %v2995
    %v2998 = vunpack.c.l.s4 1983009808
    %v2999 = vunpack.c.0.s8 %v2998
    %v3000 = vlaneseq
    %v3001 = vshrl.u32 %v3000, 7
    %v3002 = vsub.s32 %v2999, %v3001
    %v3003 = vrot.slane %v2773, %v3002
    %v3005 = vunpack.c.l.s4 1983009808
    %v3006 = vunpack.c.0.s8 %v3005
    %v3007 = vlaneseq
    %v3008 = vshrl.u32 %v3007, 7
    %v3009 = vsub.s32 %v3006, %v3008
    %v3010 = vrot.slane %v2776, %v3009
    %v3012 = vunpack.c.l.s4 1983009808
    %v3013 = vunpack.c.0.s8 %v3012
    %v3014 = vlaneseq
    %v3015 = vshrl.u32 %v3014, 7
    %v3016 = vsub.s32 %v3013, %v3015
    %v3017 = vrot.slane %v2779, %v3016
    %v3019 = vunpack.c.l.s4 1983009808
    %v3020 = vunpack.c.0.s8 %v3019
    %v3021 = vlaneseq
    %v3022 = vshrl.u32 %v3021, 7
    %v3023 = vsub.s32 %v3020, %v3022
    %v3024 = vrot.slane %v2782, %v3023
    %v3026 = vunpack.c.l.s4 1983009808
    %v3027 = vunpack.c.0.s8 %v3026
    %v3028 = vlaneseq
    %v3029 = vshrl.u32 %v3028, 7
    %v3030 = vsub.s32 %v3027, %v3029
    %v3031 = vrot.slane %v2785, %v3030
    %v3033 = vunpack.c.l.s4 1983009808
    %v3034 = vunpack.c.0.s8 %v3033
    %v3035 = vlaneseq
    %v3036 = vshrl.u32 %v3035, 7
    %v3037 = vsub.s32 %v3034, %v3036
    %v3038 = vrot.slane %v2788, %v3037
    %v3040 = vunpack.c.l.s4 1983009808
    %v3041 = vunpack.c.0.s8 %v3040
    %v3042 = vlaneseq
    %v3043 = vshrl.u32 %v3042, 7
    %v3044 = vsub.s32 %v3041, %v3043
    %v3045 = vrot.slane %v2791, %v3044
    %v3047 = vunpack.c.l.s4 1983009808
    %v3048 = vunpack.c.0.s8 %v3047
    %v3049 = vlaneseq
    %v3050 = vshrl.u32 %v3049, 7
    %v3051 = vsub.s32 %v3048, %v3050
    %v3052 = vrot.slane %v2794, %v3051
    %v3054 = vunpack.c.l.s4 1983009808
    %v3055 = vunpack.c.0.s8 %v3054
    %v3056 = vlaneseq
    %v3057 = vshrl.u32 %v3056, 7
    %v3058 = vsub.s32 %v3055, %v3057
    %v3059 = vrot.slane %v2797, %v3058
    %v3061 = vunpack.c.l.s4 1983009808
    %v3062 = vunpack.c.0.s8 %v3061
    %v3063 = vlaneseq
    %v3064 = vshrl.u32 %v3063, 7
    %v3065 = vsub.s32 %v3062, %v3064
    %v3066 = vrot.slane %v2800, %v3065
    %3067 = vrot.lane.b32.xlu0 %v2975, 32
    %v3068 = vpop.permute.xlu0 %3067
    %3069 = vrot.lane.b32.xlu0 %v2982, 32
    %v3070 = vpop.permute.xlu0 %3069
    %3071 = vrot.lane.b32.xlu0 %v2989, 32
    %v3072 = vpop.permute.xlu0 %3071
    %3073 = vrot.lane.b32.xlu0 %v2996, 32
    %v3074 = vpop.permute.xlu0 %3073
    %3075 = vrot.lane.b32.xlu0 %v3003, 32
    %v3076 = vpop.permute.xlu0 %3075
    %3077 = vrot.lane.b32.xlu0 %v3010, 32
    %v3078 = vpop.permute.xlu0 %3077
    %3079 = vrot.lane.b32.xlu0 %v3017, 32
    %v3080 = vpop.permute.xlu0 %3079
    %3081 = vrot.lane.b32.xlu0 %v3024, 32
    %v3082 = vpop.permute.xlu0 %3081
    %3083 = vrot.lane.b32.xlu0 %v3031, 32
    %v3084 = vpop.permute.xlu0 %3083
    %3085 = vrot.lane.b32.xlu0 %v3038, 32
    %v3086 = vpop.permute.xlu0 %3085
    %3087 = vrot.lane.b32.xlu0 %v3045, 32
    %v3088 = vpop.permute.xlu0 %3087
    %3089 = vrot.lane.b32.xlu0 %v3052, 32
    %v3090 = vpop.permute.xlu0 %3089
    %3091 = vrot.lane.b32.xlu0 %v3059, 32
    %v3092 = vpop.permute.xlu0 %3091
    %3093 = vrot.lane.b32.xlu0 %v3066, 32
    %v3094 = vpop.permute.xlu0 %3093
    %v3109 = vsel %vm1962, 0.0, %v2914
    %v3110 = vsel %vm1962, 0.0, %v2916
    %v3111 = vsel %vm1962, 0.0, %v2918
    %v3112 = vsel %vm1962, 0.0, %v2920
    %v3113 = vsel %vm1962, 0.0, %v2922
    %v3114 = vsel %vm1962, 0.0, %v2924
    %v3115 = vsel %vm1962, 0.0, %v2926
    %v3116 = vsel %vm1962, 0.0, %v2928
    %v3117 = vsel %vm1962, 0.0, %v2930
    %v3118 = vsel %vm1962, 0.0, %v2932
    %v3119 = vsel %vm1962, 0.0, %v2934
    %v3120 = vsel %vm1962, 0.0, %v2936
    %v3121 = vsel %vm1962, 0.0, %v2938
    %v3122 = vsel %vm1962, 0.0, %v2940
    %v3123 = vsel %vm1962, %v2914, 0.0
    %v3124 = vsel %vm1962, %v2916, 0.0
    %v3125 = vsel %vm1962, %v2918, 0.0
    %v3126 = vsel %vm1962, %v2920, 0.0
    %v3127 = vsel %vm1962, %v2922, 0.0
    %v3128 = vsel %vm1962, %v2924, 0.0
    %v3129 = vsel %vm1962, %v2926, 0.0
    %v3130 = vsel %vm1962, %v2928, 0.0
    %v3131 = vsel %vm1962, %v2930, 0.0
    %v3132 = vsel %vm1962, %v2932, 0.0
    %v3133 = vsel %vm1962, %v2934, 0.0
    %v3134 = vsel %vm1962, %v2936, 0.0
    %v3135 = vsel %vm1962, %v2938, 0.0
    %v3136 = vsel %vm1962, %v2940, 0.0
    %v3137 = vsel %vm328, %v3123, %v3068
    %v3138 = vsel %vm328, %v3124, %v3070
    %v3139 = vsel %vm328, %v3125, %v3072
    %v3140 = vsel %vm328, %v3126, %v3074
    %v3141 = vsel %vm328, %v3127, %v3076
    %v3142 = vsel %vm328, %v3128, %v3078
    %v3143 = vsel %vm328, %v3129, %v3080
    %v3144 = vsel %vm328, %v3130, %v3082
    %v3145 = vsel %vm328, %v3131, %v3084
    %v3146 = vsel %vm328, %v3132, %v3086
    %v3147 = vsel %vm328, %v3133, %v3088
    %v3148 = vsel %vm328, %v3134, %v3090
    %v3149 = vsel %vm328, %v3135, %v3092
    %v3150 = vsel %vm328, %v3136, %v3094
    %v3151 = vpack.c.bf16 0.0, 0.0
    %v3152 = vpack.c.bf16 %v3109, %v3109
    %v3153 = vpack.c.bf16 %v3137, %v3137
    %v3154 = vpack.c.bf16 %v3068, %v3068
    %v3155 = vpack.c.bf16 %v3110, %v3110
    %v3156 = vpack.c.bf16 %v3138, %v3138
    %v3157 = vpack.c.bf16 %v3070, %v3070
    %v3158 = vpack.c.bf16 %v3111, %v3111
    %v3159 = vpack.c.bf16 %v3139, %v3139
    %v3160 = vpack.c.bf16 %v3072, %v3072
    %v3161 = vpack.c.bf16 %v3112, %v3112
    %v3162 = vpack.c.bf16 %v3140, %v3140
    %v3163 = vpack.c.bf16 %v3074, %v3074
    %v3164 = vpack.c.bf16 %v3113, %v3113
    %v3165 = vpack.c.bf16 %v3141, %v3141
    %v3166 = vpack.c.bf16 %v3076, %v3076
    %v3167 = vpack.c.bf16 %v3114, %v3114
    %v3168 = vpack.c.bf16 %v3142, %v3142
    %v3169 = vpack.c.bf16 %v3078, %v3078
    %v3170 = vpack.c.bf16 %v3115, %v3115
    %v3171 = vpack.c.bf16 %v3143, %v3143
    %v3172 = vpack.c.bf16 %v3080, %v3080
    %v3173 = vpack.c.bf16 %v3116, %v3116
    %v3174 = vpack.c.bf16 %v3144, %v3144
    %v3175 = vpack.c.bf16 %v3082, %v3082
    %v3176 = vpack.c.bf16 %v3117, %v3117
    %v3177 = vpack.c.bf16 %v3145, %v3145
    %v3178 = vpack.c.bf16 %v3084, %v3084
    %v3179 = vpack.c.bf16 %v3118, %v3118
    %v3180 = vpack.c.bf16 %v3146, %v3146
    %v3181 = vpack.c.bf16 %v3086, %v3086
    %v3182 = vpack.c.bf16 %v3119, %v3119
    %v3183 = vpack.c.bf16 %v3147, %v3147
    %v3184 = vpack.c.bf16 %v3088, %v3088
    %v3185 = vpack.c.bf16 %v3120, %v3120
    %v3186 = vpack.c.bf16 %v3148, %v3148
    %v3187 = vpack.c.bf16 %v3090, %v3090
    %v3188 = vpack.c.bf16 %v3121, %v3121
    %v3189 = vpack.c.bf16 %v3149, %v3149
    %v3190 = vpack.c.bf16 %v3092, %v3092
    %v3191 = vpack.c.bf16 %v3122, %v3122
    %v3192 = vpack.c.bf16 %v3150, %v3150
    %v3193 = vpack.c.bf16 %v3094, %v3094
    %v3231 = vcombine.low %v3151, %v3151
    %v3233 = vunpack.c.l.s4 1966171168
    %v3234 = vunpack.c.0.s8 %v3233
    %v3235 = vlaneseq
    %v3236 = vshrl.u32 %v3235, 7
    %v3237 = vsub.s32 %v3234, %v3236
    %v3238 = vrot.slane %v3231, %v3237
    %v3240 = vunpack.c.l.s4 1966171168
    %v3241 = vunpack.c.0.s8 %v3240
    %v3242 = vlaneseq
    %v3243 = vshrl.u32 %v3242, 7
    %v3244 = vsub.s32 %v3241, %v3243
    %v3245 = vrot.slane %v3151, %v3244
    %v3246 = vcombine.low %v3238, %v3245
    %v3248 = vunpack.c.l.s4 1966171168
    %v3249 = vunpack.c.0.s8 %v3248
    %v3250 = vlaneseq
    %v3251 = vshrl.u32 %v3250, 7
    %v3252 = vsub.s32 %v3249, %v3251
    %v3253 = vrot.slane %v3246, %v3252
    %v3254 = vcombine.low %v3152, %v3153
    %v3256 = vunpack.c.l.s4 1966171168
    %v3257 = vunpack.c.0.s8 %v3256
    %v3258 = vlaneseq
    %v3259 = vshrl.u32 %v3258, 7
    %v3260 = vsub.s32 %v3257, %v3259
    %v3261 = vrot.slane %v3254, %v3260
    %v3263 = vunpack.c.l.s4 1966171168
    %v3264 = vunpack.c.0.s8 %v3263
    %v3265 = vlaneseq
    %v3266 = vshrl.u32 %v3265, 7
    %v3267 = vsub.s32 %v3264, %v3266
    %v3268 = vrot.slane %v3154, %v3267
    %v3269 = vcombine.low %v3261, %v3268
    %v3271 = vunpack.c.l.s4 1966171168
    %v3272 = vunpack.c.0.s8 %v3271
    %v3273 = vlaneseq
    %v3274 = vshrl.u32 %v3273, 7
    %v3275 = vsub.s32 %v3272, %v3274
    %v3276 = vrot.slane %v3269, %v3275
    %v3277 = vcombine.low %v3155, %v3156
    %v3279 = vunpack.c.l.s4 1966171168
    %v3280 = vunpack.c.0.s8 %v3279
    %v3281 = vlaneseq
    %v3282 = vshrl.u32 %v3281, 7
    %v3283 = vsub.s32 %v3280, %v3282
    %v3284 = vrot.slane %v3277, %v3283
    %v3286 = vunpack.c.l.s4 1966171168
    %v3287 = vunpack.c.0.s8 %v3286
    %v3288 = vlaneseq
    %v3289 = vshrl.u32 %v3288, 7
    %v3290 = vsub.s32 %v3287, %v3289
    %v3291 = vrot.slane %v3157, %v3290
    %v3292 = vcombine.low %v3284, %v3291
    %v3294 = vunpack.c.l.s4 1966171168
    %v3295 = vunpack.c.0.s8 %v3294
    %v3296 = vlaneseq
    %v3297 = vshrl.u32 %v3296, 7
    %v3298 = vsub.s32 %v3295, %v3297
    %v3299 = vrot.slane %v3292, %v3298
    %v3300 = vcombine.low %v3158, %v3159
    %v3302 = vunpack.c.l.s4 1966171168
    %v3303 = vunpack.c.0.s8 %v3302
    %v3304 = vlaneseq
    %v3305 = vshrl.u32 %v3304, 7
    %v3306 = vsub.s32 %v3303, %v3305
    %v3307 = vrot.slane %v3300, %v3306
    %v3309 = vunpack.c.l.s4 1966171168
    %v3310 = vunpack.c.0.s8 %v3309
    %v3311 = vlaneseq
    %v3312 = vshrl.u32 %v3311, 7
    %v3313 = vsub.s32 %v3310, %v3312
    %v3314 = vrot.slane %v3160, %v3313
    %v3315 = vcombine.low %v3307, %v3314
    %v3317 = vunpack.c.l.s4 1966171168
    %v3318 = vunpack.c.0.s8 %v3317
    %v3319 = vlaneseq
    %v3320 = vshrl.u32 %v3319, 7
    %v3321 = vsub.s32 %v3318, %v3320
    %v3322 = vrot.slane %v3315, %v3321
    %v3323 = vcombine.low %v3161, %v3162
    %v3325 = vunpack.c.l.s4 1966171168
    %v3326 = vunpack.c.0.s8 %v3325
    %v3327 = vlaneseq
    %v3328 = vshrl.u32 %v3327, 7
    %v3329 = vsub.s32 %v3326, %v3328
    %v3330 = vrot.slane %v3323, %v3329
    %v3332 = vunpack.c.l.s4 1966171168
    %v3333 = vunpack.c.0.s8 %v3332
    %v3334 = vlaneseq
    %v3335 = vshrl.u32 %v3334, 7
    %v3336 = vsub.s32 %v3333, %v3335
    %v3337 = vrot.slane %v3163, %v3336
    %v3338 = vcombine.low %v3330, %v3337
    %v3340 = vunpack.c.l.s4 1966171168
    %v3341 = vunpack.c.0.s8 %v3340
    %v3342 = vlaneseq
    %v3343 = vshrl.u32 %v3342, 7
    %v3344 = vsub.s32 %v3341, %v3343
    %v3345 = vrot.slane %v3338, %v3344
    %v3346 = vcombine.low %v3164, %v3165
    %v3348 = vunpack.c.l.s4 1966171168
    %v3349 = vunpack.c.0.s8 %v3348
    %v3350 = vlaneseq
    %v3351 = vshrl.u32 %v3350, 7
    %v3352 = vsub.s32 %v3349, %v3351
    %v3353 = vrot.slane %v3346, %v3352
    %v3355 = vunpack.c.l.s4 1966171168
    %v3356 = vunpack.c.0.s8 %v3355
    %v3357 = vlaneseq
    %v3358 = vshrl.u32 %v3357, 7
    %v3359 = vsub.s32 %v3356, %v3358
    %v3360 = vrot.slane %v3166, %v3359
    %v3361 = vcombine.low %v3353, %v3360
    %v3363 = vunpack.c.l.s4 1966171168
    %v3364 = vunpack.c.0.s8 %v3363
    %v3365 = vlaneseq
    %v3366 = vshrl.u32 %v3365, 7
    %v3367 = vsub.s32 %v3364, %v3366
    %v3368 = vrot.slane %v3361, %v3367
    %v3369 = vcombine.low %v3167, %v3168
    %v3371 = vunpack.c.l.s4 1966171168
    %v3372 = vunpack.c.0.s8 %v3371
    %v3373 = vlaneseq
    %v3374 = vshrl.u32 %v3373, 7
    %v3375 = vsub.s32 %v3372, %v3374
    %v3376 = vrot.slane %v3369, %v3375
    %v3378 = vunpack.c.l.s4 1966171168
    %v3379 = vunpack.c.0.s8 %v3378
    %v3380 = vlaneseq
    %v3381 = vshrl.u32 %v3380, 7
    %v3382 = vsub.s32 %v3379, %v3381
    %v3383 = vrot.slane %v3169, %v3382
    %v3384 = vcombine.low %v3376, %v3383
    %v3386 = vunpack.c.l.s4 1966171168
    %v3387 = vunpack.c.0.s8 %v3386
    %v3388 = vlaneseq
    %v3389 = vshrl.u32 %v3388, 7
    %v3390 = vsub.s32 %v3387, %v3389
    %v3391 = vrot.slane %v3384, %v3390
    %v3392 = vcombine.low %v3170, %v3171
    %v3394 = vunpack.c.l.s4 1966171168
    %v3395 = vunpack.c.0.s8 %v3394
    %v3396 = vlaneseq
    %v3397 = vshrl.u32 %v3396, 7
    %v3398 = vsub.s32 %v3395, %v3397
    %v3399 = vrot.slane %v3392, %v3398
    %v3401 = vunpack.c.l.s4 1966171168
    %v3402 = vunpack.c.0.s8 %v3401
    %v3403 = vlaneseq
    %v3404 = vshrl.u32 %v3403, 7
    %v3405 = vsub.s32 %v3402, %v3404
    %v3406 = vrot.slane %v3172, %v3405
    %v3407 = vcombine.low %v3399, %v3406
    %v3409 = vunpack.c.l.s4 1966171168
    %v3410 = vunpack.c.0.s8 %v3409
    %v3411 = vlaneseq
    %v3412 = vshrl.u32 %v3411, 7
    %v3413 = vsub.s32 %v3410, %v3412
    %v3414 = vrot.slane %v3407, %v3413
    %v3415 = vcombine.low %v3173, %v3174
    %v3417 = vunpack.c.l.s4 1966171168
    %v3418 = vunpack.c.0.s8 %v3417
    %v3419 = vlaneseq
    %v3420 = vshrl.u32 %v3419, 7
    %v3421 = vsub.s32 %v3418, %v3420
    %v3422 = vrot.slane %v3415, %v3421
    %v3424 = vunpack.c.l.s4 1966171168
    %v3425 = vunpack.c.0.s8 %v3424
    %v3426 = vlaneseq
    %v3427 = vshrl.u32 %v3426, 7
    %v3428 = vsub.s32 %v3425, %v3427
    %v3429 = vrot.slane %v3175, %v3428
    %v3430 = vcombine.low %v3422, %v3429
    %v3432 = vunpack.c.l.s4 1966171168
    %v3433 = vunpack.c.0.s8 %v3432
    %v3434 = vlaneseq
    %v3435 = vshrl.u32 %v3434, 7
    %v3436 = vsub.s32 %v3433, %v3435
    %v3437 = vrot.slane %v3430, %v3436
    %v3438 = vcombine.low %v3176, %v3177
    %v3440 = vunpack.c.l.s4 1966171168
    %v3441 = vunpack.c.0.s8 %v3440
    %v3442 = vlaneseq
    %v3443 = vshrl.u32 %v3442, 7
    %v3444 = vsub.s32 %v3441, %v3443
    %v3445 = vrot.slane %v3438, %v3444
    %v3447 = vunpack.c.l.s4 1966171168
    %v3448 = vunpack.c.0.s8 %v3447
    %v3449 = vlaneseq
    %v3450 = vshrl.u32 %v3449, 7
    %v3451 = vsub.s32 %v3448, %v3450
    %v3452 = vrot.slane %v3178, %v3451
    %v3453 = vcombine.low %v3445, %v3452
    %v3455 = vunpack.c.l.s4 1966171168
    %v3456 = vunpack.c.0.s8 %v3455
    %v3457 = vlaneseq
    %v3458 = vshrl.u32 %v3457, 7
    %v3459 = vsub.s32 %v3456, %v3458
    %v3460 = vrot.slane %v3453, %v3459
    %v3461 = vcombine.low %v3179, %v3180
    %v3463 = vunpack.c.l.s4 1966171168
    %v3464 = vunpack.c.0.s8 %v3463
    %v3465 = vlaneseq
    %v3466 = vshrl.u32 %v3465, 7
    %v3467 = vsub.s32 %v3464, %v3466
    %v3468 = vrot.slane %v3461, %v3467
    %v3470 = vunpack.c.l.s4 1966171168
    %v3471 = vunpack.c.0.s8 %v3470
    %v3472 = vlaneseq
    %v3473 = vshrl.u32 %v3472, 7
    %v3474 = vsub.s32 %v3471, %v3473
    %v3475 = vrot.slane %v3181, %v3474
    %v3476 = vcombine.low %v3468, %v3475
    %v3478 = vunpack.c.l.s4 1966171168
    %v3479 = vunpack.c.0.s8 %v3478
    %v3480 = vlaneseq
    %v3481 = vshrl.u32 %v3480, 7
    %v3482 = vsub.s32 %v3479, %v3481
    %v3483 = vrot.slane %v3476, %v3482
    %v3484 = vcombine.low %v3182, %v3183
    %v3486 = vunpack.c.l.s4 1966171168
    %v3487 = vunpack.c.0.s8 %v3486
    %v3488 = vlaneseq
    %v3489 = vshrl.u32 %v3488, 7
    %v3490 = vsub.s32 %v3487, %v3489
    %v3491 = vrot.slane %v3484, %v3490
    %v3493 = vunpack.c.l.s4 1966171168
    %v3494 = vunpack.c.0.s8 %v3493
    %v3495 = vlaneseq
    %v3496 = vshrl.u32 %v3495, 7
    %v3497 = vsub.s32 %v3494, %v3496
    %v3498 = vrot.slane %v3184, %v3497
    %v3499 = vcombine.low %v3491, %v3498
    %v3501 = vunpack.c.l.s4 1966171168
    %v3502 = vunpack.c.0.s8 %v3501
    %v3503 = vlaneseq
    %v3504 = vshrl.u32 %v3503, 7
    %v3505 = vsub.s32 %v3502, %v3504
    %v3506 = vrot.slane %v3499, %v3505
    %v3507 = vcombine.low %v3185, %v3186
    %v3509 = vunpack.c.l.s4 1966171168
    %v3510 = vunpack.c.0.s8 %v3509
    %v3511 = vlaneseq
    %v3512 = vshrl.u32 %v3511, 7
    %v3513 = vsub.s32 %v3510, %v3512
    %v3514 = vrot.slane %v3507, %v3513
    %v3516 = vunpack.c.l.s4 1966171168
    %v3517 = vunpack.c.0.s8 %v3516
    %v3518 = vlaneseq
    %v3519 = vshrl.u32 %v3518, 7
    %v3520 = vsub.s32 %v3517, %v3519
    %v3521 = vrot.slane %v3187, %v3520
    %v3522 = vcombine.low %v3514, %v3521
    %v3524 = vunpack.c.l.s4 1966171168
    %v3525 = vunpack.c.0.s8 %v3524
    %v3526 = vlaneseq
    %v3527 = vshrl.u32 %v3526, 7
    %v3528 = vsub.s32 %v3525, %v3527
    %v3529 = vrot.slane %v3522, %v3528
    %v3530 = vld [vmem:[%s5] sm:$0xff]
    %v3531 = vld [vmem:[%s5 + $0x8] sm:$0xff]
    %v3532 = vld [vmem:[%s5 + $0x10] sm:$0xff]
    %v3533 = vld [vmem:[%s5 + $0x18] sm:$0xff]
    %v3534 = vld [vmem:[%s5 + $0x20] sm:$0xff]
    %v3535 = vld [vmem:[%s5 + $0x28] sm:$0xff]
    %v3536 = vld [vmem:[%s5 + $0x30] sm:$0xff]
    %v3537 = vld [vmem:[%s5 + $0x38] sm:$0xff]
    %v3538 = vld [vmem:[%s5 + $0x40] sm:$0xff]
    %v3539 = vld [vmem:[%s5 + $0x48] sm:$0xff]
    %v3540 = vld [vmem:[%s5 + $0x50] sm:$0xff]
    %v3541 = vld [vmem:[%s5 + $0x58] sm:$0xff]
    %v3542 = vld [vmem:[%s5 + $0x60] sm:$0xff]
    %v3543 = vld [vmem:[%s5 + $0x68] sm:$0xff]
    %v3544 = vld [vmem:[%s5 + $0x70] sm:$0xff]
    %v3545 = vld [vmem:[%s5 + $0x78] sm:$0xff]
    %v3546 = vld [vmem:[%s5 + $0x80] sm:$0xff]
    %v3547 = vld [vmem:[%s5 + $0x88] sm:$0xff]
    %v3548 = vld [vmem:[%s5 + $0x90] sm:$0xff]
    %v3549 = vld [vmem:[%s5 + $0x98] sm:$0xff]
    %v3550 = vld [vmem:[%s5 + $0xa0] sm:$0xff]
    %v3551 = vld [vmem:[%s5 + $0xa8] sm:$0xff]
    %v3552 = vld [vmem:[%s5 + $0xb0] sm:$0xff]
    %v3553 = vld [vmem:[%s5 + $0xb8] sm:$0xff]
    %v3554 = vld [vmem:[%s5 + $0xc0] sm:$0xff]
    %v3555 = vld [vmem:[%s5 + $0xc8] sm:$0xff]
    %v3556 = vld [vmem:[%s5 + $0xd0] sm:$0xff]
    %v3557 = vld [vmem:[%s5 + $0xd8] sm:$0xff]
    %v3558 = vld [vmem:[%s5 + $0xe0] sm:$0xff]
    %v3559 = vld [vmem:[%s5 + $0xe8] sm:$0xff]
    %v3560 = vld [vmem:[%s5 + $0xf0] sm:$0xff]
    %v3561 = vld [vmem:[%s5 + $0xf8] sm:$0xff]
    %v3562 = vld [vmem:[%s5 + $0x100] sm:$0xff]
    %v3563 = vld [vmem:[%s5 + $0x108] sm:$0xff]
    %v3564 = vld [vmem:[%s5 + $0x110] sm:$0xff]
    %v3565 = vld [vmem:[%s5 + $0x118] sm:$0xff]
    %v3566 = vld [vmem:[%s5 + $0x120] sm:$0xff]
    %v3567 = vld [vmem:[%s5 + $0x128] sm:$0xff]
    %v3568 = vld [vmem:[%s5 + $0x130] sm:$0xff]
    %v3569 = vld [vmem:[%s5 + $0x138] sm:$0xff]
    %v3570 = vld [vmem:[%s5 + $0x140] sm:$0xff]
    %v3571 = vld [vmem:[%s5 + $0x148] sm:$0xff]
    %v3572 = vld [vmem:[%s5 + $0x150] sm:$0xff]
    %v3573 = vld [vmem:[%s5 + $0x158] sm:$0xff]
    %v3574 = vld [vmem:[%s5 + $0x160] sm:$0xff]
    %v3575 = vld [vmem:[%s5 + $0x168] sm:$0xff]
    %v3576 = vld [vmem:[%s5 + $0x170] sm:$0xff]
    %v3577 = vld [vmem:[%s5 + $0x178] sm:$0xff]
    %v3578 = vld [vmem:[%s5 + $0x180] sm:$0xff]
    %v3579 = vld [vmem:[%s5 + $0x188] sm:$0xff]
    %v3580 = vld [vmem:[%s5 + $0x190] sm:$0xff]
    %v3581 = vld [vmem:[%s5 + $0x198] sm:$0xff]
    %v3582 = vld [vmem:[%s5 + $0x1a0] sm:$0xff]
    %v3583 = vld [vmem:[%s5 + $0x1a8] sm:$0xff]
    %v3584 = vld [vmem:[%s5 + $0x1b0] sm:$0xff]
    %v3585 = vld [vmem:[%s5 + $0x1b8] sm:$0xff]
    %v3586 = vld [vmem:[%s5 + $0x1c0] sm:$0xff]
    %v3587 = vld [vmem:[%s5 + $0x1c8] sm:$0xff]
    %v3588 = vld [vmem:[%s5 + $0x1d0] sm:$0xff]
    %v3589 = vld [vmem:[%s5 + $0x1d8] sm:$0xff]
    %v3590 = vld [vmem:[%s5 + $0x1e0] sm:$0xff]
    %v3591 = vld [vmem:[%s5 + $0x1e8] sm:$0xff]
    %v3592 = vld [vmem:[%s5 + $0x1f0] sm:$0xff]
    %v3593 = vld [vmem:[%s5 + $0x1f8] sm:$0xff]
    %v3594 = vld [vmem:[%s5 + $0x200] sm:$0xff]
    %v3595 = vld [vmem:[%s5 + $0x208] sm:$0xff]
    %v3596 = vld [vmem:[%s5 + $0x210] sm:$0xff]
    %v3597 = vld [vmem:[%s5 + $0x218] sm:$0xff]
    %v3598 = vld [vmem:[%s5 + $0x220] sm:$0xff]
    %v3599 = vld [vmem:[%s5 + $0x228] sm:$0xff]
    %v3600 = vld [vmem:[%s5 + $0x230] sm:$0xff]
    %v3601 = vld [vmem:[%s5 + $0x238] sm:$0xff]
    %v3605 = vcombine.low %v3188, %v3189
    %v3607 = vunpack.c.l.s4 1966171168
    %v3608 = vunpack.c.0.s8 %v3607
    %v3609 = vlaneseq
    %v3610 = vshrl.u32 %v3609, 7
    %v3611 = vsub.s32 %v3608, %v3610
    %v3612 = vrot.slane %v3605, %v3611
    %v3614 = vunpack.c.l.s4 1966171168
    %v3615 = vunpack.c.0.s8 %v3614
    %v3616 = vlaneseq
    %v3617 = vshrl.u32 %v3616, 7
    %v3618 = vsub.s32 %v3615, %v3617
    %v3619 = vrot.slane %v3190, %v3618
    %v3620 = vcombine.low %v3612, %v3619
    %v3622 = vunpack.c.l.s4 1966171168
    %v3623 = vunpack.c.0.s8 %v3622
    %v3624 = vlaneseq
    %v3625 = vshrl.u32 %v3624, 7
    %v3626 = vsub.s32 %v3623, %v3625
    %v3627 = vrot.slane %v3620, %v3626
    %s3628 = scalar_lea.vmem %s5, 576
    %v3629 = vld [vmem:[%s3628] sm:$0xff]
    %v3630 = vld [vmem:[%s3628 + $0x8] sm:$0xff]
    %v3631 = vld [vmem:[%s3628 + $0x10] sm:$0xff]
    %v3632 = vld [vmem:[%s3628 + $0x18] sm:$0xff]
    %v3633 = vld [vmem:[%s3628 + $0x20] sm:$0xff]
    %v3634 = vld [vmem:[%s3628 + $0x28] sm:$0xff]
    %v3635 = vld [vmem:[%s3628 + $0x30] sm:$0xff]
    %v3636 = vld [vmem:[%s3628 + $0x38] sm:$0xff]
    %v3637 = vld [vmem:[%s3628 + $0x40] sm:$0xff]
    %v3638 = vld [vmem:[%s3628 + $0x48] sm:$0xff]
    %v3639 = vld [vmem:[%s3628 + $0x50] sm:$0xff]
    %v3640 = vld [vmem:[%s3628 + $0x58] sm:$0xff]
    %v3641 = vld [vmem:[%s3628 + $0x60] sm:$0xff]
    %v3642 = vld [vmem:[%s3628 + $0x68] sm:$0xff]
    %v3643 = vld [vmem:[%s3628 + $0x70] sm:$0xff]
    %v3644 = vld [vmem:[%s3628 + $0x78] sm:$0xff]
    %v3645 = vld [vmem:[%s3628 + $0x80] sm:$0xff]
    %v3646 = vld [vmem:[%s3628 + $0x88] sm:$0xff]
    %v3647 = vld [vmem:[%s3628 + $0x90] sm:$0xff]
    %v3648 = vld [vmem:[%s3628 + $0x98] sm:$0xff]
    %v3649 = vld [vmem:[%s3628 + $0xa0] sm:$0xff]
    %v3650 = vld [vmem:[%s3628 + $0xa8] sm:$0xff]
    %v3651 = vld [vmem:[%s3628 + $0xb0] sm:$0xff]
    %v3652 = vld [vmem:[%s3628 + $0xb8] sm:$0xff]
    %v3653 = vld [vmem:[%s3628 + $0xc0] sm:$0xff]
    %v3654 = vld [vmem:[%s3628 + $0xc8] sm:$0xff]
    %v3655 = vld [vmem:[%s3628 + $0xd0] sm:$0xff]
    %v3656 = vld [vmem:[%s3628 + $0xd8] sm:$0xff]
    %v3657 = vld [vmem:[%s3628 + $0xe0] sm:$0xff]
    %v3658 = vld [vmem:[%s3628 + $0xe8] sm:$0xff]
    %v3659 = vld [vmem:[%s3628 + $0xf0] sm:$0xff]
    %v3660 = vld [vmem:[%s3628 + $0xf8] sm:$0xff]
    %v3661 = vld [vmem:[%s3628 + $0x100] sm:$0xff]
    %v3662 = vld [vmem:[%s3628 + $0x108] sm:$0xff]
    %v3663 = vld [vmem:[%s3628 + $0x110] sm:$0xff]
    %v3664 = vld [vmem:[%s3628 + $0x118] sm:$0xff]
    %v3665 = vld [vmem:[%s3628 + $0x120] sm:$0xff]
    %v3666 = vld [vmem:[%s3628 + $0x128] sm:$0xff]
    %v3667 = vld [vmem:[%s3628 + $0x130] sm:$0xff]
    %v3668 = vld [vmem:[%s3628 + $0x138] sm:$0xff]
    %v3669 = vld [vmem:[%s3628 + $0x140] sm:$0xff]
    %v3670 = vld [vmem:[%s3628 + $0x148] sm:$0xff]
    %v3671 = vld [vmem:[%s3628 + $0x150] sm:$0xff]
    %v3672 = vld [vmem:[%s3628 + $0x158] sm:$0xff]
    %v3673 = vld [vmem:[%s3628 + $0x160] sm:$0xff]
    %v3674 = vld [vmem:[%s3628 + $0x168] sm:$0xff]
    %v3675 = vld [vmem:[%s3628 + $0x170] sm:$0xff]
    %v3676 = vld [vmem:[%s3628 + $0x178] sm:$0xff]
    %v3677 = vld [vmem:[%s3628 + $0x180] sm:$0xff]
    %v3678 = vld [vmem:[%s3628 + $0x188] sm:$0xff]
    %v3679 = vld [vmem:[%s3628 + $0x190] sm:$0xff]
    %v3680 = vld [vmem:[%s3628 + $0x198] sm:$0xff]
    %v3681 = vld [vmem:[%s3628 + $0x1a0] sm:$0xff]
    %v3682 = vld [vmem:[%s3628 + $0x1a8] sm:$0xff]
    %v3683 = vld [vmem:[%s3628 + $0x1b0] sm:$0xff]
    %v3684 = vld [vmem:[%s3628 + $0x1b8] sm:$0xff]
    %v3685 = vld [vmem:[%s3628 + $0x1c0] sm:$0xff]
    %v3686 = vld [vmem:[%s3628 + $0x1c8] sm:$0xff]
    %v3687 = vld [vmem:[%s3628 + $0x1d0] sm:$0xff]
    %v3688 = vld [vmem:[%s3628 + $0x1d8] sm:$0xff]
    %v3689 = vld [vmem:[%s3628 + $0x1e0] sm:$0xff]
    %v3690 = vld [vmem:[%s3628 + $0x1e8] sm:$0xff]
    %v3691 = vld [vmem:[%s3628 + $0x1f0] sm:$0xff]
    %v3692 = vld [vmem:[%s3628 + $0x1f8] sm:$0xff]
    %v3693 = vld [vmem:[%s3628 + $0x200] sm:$0xff]
    %v3694 = vld [vmem:[%s3628 + $0x208] sm:$0xff]
    %v3695 = vld [vmem:[%s3628 + $0x210] sm:$0xff]
    %v3696 = vld [vmem:[%s3628 + $0x218] sm:$0xff]
    %v3697 = vld [vmem:[%s3628 + $0x220] sm:$0xff]
    %v3698 = vld [vmem:[%s3628 + $0x228] sm:$0xff]
    %v3699 = vld [vmem:[%s3628 + $0x230] sm:$0xff]
    %v3700 = vld [vmem:[%s3628 + $0x238] sm:$0xff]
    %v3701 = vcombine.low %v3253, %v3276
    %v3702 = vcombine.low %v3299, %v3322
    %v3703 = vcombine.low %v3345, %v3368
    %v3704 = vcombine.low %v3391, %v3414
    %v3706 = vunpack.c.l.s4 1966171168
    %v3707 = vunpack.c.0.s8 %v3706
    %v3708 = vlaneseq
    %v3709 = vshrl.u32 %v3708, 7
    %v3710 = vsub.s32 %v3707, %v3709
    %v3711 = vrot.slane %v3701, %v3710
    %v3713 = vunpack.c.l.s4 1966171168
    %v3714 = vunpack.c.0.s8 %v3713
    %v3715 = vlaneseq
    %v3716 = vshrl.u32 %v3715, 7
    %v3717 = vsub.s32 %v3714, %v3716
    %v3718 = vrot.slane %v3702, %v3717
    %v3720 = vunpack.c.l.s4 1966171168
    %v3721 = vunpack.c.0.s8 %v3720
    %v3722 = vlaneseq
    %v3723 = vshrl.u32 %v3722, 7
    %v3724 = vsub.s32 %v3721, %v3723
    %v3725 = vrot.slane %v3703, %v3724
    %v3727 = vunpack.c.l.s4 1966171168
    %v3728 = vunpack.c.0.s8 %v3727
    %v3729 = vlaneseq
    %v3730 = vshrl.u32 %v3729, 7
    %v3731 = vsub.s32 %v3728, %v3730
    %v3732 = vrot.slane %v3704, %v3731
    %v3733 = vcombine.low %v3711, %v3718
    %v3734 = vcombine.high %v3711, %v3718
    %v3735 = vcombine.low %v3725, %v3732
    %v3736 = vcombine.high %v3725, %v3732
    %v3738 = vunpack.c.l.s4 1966171168
    %v3739 = vunpack.c.0.s8 %v3738
    %v3740 = vlaneseq
    %v3741 = vshrl.u32 %v3740, 7
    %v3742 = vsub.s32 %v3739, %v3741
    %v3743 = vrot.slane %v3733, %v3742
    %v3745 = vunpack.c.l.s4 1966171168
    %v3746 = vunpack.c.0.s8 %v3745
    %v3747 = vlaneseq
    %v3748 = vshrl.u32 %v3747, 7
    %v3749 = vsub.s32 %v3746, %v3748
    %v3750 = vrot.slane %v3734, %v3749
    %v3752 = vunpack.c.l.s4 1966171168
    %v3753 = vunpack.c.0.s8 %v3752
    %v3754 = vlaneseq
    %v3755 = vshrl.u32 %v3754, 7
    %v3756 = vsub.s32 %v3753, %v3755
    %v3757 = vrot.slane %v3735, %v3756
    %v3759 = vunpack.c.l.s4 1966171168
    %v3760 = vunpack.c.0.s8 %v3759
    %v3761 = vlaneseq
    %v3762 = vshrl.u32 %v3761, 7
    %v3763 = vsub.s32 %v3760, %v3762
    %v3764 = vrot.slane %v3736, %v3763
    %v3765 = vcombine.low %v3743, %v3757
    %v3766 = vcombine.high %v3743, %v3757
    %v3767 = vcombine.low %v3750, %v3764
    %v3768 = vcombine.low %v3437, %v3460
    %v3769 = vcombine.low %v3483, %v3506
    %v3770 = vcombine.low %v3529, %v3627
    %v3772 = vunpack.c.l.s4 1966171168
    %v3773 = vunpack.c.0.s8 %v3772
    %v3774 = vlaneseq
    %v3775 = vshrl.u32 %v3774, 7
    %v3776 = vsub.s32 %v3773, %v3775
    %v3777 = vrot.slane %v3768, %v3776
    %v3779 = vunpack.c.l.s4 1966171168
    %v3780 = vunpack.c.0.s8 %v3779
    %v3781 = vlaneseq
    %v3782 = vshrl.u32 %v3781, 7
    %v3783 = vsub.s32 %v3780, %v3782
    %v3784 = vrot.slane %v3769, %v3783
    %v3786 = vunpack.c.l.s4 1966171168
    %v3787 = vunpack.c.0.s8 %v3786
    %v3788 = vlaneseq
    %v3789 = vshrl.u32 %v3788, 7
    %v3790 = vsub.s32 %v3787, %v3789
    %v3791 = vrot.slane %v3770, %v3790
    %v3792 = vcombine.low %v3777, %v3784
    %v3793 = vcombine.high %v3777, %v3784
    %v3794 = vcombine.high %v3791, %v3791
    %v3796 = vunpack.c.l.s4 1966171168
    %v3797 = vunpack.c.0.s8 %v3796
    %v3798 = vlaneseq
    %v3799 = vshrl.u32 %v3798, 7
    %v3800 = vsub.s32 %v3797, %v3799
    %v3801 = vrot.slane %v3792, %v3800
    %v3803 = vunpack.c.l.s4 1966171168
    %v3804 = vunpack.c.0.s8 %v3803
    %v3805 = vlaneseq
    %v3806 = vshrl.u32 %v3805, 7
    %v3807 = vsub.s32 %v3804, %v3806
    %v3808 = vrot.slane %v3793, %v3807
    %v3810 = vunpack.c.l.s4 1966171168
    %v3811 = vunpack.c.0.s8 %v3810
    %v3812 = vlaneseq
    %v3813 = vshrl.u32 %v3812, 7
    %v3814 = vsub.s32 %v3811, %v3813
    %v3815 = vrot.slane %v3791, %v3814
    %v3817 = vunpack.c.l.s4 1966171168
    %v3818 = vunpack.c.0.s8 %v3817
    %v3819 = vlaneseq
    %v3820 = vshrl.u32 %v3819, 7
    %v3821 = vsub.s32 %v3818, %v3820
    %v3822 = vrot.slane %v3794, %v3821
    %v3823 = vcombine.low %v3801, %v3815
    %v3824 = vcombine.high %v3801, %v3815
    %v3825 = vcombine.low %v3808, %v3822
    %v3902 = vunpack.c.l.b16 %v3629
    %v3903 = vunpack.c.h.b16 %v3629
    %v3904 = vunpack.c.l.b16 %v3630
    %v3905 = vunpack.c.h.b16 %v3630
    %v3906 = vunpack.c.l.b16 %v3631
    %v3907 = vunpack.c.h.b16 %v3631
    %v3908 = vunpack.c.l.b16 %v3632
    %v3909 = vunpack.c.h.b16 %v3632
    %v3910 = vunpack.c.l.b16 %v3633
    %v3911 = vunpack.c.h.b16 %v3633
    %v3912 = vunpack.c.l.b16 %v3634
    %v3913 = vunpack.c.h.b16 %v3634
    %v3914 = vunpack.c.l.b16 %v3635
    %v3915 = vunpack.c.h.b16 %v3635
    %v3916 = vunpack.c.l.b16 %v3636
    %v3917 = vunpack.c.h.b16 %v3636
    %v3918 = vunpack.c.l.b16 %v3637
    %v3919 = vunpack.c.h.b16 %v3637
    %v3920 = vunpack.c.l.b16 %v3638
    %v3921 = vunpack.c.h.b16 %v3638
    %v3922 = vunpack.c.l.b16 %v3639
    %v3923 = vunpack.c.h.b16 %v3639
    %v3924 = vunpack.c.l.b16 %v3640
    %v3925 = vunpack.c.h.b16 %v3640
    %v3926 = vunpack.c.l.b16 %v3641
    %v3927 = vunpack.c.h.b16 %v3641
    %v3928 = vunpack.c.l.b16 %v3642
    %v3929 = vunpack.c.h.b16 %v3642
    %v3930 = vunpack.c.l.b16 %v3643
    %v3931 = vunpack.c.h.b16 %v3643
    %v3932 = vunpack.c.l.b16 %v3644
    %v3933 = vunpack.c.h.b16 %v3644
    %v3934 = vunpack.c.l.b16 %v3645
    %v3935 = vunpack.c.h.b16 %v3645
    %v3936 = vunpack.c.l.b16 %v3646
    %v3937 = vunpack.c.h.b16 %v3646
    %v3938 = vunpack.c.l.b16 %v3647
    %v3939 = vunpack.c.h.b16 %v3647
    %v3940 = vunpack.c.l.b16 %v3648
    %v3941 = vunpack.c.h.b16 %v3648
    %v3942 = vunpack.c.l.b16 %v3649
    %v3943 = vunpack.c.h.b16 %v3649
    %v3944 = vunpack.c.l.b16 %v3650
    %v3945 = vunpack.c.h.b16 %v3650
    %v3946 = vunpack.c.l.b16 %v3651
    %v3947 = vunpack.c.h.b16 %v3651
    %v3948 = vunpack.c.l.b16 %v3652
    %v3949 = vunpack.c.h.b16 %v3652
    %v3950 = vunpack.c.l.b16 %v3653
    %v3951 = vunpack.c.h.b16 %v3653
    %v3952 = vunpack.c.l.b16 %v3654
    %v3953 = vunpack.c.h.b16 %v3654
    %v3954 = vunpack.c.l.b16 %v3655
    %v3955 = vunpack.c.h.b16 %v3655
    %v3956 = vunpack.c.l.b16 %v3656
    %v3957 = vunpack.c.h.b16 %v3656
    %v3958 = vunpack.c.l.b16 %v3657
    %v3959 = vunpack.c.h.b16 %v3657
    %v3960 = vunpack.c.l.b16 %v3658
    %v3961 = vunpack.c.h.b16 %v3658
    %v3962 = vunpack.c.l.b16 %v3659
    %v3963 = vunpack.c.h.b16 %v3659
    %v3964 = vunpack.c.l.b16 %v3660
    %v3965 = vunpack.c.h.b16 %v3660
    %v3966 = vunpack.c.l.b16 %v3661
    %v3967 = vunpack.c.h.b16 %v3661
    %v3968 = vunpack.c.l.b16 %v3662
    %v3969 = vunpack.c.h.b16 %v3662
    %v3970 = vunpack.c.l.b16 %v3663
    %v3971 = vunpack.c.h.b16 %v3663
    %v3972 = vunpack.c.l.b16 %v3664
    %v3973 = vunpack.c.h.b16 %v3664
    %v3974 = vunpack.c.l.b16 %v3665
    %v3975 = vunpack.c.h.b16 %v3665
    %v3976 = vunpack.c.l.b16 %v3666
    %v3977 = vunpack.c.h.b16 %v3666
    %v3978 = vunpack.c.l.b16 %v3667
    %v3979 = vunpack.c.h.b16 %v3667
    %v3980 = vunpack.c.l.b16 %v3668
    %v3981 = vunpack.c.h.b16 %v3668
    %v3982 = vunpack.c.l.b16 %v3669
    %v3983 = vunpack.c.h.b16 %v3669
    %v3984 = vunpack.c.l.b16 %v3670
    %v3985 = vunpack.c.h.b16 %v3670
    %v3986 = vunpack.c.l.b16 %v3671
    %v3987 = vunpack.c.h.b16 %v3671
    %v3988 = vunpack.c.l.b16 %v3672
    %v3989 = vunpack.c.h.b16 %v3672
    %v3990 = vunpack.c.l.b16 %v3673
    %v3991 = vunpack.c.h.b16 %v3673
    %v3992 = vunpack.c.l.b16 %v3674
    %v3993 = vunpack.c.h.b16 %v3674
    %v3994 = vunpack.c.l.b16 %v3675
    %v3995 = vunpack.c.h.b16 %v3675
    %v3996 = vunpack.c.l.b16 %v3676
    %v3997 = vunpack.c.h.b16 %v3676
    %v3998 = vunpack.c.l.b16 %v3677
    %v3999 = vunpack.c.h.b16 %v3677
    %v4000 = vunpack.c.l.b16 %v3678
    %v4001 = vunpack.c.h.b16 %v3678
    %v4002 = vunpack.c.l.b16 %v3679
    %v4003 = vunpack.c.h.b16 %v3679
    %v4004 = vunpack.c.l.b16 %v3680
    %v4005 = vunpack.c.h.b16 %v3680
    %v4006 = vunpack.c.l.b16 %v3681
    %v4007 = vunpack.c.h.b16 %v3681
    %v4008 = vunpack.c.l.b16 %v3682
    %v4009 = vunpack.c.h.b16 %v3682
    %v4010 = vunpack.c.l.b16 %v3683
    %v4011 = vunpack.c.h.b16 %v3683
    %v4012 = vunpack.c.l.b16 %v3684
    %v4013 = vunpack.c.h.b16 %v3684
    %v4014 = vunpack.c.l.b16 %v3685
    %v4015 = vunpack.c.h.b16 %v3685
    %v4016 = vunpack.c.l.b16 %v3686
    %v4017 = vunpack.c.h.b16 %v3686
    %v4018 = vunpack.c.l.b16 %v3687
    %v4019 = vunpack.c.h.b16 %v3687
    %v4020 = vunpack.c.l.b16 %v3688
    %v4021 = vunpack.c.h.b16 %v3688
    %v4022 = vunpack.c.l.b16 %v3689
    %v4023 = vunpack.c.h.b16 %v3689
    %v4024 = vunpack.c.l.b16 %v3690
    %v4025 = vunpack.c.h.b16 %v3690
    %v4026 = vunpack.c.l.b16 %v3691
    %v4027 = vunpack.c.h.b16 %v3691
    %v4028 = vunpack.c.l.b16 %v3692
    %v4029 = vunpack.c.h.b16 %v3692
    %v4030 = vunpack.c.l.b16 %v3693
    %v4031 = vunpack.c.h.b16 %v3693
    %v4032 = vunpack.c.l.b16 %v3694
    %v4033 = vunpack.c.h.b16 %v3694
    %v4034 = vunpack.c.l.b16 %v3695
    %v4035 = vunpack.c.h.b16 %v3695
    %v4036 = vunpack.c.l.b16 %v3696
    %v4037 = vunpack.c.h.b16 %v3696
    %v4038 = vunpack.c.l.b16 %v3697
    %v4039 = vunpack.c.h.b16 %v3697
    %v4040 = vunpack.c.l.b16 %v3698
    %v4041 = vunpack.c.h.b16 %v3698
    %v4042 = vunpack.c.l.b16 %v3699
    %v4043 = vunpack.c.h.b16 %v3699
    %v4044 = vunpack.c.l.b16 %v3700
    %v4045 = vunpack.c.h.b16 %v3700
    %v4046 = vpack.c.b16 %v3906, %v3902
    %v4047 = vpack.c.b16 %v3907, %v3903
    %v4048 = vpack.c.b16 %v3908, %v3904
    %v4049 = vpack.c.b16 %v3909, %v3905
    %v4050 = vpack.c.b16 %v3914, %v3910
    %v4051 = vpack.c.b16 %v3915, %v3911
    %v4052 = vpack.c.b16 %v3916, %v3912
    %v4053 = vpack.c.b16 %v3917, %v3913
    %v4054 = vpack.c.b16 %v3922, %v3918
    %v4055 = vpack.c.b16 %v3923, %v3919
    %v4056 = vpack.c.b16 %v3924, %v3920
    %v4057 = vpack.c.b16 %v3925, %v3921
    %v4058 = vpack.c.b16 %v3930, %v3926
    %v4059 = vpack.c.b16 %v3931, %v3927
    %v4060 = vpack.c.b16 %v3932, %v3928
    %v4061 = vpack.c.b16 %v3933, %v3929
    %v4062 = vpack.c.b16 %v3938, %v3934
    %v4063 = vpack.c.b16 %v3939, %v3935
    %v4064 = vpack.c.b16 %v3940, %v3936
    %v4065 = vpack.c.b16 %v3941, %v3937
    %v4066 = vpack.c.b16 %v3946, %v3942
    %v4067 = vpack.c.b16 %v3947, %v3943
    %v4068 = vpack.c.b16 %v3948, %v3944
    %v4069 = vpack.c.b16 %v3949, %v3945
    %v4070 = vpack.c.b16 %v3954, %v3950
    %v4071 = vpack.c.b16 %v3955, %v3951
    %v4072 = vpack.c.b16 %v3956, %v3952
    %v4073 = vpack.c.b16 %v3957, %v3953
    %v4074 = vpack.c.b16 %v3962, %v3958
    %v4075 = vpack.c.b16 %v3963, %v3959
    %v4076 = vpack.c.b16 %v3964, %v3960
    %v4077 = vpack.c.b16 %v3965, %v3961
    %v4078 = vpack.c.b16 %v3970, %v3966
    %v4079 = vpack.c.b16 %v3971, %v3967
    %v4080 = vpack.c.b16 %v3972, %v3968
    %v4081 = vpack.c.b16 %v3973, %v3969
    %v4082 = vpack.c.b16 %v3978, %v3974
    %v4083 = vpack.c.b16 %v3979, %v3975
    %v4084 = vpack.c.b16 %v3980, %v3976
    %v4085 = vpack.c.b16 %v3981, %v3977
    %v4086 = vpack.c.b16 %v3986, %v3982
    %v4087 = vpack.c.b16 %v3987, %v3983
    %v4088 = vpack.c.b16 %v3988, %v3984
    %v4089 = vpack.c.b16 %v3989, %v3985
    %v4090 = vpack.c.b16 %v3994, %v3990
    %v4091 = vpack.c.b16 %v3995, %v3991
    %v4092 = vpack.c.b16 %v3996, %v3992
    %v4093 = vpack.c.b16 %v3997, %v3993
    %v4094 = vpack.c.b16 %v4002, %v3998
    %v4095 = vpack.c.b16 %v4003, %v3999
    %v4096 = vpack.c.b16 %v4004, %v4000
    %v4097 = vpack.c.b16 %v4005, %v4001
    %v4098 = vpack.c.b16 %v4010, %v4006
    %v4099 = vpack.c.b16 %v4011, %v4007
    %v4100 = vpack.c.b16 %v4012, %v4008
    %v4101 = vpack.c.b16 %v4013, %v4009
    %v4102 = vpack.c.b16 %v4018, %v4014
    %v4103 = vpack.c.b16 %v4019, %v4015
    %v4104 = vpack.c.b16 %v4020, %v4016
    %v4105 = vpack.c.b16 %v4021, %v4017
    %v4106 = vpack.c.b16 %v4026, %v4022
    %v4107 = vpack.c.b16 %v4027, %v4023
    %v4108 = vpack.c.b16 %v4028, %v4024
    %v4109 = vpack.c.b16 %v4029, %v4025
    %v4110 = vpack.c.b16 %v4034, %v4030
    %v4111 = vpack.c.b16 %v4035, %v4031
    %v4112 = vpack.c.b16 %v4036, %v4032
    %v4113 = vpack.c.b16 %v4037, %v4033
    %v4114 = vpack.c.b16 %v4042, %v4038
    %v4115 = vpack.c.b16 %v4043, %v4039
    %v4116 = vpack.c.b16 %v4044, %v4040
    %v4117 = vpack.c.b16 %v4045, %v4041
    %v4191 = vsel %vm328, %v3766, 0
    %v4194 = vsel %vm328, %v3824, 0
    %4196 = vmatprep.subr.bf16.mxu0 %v4047
    %4197 = vmatpush1.bf16.msra.mxu0 %v4046
    %4198 = vmatprep.subr.bf16.mxu0 %v4051
    %4199 = vmatpush1.bf16.msra.mxu0 %v4050
    %4200 = vmatprep.subr.bf16.mxu0 %v4055
    %4201 = vmatpush1.bf16.msra.mxu0 %v4054
    %4202 = vmatprep.subr.bf16.mxu0 %v4059
    %4203 = vmatpush1.bf16.msra.mxu0 %v4058
    %4204 = vmatprep.subr.bf16.mxu0 %v4063
    %4205 = vmatpush1.bf16.msra.mxu0 %v4062
    %4206 = vmatprep.subr.bf16.mxu0 %v4067
    %4207 = vmatpush1.bf16.msra.mxu0 %v4066
    %4208 = vmatprep.subr.bf16.mxu0 %v4071
    %4209 = vmatpush1.bf16.msra.mxu0 %v4070
    %4210 = vmatprep.subr.bf16.mxu0 %v4075
    %4211 = vmatpush1.bf16.msra.mxu0 %v4074
    %4212 = vmatprep.subr.bf16.mxu0 %v4079
    %4213 = vmatpush1.bf16.msra.mxu0 %v4078
    %4214 = vmatprep.subr.bf16.mxu0 %v4083
    %4215 = vmatpush1.bf16.msra.mxu0 %v4082
    %4216 = vmatprep.subr.bf16.mxu0 %v4087
    %4217 = vmatpush1.bf16.msra.mxu0 %v4086
    %4218 = vmatprep.subr.bf16.mxu0 %v4091
    %4219 = vmatpush1.bf16.msra.mxu0 %v4090
    %4220 = vmatprep.subr.bf16.mxu0 %v4095
    %4221 = vmatpush1.bf16.msra.mxu0 %v4094
    %4222 = vmatprep.subr.bf16.mxu0 %v4099
    %4223 = vmatpush1.bf16.msra.mxu0 %v4098
    %4224 = vmatprep.subr.bf16.mxu0 %v4103
    %4225 = vmatpush1.bf16.msra.mxu0 %v4102
    %4226 = vmatprep.subr.bf16.mxu0 %v4107
    %4227 = vmatpush1.bf16.msra.mxu0 %v4106
    %4228 = vmatprep.mubr.bf16.mxu0 %v3767
    %4229 = vmatmul.mubr.bf16.gmra.mrb[0].mxu0 %v3765
    %v4230 = vpop.f32.mrb[0].mxu0
    %v4231 = vadd.f32 0.0, %v4230
    %v4232 = vpop.f32.mrb[0].mxu0
    %v4233 = vadd.f32 0.0, %v4232
    %v4234 = vpop.f32.mrb[0].mxu0
    %v4235 = vadd.f32 0.0, %v4234
    %v4236 = vpop.f32.mrb[0].mxu0
    %v4237 = vadd.f32 0.0, %v4236
    %4238 = vmatprep.mubr.bf16.mxu0 %v3825
    %4239 = vmatmul.mubr.bf16.gmra.mrb[0].mxu0 %v3823
    %v4240 = vpop.f32.mrb[0].mxu0
    %v4241 = vadd.f32 0.0, %v4240
    %v4242 = vpop.f32.mrb[0].mxu0
    %v4243 = vadd.f32 0.0, %v4242
    %v4244 = vpop.f32.mrb[0].mxu0
    %v4245 = vadd.f32 0.0, %v4244
    %v4246 = vpop.f32.mrb[0].mxu0
    %v4247 = vadd.f32 0.0, %v4246
    %4248 = vdwg.mxu0
    %4249 = vmatprep.subr.bf16.mxu0 %v4111
    %4250 = vmatpush1.bf16.msra.mxu0 %v4110
    %4251 = vmatprep.subr.bf16.mxu0 %v4115
    %4252 = vmatpush1.bf16.msra.mxu0 %v4114
    %4253 = vmatprep.subr.bf16.mxu0 0
    %4254 = vmatpush1.bf16.msra.mxu0 0
    %4255 = vmatprep.subr.bf16.mxu0 0
    %4256 = vmatpush1.bf16.msra.mxu0 0
    %4257 = vmatprep.subr.bf16.mxu0 0
    %4258 = vmatpush1.bf16.msra.mxu0 0
    %4259 = vmatprep.subr.bf16.mxu0 0
    %4260 = vmatpush1.bf16.msra.mxu0 0
    %4261 = vmatprep.subr.bf16.mxu0 0
    %4262 = vmatpush1.bf16.msra.mxu0 0
    %4263 = vmatprep.subr.bf16.mxu0 0
    %4264 = vmatpush1.bf16.msra.mxu0 0
    %4265 = vmatprep.subr.bf16.mxu0 0
    %4266 = vmatpush1.bf16.msra.mxu0 0
    %4267 = vmatprep.subr.bf16.mxu0 0
    %4268 = vmatpush1.bf16.msra.mxu0 0
    %4269 = vmatprep.subr.bf16.mxu0 0
    %4270 = vmatpush1.bf16.msra.mxu0 0
    %4271 = vmatprep.subr.bf16.mxu0 0
    %4272 = vmatpush1.bf16.msra.mxu0 0
    %4273 = vmatprep.subr.bf16.mxu0 0
    %4274 = vmatpush1.bf16.msra.mxu0 0
    %4275 = vmatprep.subr.bf16.mxu0 0
    %4276 = vmatpush1.bf16.msra.mxu0 0
    %4277 = vmatprep.subr.bf16.mxu0 0
    %4278 = vmatpush1.bf16.msra.mxu0 0
    %4279 = vmatprep.subr.bf16.mxu0 0
    %4280 = vmatpush1.bf16.msra.mxu0 0
    %4281 = vmatprep.mubr.bf16.mxu0 0
    %4282 = vmatmul.mubr.bf16.gmra.mrb[0].mxu0 %v4191
    %v4283 = vpop.f32.mrb[0].mxu0
    %v4284 = vadd.f32 %v4231, %v4283
    %v4285 = vpop.f32.mrb[0].mxu0
    %v4286 = vadd.f32 %v4233, %v4285
    %v4287 = vpop.f32.mrb[0].mxu0
    %v4288 = vadd.f32 %v4235, %v4287
    %v4289 = vpop.f32.mrb[0].mxu0
    %v4290 = vadd.f32 %v4237, %v4289
    %4291 = vmatprep.mubr.bf16.mxu0 0
    %4292 = vmatmul.mubr.bf16.gmra.mrb[0].mxu0 %v4194
    %v4293 = vpop.f32.mrb[0].mxu0
    %v4294 = vadd.f32 %v4241, %v4293
    %v4295 = vpop.f32.mrb[0].mxu0
    %v4296 = vadd.f32 %v4243, %v4295
    %v4297 = vpop.f32.mrb[0].mxu0
    %v4298 = vadd.f32 %v4245, %v4297
    %v4299 = vpop.f32.mrb[0].mxu0
    %v4300 = vadd.f32 %v4247, %v4299
    %4301 = vdwg.mxu0
    %4302 = vmatprep.subr.bf16.mxu0 %v4049
    %4303 = vmatpush1.bf16.msra.mxu0 %v4048
    %4304 = vmatprep.subr.bf16.mxu0 %v4053
    %4305 = vmatpush1.bf16.msra.mxu0 %v4052
    %4306 = vmatprep.subr.bf16.mxu0 %v4057
    %4307 = vmatpush1.bf16.msra.mxu0 %v4056
    %4308 = vmatprep.subr.bf16.mxu0 %v4061
    %4309 = vmatpush1.bf16.msra.mxu0 %v4060
    %4310 = vmatprep.subr.bf16.mxu0 %v4065
    %4311 = vmatpush1.bf16.msra.mxu0 %v4064
    %4312 = vmatprep.subr.bf16.mxu0 %v4069
    %4313 = vmatpush1.bf16.msra.mxu0 %v4068
    %4314 = vmatprep.subr.bf16.mxu0 %v4073
    %4315 = vmatpush1.bf16.msra.mxu0 %v4072
    %4316 = vmatprep.subr.bf16.mxu0 %v4077
    %4317 = vmatpush1.bf16.msra.mxu0 %v4076
    %4318 = vmatprep.subr.bf16.mxu0 %v4081
    %4319 = vmatpush1.bf16.msra.mxu0 %v4080
    %4320 = vmatprep.subr.bf16.mxu0 %v4085
    %4321 = vmatpush1.bf16.msra.mxu0 %v4084
    %4322 = vmatprep.subr.bf16.mxu0 %v4089
    %4323 = vmatpush1.bf16.msra.mxu0 %v4088
    %4324 = vmatprep.subr.bf16.mxu0 %v4093
    %4325 = vmatpush1.bf16.msra.mxu0 %v4092
    %4326 = vmatprep.subr.bf16.mxu0 %v4097
    %4327 = vmatpush1.bf16.msra.mxu0 %v4096
    %4328 = vmatprep.subr.bf16.mxu0 %v4101
    %4329 = vmatpush1.bf16.msra.mxu0 %v4100
    %4330 = vmatprep.subr.bf16.mxu0 %v4105
    %4331 = vmatpush1.bf16.msra.mxu0 %v4104
    %4332 = vmatprep.subr.bf16.mxu0 %v4109
    %4333 = vmatpush1.bf16.msra.mxu0 %v4108
    %4334 = vmatprep.mubr.bf16.mxu0 %v3767
    %4335 = vmatmul.mubr.bf16.gmra.mrb[0].mxu0 %v3765
    %v4336 = vpop.f32.mrb[0].mxu0
    %v4337 = vadd.f32 0.0, %v4336
    %v4338 = vpop.f32.mrb[0].mxu0
    %v4339 = vadd.f32 0.0, %v4338
    %v4340 = vpop.f32.mrb[0].mxu0
    %v4341 = vadd.f32 0.0, %v4340
    %v4342 = vpop.f32.mrb[0].mxu0
    %v4343 = vadd.f32 0.0, %v4342
    %4344 = vmatprep.mubr.bf16.mxu0 %v3825
    %4345 = vmatmul.mubr.bf16.gmra.mrb[0].mxu0 %v3823
    %v4346 = vpop.f32.mrb[0].mxu0
    %v4347 = vadd.f32 0.0, %v4346
    %v4348 = vpop.f32.mrb[0].mxu0
    %v4349 = vadd.f32 0.0, %v4348
    %v4350 = vpop.f32.mrb[0].mxu0
    %v4351 = vadd.f32 0.0, %v4350
    %v4352 = vpop.f32.mrb[0].mxu0
    %v4353 = vadd.f32 0.0, %v4352
    %4354 = vdwg.mxu0
    %4355 = vmatprep.subr.bf16.mxu0 %v4113
    %4356 = vmatpush1.bf16.msra.mxu0 %v4112
    %4357 = vmatprep.subr.bf16.mxu0 %v4117
    %4358 = vmatpush1.bf16.msra.mxu0 %v4116
    %4359 = vmatprep.subr.bf16.mxu0 0
    %4360 = vmatpush1.bf16.msra.mxu0 0
    %4361 = vmatprep.subr.bf16.mxu0 0
    %4362 = vmatpush1.bf16.msra.mxu0 0
    %4363 = vmatprep.subr.bf16.mxu0 0
    %4364 = vmatpush1.bf16.msra.mxu0 0
    %4365 = vmatprep.subr.bf16.mxu0 0
    %4366 = vmatpush1.bf16.msra.mxu0 0
    %4367 = vmatprep.subr.bf16.mxu0 0
    %4368 = vmatpush1.bf16.msra.mxu0 0
    %4369 = vmatprep.subr.bf16.mxu0 0
    %4370 = vmatpush1.bf16.msra.mxu0 0
    %4371 = vmatprep.subr.bf16.mxu0 0
    %4372 = vmatpush1.bf16.msra.mxu0 0
    %4373 = vmatprep.subr.bf16.mxu0 0
    %4374 = vmatpush1.bf16.msra.mxu0 0
    %4375 = vmatprep.subr.bf16.mxu0 0
    %4376 = vmatpush1.bf16.msra.mxu0 0
    %4377 = vmatprep.subr.bf16.mxu0 0
    %4378 = vmatpush1.bf16.msra.mxu0 0
    %4379 = vmatprep.subr.bf16.mxu0 0
    %4380 = vmatpush1.bf16.msra.mxu0 0
    %4381 = vmatprep.subr.bf16.mxu0 0
    %4382 = vmatpush1.bf16.msra.mxu0 0
    %4383 = vmatprep.subr.bf16.mxu0 0
    %4384 = vmatpush1.bf16.msra.mxu0 0
    %4385 = vmatprep.subr.bf16.mxu0 0
    %4386 = vmatpush1.bf16.msra.mxu0 0
    %4387 = vmatprep.mubr.bf16.mxu0 0
    %4388 = vmatmul.mubr.bf16.gmra.mrb[0].mxu0 %v4191
    %v4389 = vpop.f32.mrb[0].mxu0
    %v4390 = vadd.f32 %v4337, %v4389
    %v4391 = vpop.f32.mrb[0].mxu0
    %v4392 = vadd.f32 %v4339, %v4391
    %v4393 = vpop.f32.mrb[0].mxu0
    %v4394 = vadd.f32 %v4341, %v4393
    %v4395 = vpop.f32.mrb[0].mxu0
    %v4396 = vadd.f32 %v4343, %v4395
    %4397 = vmatprep.mubr.bf16.mxu0 0
    %4398 = vmatmul.mubr.bf16.gmra.mrb[0].mxu0 %v4194
    %v4399 = vpop.f32.mrb[0].mxu0
    %v4400 = vadd.f32 %v4347, %v4399
    %v4401 = vpop.f32.mrb[0].mxu0
    %v4402 = vadd.f32 %v4349, %v4401
    %v4403 = vpop.f32.mrb[0].mxu0
    %v4404 = vadd.f32 %v4351, %v4403
    %v4405 = vpop.f32.mrb[0].mxu0
    %v4406 = vadd.f32 %v4353, %v4405
    %4407 = vdwg.mxu0
    %v4408 = vcombine.low %v3253, %v3253
    %v4409 = vcombine.low %v3276, %v3299
    %v4410 = vcombine.low %v3322, %v3345
    %v4411 = vcombine.low %v3368, %v3391
    %v4413 = vunpack.c.l.s4 1966171168
    %v4414 = vunpack.c.0.s8 %v4413
    %v4415 = vlaneseq
    %v4416 = vshrl.u32 %v4415, 7
    %v4417 = vsub.s32 %v4414, %v4416
    %v4418 = vrot.slane %v4408, %v4417
    %v4420 = vunpack.c.l.s4 1966171168
    %v4421 = vunpack.c.0.s8 %v4420
    %v4422 = vlaneseq
    %v4423 = vshrl.u32 %v4422, 7
    %v4424 = vsub.s32 %v4421, %v4423
    %v4425 = vrot.slane %v4409, %v4424
    %v4427 = vunpack.c.l.s4 1966171168
    %v4428 = vunpack.c.0.s8 %v4427
    %v4429 = vlaneseq
    %v4430 = vshrl.u32 %v4429, 7
    %v4431 = vsub.s32 %v4428, %v4430
    %v4432 = vrot.slane %v4410, %v4431
    %v4434 = vunpack.c.l.s4 1966171168
    %v4435 = vunpack.c.0.s8 %v4434
    %v4436 = vlaneseq
    %v4437 = vshrl.u32 %v4436, 7
    %v4438 = vsub.s32 %v4435, %v4437
    %v4439 = vrot.slane %v4411, %v4438
    %v4440 = vcombine.low %v4418, %v4425
    %v4441 = vcombine.high %v4418, %v4425
    %v4442 = vcombine.low %v4432, %v4439
    %v4443 = vcombine.high %v4432, %v4439
    %v4445 = vunpack.c.l.s4 1966171168
    %v4446 = vunpack.c.0.s8 %v4445
    %v4447 = vlaneseq
    %v4448 = vshrl.u32 %v4447, 7
    %v4449 = vsub.s32 %v4446, %v4448
    %v4450 = vrot.slane %v4440, %v4449
    %v4452 = vunpack.c.l.s4 1966171168
    %v4453 = vunpack.c.0.s8 %v4452
    %v4454 = vlaneseq
    %v4455 = vshrl.u32 %v4454, 7
    %v4456 = vsub.s32 %v4453, %v4455
    %v4457 = vrot.slane %v4441, %v4456
    %v4459 = vunpack.c.l.s4 1966171168
    %v4460 = vunpack.c.0.s8 %v4459
    %v4461 = vlaneseq
    %v4462 = vshrl.u32 %v4461, 7
    %v4463 = vsub.s32 %v4460, %v4462
    %v4464 = vrot.slane %v4442, %v4463
    %v4466 = vunpack.c.l.s4 1966171168
    %v4467 = vunpack.c.0.s8 %v4466
    %v4468 = vlaneseq
    %v4469 = vshrl.u32 %v4468, 7
    %v4470 = vsub.s32 %v4467, %v4469
    %v4471 = vrot.slane %v4443, %v4470
    %v4472 = vcombine.low %v4450, %v4464
    %v4473 = vcombine.high %v4450, %v4464
    %v4474 = vcombine.low %v4457, %v4471
    %v4475 = vcombine.low %v3414, %v3437
    %v4476 = vcombine.low %v3460, %v3483
    %v4477 = vcombine.low %v3506, %v3529
    %v4479 = vunpack.c.l.s4 1966171168
    %v4480 = vunpack.c.0.s8 %v4479
    %v4481 = vlaneseq
    %v4482 = vshrl.u32 %v4481, 7
    %v4483 = vsub.s32 %v4480, %v4482
    %v4484 = vrot.slane %v4475, %v4483
    %v4486 = vunpack.c.l.s4 1966171168
    %v4487 = vunpack.c.0.s8 %v4486
    %v4488 = vlaneseq
    %v4489 = vshrl.u32 %v4488, 7
    %v4490 = vsub.s32 %v4487, %v4489
    %v4491 = vrot.slane %v4476, %v4490
    %v4493 = vunpack.c.l.s4 1966171168
    %v4494 = vunpack.c.0.s8 %v4493
    %v4495 = vlaneseq
    %v4496 = vshrl.u32 %v4495, 7
    %v4497 = vsub.s32 %v4494, %v4496
    %v4498 = vrot.slane %v4477, %v4497
    %v4499 = vcombine.low %v4484, %v4491
    %v4500 = vcombine.high %v4484, %v4491
    %v4501 = vcombine.high %v4498, %v4498
    %v4503 = vunpack.c.l.s4 1966171168
    %v4504 = vunpack.c.0.s8 %v4503
    %v4505 = vlaneseq
    %v4506 = vshrl.u32 %v4505, 7
    %v4507 = vsub.s32 %v4504, %v4506
    %v4508 = vrot.slane %v4499, %v4507
    %v4510 = vunpack.c.l.s4 1966171168
    %v4511 = vunpack.c.0.s8 %v4510
    %v4512 = vlaneseq
    %v4513 = vshrl.u32 %v4512, 7
    %v4514 = vsub.s32 %v4511, %v4513
    %v4515 = vrot.slane %v4500, %v4514
    %v4517 = vunpack.c.l.s4 1966171168
    %v4518 = vunpack.c.0.s8 %v4517
    %v4519 = vlaneseq
    %v4520 = vshrl.u32 %v4519, 7
    %v4521 = vsub.s32 %v4518, %v4520
    %v4522 = vrot.slane %v4498, %v4521
    %v4524 = vunpack.c.l.s4 1966171168
    %v4525 = vunpack.c.0.s8 %v4524
    %v4526 = vlaneseq
    %v4527 = vshrl.u32 %v4526, 7
    %v4528 = vsub.s32 %v4525, %v4527
    %v4529 = vrot.slane %v4501, %v4528
    %v4530 = vcombine.low %v4508, %v4522
    %v4531 = vcombine.high %v4508, %v4522
    %v4532 = vcombine.low %v4515, %v4529
    %v4609 = vunpack.c.l.b16 %v3530
    %v4610 = vunpack.c.h.b16 %v3530
    %v4611 = vunpack.c.l.b16 %v3531
    %v4612 = vunpack.c.h.b16 %v3531
    %v4613 = vunpack.c.l.b16 %v3532
    %v4614 = vunpack.c.h.b16 %v3532
    %v4615 = vunpack.c.l.b16 %v3533
    %v4616 = vunpack.c.h.b16 %v3533
    %v4617 = vunpack.c.l.b16 %v3534
    %v4618 = vunpack.c.h.b16 %v3534
    %v4619 = vunpack.c.l.b16 %v3535
    %v4620 = vunpack.c.h.b16 %v3535
    %v4621 = vunpack.c.l.b16 %v3536
    %v4622 = vunpack.c.h.b16 %v3536
    %v4623 = vunpack.c.l.b16 %v3537
    %v4624 = vunpack.c.h.b16 %v3537
    %v4625 = vunpack.c.l.b16 %v3538
    %v4626 = vunpack.c.h.b16 %v3538
    %v4627 = vunpack.c.l.b16 %v3539
    %v4628 = vunpack.c.h.b16 %v3539
    %v4629 = vunpack.c.l.b16 %v3540
    %v4630 = vunpack.c.h.b16 %v3540
    %v4631 = vunpack.c.l.b16 %v3541
    %v4632 = vunpack.c.h.b16 %v3541
    %v4633 = vunpack.c.l.b16 %v3542
    %v4634 = vunpack.c.h.b16 %v3542
    %v4635 = vunpack.c.l.b16 %v3543
    %v4636 = vunpack.c.h.b16 %v3543
    %v4637 = vunpack.c.l.b16 %v3544
    %v4638 = vunpack.c.h.b16 %v3544
    %v4639 = vunpack.c.l.b16 %v3545
    %v4640 = vunpack.c.h.b16 %v3545
    %v4641 = vunpack.c.l.b16 %v3546
    %v4642 = vunpack.c.h.b16 %v3546
    %v4643 = vunpack.c.l.b16 %v3547
    %v4644 = vunpack.c.h.b16 %v3547
    %v4645 = vunpack.c.l.b16 %v3548
    %v4646 = vunpack.c.h.b16 %v3548
    %v4647 = vunpack.c.l.b16 %v3549
    %v4648 = vunpack.c.h.b16 %v3549
    %v4649 = vunpack.c.l.b16 %v3550
    %v4650 = vunpack.c.h.b16 %v3550
    %v4651 = vunpack.c.l.b16 %v3551
    %v4652 = vunpack.c.h.b16 %v3551
    %v4653 = vunpack.c.l.b16 %v3552
    %v4654 = vunpack.c.h.b16 %v3552
    %v4655 = vunpack.c.l.b16 %v3553
    %v4656 = vunpack.c.h.b16 %v3553
    %v4657 = vunpack.c.l.b16 %v3554
    %v4658 = vunpack.c.h.b16 %v3554
    %v4659 = vunpack.c.l.b16 %v3555
    %v4660 = vunpack.c.h.b16 %v3555
    %v4661 = vunpack.c.l.b16 %v3556
    %v4662 = vunpack.c.h.b16 %v3556
    %v4663 = vunpack.c.l.b16 %v3557
    %v4664 = vunpack.c.h.b16 %v3557
    %v4665 = vunpack.c.l.b16 %v3558
    %v4666 = vunpack.c.h.b16 %v3558
    %v4667 = vunpack.c.l.b16 %v3559
    %v4668 = vunpack.c.h.b16 %v3559
    %v4669 = vunpack.c.l.b16 %v3560
    %v4670 = vunpack.c.h.b16 %v3560
    %v4671 = vunpack.c.l.b16 %v3561
    %v4672 = vunpack.c.h.b16 %v3561
    %v4673 = vunpack.c.l.b16 %v3562
    %v4674 = vunpack.c.h.b16 %v3562
    %v4675 = vunpack.c.l.b16 %v3563
    %v4676 = vunpack.c.h.b16 %v3563
    %v4677 = vunpack.c.l.b16 %v3564
    %v4678 = vunpack.c.h.b16 %v3564
    %v4679 = vunpack.c.l.b16 %v3565
    %v4680 = vunpack.c.h.b16 %v3565
    %v4681 = vunpack.c.l.b16 %v3566
    %v4682 = vunpack.c.h.b16 %v3566
    %v4683 = vunpack.c.l.b16 %v3567
    %v4684 = vunpack.c.h.b16 %v3567
    %v4685 = vunpack.c.l.b16 %v3568
    %v4686 = vunpack.c.h.b16 %v3568
    %v4687 = vunpack.c.l.b16 %v3569
    %v4688 = vunpack.c.h.b16 %v3569
    %v4689 = vunpack.c.l.b16 %v3570
    %v4690 = vunpack.c.h.b16 %v3570
    %v4691 = vunpack.c.l.b16 %v3571
    %v4692 = vunpack.c.h.b16 %v3571
    %v4693 = vunpack.c.l.b16 %v3572
    %v4694 = vunpack.c.h.b16 %v3572
    %v4695 = vunpack.c.l.b16 %v3573
    %v4696 = vunpack.c.h.b16 %v3573
    %v4697 = vunpack.c.l.b16 %v3574
    %v4698 = vunpack.c.h.b16 %v3574
    %v4699 = vunpack.c.l.b16 %v3575
    %v4700 = vunpack.c.h.b16 %v3575
    %v4701 = vunpack.c.l.b16 %v3576
    %v4702 = vunpack.c.h.b16 %v3576
    %v4703 = vunpack.c.l.b16 %v3577
    %v4704 = vunpack.c.h.b16 %v3577
    %v4705 = vunpack.c.l.b16 %v3578
    %v4706 = vunpack.c.h.b16 %v3578
    %v4707 = vunpack.c.l.b16 %v3579
    %v4708 = vunpack.c.h.b16 %v3579
    %v4709 = vunpack.c.l.b16 %v3580
    %v4710 = vunpack.c.h.b16 %v3580
    %v4711 = vunpack.c.l.b16 %v3581
    %v4712 = vunpack.c.h.b16 %v3581
    %v4713 = vunpack.c.l.b16 %v3582
    %v4714 = vunpack.c.h.b16 %v3582
    %v4715 = vunpack.c.l.b16 %v3583
    %v4716 = vunpack.c.h.b16 %v3583
    %v4717 = vunpack.c.l.b16 %v3584
    %v4718 = vunpack.c.h.b16 %v3584
    %v4719 = vunpack.c.l.b16 %v3585
    %v4720 = vunpack.c.h.b16 %v3585
    %v4721 = vunpack.c.l.b16 %v3586
    %v4722 = vunpack.c.h.b16 %v3586
    %v4723 = vunpack.c.l.b16 %v3587
    %v4724 = vunpack.c.h.b16 %v3587
    %v4725 = vunpack.c.l.b16 %v3588
    %v4726 = vunpack.c.h.b16 %v3588
    %v4727 = vunpack.c.l.b16 %v3589
    %v4728 = vunpack.c.h.b16 %v3589
    %v4729 = vunpack.c.l.b16 %v3590
    %v4730 = vunpack.c.h.b16 %v3590
    %v4731 = vunpack.c.l.b16 %v3591
    %v4732 = vunpack.c.h.b16 %v3591
    %v4733 = vunpack.c.l.b16 %v3592
    %v4734 = vunpack.c.h.b16 %v3592
    %v4735 = vunpack.c.l.b16 %v3593
    %v4736 = vunpack.c.h.b16 %v3593
    %v4737 = vunpack.c.l.b16 %v3594
    %v4738 = vunpack.c.h.b16 %v3594
    %v4739 = vunpack.c.l.b16 %v3595
    %v4740 = vunpack.c.h.b16 %v3595
    %v4741 = vunpack.c.l.b16 %v3596
    %v4742 = vunpack.c.h.b16 %v3596
    %v4743 = vunpack.c.l.b16 %v3597
    %v4744 = vunpack.c.h.b16 %v3597
    %v4745 = vunpack.c.l.b16 %v3598
    %v4746 = vunpack.c.h.b16 %v3598
    %v4747 = vunpack.c.l.b16 %v3599
    %v4748 = vunpack.c.h.b16 %v3599
    %v4749 = vunpack.c.l.b16 %v3600
    %v4750 = vunpack.c.h.b16 %v3600
    %v4751 = vunpack.c.l.b16 %v3601
    %v4752 = vunpack.c.h.b16 %v3601
    %v4753 = vpack.c.b16 %v4613, %v4609
    %v4754 = vpack.c.b16 %v4614, %v4610
    %v4755 = vpack.c.b16 %v4615, %v4611
    %v4756 = vpack.c.b16 %v4616, %v4612
    %v4757 = vpack.c.b16 %v4621, %v4617
    %v4758 = vpack.c.b16 %v4622, %v4618
    %v4759 = vpack.c.b16 %v4623, %v4619
    %v4760 = vpack.c.b16 %v4624, %v4620
    %v4761 = vpack.c.b16 %v4629, %v4625
    %v4762 = vpack.c.b16 %v4630, %v4626
    %v4763 = vpack.c.b16 %v4631, %v4627
    %v4764 = vpack.c.b16 %v4632, %v4628
    %v4765 = vpack.c.b16 %v4637, %v4633
    %v4766 = vpack.c.b16 %v4638, %v4634
    %v4767 = vpack.c.b16 %v4639, %v4635
    %v4768 = vpack.c.b16 %v4640, %v4636
    %v4769 = vpack.c.b16 %v4645, %v4641
    %v4770 = vpack.c.b16 %v4646, %v4642
    %v4771 = vpack.c.b16 %v4647, %v4643
    %v4772 = vpack.c.b16 %v4648, %v4644
    %v4773 = vpack.c.b16 %v4653, %v4649
    %v4774 = vpack.c.b16 %v4654, %v4650
    %v4775 = vpack.c.b16 %v4655, %v4651
    %v4776 = vpack.c.b16 %v4656, %v4652
    %v4777 = vpack.c.b16 %v4661, %v4657
    %v4778 = vpack.c.b16 %v4662, %v4658
    %v4779 = vpack.c.b16 %v4663, %v4659
    %v4780 = vpack.c.b16 %v4664, %v4660
    %v4781 = vpack.c.b16 %v4669, %v4665
    %v4782 = vpack.c.b16 %v4670, %v4666
    %v4783 = vpack.c.b16 %v4671, %v4667
    %v4784 = vpack.c.b16 %v4672, %v4668
    %v4785 = vpack.c.b16 %v4677, %v4673
    %v4786 = vpack.c.b16 %v4678, %v4674
    %v4787 = vpack.c.b16 %v4679, %v4675
    %v4788 = vpack.c.b16 %v4680, %v4676
    %v4789 = vpack.c.b16 %v4685, %v4681
    %v4790 = vpack.c.b16 %v4686, %v4682
    %v4791 = vpack.c.b16 %v4687, %v4683
    %v4792 = vpack.c.b16 %v4688, %v4684
    %v4793 = vpack.c.b16 %v4693, %v4689
    %v4794 = vpack.c.b16 %v4694, %v4690
    %v4795 = vpack.c.b16 %v4695, %v4691
    %v4796 = vpack.c.b16 %v4696, %v4692
    %v4797 = vpack.c.b16 %v4701, %v4697
    %v4798 = vpack.c.b16 %v4702, %v4698
    %v4799 = vpack.c.b16 %v4703, %v4699
    %v4800 = vpack.c.b16 %v4704, %v4700
    %v4801 = vpack.c.b16 %v4709, %v4705
    %v4802 = vpack.c.b16 %v4710, %v4706
    %v4803 = vpack.c.b16 %v4711, %v4707
    %v4804 = vpack.c.b16 %v4712, %v4708
    %v4805 = vpack.c.b16 %v4717, %v4713
    %v4806 = vpack.c.b16 %v4718, %v4714
    %v4807 = vpack.c.b16 %v4719, %v4715
    %v4808 = vpack.c.b16 %v4720, %v4716
    %v4809 = vpack.c.b16 %v4725, %v4721
    %v4810 = vpack.c.b16 %v4726, %v4722
    %v4811 = vpack.c.b16 %v4727, %v4723
    %v4812 = vpack.c.b16 %v4728, %v4724
    %v4813 = vpack.c.b16 %v4733, %v4729
    %v4814 = vpack.c.b16 %v4734, %v4730
    %v4815 = vpack.c.b16 %v4735, %v4731
    %v4816 = vpack.c.b16 %v4736, %v4732
    %v4817 = vpack.c.b16 %v4741, %v4737
    %v4818 = vpack.c.b16 %v4742, %v4738
    %v4819 = vpack.c.b16 %v4743, %v4739
    %v4820 = vpack.c.b16 %v4744, %v4740
    %v4821 = vpack.c.b16 %v4749, %v4745
    %v4822 = vpack.c.b16 %v4750, %v4746
    %v4823 = vpack.c.b16 %v4751, %v4747
    %v4824 = vpack.c.b16 %v4752, %v4748
    %v4898 = vsel %vm328, %v4473, 0
    %v4901 = vsel %vm328, %v4531, 0
    %4903 = vmatprep.subr.bf16.mxu0 %v4754
    %4904 = vmatpush1.bf16.msra.mxu0 %v4753
    %4905 = vmatprep.subr.bf16.mxu0 %v4758
    %4906 = vmatpush1.bf16.msra.mxu0 %v4757
    %4907 = vmatprep.subr.bf16.mxu0 %v4762
    %4908 = vmatpush1.bf16.msra.mxu0 %v4761
    %4909 = vmatprep.subr.bf16.mxu0 %v4766
    %4910 = vmatpush1.bf16.msra.mxu0 %v4765
    %4911 = vmatprep.subr.bf16.mxu0 %v4770
    %4912 = vmatpush1.bf16.msra.mxu0 %v4769
    %4913 = vmatprep.subr.bf16.mxu0 %v4774
    %4914 = vmatpush1.bf16.msra.mxu0 %v4773
    %4915 = vmatprep.subr.bf16.mxu0 %v4778
    %4916 = vmatpush1.bf16.msra.mxu0 %v4777
    %4917 = vmatprep.subr.bf16.mxu0 %v4782
    %4918 = vmatpush1.bf16.msra.mxu0 %v4781
    %4919 = vmatprep.subr.bf16.mxu0 %v4786
    %4920 = vmatpush1.bf16.msra.mxu0 %v4785
    %4921 = vmatprep.subr.bf16.mxu0 %v4790
    %4922 = vmatpush1.bf16.msra.mxu0 %v4789
    %4923 = vmatprep.subr.bf16.mxu0 %v4794
    %4924 = vmatpush1.bf16.msra.mxu0 %v4793
    %4925 = vmatprep.subr.bf16.mxu0 %v4798
    %4926 = vmatpush1.bf16.msra.mxu0 %v4797
    %4927 = vmatprep.subr.bf16.mxu0 %v4802
    %4928 = vmatpush1.bf16.msra.mxu0 %v4801
    %4929 = vmatprep.subr.bf16.mxu0 %v4806
    %4930 = vmatpush1.bf16.msra.mxu0 %v4805
    %4931 = vmatprep.subr.bf16.mxu0 %v4810
    %4932 = vmatpush1.bf16.msra.mxu0 %v4809
    %4933 = vmatprep.subr.bf16.mxu0 %v4814
    %4934 = vmatpush1.bf16.msra.mxu0 %v4813
    %4935 = vmatprep.mubr.bf16.mxu0 %v4474
    %4936 = vmatmul.mubr.bf16.gmra.mrb[0].mxu0 %v4472
    %v4937 = vpop.f32.mrb[0].mxu0
    %v4938 = vadd.f32 %v4284, %v4937
    %v4939 = vpop.f32.mrb[0].mxu0
    %v4940 = vadd.f32 %v4286, %v4939
    %v4941 = vpop.f32.mrb[0].mxu0
    %v4942 = vadd.f32 %v4288, %v4941
    %v4943 = vpop.f32.mrb[0].mxu0
    %v4944 = vadd.f32 %v4290, %v4943
    %4945 = vmatprep.mubr.bf16.mxu0 %v4532
    %4946 = vmatmul.mubr.bf16.gmra.mrb[0].mxu0 %v4530
    %v4947 = vpop.f32.mrb[0].mxu0
    %v4948 = vadd.f32 %v4294, %v4947
    %v4949 = vpop.f32.mrb[0].mxu0
    %v4950 = vadd.f32 %v4296, %v4949
    %v4951 = vpop.f32.mrb[0].mxu0
    %v4952 = vadd.f32 %v4298, %v4951
    %v4953 = vpop.f32.mrb[0].mxu0
    %v4954 = vadd.f32 %v4300, %v4953
    %4955 = vdwg.mxu0
    %4956 = vmatprep.subr.bf16.mxu0 %v4818
    %4957 = vmatpush1.bf16.msra.mxu0 %v4817
    %4958 = vmatprep.subr.bf16.mxu0 %v4822
    %4959 = vmatpush1.bf16.msra.mxu0 %v4821
    %4960 = vmatprep.subr.bf16.mxu0 0
    %4961 = vmatpush1.bf16.msra.mxu0 0
    %4962 = vmatprep.subr.bf16.mxu0 0
    %4963 = vmatpush1.bf16.msra.mxu0 0
    %4964 = vmatprep.subr.bf16.mxu0 0
    %4965 = vmatpush1.bf16.msra.mxu0 0
    %4966 = vmatprep.subr.bf16.mxu0 0
    %4967 = vmatpush1.bf16.msra.mxu0 0
    %4968 = vmatprep.subr.bf16.mxu0 0
    %4969 = vmatpush1.bf16.msra.mxu0 0
    %4970 = vmatprep.subr.bf16.mxu0 0
    %4971 = vmatpush1.bf16.msra.mxu0 0
    %4972 = vmatprep.subr.bf16.mxu0 0
    %4973 = vmatpush1.bf16.msra.mxu0 0
    %4974 = vmatprep.subr.bf16.mxu0 0
    %4975 = vmatpush1.bf16.msra.mxu0 0
    %4976 = vmatprep.subr.bf16.mxu0 0
    %4977 = vmatpush1.bf16.msra.mxu0 0
    %4978 = vmatprep.subr.bf16.mxu0 0
    %4979 = vmatpush1.bf16.msra.mxu0 0
    %4980 = vmatprep.subr.bf16.mxu0 0
    %4981 = vmatpush1.bf16.msra.mxu0 0
    %4982 = vmatprep.subr.bf16.mxu0 0
    %4983 = vmatpush1.bf16.msra.mxu0 0
    %4984 = vmatprep.subr.bf16.mxu0 0
    %4985 = vmatpush1.bf16.msra.mxu0 0
    %4986 = vmatprep.subr.bf16.mxu0 0
    %4987 = vmatpush1.bf16.msra.mxu0 0
    %4988 = vmatprep.mubr.bf16.mxu0 0
    %4989 = vmatmul.mubr.bf16.gmra.mrb[0].mxu0 %v4898
    %v4990 = vpop.f32.mrb[0].mxu0
    %v4991 = vadd.f32 %v4938, %v4990
    %v4992 = vpop.f32.mrb[0].mxu0
    %v4993 = vadd.f32 %v4940, %v4992
    %v4994 = vpop.f32.mrb[0].mxu0
    %v4995 = vadd.f32 %v4942, %v4994
    %v4996 = vpop.f32.mrb[0].mxu0
    %v4997 = vadd.f32 %v4944, %v4996
    %4998 = vmatprep.mubr.bf16.mxu0 0
    %4999 = vmatmul.mubr.bf16.gmra.mrb[0].mxu0 %v4901
    %v5000 = vpop.f32.mrb[0].mxu0
    %v5001 = vadd.f32 %v4948, %v5000
    %v5002 = vpop.f32.mrb[0].mxu0
    %v5003 = vadd.f32 %v4950, %v5002
    %v5004 = vpop.f32.mrb[0].mxu0
    %v5005 = vadd.f32 %v4952, %v5004
    %v5006 = vpop.f32.mrb[0].mxu0
    %v5007 = vadd.f32 %v4954, %v5006
    %5008 = vdwg.mxu0
    %5009 = vmatprep.subr.bf16.mxu0 %v4756
    %5010 = vmatpush1.bf16.msra.mxu0 %v4755
    %5011 = vmatprep.subr.bf16.mxu0 %v4760
    %5012 = vmatpush1.bf16.msra.mxu0 %v4759
    %5013 = vmatprep.subr.bf16.mxu0 %v4764
    %5014 = vmatpush1.bf16.msra.mxu0 %v4763
    %5015 = vmatprep.subr.bf16.mxu0 %v4768
    %5016 = vmatpush1.bf16.msra.mxu0 %v4767
    %5017 = vmatprep.subr.bf16.mxu0 %v4772
    %5018 = vmatpush1.bf16.msra.mxu0 %v4771
    %5019 = vmatprep.subr.bf16.mxu0 %v4776
    %5020 = vmatpush1.bf16.msra.mxu0 %v4775
    %5021 = vmatprep.subr.bf16.mxu0 %v4780
    %5022 = vmatpush1.bf16.msra.mxu0 %v4779
    %5023 = vmatprep.subr.bf16.mxu0 %v4784
    %5024 = vmatpush1.bf16.msra.mxu0 %v4783
    %5025 = vmatprep.subr.bf16.mxu0 %v4788
    %5026 = vmatpush1.bf16.msra.mxu0 %v4787
    %5027 = vmatprep.subr.bf16.mxu0 %v4792
    %5028 = vmatpush1.bf16.msra.mxu0 %v4791
    %5029 = vmatprep.subr.bf16.mxu0 %v4796
    %5030 = vmatpush1.bf16.msra.mxu0 %v4795
    %5031 = vmatprep.subr.bf16.mxu0 %v4800
    %5032 = vmatpush1.bf16.msra.mxu0 %v4799
    %5033 = vmatprep.subr.bf16.mxu0 %v4804
    %5034 = vmatpush1.bf16.msra.mxu0 %v4803
    %5035 = vmatprep.subr.bf16.mxu0 %v4808
    %5036 = vmatpush1.bf16.msra.mxu0 %v4807
    %5037 = vmatprep.subr.bf16.mxu0 %v4812
    %5038 = vmatpush1.bf16.msra.mxu0 %v4811
    %5039 = vmatprep.subr.bf16.mxu0 %v4816
    %5040 = vmatpush1.bf16.msra.mxu0 %v4815
    %5041 = vmatprep.mubr.bf16.mxu0 %v4474
    %5042 = vmatmul.mubr.bf16.gmra.mrb[0].mxu0 %v4472
    %v5043 = vpop.f32.mrb[0].mxu0
    %v5044 = vadd.f32 %v4390, %v5043
    %v5045 = vpop.f32.mrb[0].mxu0
    %v5046 = vadd.f32 %v4392, %v5045
    %v5047 = vpop.f32.mrb[0].mxu0
    %v5048 = vadd.f32 %v4394, %v5047
    %v5049 = vpop.f32.mrb[0].mxu0
    %v5050 = vadd.f32 %v4396, %v5049
    %5051 = vmatprep.mubr.bf16.mxu0 %v4532
    %5052 = vmatmul.mubr.bf16.gmra.mrb[0].mxu0 %v4530
    %v5053 = vpop.f32.mrb[0].mxu0
    %v5054 = vadd.f32 %v4400, %v5053
    %v5055 = vpop.f32.mrb[0].mxu0
    %v5056 = vadd.f32 %v4402, %v5055
    %v5057 = vpop.f32.mrb[0].mxu0
    %v5058 = vadd.f32 %v4404, %v5057
    %v5059 = vpop.f32.mrb[0].mxu0
    %v5060 = vadd.f32 %v4406, %v5059
    %5061 = vdwg.mxu0
    %5062 = vmatprep.subr.bf16.mxu0 %v4820
    %5063 = vmatpush1.bf16.msra.mxu0 %v4819
    %5064 = vmatprep.subr.bf16.mxu0 %v4824
    %5065 = vmatpush1.bf16.msra.mxu0 %v4823
    %5066 = vmatprep.subr.bf16.mxu0 0
    %5067 = vmatpush1.bf16.msra.mxu0 0
    %5068 = vmatprep.subr.bf16.mxu0 0
    %5069 = vmatpush1.bf16.msra.mxu0 0
    %5070 = vmatprep.subr.bf16.mxu0 0
    %5071 = vmatpush1.bf16.msra.mxu0 0
    %5072 = vmatprep.subr.bf16.mxu0 0
    %5073 = vmatpush1.bf16.msra.mxu0 0
    %5074 = vmatprep.subr.bf16.mxu0 0
    %5075 = vmatpush1.bf16.msra.mxu0 0
    %5076 = vmatprep.subr.bf16.mxu0 0
    %5077 = vmatpush1.bf16.msra.mxu0 0
    %5078 = vmatprep.subr.bf16.mxu0 0
    %5079 = vmatpush1.bf16.msra.mxu0 0
    %5080 = vmatprep.subr.bf16.mxu0 0
    %5081 = vmatpush1.bf16.msra.mxu0 0
    %5082 = vmatprep.subr.bf16.mxu0 0
    %5083 = vmatpush1.bf16.msra.mxu0 0
    %5084 = vmatprep.subr.bf16.mxu0 0
    %5085 = vmatpush1.bf16.msra.mxu0 0
    %5086 = vmatprep.subr.bf16.mxu0 0
    %5087 = vmatpush1.bf16.msra.mxu0 0
    %5088 = vmatprep.subr.bf16.mxu0 0
    %5089 = vmatpush1.bf16.msra.mxu0 0
    %5090 = vmatprep.subr.bf16.mxu0 0
    %5091 = vmatpush1.bf16.msra.mxu0 0
    %5092 = vmatprep.subr.bf16.mxu0 0
    %5093 = vmatpush1.bf16.msra.mxu0 0
    %5094 = vmatprep.mubr.bf16.mxu0 0
    %5095 = vmatmul.mubr.bf16.gmra.mrb[0].mxu0 %v4898
    %v5096 = vpop.f32.mrb[0].mxu0
    %v5097 = vadd.f32 %v5044, %v5096
    %v5098 = vpop.f32.mrb[0].mxu0
    %v5099 = vadd.f32 %v5046, %v5098
    %v5100 = vpop.f32.mrb[0].mxu0
    %v5101 = vadd.f32 %v5048, %v5100
    %v5102 = vpop.f32.mrb[0].mxu0
    %v5103 = vadd.f32 %v5050, %v5102
    %5104 = vmatprep.mubr.bf16.mxu0 0
    %5105 = vmatmul.mubr.bf16.gmra.mrb[0].mxu0 %v4901
    %v5106 = vpop.f32.mrb[0].mxu0
    %v5107 = vadd.f32 %v5054, %v5106
    %v5108 = vpop.f32.mrb[0].mxu0
    %v5109 = vadd.f32 %v5056, %v5108
    %v5110 = vpop.f32.mrb[0].mxu0
    %v5111 = vadd.f32 %v5058, %v5110
    %v5112 = vpop.f32.mrb[0].mxu0
    %v5113 = vadd.f32 %v5060, %v5112
    %5114 = vdwg.mxu0
    %v5118 = vcombine.low %v3191, %v3192
    %v5120 = vunpack.c.l.s4 1966171168
    %v5121 = vunpack.c.0.s8 %v5120
    %v5122 = vlaneseq
    %v5123 = vshrl.u32 %v5122, 7
    %v5124 = vsub.s32 %v5121, %v5123
    %v5125 = vrot.slane %v5118, %v5124
    %v5127 = vunpack.c.l.s4 1966171168
    %v5128 = vunpack.c.0.s8 %v5127
    %v5129 = vlaneseq
    %v5130 = vshrl.u32 %v5129, 7
    %v5131 = vsub.s32 %v5128, %v5130
    %v5132 = vrot.slane %v3193, %v5131
    %v5133 = vcombine.low %v5125, %v5132
    %v5135 = vunpack.c.l.s4 1966171168
    %v5136 = vunpack.c.0.s8 %v5135
    %v5137 = vlaneseq
    %v5138 = vshrl.u32 %v5137, 7
    %v5139 = vsub.s32 %v5136, %v5138
    %v5140 = vrot.slane %v5133, %v5139
    %s5141 = scalar_lea.vmem %s5, 1152
    %v5142 = vld [vmem:[%s5141] sm:$0xff]
    %v5143 = vld [vmem:[%s5141 + $0x8] sm:$0xff]
    %v5144 = vld [vmem:[%s5141 + $0x10] sm:$0xff]
    %v5145 = vld [vmem:[%s5141 + $0x18] sm:$0xff]
    %v5146 = vld [vmem:[%s5141 + $0x20] sm:$0xff]
    %v5147 = vld [vmem:[%s5141 + $0x28] sm:$0xff]
    %v5148 = vld [vmem:[%s5141 + $0x30] sm:$0xff]
    %v5149 = vld [vmem:[%s5141 + $0x38] sm:$0xff]
    %v5150 = vld [vmem:[%s5141 + $0x40] sm:$0xff]
    %v5151 = vld [vmem:[%s5141 + $0x48] sm:$0xff]
    %v5152 = vld [vmem:[%s5141 + $0x50] sm:$0xff]
    %v5153 = vld [vmem:[%s5141 + $0x58] sm:$0xff]
    %v5154 = vld [vmem:[%s5141 + $0x60] sm:$0xff]
    %v5155 = vld [vmem:[%s5141 + $0x68] sm:$0xff]
    %v5156 = vld [vmem:[%s5141 + $0x70] sm:$0xff]
    %v5157 = vld [vmem:[%s5141 + $0x78] sm:$0xff]
    %v5158 = vld [vmem:[%s5141 + $0x80] sm:$0xff]
    %v5159 = vld [vmem:[%s5141 + $0x88] sm:$0xff]
    %v5160 = vld [vmem:[%s5141 + $0x90] sm:$0xff]
    %v5161 = vld [vmem:[%s5141 + $0x98] sm:$0xff]
    %v5162 = vld [vmem:[%s5141 + $0xa0] sm:$0xff]
    %v5163 = vld [vmem:[%s5141 + $0xa8] sm:$0xff]
    %v5164 = vld [vmem:[%s5141 + $0xb0] sm:$0xff]
    %v5165 = vld [vmem:[%s5141 + $0xb8] sm:$0xff]
    %v5166 = vld [vmem:[%s5141 + $0xc0] sm:$0xff]
    %v5167 = vld [vmem:[%s5141 + $0xc8] sm:$0xff]
    %v5168 = vld [vmem:[%s5141 + $0xd0] sm:$0xff]
    %v5169 = vld [vmem:[%s5141 + $0xd8] sm:$0xff]
    %v5170 = vld [vmem:[%s5141 + $0xe0] sm:$0xff]
    %v5171 = vld [vmem:[%s5141 + $0xe8] sm:$0xff]
    %v5172 = vld [vmem:[%s5141 + $0xf0] sm:$0xff]
    %v5173 = vld [vmem:[%s5141 + $0xf8] sm:$0xff]
    %v5174 = vld [vmem:[%s5141 + $0x100] sm:$0xff]
    %v5175 = vld [vmem:[%s5141 + $0x108] sm:$0xff]
    %v5176 = vld [vmem:[%s5141 + $0x110] sm:$0xff]
    %v5177 = vld [vmem:[%s5141 + $0x118] sm:$0xff]
    %v5178 = vld [vmem:[%s5141 + $0x120] sm:$0xff]
    %v5179 = vld [vmem:[%s5141 + $0x128] sm:$0xff]
    %v5180 = vld [vmem:[%s5141 + $0x130] sm:$0xff]
    %v5181 = vld [vmem:[%s5141 + $0x138] sm:$0xff]
    %v5182 = vld [vmem:[%s5141 + $0x140] sm:$0xff]
    %v5183 = vld [vmem:[%s5141 + $0x148] sm:$0xff]
    %v5184 = vld [vmem:[%s5141 + $0x150] sm:$0xff]
    %v5185 = vld [vmem:[%s5141 + $0x158] sm:$0xff]
    %v5186 = vld [vmem:[%s5141 + $0x160] sm:$0xff]
    %v5187 = vld [vmem:[%s5141 + $0x168] sm:$0xff]
    %v5188 = vld [vmem:[%s5141 + $0x170] sm:$0xff]
    %v5189 = vld [vmem:[%s5141 + $0x178] sm:$0xff]
    %v5190 = vld [vmem:[%s5141 + $0x180] sm:$0xff]
    %v5191 = vld [vmem:[%s5141 + $0x188] sm:$0xff]
    %v5192 = vld [vmem:[%s5141 + $0x190] sm:$0xff]
    %v5193 = vld [vmem:[%s5141 + $0x198] sm:$0xff]
    %v5194 = vld [vmem:[%s5141 + $0x1a0] sm:$0xff]
    %v5195 = vld [vmem:[%s5141 + $0x1a8] sm:$0xff]
    %v5196 = vld [vmem:[%s5141 + $0x1b0] sm:$0xff]
    %v5197 = vld [vmem:[%s5141 + $0x1b8] sm:$0xff]
    %v5198 = vld [vmem:[%s5141 + $0x1c0] sm:$0xff]
    %v5199 = vld [vmem:[%s5141 + $0x1c8] sm:$0xff]
    %v5200 = vld [vmem:[%s5141 + $0x1d0] sm:$0xff]
    %v5201 = vld [vmem:[%s5141 + $0x1d8] sm:$0xff]
    %v5202 = vld [vmem:[%s5141 + $0x1e0] sm:$0xff]
    %v5203 = vld [vmem:[%s5141 + $0x1e8] sm:$0xff]
    %v5204 = vld [vmem:[%s5141 + $0x1f0] sm:$0xff]
    %v5205 = vld [vmem:[%s5141 + $0x1f8] sm:$0xff]
    %v5206 = vld [vmem:[%s5141 + $0x200] sm:$0xff]
    %v5207 = vld [vmem:[%s5141 + $0x208] sm:$0xff]
    %v5208 = vld [vmem:[%s5141 + $0x210] sm:$0xff]
    %v5209 = vld [vmem:[%s5141 + $0x218] sm:$0xff]
    %v5210 = vld [vmem:[%s5141 + $0x220] sm:$0xff]
    %v5211 = vld [vmem:[%s5141 + $0x228] sm:$0xff]
    %v5212 = vld [vmem:[%s5141 + $0x230] sm:$0xff]
    %v5213 = vld [vmem:[%s5141 + $0x238] sm:$0xff]
    %v5214 = vcombine.low %v4425, %v4432
    %v5215 = vcombine.high %v4425, %v4432
    %v5216 = vcombine.low %v4439, %v4484
    %v5217 = vcombine.high %v4439, %v4484
    %v5219 = vunpack.c.l.s4 1966171168
    %v5220 = vunpack.c.0.s8 %v5219
    %v5221 = vlaneseq
    %v5222 = vshrl.u32 %v5221, 7
    %v5223 = vsub.s32 %v5220, %v5222
    %v5224 = vrot.slane %v5214, %v5223
    %v5226 = vunpack.c.l.s4 1966171168
    %v5227 = vunpack.c.0.s8 %v5226
    %v5228 = vlaneseq
    %v5229 = vshrl.u32 %v5228, 7
    %v5230 = vsub.s32 %v5227, %v5229
    %v5231 = vrot.slane %v5215, %v5230
    %v5233 = vunpack.c.l.s4 1966171168
    %v5234 = vunpack.c.0.s8 %v5233
    %v5235 = vlaneseq
    %v5236 = vshrl.u32 %v5235, 7
    %v5237 = vsub.s32 %v5234, %v5236
    %v5238 = vrot.slane %v5216, %v5237
    %v5240 = vunpack.c.l.s4 1966171168
    %v5241 = vunpack.c.0.s8 %v5240
    %v5242 = vlaneseq
    %v5243 = vshrl.u32 %v5242, 7
    %v5244 = vsub.s32 %v5241, %v5243
    %v5245 = vrot.slane %v5217, %v5244
    %v5246 = vcombine.low %v5224, %v5238
    %v5247 = vcombine.high %v5224, %v5238
    %v5248 = vcombine.low %v5231, %v5245
    %v5249 = vcombine.low %v3627, %v5140
    %v5251 = vunpack.c.l.s4 1966171168
    %v5252 = vunpack.c.0.s8 %v5251
    %v5253 = vlaneseq
    %v5254 = vshrl.u32 %v5253, 7
    %v5255 = vsub.s32 %v5252, %v5254
    %v5256 = vrot.slane %v5249, %v5255
    %v5257 = vcombine.low %v4491, %v4498
    %v5258 = vcombine.high %v4491, %v4498
    %v5259 = vcombine.high %v5256, %v5256
    %v5261 = vunpack.c.l.s4 1966171168
    %v5262 = vunpack.c.0.s8 %v5261
    %v5263 = vlaneseq
    %v5264 = vshrl.u32 %v5263, 7
    %v5265 = vsub.s32 %v5262, %v5264
    %v5266 = vrot.slane %v5257, %v5265
    %v5268 = vunpack.c.l.s4 1966171168
    %v5269 = vunpack.c.0.s8 %v5268
    %v5270 = vlaneseq
    %v5271 = vshrl.u32 %v5270, 7
    %v5272 = vsub.s32 %v5269, %v5271
    %v5273 = vrot.slane %v5258, %v5272
    %v5275 = vunpack.c.l.s4 1966171168
    %v5276 = vunpack.c.0.s8 %v5275
    %v5277 = vlaneseq
    %v5278 = vshrl.u32 %v5277, 7
    %v5279 = vsub.s32 %v5276, %v5278
    %v5280 = vrot.slane %v5256, %v5279
    %v5282 = vunpack.c.l.s4 1966171168
    %v5283 = vunpack.c.0.s8 %v5282
    %v5284 = vlaneseq
    %v5285 = vshrl.u32 %v5284, 7
    %v5286 = vsub.s32 %v5283, %v5285
    %v5287 = vrot.slane %v5259, %v5286
    %v5288 = vcombine.low %v5266, %v5280
    %v5289 = vcombine.high %v5266, %v5280
    %v5290 = vcombine.low %v5273, %v5287
    %v5367 = vunpack.c.l.b16 %v5142
    %v5368 = vunpack.c.h.b16 %v5142
    %v5369 = vunpack.c.l.b16 %v5143
    %v5370 = vunpack.c.h.b16 %v5143
    %v5371 = vunpack.c.l.b16 %v5144
    %v5372 = vunpack.c.h.b16 %v5144
    %v5373 = vunpack.c.l.b16 %v5145
    %v5374 = vunpack.c.h.b16 %v5145
    %v5375 = vunpack.c.l.b16 %v5146
    %v5376 = vunpack.c.h.b16 %v5146
    %v5377 = vunpack.c.l.b16 %v5147
    %v5378 = vunpack.c.h.b16 %v5147
    %v5379 = vunpack.c.l.b16 %v5148
    %v5380 = vunpack.c.h.b16 %v5148
    %v5381 = vunpack.c.l.b16 %v5149
    %v5382 = vunpack.c.h.b16 %v5149
    %v5383 = vunpack.c.l.b16 %v5150
    %v5384 = vunpack.c.h.b16 %v5150
    %v5385 = vunpack.c.l.b16 %v5151
    %v5386 = vunpack.c.h.b16 %v5151
    %v5387 = vunpack.c.l.b16 %v5152
    %v5388 = vunpack.c.h.b16 %v5152
    %v5389 = vunpack.c.l.b16 %v5153
    %v5390 = vunpack.c.h.b16 %v5153
    %v5391 = vunpack.c.l.b16 %v5154
    %v5392 = vunpack.c.h.b16 %v5154
    %v5393 = vunpack.c.l.b16 %v5155
    %v5394 = vunpack.c.h.b16 %v5155
    %v5395 = vunpack.c.l.b16 %v5156
    %v5396 = vunpack.c.h.b16 %v5156
    %v5397 = vunpack.c.l.b16 %v5157
    %v5398 = vunpack.c.h.b16 %v5157
    %v5399 = vunpack.c.l.b16 %v5158
    %v5400 = vunpack.c.h.b16 %v5158
    %v5401 = vunpack.c.l.b16 %v5159
    %v5402 = vunpack.c.h.b16 %v5159
    %v5403 = vunpack.c.l.b16 %v5160
    %v5404 = vunpack.c.h.b16 %v5160
    %v5405 = vunpack.c.l.b16 %v5161
    %v5406 = vunpack.c.h.b16 %v5161
    %v5407 = vunpack.c.l.b16 %v5162
    %v5408 = vunpack.c.h.b16 %v5162
    %v5409 = vunpack.c.l.b16 %v5163
    %v5410 = vunpack.c.h.b16 %v5163
    %v5411 = vunpack.c.l.b16 %v5164
    %v5412 = vunpack.c.h.b16 %v5164
    %v5413 = vunpack.c.l.b16 %v5165
    %v5414 = vunpack.c.h.b16 %v5165
    %v5415 = vunpack.c.l.b16 %v5166
    %v5416 = vunpack.c.h.b16 %v5166
    %v5417 = vunpack.c.l.b16 %v5167
    %v5418 = vunpack.c.h.b16 %v5167
    %v5419 = vunpack.c.l.b16 %v5168
    %v5420 = vunpack.c.h.b16 %v5168
    %v5421 = vunpack.c.l.b16 %v5169
    %v5422 = vunpack.c.h.b16 %v5169
    %v5423 = vunpack.c.l.b16 %v5170
    %v5424 = vunpack.c.h.b16 %v5170
    %v5425 = vunpack.c.l.b16 %v5171
    %v5426 = vunpack.c.h.b16 %v5171
    %v5427 = vunpack.c.l.b16 %v5172
    %v5428 = vunpack.c.h.b16 %v5172
    %v5429 = vunpack.c.l.b16 %v5173
    %v5430 = vunpack.c.h.b16 %v5173
    %v5431 = vunpack.c.l.b16 %v5174
    %v5432 = vunpack.c.h.b16 %v5174
    %v5433 = vunpack.c.l.b16 %v5175
    %v5434 = vunpack.c.h.b16 %v5175
    %v5435 = vunpack.c.l.b16 %v5176
    %v5436 = vunpack.c.h.b16 %v5176
    %v5437 = vunpack.c.l.b16 %v5177
    %v5438 = vunpack.c.h.b16 %v5177
    %v5439 = vunpack.c.l.b16 %v5178
    %v5440 = vunpack.c.h.b16 %v5178
    %v5441 = vunpack.c.l.b16 %v5179
    %v5442 = vunpack.c.h.b16 %v5179
    %v5443 = vunpack.c.l.b16 %v5180
    %v5444 = vunpack.c.h.b16 %v5180
    %v5445 = vunpack.c.l.b16 %v5181
    %v5446 = vunpack.c.h.b16 %v5181
    %v5447 = vunpack.c.l.b16 %v5182
    %v5448 = vunpack.c.h.b16 %v5182
    %v5449 = vunpack.c.l.b16 %v5183
    %v5450 = vunpack.c.h.b16 %v5183
    %v5451 = vunpack.c.l.b16 %v5184
    %v5452 = vunpack.c.h.b16 %v5184
    %v5453 = vunpack.c.l.b16 %v5185
    %v5454 = vunpack.c.h.b16 %v5185
    %v5455 = vunpack.c.l.b16 %v5186
    %v5456 = vunpack.c.h.b16 %v5186
    %v5457 = vunpack.c.l.b16 %v5187
    %v5458 = vunpack.c.h.b16 %v5187
    %v5459 = vunpack.c.l.b16 %v5188
    %v5460 = vunpack.c.h.b16 %v5188
    %v5461 = vunpack.c.l.b16 %v5189
    %v5462 = vunpack.c.h.b16 %v5189
    %v5463 = vunpack.c.l.b16 %v5190
    %v5464 = vunpack.c.h.b16 %v5190
    %v5465 = vunpack.c.l.b16 %v5191
    %v5466 = vunpack.c.h.b16 %v5191
    %v5467 = vunpack.c.l.b16 %v5192
    %v5468 = vunpack.c.h.b16 %v5192
    %v5469 = vunpack.c.l.b16 %v5193
    %v5470 = vunpack.c.h.b16 %v5193
    %v5471 = vunpack.c.l.b16 %v5194
    %v5472 = vunpack.c.h.b16 %v5194
    %v5473 = vunpack.c.l.b16 %v5195
    %v5474 = vunpack.c.h.b16 %v5195
    %v5475 = vunpack.c.l.b16 %v5196
    %v5476 = vunpack.c.h.b16 %v5196
    %v5477 = vunpack.c.l.b16 %v5197
    %v5478 = vunpack.c.h.b16 %v5197
    %v5479 = vunpack.c.l.b16 %v5198
    %v5480 = vunpack.c.h.b16 %v5198
    %v5481 = vunpack.c.l.b16 %v5199
    %v5482 = vunpack.c.h.b16 %v5199
    %v5483 = vunpack.c.l.b16 %v5200
    %v5484 = vunpack.c.h.b16 %v5200
    %v5485 = vunpack.c.l.b16 %v5201
    %v5486 = vunpack.c.h.b16 %v5201
    %v5487 = vunpack.c.l.b16 %v5202
    %v5488 = vunpack.c.h.b16 %v5202
    %v5489 = vunpack.c.l.b16 %v5203
    %v5490 = vunpack.c.h.b16 %v5203
    %v5491 = vunpack.c.l.b16 %v5204
    %v5492 = vunpack.c.h.b16 %v5204
    %v5493 = vunpack.c.l.b16 %v5205
    %v5494 = vunpack.c.h.b16 %v5205
    %v5495 = vunpack.c.l.b16 %v5206
    %v5496 = vunpack.c.h.b16 %v5206
    %v5497 = vunpack.c.l.b16 %v5207
    %v5498 = vunpack.c.h.b16 %v5207
    %v5499 = vunpack.c.l.b16 %v5208
    %v5500 = vunpack.c.h.b16 %v5208
    %v5501 = vunpack.c.l.b16 %v5209
    %v5502 = vunpack.c.h.b16 %v5209
    %v5503 = vunpack.c.l.b16 %v5210
    %v5504 = vunpack.c.h.b16 %v5210
    %v5505 = vunpack.c.l.b16 %v5211
    %v5506 = vunpack.c.h.b16 %v5211
    %v5507 = vunpack.c.l.b16 %v5212
    %v5508 = vunpack.c.h.b16 %v5212
    %v5509 = vunpack.c.l.b16 %v5213
    %v5510 = vunpack.c.h.b16 %v5213
    %v5511 = vpack.c.b16 %v5371, %v5367
    %v5512 = vpack.c.b16 %v5372, %v5368
    %v5513 = vpack.c.b16 %v5373, %v5369
    %v5514 = vpack.c.b16 %v5374, %v5370
    %v5515 = vpack.c.b16 %v5379, %v5375
    %v5516 = vpack.c.b16 %v5380, %v5376
    %v5517 = vpack.c.b16 %v5381, %v5377
    %v5518 = vpack.c.b16 %v5382, %v5378
    %v5519 = vpack.c.b16 %v5387, %v5383
    %v5520 = vpack.c.b16 %v5388, %v5384
    %v5521 = vpack.c.b16 %v5389, %v5385
    %v5522 = vpack.c.b16 %v5390, %v5386
    %v5523 = vpack.c.b16 %v5395, %v5391
    %v5524 = vpack.c.b16 %v5396, %v5392
    %v5525 = vpack.c.b16 %v5397, %v5393
    %v5526 = vpack.c.b16 %v5398, %v5394
    %v5527 = vpack.c.b16 %v5403, %v5399
    %v5528 = vpack.c.b16 %v5404, %v5400
    %v5529 = vpack.c.b16 %v5405, %v5401
    %v5530 = vpack.c.b16 %v5406, %v5402
    %v5531 = vpack.c.b16 %v5411, %v5407
    %v5532 = vpack.c.b16 %v5412, %v5408
    %v5533 = vpack.c.b16 %v5413, %v5409
    %v5534 = vpack.c.b16 %v5414, %v5410
    %v5535 = vpack.c.b16 %v5419, %v5415
    %v5536 = vpack.c.b16 %v5420, %v5416
    %v5537 = vpack.c.b16 %v5421, %v5417
    %v5538 = vpack.c.b16 %v5422, %v5418
    %v5539 = vpack.c.b16 %v5427, %v5423
    %v5540 = vpack.c.b16 %v5428, %v5424
    %v5541 = vpack.c.b16 %v5429, %v5425
    %v5542 = vpack.c.b16 %v5430, %v5426
    %v5543 = vpack.c.b16 %v5435, %v5431
    %v5544 = vpack.c.b16 %v5436, %v5432
    %v5545 = vpack.c.b16 %v5437, %v5433
    %v5546 = vpack.c.b16 %v5438, %v5434
    %v5547 = vpack.c.b16 %v5443, %v5439
    %v5548 = vpack.c.b16 %v5444, %v5440
    %v5549 = vpack.c.b16 %v5445, %v5441
    %v5550 = vpack.c.b16 %v5446, %v5442
    %v5551 = vpack.c.b16 %v5451, %v5447
    %v5552 = vpack.c.b16 %v5452, %v5448
    %v5553 = vpack.c.b16 %v5453, %v5449
    %v5554 = vpack.c.b16 %v5454, %v5450
    %v5555 = vpack.c.b16 %v5459, %v5455
    %v5556 = vpack.c.b16 %v5460, %v5456
    %v5557 = vpack.c.b16 %v5461, %v5457
    %v5558 = vpack.c.b16 %v5462, %v5458
    %v5559 = vpack.c.b16 %v5467, %v5463
    %v5560 = vpack.c.b16 %v5468, %v5464
    %v5561 = vpack.c.b16 %v5469, %v5465
    %v5562 = vpack.c.b16 %v5470, %v5466
    %v5563 = vpack.c.b16 %v5475, %v5471
    %v5564 = vpack.c.b16 %v5476, %v5472
    %v5565 = vpack.c.b16 %v5477, %v5473
    %v5566 = vpack.c.b16 %v5478, %v5474
    %v5567 = vpack.c.b16 %v5483, %v5479
    %v5568 = vpack.c.b16 %v5484, %v5480
    %v5569 = vpack.c.b16 %v5485, %v5481
    %v5570 = vpack.c.b16 %v5486, %v5482
    %v5571 = vpack.c.b16 %v5491, %v5487
    %v5572 = vpack.c.b16 %v5492, %v5488
    %v5573 = vpack.c.b16 %v5493, %v5489
    %v5574 = vpack.c.b16 %v5494, %v5490
    %v5575 = vpack.c.b16 %v5499, %v5495
    %v5576 = vpack.c.b16 %v5500, %v5496
    %v5577 = vpack.c.b16 %v5501, %v5497
    %v5578 = vpack.c.b16 %v5502, %v5498
    %v5579 = vpack.c.b16 %v5507, %v5503
    %v5580 = vpack.c.b16 %v5508, %v5504
    %v5581 = vpack.c.b16 %v5509, %v5505
    %v5582 = vpack.c.b16 %v5510, %v5506
    %v5656 = vsel %vm328, %v5247, 0
    %v5659 = vsel %vm328, %v5289, 0
    %5661 = vmatprep.subr.bf16.mxu0 %v5512
    %5662 = vmatpush1.bf16.msra.mxu0 %v5511
    %5663 = vmatprep.subr.bf16.mxu0 %v5516
    %5664 = vmatpush1.bf16.msra.mxu0 %v5515
    %5665 = vmatprep.subr.bf16.mxu0 %v5520
    %5666 = vmatpush1.bf16.msra.mxu0 %v5519
    %5667 = vmatprep.subr.bf16.mxu0 %v5524
    %5668 = vmatpush1.bf16.msra.mxu0 %v5523
    %5669 = vmatprep.subr.bf16.mxu0 %v5528
    %5670 = vmatpush1.bf16.msra.mxu0 %v5527
    %5671 = vmatprep.subr.bf16.mxu0 %v5532
    %5672 = vmatpush1.bf16.msra.mxu0 %v5531
    %5673 = vmatprep.subr.bf16.mxu0 %v5536
    %5674 = vmatpush1.bf16.msra.mxu0 %v5535
    %5675 = vmatprep.subr.bf16.mxu0 %v5540
    %5676 = vmatpush1.bf16.msra.mxu0 %v5539
    %5677 = vmatprep.subr.bf16.mxu0 %v5544
    %5678 = vmatpush1.bf16.msra.mxu0 %v5543
    %5679 = vmatprep.subr.bf16.mxu0 %v5548
    %5680 = vmatpush1.bf16.msra.mxu0 %v5547
    %5681 = vmatprep.subr.bf16.mxu0 %v5552
    %5682 = vmatpush1.bf16.msra.mxu0 %v5551
    %5683 = vmatprep.subr.bf16.mxu0 %v5556
    %5684 = vmatpush1.bf16.msra.mxu0 %v5555
    %5685 = vmatprep.subr.bf16.mxu0 %v5560
    %5686 = vmatpush1.bf16.msra.mxu0 %v5559
    %5687 = vmatprep.subr.bf16.mxu0 %v5564
    %5688 = vmatpush1.bf16.msra.mxu0 %v5563
    %5689 = vmatprep.subr.bf16.mxu0 %v5568
    %5690 = vmatpush1.bf16.msra.mxu0 %v5567
    %5691 = vmatprep.subr.bf16.mxu0 %v5572
    %5692 = vmatpush1.bf16.msra.mxu0 %v5571
    %5693 = vmatprep.mubr.bf16.mxu0 %v5248
    %5694 = vmatmul.mubr.bf16.gmra.mrb[0].mxu0 %v5246
    %v5695 = vpop.f32.mrb[0].mxu0
    %v5696 = vadd.f32 0.0, %v5695
    %v5697 = vpop.f32.mrb[0].mxu0
    %v5698 = vadd.f32 0.0, %v5697
    %v5699 = vpop.f32.mrb[0].mxu0
    %v5700 = vadd.f32 0.0, %v5699
    %v5701 = vpop.f32.mrb[0].mxu0
    %v5702 = vadd.f32 0.0, %v5701
    %5703 = vmatprep.mubr.bf16.mxu0 %v5290
    %5704 = vmatmul.mubr.bf16.gmra.mrb[0].mxu0 %v5288
    %v5705 = vpop.f32.mrb[0].mxu0
    %v5706 = vadd.f32 0.0, %v5705
    %v5707 = vpop.f32.mrb[0].mxu0
    %v5708 = vadd.f32 0.0, %v5707
    %v5709 = vpop.f32.mrb[0].mxu0
    %v5710 = vadd.f32 0.0, %v5709
    %v5711 = vpop.f32.mrb[0].mxu0
    %v5712 = vadd.f32 0.0, %v5711
    %5713 = vdwg.mxu0
    %5714 = vmatprep.subr.bf16.mxu0 %v5576
    %5715 = vmatpush1.bf16.msra.mxu0 %v5575
    %5716 = vmatprep.subr.bf16.mxu0 %v5580
    %5717 = vmatpush1.bf16.msra.mxu0 %v5579
    %5718 = vmatprep.subr.bf16.mxu0 0
    %5719 = vmatpush1.bf16.msra.mxu0 0
    %5720 = vmatprep.subr.bf16.mxu0 0
    %5721 = vmatpush1.bf16.msra.mxu0 0
    %5722 = vmatprep.subr.bf16.mxu0 0
    %5723 = vmatpush1.bf16.msra.mxu0 0
    %5724 = vmatprep.subr.bf16.mxu0 0
    %5725 = vmatpush1.bf16.msra.mxu0 0
    %5726 = vmatprep.subr.bf16.mxu0 0
    %5727 = vmatpush1.bf16.msra.mxu0 0
    %5728 = vmatprep.subr.bf16.mxu0 0
    %5729 = vmatpush1.bf16.msra.mxu0 0
    %5730 = vmatprep.subr.bf16.mxu0 0
    %5731 = vmatpush1.bf16.msra.mxu0 0
    %5732 = vmatprep.subr.bf16.mxu0 0
    %5733 = vmatpush1.bf16.msra.mxu0 0
    %5734 = vmatprep.subr.bf16.mxu0 0
    %5735 = vmatpush1.bf16.msra.mxu0 0
    %5736 = vmatprep.subr.bf16.mxu0 0
    %5737 = vmatpush1.bf16.msra.mxu0 0
    %5738 = vmatprep.subr.bf16.mxu0 0
    %5739 = vmatpush1.bf16.msra.mxu0 0
    %5740 = vmatprep.subr.bf16.mxu0 0
    %5741 = vmatpush1.bf16.msra.mxu0 0
    %5742 = vmatprep.subr.bf16.mxu0 0
    %5743 = vmatpush1.bf16.msra.mxu0 0
    %5744 = vmatprep.subr.bf16.mxu0 0
    %5745 = vmatpush1.bf16.msra.mxu0 0
    %5746 = vmatprep.mubr.bf16.mxu0 0
    %5747 = vmatmul.mubr.bf16.gmra.mrb[0].mxu0 %v5656
    %v5748 = vpop.f32.mrb[0].mxu0
    %v5749 = vadd.f32 %v5696, %v5748
    %v5750 = vpop.f32.mrb[0].mxu0
    %v5751 = vadd.f32 %v5698, %v5750
    %v5752 = vpop.f32.mrb[0].mxu0
    %v5753 = vadd.f32 %v5700, %v5752
    %v5754 = vpop.f32.mrb[0].mxu0
    %v5755 = vadd.f32 %v5702, %v5754
    %5756 = vmatprep.mubr.bf16.mxu0 0
    %5757 = vmatmul.mubr.bf16.gmra.mrb[0].mxu0 %v5659
    %v5758 = vpop.f32.mrb[0].mxu0
    %v5759 = vadd.f32 %v5706, %v5758
    %v5760 = vpop.f32.mrb[0].mxu0
    %v5761 = vadd.f32 %v5708, %v5760
    %v5762 = vpop.f32.mrb[0].mxu0
    %v5763 = vadd.f32 %v5710, %v5762
    %v5764 = vpop.f32.mrb[0].mxu0
    %v5765 = vadd.f32 %v5712, %v5764
    %5766 = vdwg.mxu0
    %5767 = vmatprep.subr.bf16.mxu0 %v5514
    %5768 = vmatpush1.bf16.msra.mxu0 %v5513
    %5769 = vmatprep.subr.bf16.mxu0 %v5518
    %5770 = vmatpush1.bf16.msra.mxu0 %v5517
    %5771 = vmatprep.subr.bf16.mxu0 %v5522
    %5772 = vmatpush1.bf16.msra.mxu0 %v5521
    %5773 = vmatprep.subr.bf16.mxu0 %v5526
    %5774 = vmatpush1.bf16.msra.mxu0 %v5525
    %5775 = vmatprep.subr.bf16.mxu0 %v5530
    %5776 = vmatpush1.bf16.msra.mxu0 %v5529
    %5777 = vmatprep.subr.bf16.mxu0 %v5534
    %5778 = vmatpush1.bf16.msra.mxu0 %v5533
    %5779 = vmatprep.subr.bf16.mxu0 %v5538
    %5780 = vmatpush1.bf16.msra.mxu0 %v5537
    %5781 = vmatprep.subr.bf16.mxu0 %v5542
    %5782 = vmatpush1.bf16.msra.mxu0 %v5541
    %5783 = vmatprep.subr.bf16.mxu0 %v5546
    %5784 = vmatpush1.bf16.msra.mxu0 %v5545
    %5785 = vmatprep.subr.bf16.mxu0 %v5550
    %5786 = vmatpush1.bf16.msra.mxu0 %v5549
    %5787 = vmatprep.subr.bf16.mxu0 %v5554
    %5788 = vmatpush1.bf16.msra.mxu0 %v5553
    %5789 = vmatprep.subr.bf16.mxu0 %v5558
    %5790 = vmatpush1.bf16.msra.mxu0 %v5557
    %5791 = vmatprep.subr.bf16.mxu0 %v5562
    %5792 = vmatpush1.bf16.msra.mxu0 %v5561
    %5793 = vmatprep.subr.bf16.mxu0 %v5566
    %5794 = vmatpush1.bf16.msra.mxu0 %v5565
    %5795 = vmatprep.subr.bf16.mxu0 %v5570
    %5796 = vmatpush1.bf16.msra.mxu0 %v5569
    %5797 = vmatprep.subr.bf16.mxu0 %v5574
    %5798 = vmatpush1.bf16.msra.mxu0 %v5573
    %5799 = vmatprep.mubr.bf16.mxu0 %v5248
    %5800 = vmatmul.mubr.bf16.gmra.mrb[0].mxu0 %v5246
    %v5801 = vpop.f32.mrb[0].mxu0
    %v5802 = vadd.f32 0.0, %v5801
    %v5803 = vpop.f32.mrb[0].mxu0
    %v5804 = vadd.f32 0.0, %v5803
    %v5805 = vpop.f32.mrb[0].mxu0
    %v5806 = vadd.f32 0.0, %v5805
    %v5807 = vpop.f32.mrb[0].mxu0
    %v5808 = vadd.f32 0.0, %v5807
    %5809 = vmatprep.mubr.bf16.mxu0 %v5290
    %5810 = vmatmul.mubr.bf16.gmra.mrb[0].mxu0 %v5288
    %v5811 = vpop.f32.mrb[0].mxu0
    %v5812 = vadd.f32 0.0, %v5811
    %v5813 = vpop.f32.mrb[0].mxu0
    %v5814 = vadd.f32 0.0, %v5813
    %v5815 = vpop.f32.mrb[0].mxu0
    %v5816 = vadd.f32 0.0, %v5815
    %v5817 = vpop.f32.mrb[0].mxu0
    %v5818 = vadd.f32 0.0, %v5817
    %5819 = vdwg.mxu0
    %5820 = vmatprep.subr.bf16.mxu0 %v5578
    %5821 = vmatpush1.bf16.msra.mxu0 %v5577
    %5822 = vmatprep.subr.bf16.mxu0 %v5582
    %5823 = vmatpush1.bf16.msra.mxu0 %v5581
    %5824 = vmatprep.subr.bf16.mxu0 0
    %5825 = vmatpush1.bf16.msra.mxu0 0
    %5826 = vmatprep.subr.bf16.mxu0 0
    %5827 = vmatpush1.bf16.msra.mxu0 0
    %5828 = vmatprep.subr.bf16.mxu0 0
    %5829 = vmatpush1.bf16.msra.mxu0 0
    %5830 = vmatprep.subr.bf16.mxu0 0
    %5831 = vmatpush1.bf16.msra.mxu0 0
    %5832 = vmatprep.subr.bf16.mxu0 0
    %5833 = vmatpush1.bf16.msra.mxu0 0
    %5834 = vmatprep.subr.bf16.mxu0 0
    %5835 = vmatpush1.bf16.msra.mxu0 0
    %5836 = vmatprep.subr.bf16.mxu0 0
    %5837 = vmatpush1.bf16.msra.mxu0 0
    %5838 = vmatprep.subr.bf16.mxu0 0
    %5839 = vmatpush1.bf16.msra.mxu0 0
    %5840 = vmatprep.subr.bf16.mxu0 0
    %5841 = vmatpush1.bf16.msra.mxu0 0
    %5842 = vmatprep.subr.bf16.mxu0 0
    %5843 = vmatpush1.bf16.msra.mxu0 0
    %5844 = vmatprep.subr.bf16.mxu0 0
    %5845 = vmatpush1.bf16.msra.mxu0 0
    %5846 = vmatprep.subr.bf16.mxu0 0
    %5847 = vmatpush1.bf16.msra.mxu0 0
    %5848 = vmatprep.subr.bf16.mxu0 0
    %5849 = vmatpush1.bf16.msra.mxu0 0
    %5850 = vmatprep.subr.bf16.mxu0 0
    %5851 = vmatpush1.bf16.msra.mxu0 0
    %5852 = vmatprep.mubr.bf16.mxu0 0
    %5853 = vmatmul.mubr.bf16.gmra.mrb[0].mxu0 %v5656
    %v5854 = vpop.f32.mrb[0].mxu0
    %v5855 = vadd.f32 %v5802, %v5854
    %v5856 = vpop.f32.mrb[0].mxu0
    %v5857 = vadd.f32 %v5804, %v5856
    %v5858 = vpop.f32.mrb[0].mxu0
    %v5859 = vadd.f32 %v5806, %v5858
    %v5860 = vpop.f32.mrb[0].mxu0
    %v5861 = vadd.f32 %v5808, %v5860
    %5862 = vmatprep.mubr.bf16.mxu0 0
    %5863 = vmatmul.mubr.bf16.gmra.mrb[0].mxu0 %v5659
    %v5864 = vpop.f32.mrb[0].mxu0
    %v5865 = vadd.f32 %v5812, %v5864
    %v5866 = vpop.f32.mrb[0].mxu0
    %v5867 = vadd.f32 %v5814, %v5866
    %v5868 = vpop.f32.mrb[0].mxu0
    %v5869 = vadd.f32 %v5816, %v5868
    %v5870 = vpop.f32.mrb[0].mxu0
    %v5871 = vadd.f32 %v5818, %v5870
    %5872 = vdwg.mxu0
    %v5873 = vadd.f32 %v4991, %v5749
    %v5874 = vadd.f32 %v4993, %v5751
    %v5875 = vadd.f32 %v5097, %v5855
    %v5876 = vadd.f32 %v5099, %v5857
    %v5877 = vadd.f32 %v4995, %v5753
    %v5878 = vadd.f32 %v4997, %v5755
    %v5879 = vadd.f32 %v5101, %v5859
    %v5880 = vadd.f32 %v5103, %v5861
    %v5881 = vadd.f32 %v5001, %v5759
    %v5882 = vadd.f32 %v5003, %v5761
    %v5883 = vadd.f32 %v5107, %v5865
    %v5884 = vadd.f32 %v5109, %v5867
    %v5885 = vadd.f32 %v5005, %v5763
    %v5886 = vadd.f32 %v5007, %v5765
    %v5887 = vadd.f32 %v5111, %v5869
    %v5888 = vadd.f32 %v5113, %v5871
    %s5889 = scalar_lea.vmem %s5, 1728
    %v5890 = vld [vmem:[%s5889] sm:$0xff]
    %v5891 = vld [vmem:[%s5889 + $0x8] sm:$0xff]
    %v5892 = vld [vmem:[%s5889 + $0x10] sm:$0xff]
    %v5893 = vld [vmem:[%s5889 + $0x18] sm:$0xff]
    %v5894 = vld [vmem:[%s5889 + $0x20] sm:$0xff]
    %v5895 = vld [vmem:[%s5889 + $0x28] sm:$0xff]
    %v5896 = vld [vmem:[%s5889 + $0x30] sm:$0xff]
    %v5897 = vld [vmem:[%s5889 + $0x38] sm:$0xff]
    %v5898 = vld [vmem:[%s5889 + $0x40] sm:$0xff]
    %v5899 = vld [vmem:[%s5889 + $0x48] sm:$0xff]
    %v5900 = vld [vmem:[%s5889 + $0x50] sm:$0xff]
    %v5901 = vld [vmem:[%s5889 + $0x58] sm:$0xff]
    %v5902 = vld [vmem:[%s5889 + $0x60] sm:$0xff]
    %v5903 = vld [vmem:[%s5889 + $0x68] sm:$0xff]
    %v5904 = vld [vmem:[%s5889 + $0x70] sm:$0xff]
    %v5905 = vld [vmem:[%s5889 + $0x78] sm:$0xff]
    %v5906 = vld [vmem:[%s5889 + $0x80] sm:$0xff]
    %v5907 = vld [vmem:[%s5889 + $0x88] sm:$0xff]
    %v5908 = vld [vmem:[%s5889 + $0x90] sm:$0xff]
    %v5909 = vld [vmem:[%s5889 + $0x98] sm:$0xff]
    %v5910 = vld [vmem:[%s5889 + $0xa0] sm:$0xff]
    %v5911 = vld [vmem:[%s5889 + $0xa8] sm:$0xff]
    %v5912 = vld [vmem:[%s5889 + $0xb0] sm:$0xff]
    %v5913 = vld [vmem:[%s5889 + $0xb8] sm:$0xff]
    %v5914 = vld [vmem:[%s5889 + $0xc0] sm:$0xff]
    %v5915 = vld [vmem:[%s5889 + $0xc8] sm:$0xff]
    %v5916 = vld [vmem:[%s5889 + $0xd0] sm:$0xff]
    %v5917 = vld [vmem:[%s5889 + $0xd8] sm:$0xff]
    %v5918 = vld [vmem:[%s5889 + $0xe0] sm:$0xff]
    %v5919 = vld [vmem:[%s5889 + $0xe8] sm:$0xff]
    %v5920 = vld [vmem:[%s5889 + $0xf0] sm:$0xff]
    %v5921 = vld [vmem:[%s5889 + $0xf8] sm:$0xff]
    %v5922 = vld [vmem:[%s5889 + $0x100] sm:$0xff]
    %v5923 = vld [vmem:[%s5889 + $0x108] sm:$0xff]
    %v5924 = vld [vmem:[%s5889 + $0x110] sm:$0xff]
    %v5925 = vld [vmem:[%s5889 + $0x118] sm:$0xff]
    %v5926 = vld [vmem:[%s5889 + $0x120] sm:$0xff]
    %v5927 = vld [vmem:[%s5889 + $0x128] sm:$0xff]
    %v5928 = vld [vmem:[%s5889 + $0x130] sm:$0xff]
    %v5929 = vld [vmem:[%s5889 + $0x138] sm:$0xff]
    %v5930 = vld [vmem:[%s5889 + $0x140] sm:$0xff]
    %v5931 = vld [vmem:[%s5889 + $0x148] sm:$0xff]
    %v5932 = vld [vmem:[%s5889 + $0x150] sm:$0xff]
    %v5933 = vld [vmem:[%s5889 + $0x158] sm:$0xff]
    %v5934 = vld [vmem:[%s5889 + $0x160] sm:$0xff]
    %v5935 = vld [vmem:[%s5889 + $0x168] sm:$0xff]
    %v5936 = vld [vmem:[%s5889 + $0x170] sm:$0xff]
    %v5937 = vld [vmem:[%s5889 + $0x178] sm:$0xff]
    %v5938 = vld [vmem:[%s5889 + $0x180] sm:$0xff]
    %v5939 = vld [vmem:[%s5889 + $0x188] sm:$0xff]
    %v5940 = vld [vmem:[%s5889 + $0x190] sm:$0xff]
    %v5941 = vld [vmem:[%s5889 + $0x198] sm:$0xff]
    %v5942 = vld [vmem:[%s5889 + $0x1a0] sm:$0xff]
    %v5943 = vld [vmem:[%s5889 + $0x1a8] sm:$0xff]
    %v5944 = vld [vmem:[%s5889 + $0x1b0] sm:$0xff]
    %v5945 = vld [vmem:[%s5889 + $0x1b8] sm:$0xff]
    %v5946 = vld [vmem:[%s5889 + $0x1c0] sm:$0xff]
    %v5947 = vld [vmem:[%s5889 + $0x1c8] sm:$0xff]
    %v5948 = vld [vmem:[%s5889 + $0x1d0] sm:$0xff]
    %v5949 = vld [vmem:[%s5889 + $0x1d8] sm:$0xff]
    %v5950 = vld [vmem:[%s5889 + $0x1e0] sm:$0xff]
    %v5951 = vld [vmem:[%s5889 + $0x1e8] sm:$0xff]
    %v5952 = vld [vmem:[%s5889 + $0x1f0] sm:$0xff]
    %v5953 = vld [vmem:[%s5889 + $0x1f8] sm:$0xff]
    %v5954 = vld [vmem:[%s5889 + $0x200] sm:$0xff]
    %v5955 = vld [vmem:[%s5889 + $0x208] sm:$0xff]
    %v5956 = vld [vmem:[%s5889 + $0x210] sm:$0xff]
    %v5957 = vld [vmem:[%s5889 + $0x218] sm:$0xff]
    %v5958 = vld [vmem:[%s5889 + $0x220] sm:$0xff]
    %v5959 = vld [vmem:[%s5889 + $0x228] sm:$0xff]
    %v5960 = vld [vmem:[%s5889 + $0x230] sm:$0xff]
    %v5961 = vld [vmem:[%s5889 + $0x238] sm:$0xff]
    %v5962 = vcombine.low %v3718, %v3725
    %v5963 = vcombine.high %v3718, %v3725
    %v5964 = vcombine.low %v3732, %v3777
    %v5965 = vcombine.high %v3732, %v3777
    %v5967 = vunpack.c.l.s4 1966171168
    %v5968 = vunpack.c.0.s8 %v5967
    %v5969 = vlaneseq
    %v5970 = vshrl.u32 %v5969, 7
    %v5971 = vsub.s32 %v5968, %v5970
    %v5972 = vrot.slane %v5962, %v5971
    %v5974 = vunpack.c.l.s4 1966171168
    %v5975 = vunpack.c.0.s8 %v5974
    %v5976 = vlaneseq
    %v5977 = vshrl.u32 %v5976, 7
    %v5978 = vsub.s32 %v5975, %v5977
    %v5979 = vrot.slane %v5963, %v5978
    %v5981 = vunpack.c.l.s4 1966171168
    %v5982 = vunpack.c.0.s8 %v5981
    %v5983 = vlaneseq
    %v5984 = vshrl.u32 %v5983, 7
    %v5985 = vsub.s32 %v5982, %v5984
    %v5986 = vrot.slane %v5964, %v5985
    %v5988 = vunpack.c.l.s4 1966171168
    %v5989 = vunpack.c.0.s8 %v5988
    %v5990 = vlaneseq
    %v5991 = vshrl.u32 %v5990, 7
    %v5992 = vsub.s32 %v5989, %v5991
    %v5993 = vrot.slane %v5965, %v5992
    %v5994 = vcombine.low %v5972, %v5986
    %v5995 = vcombine.high %v5972, %v5986
    %v5996 = vcombine.low %v5979, %v5993
    %v5997 = vcombine.low %v5140, %v3253
    %v5999 = vunpack.c.l.s4 1966171168
    %v6000 = vunpack.c.0.s8 %v5999
    %v6001 = vlaneseq
    %v6002 = vshrl.u32 %v6001, 7
    %v6003 = vsub.s32 %v6000, %v6002
    %v6004 = vrot.slane %v5997, %v6003
    %v6005 = vcombine.low %v3784, %v3791
    %v6006 = vcombine.high %v3784, %v3791
    %v6007 = vcombine.high %v6004, %v6004
    %v6009 = vunpack.c.l.s4 1966171168
    %v6010 = vunpack.c.0.s8 %v6009
    %v6011 = vlaneseq
    %v6012 = vshrl.u32 %v6011, 7
    %v6013 = vsub.s32 %v6010, %v6012
    %v6014 = vrot.slane %v6005, %v6013
    %v6016 = vunpack.c.l.s4 1966171168
    %v6017 = vunpack.c.0.s8 %v6016
    %v6018 = vlaneseq
    %v6019 = vshrl.u32 %v6018, 7
    %v6020 = vsub.s32 %v6017, %v6019
    %v6021 = vrot.slane %v6006, %v6020
    %v6023 = vunpack.c.l.s4 1966171168
    %v6024 = vunpack.c.0.s8 %v6023
    %v6025 = vlaneseq
    %v6026 = vshrl.u32 %v6025, 7
    %v6027 = vsub.s32 %v6024, %v6026
    %v6028 = vrot.slane %v6004, %v6027
    %v6030 = vunpack.c.l.s4 1966171168
    %v6031 = vunpack.c.0.s8 %v6030
    %v6032 = vlaneseq
    %v6033 = vshrl.u32 %v6032, 7
    %v6034 = vsub.s32 %v6031, %v6033
    %v6035 = vrot.slane %v6007, %v6034
    %v6036 = vcombine.low %v6014, %v6028
    %v6037 = vcombine.high %v6014, %v6028
    %v6038 = vcombine.low %v6021, %v6035
    %v6115 = vunpack.c.l.b16 %v5890
    %v6116 = vunpack.c.h.b16 %v5890
    %v6117 = vunpack.c.l.b16 %v5891
    %v6118 = vunpack.c.h.b16 %v5891
    %v6119 = vunpack.c.l.b16 %v5892
    %v6120 = vunpack.c.h.b16 %v5892
    %v6121 = vunpack.c.l.b16 %v5893
    %v6122 = vunpack.c.h.b16 %v5893
    %v6123 = vunpack.c.l.b16 %v5894
    %v6124 = vunpack.c.h.b16 %v5894
    %v6125 = vunpack.c.l.b16 %v5895
    %v6126 = vunpack.c.h.b16 %v5895
    %v6127 = vunpack.c.l.b16 %v5896
    %v6128 = vunpack.c.h.b16 %v5896
    %v6129 = vunpack.c.l.b16 %v5897
    %v6130 = vunpack.c.h.b16 %v5897
    %v6131 = vunpack.c.l.b16 %v5898
    %v6132 = vunpack.c.h.b16 %v5898
    %v6133 = vunpack.c.l.b16 %v5899
    %v6134 = vunpack.c.h.b16 %v5899
    %v6135 = vunpack.c.l.b16 %v5900
    %v6136 = vunpack.c.h.b16 %v5900
    %v6137 = vunpack.c.l.b16 %v5901
    %v6138 = vunpack.c.h.b16 %v5901
    %v6139 = vunpack.c.l.b16 %v5902
    %v6140 = vunpack.c.h.b16 %v5902
    %v6141 = vunpack.c.l.b16 %v5903
    %v6142 = vunpack.c.h.b16 %v5903
    %v6143 = vunpack.c.l.b16 %v5904
    %v6144 = vunpack.c.h.b16 %v5904
    %v6145 = vunpack.c.l.b16 %v5905
    %v6146 = vunpack.c.h.b16 %v5905
    %v6147 = vunpack.c.l.b16 %v5906
    %v6148 = vunpack.c.h.b16 %v5906
    %v6149 = vunpack.c.l.b16 %v5907
    %v6150 = vunpack.c.h.b16 %v5907
    %v6151 = vunpack.c.l.b16 %v5908
    %v6152 = vunpack.c.h.b16 %v5908
    %v6153 = vunpack.c.l.b16 %v5909
    %v6154 = vunpack.c.h.b16 %v5909
    %v6155 = vunpack.c.l.b16 %v5910
    %v6156 = vunpack.c.h.b16 %v5910
    %v6157 = vunpack.c.l.b16 %v5911
    %v6158 = vunpack.c.h.b16 %v5911
    %v6159 = vunpack.c.l.b16 %v5912
    %v6160 = vunpack.c.h.b16 %v5912
    %v6161 = vunpack.c.l.b16 %v5913
    %v6162 = vunpack.c.h.b16 %v5913
    %v6163 = vunpack.c.l.b16 %v5914
    %v6164 = vunpack.c.h.b16 %v5914
    %v6165 = vunpack.c.l.b16 %v5915
    %v6166 = vunpack.c.h.b16 %v5915
    %v6167 = vunpack.c.l.b16 %v5916
    %v6168 = vunpack.c.h.b16 %v5916
    %v6169 = vunpack.c.l.b16 %v5917
    %v6170 = vunpack.c.h.b16 %v5917
    %v6171 = vunpack.c.l.b16 %v5918
    %v6172 = vunpack.c.h.b16 %v5918
    %v6173 = vunpack.c.l.b16 %v5919
    %v6174 = vunpack.c.h.b16 %v5919
    %v6175 = vunpack.c.l.b16 %v5920
    %v6176 = vunpack.c.h.b16 %v5920
    %v6177 = vunpack.c.l.b16 %v5921
    %v6178 = vunpack.c.h.b16 %v5921
    %v6179 = vunpack.c.l.b16 %v5922
    %v6180 = vunpack.c.h.b16 %v5922
    %v6181 = vunpack.c.l.b16 %v5923
    %v6182 = vunpack.c.h.b16 %v5923
    %v6183 = vunpack.c.l.b16 %v5924
    %v6184 = vunpack.c.h.b16 %v5924
    %v6185 = vunpack.c.l.b16 %v5925
    %v6186 = vunpack.c.h.b16 %v5925
    %v6187 = vunpack.c.l.b16 %v5926
    %v6188 = vunpack.c.h.b16 %v5926
    %v6189 = vunpack.c.l.b16 %v5927
    %v6190 = vunpack.c.h.b16 %v5927
    %v6191 = vunpack.c.l.b16 %v5928
    %v6192 = vunpack.c.h.b16 %v5928
    %v6193 = vunpack.c.l.b16 %v5929
    %v6194 = vunpack.c.h.b16 %v5929
    %v6195 = vunpack.c.l.b16 %v5930
    %v6196 = vunpack.c.h.b16 %v5930
    %v6197 = vunpack.c.l.b16 %v5931
    %v6198 = vunpack.c.h.b16 %v5931
    %v6199 = vunpack.c.l.b16 %v5932
    %v6200 = vunpack.c.h.b16 %v5932
    %v6201 = vunpack.c.l.b16 %v5933
    %v6202 = vunpack.c.h.b16 %v5933
    %v6203 = vunpack.c.l.b16 %v5934
    %v6204 = vunpack.c.h.b16 %v5934
    %v6205 = vunpack.c.l.b16 %v5935
    %v6206 = vunpack.c.h.b16 %v5935
    %v6207 = vunpack.c.l.b16 %v5936
    %v6208 = vunpack.c.h.b16 %v5936
    %v6209 = vunpack.c.l.b16 %v5937
    %v6210 = vunpack.c.h.b16 %v5937
    %v6211 = vunpack.c.l.b16 %v5938
    %v6212 = vunpack.c.h.b16 %v5938
    %v6213 = vunpack.c.l.b16 %v5939
    %v6214 = vunpack.c.h.b16 %v5939
    %v6215 = vunpack.c.l.b16 %v5940
    %v6216 = vunpack.c.h.b16 %v5940
    %v6217 = vunpack.c.l.b16 %v5941
    %v6218 = vunpack.c.h.b16 %v5941
    %v6219 = vunpack.c.l.b16 %v5942
    %v6220 = vunpack.c.h.b16 %v5942
    %v6221 = vunpack.c.l.b16 %v5943
    %v6222 = vunpack.c.h.b16 %v5943
    %v6223 = vunpack.c.l.b16 %v5944
    %v6224 = vunpack.c.h.b16 %v5944
    %v6225 = vunpack.c.l.b16 %v5945
    %v6226 = vunpack.c.h.b16 %v5945
    %v6227 = vunpack.c.l.b16 %v5946
    %v6228 = vunpack.c.h.b16 %v5946
    %v6229 = vunpack.c.l.b16 %v5947
    %v6230 = vunpack.c.h.b16 %v5947
    %v6231 = vunpack.c.l.b16 %v5948
    %v6232 = vunpack.c.h.b16 %v5948
    %v6233 = vunpack.c.l.b16 %v5949
    %v6234 = vunpack.c.h.b16 %v5949
    %v6235 = vunpack.c.l.b16 %v5950
    %v6236 = vunpack.c.h.b16 %v5950
    %v6237 = vunpack.c.l.b16 %v5951
    %v6238 = vunpack.c.h.b16 %v5951
    %v6239 = vunpack.c.l.b16 %v5952
    %v6240 = vunpack.c.h.b16 %v5952
    %v6241 = vunpack.c.l.b16 %v5953
    %v6242 = vunpack.c.h.b16 %v5953
    %v6243 = vunpack.c.l.b16 %v5954
    %v6244 = vunpack.c.h.b16 %v5954
    %v6245 = vunpack.c.l.b16 %v5955
    %v6246 = vunpack.c.h.b16 %v5955
    %v6247 = vunpack.c.l.b16 %v5956
    %v6248 = vunpack.c.h.b16 %v5956
    %v6249 = vunpack.c.l.b16 %v5957
    %v6250 = vunpack.c.h.b16 %v5957
    %v6251 = vunpack.c.l.b16 %v5958
    %v6252 = vunpack.c.h.b16 %v5958
    %v6253 = vunpack.c.l.b16 %v5959
    %v6254 = vunpack.c.h.b16 %v5959
    %v6255 = vunpack.c.l.b16 %v5960
    %v6256 = vunpack.c.h.b16 %v5960
    %v6257 = vunpack.c.l.b16 %v5961
    %v6258 = vunpack.c.h.b16 %v5961
    %v6259 = vpack.c.b16 %v6119, %v6115
    %v6260 = vpack.c.b16 %v6120, %v6116
    %v6261 = vpack.c.b16 %v6121, %v6117
    %v6262 = vpack.c.b16 %v6122, %v6118
    %v6263 = vpack.c.b16 %v6127, %v6123
    %v6264 = vpack.c.b16 %v6128, %v6124
    %v6265 = vpack.c.b16 %v6129, %v6125
    %v6266 = vpack.c.b16 %v6130, %v6126
    %v6267 = vpack.c.b16 %v6135, %v6131
    %v6268 = vpack.c.b16 %v6136, %v6132
    %v6269 = vpack.c.b16 %v6137, %v6133
    %v6270 = vpack.c.b16 %v6138, %v6134
    %v6271 = vpack.c.b16 %v6143, %v6139
    %v6272 = vpack.c.b16 %v6144, %v6140
    %v6273 = vpack.c.b16 %v6145, %v6141
    %v6274 = vpack.c.b16 %v6146, %v6142
    %v6275 = vpack.c.b16 %v6151, %v6147
    %v6276 = vpack.c.b16 %v6152, %v6148
    %v6277 = vpack.c.b16 %v6153, %v6149
    %v6278 = vpack.c.b16 %v6154, %v6150
    %v6279 = vpack.c.b16 %v6159, %v6155
    %v6280 = vpack.c.b16 %v6160, %v6156
    %v6281 = vpack.c.b16 %v6161, %v6157
    %v6282 = vpack.c.b16 %v6162, %v6158
    %v6283 = vpack.c.b16 %v6167, %v6163
    %v6284 = vpack.c.b16 %v6168, %v6164
    %v6285 = vpack.c.b16 %v6169, %v6165
    %v6286 = vpack.c.b16 %v6170, %v6166
    %v6287 = vpack.c.b16 %v6175, %v6171
    %v6288 = vpack.c.b16 %v6176, %v6172
    %v6289 = vpack.c.b16 %v6177, %v6173
    %v6290 = vpack.c.b16 %v6178, %v6174
    %v6291 = vpack.c.b16 %v6183, %v6179
    %v6292 = vpack.c.b16 %v6184, %v6180
    %v6293 = vpack.c.b16 %v6185, %v6181
    %v6294 = vpack.c.b16 %v6186, %v6182
    %v6295 = vpack.c.b16 %v6191, %v6187
    %v6296 = vpack.c.b16 %v6192, %v6188
    %v6297 = vpack.c.b16 %v6193, %v6189
    %v6298 = vpack.c.b16 %v6194, %v6190
    %v6299 = vpack.c.b16 %v6199, %v6195
    %v6300 = vpack.c.b16 %v6200, %v6196
    %v6301 = vpack.c.b16 %v6201, %v6197
    %v6302 = vpack.c.b16 %v6202, %v6198
    %v6303 = vpack.c.b16 %v6207, %v6203
    %v6304 = vpack.c.b16 %v6208, %v6204
    %v6305 = vpack.c.b16 %v6209, %v6205
    %v6306 = vpack.c.b16 %v6210, %v6206
    %v6307 = vpack.c.b16 %v6215, %v6211
    %v6308 = vpack.c.b16 %v6216, %v6212
    %v6309 = vpack.c.b16 %v6217, %v6213
    %v6310 = vpack.c.b16 %v6218, %v6214
    %v6311 = vpack.c.b16 %v6223, %v6219
    %v6312 = vpack.c.b16 %v6224, %v6220
    %v6313 = vpack.c.b16 %v6225, %v6221
    %v6314 = vpack.c.b16 %v6226, %v6222
    %v6315 = vpack.c.b16 %v6231, %v6227
    %v6316 = vpack.c.b16 %v6232, %v6228
    %v6317 = vpack.c.b16 %v6233, %v6229
    %v6318 = vpack.c.b16 %v6234, %v6230
    %v6319 = vpack.c.b16 %v6239, %v6235
    %v6320 = vpack.c.b16 %v6240, %v6236
    %v6321 = vpack.c.b16 %v6241, %v6237
    %v6322 = vpack.c.b16 %v6242, %v6238
    %v6323 = vpack.c.b16 %v6247, %v6243
    %v6324 = vpack.c.b16 %v6248, %v6244
    %v6325 = vpack.c.b16 %v6249, %v6245
    %v6326 = vpack.c.b16 %v6250, %v6246
    %v6327 = vpack.c.b16 %v6255, %v6251
    %v6328 = vpack.c.b16 %v6256, %v6252
    %v6329 = vpack.c.b16 %v6257, %v6253
    %v6330 = vpack.c.b16 %v6258, %v6254
    %v6404 = vsel %vm328, %v5995, 0
    %v6407 = vsel %vm328, %v6037, 0
    %6409 = vmatprep.subr.bf16.mxu0 %v6260
    %6410 = vmatpush1.bf16.msra.mxu0 %v6259
    %6411 = vmatprep.subr.bf16.mxu0 %v6264
    %6412 = vmatpush1.bf16.msra.mxu0 %v6263
    %6413 = vmatprep.subr.bf16.mxu0 %v6268
    %6414 = vmatpush1.bf16.msra.mxu0 %v6267
    %6415 = vmatprep.subr.bf16.mxu0 %v6272
    %6416 = vmatpush1.bf16.msra.mxu0 %v6271
    %6417 = vmatprep.subr.bf16.mxu0 %v6276
    %6418 = vmatpush1.bf16.msra.mxu0 %v6275
    %6419 = vmatprep.subr.bf16.mxu0 %v6280
    %6420 = vmatpush1.bf16.msra.mxu0 %v6279
    %6421 = vmatprep.subr.bf16.mxu0 %v6284
    %6422 = vmatpush1.bf16.msra.mxu0 %v6283
    %6423 = vmatprep.subr.bf16.mxu0 %v6288
    %6424 = vmatpush1.bf16.msra.mxu0 %v6287
    %6425 = vmatprep.subr.bf16.mxu0 %v6292
    %6426 = vmatpush1.bf16.msra.mxu0 %v6291
    %6427 = vmatprep.subr.bf16.mxu0 %v6296
    %6428 = vmatpush1.bf16.msra.mxu0 %v6295
    %6429 = vmatprep.subr.bf16.mxu0 %v6300
    %6430 = vmatpush1.bf16.msra.mxu0 %v6299
    %6431 = vmatprep.subr.bf16.mxu0 %v6304
    %6432 = vmatpush1.bf16.msra.mxu0 %v6303
    %6433 = vmatprep.subr.bf16.mxu0 %v6308
    %6434 = vmatpush1.bf16.msra.mxu0 %v6307
    %6435 = vmatprep.subr.bf16.mxu0 %v6312
    %6436 = vmatpush1.bf16.msra.mxu0 %v6311
    %6437 = vmatprep.subr.bf16.mxu0 %v6316
    %6438 = vmatpush1.bf16.msra.mxu0 %v6315
    %6439 = vmatprep.subr.bf16.mxu0 %v6320
    %6440 = vmatpush1.bf16.msra.mxu0 %v6319
    %6441 = vmatprep.mubr.bf16.mxu0 %v5996
    %6442 = vmatmul.mubr.bf16.gmra.mrb[0].mxu0 %v5994
    %v6443 = vpop.f32.mrb[0].mxu0
    %v6444 = vadd.f32 0.0, %v6443
    %v6445 = vpop.f32.mrb[0].mxu0
    %v6446 = vadd.f32 0.0, %v6445
    %v6447 = vpop.f32.mrb[0].mxu0
    %v6448 = vadd.f32 0.0, %v6447
    %v6449 = vpop.f32.mrb[0].mxu0
    %v6450 = vadd.f32 0.0, %v6449
    %6451 = vmatprep.mubr.bf16.mxu0 %v6038
    %6452 = vmatmul.mubr.bf16.gmra.mrb[0].mxu0 %v6036
    %v6453 = vpop.f32.mrb[0].mxu0
    %v6454 = vadd.f32 0.0, %v6453
    %v6455 = vpop.f32.mrb[0].mxu0
    %v6456 = vadd.f32 0.0, %v6455
    %v6457 = vpop.f32.mrb[0].mxu0
    %v6458 = vadd.f32 0.0, %v6457
    %v6459 = vpop.f32.mrb[0].mxu0
    %v6460 = vadd.f32 0.0, %v6459
    %6461 = vdwg.mxu0
    %6462 = vmatprep.subr.bf16.mxu0 %v6324
    %6463 = vmatpush1.bf16.msra.mxu0 %v6323
    %6464 = vmatprep.subr.bf16.mxu0 %v6328
    %6465 = vmatpush1.bf16.msra.mxu0 %v6327
    %6466 = vmatprep.subr.bf16.mxu0 0
    %6467 = vmatpush1.bf16.msra.mxu0 0
    %6468 = vmatprep.subr.bf16.mxu0 0
    %6469 = vmatpush1.bf16.msra.mxu0 0
    %6470 = vmatprep.subr.bf16.mxu0 0
    %6471 = vmatpush1.bf16.msra.mxu0 0
    %6472 = vmatprep.subr.bf16.mxu0 0
    %6473 = vmatpush1.bf16.msra.mxu0 0
    %6474 = vmatprep.subr.bf16.mxu0 0
    %6475 = vmatpush1.bf16.msra.mxu0 0
    %6476 = vmatprep.subr.bf16.mxu0 0
    %6477 = vmatpush1.bf16.msra.mxu0 0
    %6478 = vmatprep.subr.bf16.mxu0 0
    %6479 = vmatpush1.bf16.msra.mxu0 0
    %6480 = vmatprep.subr.bf16.mxu0 0
    %6481 = vmatpush1.bf16.msra.mxu0 0
    %6482 = vmatprep.subr.bf16.mxu0 0
    %6483 = vmatpush1.bf16.msra.mxu0 0
    %6484 = vmatprep.subr.bf16.mxu0 0
    %6485 = vmatpush1.bf16.msra.mxu0 0
    %6486 = vmatprep.subr.bf16.mxu0 0
    %6487 = vmatpush1.bf16.msra.mxu0 0
    %6488 = vmatprep.subr.bf16.mxu0 0
    %6489 = vmatpush1.bf16.msra.mxu0 0
    %6490 = vmatprep.subr.bf16.mxu0 0
    %6491 = vmatpush1.bf16.msra.mxu0 0
    %6492 = vmatprep.subr.bf16.mxu0 0
    %6493 = vmatpush1.bf16.msra.mxu0 0
    %6494 = vmatprep.mubr.bf16.mxu0 0
    %6495 = vmatmul.mubr.bf16.gmra.mrb[0].mxu0 %v6404
    %v6496 = vpop.f32.mrb[0].mxu0
    %v6497 = vadd.f32 %v6444, %v6496
    %v6498 = vpop.f32.mrb[0].mxu0
    %v6499 = vadd.f32 %v6446, %v6498
    %v6500 = vpop.f32.mrb[0].mxu0
    %v6501 = vadd.f32 %v6448, %v6500
    %v6502 = vpop.f32.mrb[0].mxu0
    %v6503 = vadd.f32 %v6450, %v6502
    %6504 = vmatprep.mubr.bf16.mxu0 0
    %6505 = vmatmul.mubr.bf16.gmra.mrb[0].mxu0 %v6407
    %v6506 = vpop.f32.mrb[0].mxu0
    %v6507 = vadd.f32 %v6454, %v6506
    %v6508 = vpop.f32.mrb[0].mxu0
    %v6509 = vadd.f32 %v6456, %v6508
    %v6510 = vpop.f32.mrb[0].mxu0
    %v6511 = vadd.f32 %v6458, %v6510
    %v6512 = vpop.f32.mrb[0].mxu0
    %v6513 = vadd.f32 %v6460, %v6512
    %6514 = vdwg.mxu0
    %6515 = vmatprep.subr.bf16.mxu0 %v6262
    %6516 = vmatpush1.bf16.msra.mxu0 %v6261
    %6517 = vmatprep.subr.bf16.mxu0 %v6266
    %6518 = vmatpush1.bf16.msra.mxu0 %v6265
    %6519 = vmatprep.subr.bf16.mxu0 %v6270
    %6520 = vmatpush1.bf16.msra.mxu0 %v6269
    %6521 = vmatprep.subr.bf16.mxu0 %v6274
    %6522 = vmatpush1.bf16.msra.mxu0 %v6273
    %6523 = vmatprep.subr.bf16.mxu0 %v6278
    %6524 = vmatpush1.bf16.msra.mxu0 %v6277
    %6525 = vmatprep.subr.bf16.mxu0 %v6282
    %6526 = vmatpush1.bf16.msra.mxu0 %v6281
    %6527 = vmatprep.subr.bf16.mxu0 %v6286
    %6528 = vmatpush1.bf16.msra.mxu0 %v6285
    %6529 = vmatprep.subr.bf16.mxu0 %v6290
    %6530 = vmatpush1.bf16.msra.mxu0 %v6289
    %6531 = vmatprep.subr.bf16.mxu0 %v6294
    %6532 = vmatpush1.bf16.msra.mxu0 %v6293
    %6533 = vmatprep.subr.bf16.mxu0 %v6298
    %6534 = vmatpush1.bf16.msra.mxu0 %v6297
    %6535 = vmatprep.subr.bf16.mxu0 %v6302
    %6536 = vmatpush1.bf16.msra.mxu0 %v6301
    %6537 = vmatprep.subr.bf16.mxu0 %v6306
    %6538 = vmatpush1.bf16.msra.mxu0 %v6305
    %6539 = vmatprep.subr.bf16.mxu0 %v6310
    %6540 = vmatpush1.bf16.msra.mxu0 %v6309
    %6541 = vmatprep.subr.bf16.mxu0 %v6314
    %6542 = vmatpush1.bf16.msra.mxu0 %v6313
    %6543 = vmatprep.subr.bf16.mxu0 %v6318
    %6544 = vmatpush1.bf16.msra.mxu0 %v6317
    %6545 = vmatprep.subr.bf16.mxu0 %v6322
    %6546 = vmatpush1.bf16.msra.mxu0 %v6321
    %6547 = vmatprep.mubr.bf16.mxu0 %v5996
    %6548 = vmatmul.mubr.bf16.gmra.mrb[0].mxu0 %v5994
    %v6549 = vpop.f32.mrb[0].mxu0
    %v6550 = vadd.f32 0.0, %v6549
    %v6551 = vpop.f32.mrb[0].mxu0
    %v6552 = vadd.f32 0.0, %v6551
    %v6553 = vpop.f32.mrb[0].mxu0
    %v6554 = vadd.f32 0.0, %v6553
    %v6555 = vpop.f32.mrb[0].mxu0
    %v6556 = vadd.f32 0.0, %v6555
    %6557 = vmatprep.mubr.bf16.mxu0 %v6038
    %6558 = vmatmul.mubr.bf16.gmra.mrb[0].mxu0 %v6036
    %v6559 = vpop.f32.mrb[0].mxu0
    %v6560 = vadd.f32 0.0, %v6559
    %v6561 = vpop.f32.mrb[0].mxu0
    %v6562 = vadd.f32 0.0, %v6561
    %v6563 = vpop.f32.mrb[0].mxu0
    %v6564 = vadd.f32 0.0, %v6563
    %v6565 = vpop.f32.mrb[0].mxu0
    %v6566 = vadd.f32 0.0, %v6565
    %6567 = vdwg.mxu0
    %6568 = vmatprep.subr.bf16.mxu0 %v6326
    %6569 = vmatpush1.bf16.msra.mxu0 %v6325
    %6570 = vmatprep.subr.bf16.mxu0 %v6330
    %6571 = vmatpush1.bf16.msra.mxu0 %v6329
    %6572 = vmatprep.subr.bf16.mxu0 0
    %6573 = vmatpush1.bf16.msra.mxu0 0
    %6574 = vmatprep.subr.bf16.mxu0 0
    %6575 = vmatpush1.bf16.msra.mxu0 0
    %6576 = vmatprep.subr.bf16.mxu0 0
    %6577 = vmatpush1.bf16.msra.mxu0 0
    %6578 = vmatprep.subr.bf16.mxu0 0
    %6579 = vmatpush1.bf16.msra.mxu0 0
    %6580 = vmatprep.subr.bf16.mxu0 0
    %6581 = vmatpush1.bf16.msra.mxu0 0
    %6582 = vmatprep.subr.bf16.mxu0 0
    %6583 = vmatpush1.bf16.msra.mxu0 0
    %6584 = vmatprep.subr.bf16.mxu0 0
    %6585 = vmatpush1.bf16.msra.mxu0 0
    %6586 = vmatprep.subr.bf16.mxu0 0
    %6587 = vmatpush1.bf16.msra.mxu0 0
    %6588 = vmatprep.subr.bf16.mxu0 0
    %6589 = vmatpush1.bf16.msra.mxu0 0
    %6590 = vmatprep.subr.bf16.mxu0 0
    %6591 = vmatpush1.bf16.msra.mxu0 0
    %6592 = vmatprep.subr.bf16.mxu0 0
    %6593 = vmatpush1.bf16.msra.mxu0 0
    %6594 = vmatprep.subr.bf16.mxu0 0
    %6595 = vmatpush1.bf16.msra.mxu0 0
    %6596 = vmatprep.subr.bf16.mxu0 0
    %6597 = vmatpush1.bf16.msra.mxu0 0
    %6598 = vmatprep.subr.bf16.mxu0 0
    %6599 = vmatpush1.bf16.msra.mxu0 0
    %6600 = vmatprep.mubr.bf16.mxu0 0
    %6601 = vmatmul.mubr.bf16.gmra.mrb[0].mxu0 %v6404
    %v6602 = vpop.f32.mrb[0].mxu0
    %v6603 = vadd.f32 %v6550, %v6602
    %v6604 = vpop.f32.mrb[0].mxu0
    %v6605 = vadd.f32 %v6552, %v6604
    %v6606 = vpop.f32.mrb[0].mxu0
    %v6607 = vadd.f32 %v6554, %v6606
    %v6608 = vpop.f32.mrb[0].mxu0
    %v6609 = vadd.f32 %v6556, %v6608
    %6610 = vmatprep.mubr.bf16.mxu0 0
    %6611 = vmatmul.mubr.bf16.gmra.mrb[0].mxu0 %v6407
    %v6612 = vpop.f32.mrb[0].mxu0
    %v6613 = vadd.f32 %v6560, %v6612
    %v6614 = vpop.f32.mrb[0].mxu0
    %v6615 = vadd.f32 %v6562, %v6614
    %v6616 = vpop.f32.mrb[0].mxu0
    %v6617 = vadd.f32 %v6564, %v6616
    %v6618 = vpop.f32.mrb[0].mxu0
    %v6619 = vadd.f32 %v6566, %v6618
    %6620 = vdwg.mxu0
    %v6621 = vadd.f32 %v5873, %v6497
    %v6622 = vadd.f32 %v5874, %v6499
    %v6623 = vadd.f32 %v5875, %v6603
    %v6624 = vadd.f32 %v5876, %v6605
    %v6625 = vadd.f32 %v5877, %v6501
    %v6626 = vadd.f32 %v5878, %v6503
    %v6627 = vadd.f32 %v5879, %v6607
    %v6628 = vadd.f32 %v5880, %v6609
    %v6629 = vadd.f32 %v5881, %v6507
    %v6630 = vadd.f32 %v5882, %v6509
    %v6631 = vadd.f32 %v5883, %v6613
    %v6632 = vadd.f32 %v5884, %v6615
    %v6633 = vadd.f32 %v5885, %v6511
    %v6634 = vadd.f32 %v5886, %v6513
    %v6635 = vadd.f32 %v5887, %v6617
    %v6636 = vadd.f32 %v5888, %v6619
    %s6637 = scalar_lea.vmem %s5, 2304
    %v6638 = vld [vmem:[%s6637] sm:$0xff]
    %v6639 = vld [vmem:[%s6637 + $0x8] sm:$0xff]
    %v6640 = vld [vmem:[%s6637 + $0x10] sm:$0xff]
    %v6641 = vld [vmem:[%s6637 + $0x18] sm:$0xff]
    %v6642 = vld [vmem:[%s6637 + $0x20] sm:$0xff]
    %v6643 = vld [vmem:[%s6637 + $0x28] sm:$0xff]
    %v6644 = vld [vmem:[%s6637 + $0x30] sm:$0xff]
    %v6645 = vld [vmem:[%s6637 + $0x38] sm:$0xff]
    %v6646 = vld [vmem:[%s6637 + $0x40] sm:$0xff]
    %v6647 = vld [vmem:[%s6637 + $0x48] sm:$0xff]
    %v6648 = vld [vmem:[%s6637 + $0x50] sm:$0xff]
    %v6649 = vld [vmem:[%s6637 + $0x58] sm:$0xff]
    %v6650 = vld [vmem:[%s6637 + $0x60] sm:$0xff]
    %v6651 = vld [vmem:[%s6637 + $0x68] sm:$0xff]
    %v6652 = vld [vmem:[%s6637 + $0x70] sm:$0xff]
    %v6653 = vld [vmem:[%s6637 + $0x78] sm:$0xff]
    %v6654 = vld [vmem:[%s6637 + $0x80] sm:$0xff]
    %v6655 = vld [vmem:[%s6637 + $0x88] sm:$0xff]
    %v6656 = vld [vmem:[%s6637 + $0x90] sm:$0xff]
    %v6657 = vld [vmem:[%s6637 + $0x98] sm:$0xff]
    %v6658 = vld [vmem:[%s6637 + $0xa0] sm:$0xff]
    %v6659 = vld [vmem:[%s6637 + $0xa8] sm:$0xff]
    %v6660 = vld [vmem:[%s6637 + $0xb0] sm:$0xff]
    %v6661 = vld [vmem:[%s6637 + $0xb8] sm:$0xff]
    %v6662 = vld [vmem:[%s6637 + $0xc0] sm:$0xff]
    %v6663 = vld [vmem:[%s6637 + $0xc8] sm:$0xff]
    %v6664 = vld [vmem:[%s6637 + $0xd0] sm:$0xff]
    %v6665 = vld [vmem:[%s6637 + $0xd8] sm:$0xff]
    %v6666 = vld [vmem:[%s6637 + $0xe0] sm:$0xff]
    %v6667 = vld [vmem:[%s6637 + $0xe8] sm:$0xff]
    %v6668 = vld [vmem:[%s6637 + $0xf0] sm:$0xff]
    %v6669 = vld [vmem:[%s6637 + $0xf8] sm:$0xff]
    %v6670 = vld [vmem:[%s6637 + $0x100] sm:$0xff]
    %v6671 = vld [vmem:[%s6637 + $0x108] sm:$0xff]
    %v6672 = vld [vmem:[%s6637 + $0x110] sm:$0xff]
    %v6673 = vld [vmem:[%s6637 + $0x118] sm:$0xff]
    %v6674 = vld [vmem:[%s6637 + $0x120] sm:$0xff]
    %v6675 = vld [vmem:[%s6637 + $0x128] sm:$0xff]
    %v6676 = vld [vmem:[%s6637 + $0x130] sm:$0xff]
    %v6677 = vld [vmem:[%s6637 + $0x138] sm:$0xff]
    %v6678 = vld [vmem:[%s6637 + $0x140] sm:$0xff]
    %v6679 = vld [vmem:[%s6637 + $0x148] sm:$0xff]
    %v6680 = vld [vmem:[%s6637 + $0x150] sm:$0xff]
    %v6681 = vld [vmem:[%s6637 + $0x158] sm:$0xff]
    %v6682 = vld [vmem:[%s6637 + $0x160] sm:$0xff]
    %v6683 = vld [vmem:[%s6637 + $0x168] sm:$0xff]
    %v6684 = vld [vmem:[%s6637 + $0x170] sm:$0xff]
    %v6685 = vld [vmem:[%s6637 + $0x178] sm:$0xff]
    %v6686 = vld [vmem:[%s6637 + $0x180] sm:$0xff]
    %v6687 = vld [vmem:[%s6637 + $0x188] sm:$0xff]
    %v6688 = vld [vmem:[%s6637 + $0x190] sm:$0xff]
    %v6689 = vld [vmem:[%s6637 + $0x198] sm:$0xff]
    %v6690 = vld [vmem:[%s6637 + $0x1a0] sm:$0xff]
    %v6691 = vld [vmem:[%s6637 + $0x1a8] sm:$0xff]
    %v6692 = vld [vmem:[%s6637 + $0x1b0] sm:$0xff]
    %v6693 = vld [vmem:[%s6637 + $0x1b8] sm:$0xff]
    %v6694 = vld [vmem:[%s6637 + $0x1c0] sm:$0xff]
    %v6695 = vld [vmem:[%s6637 + $0x1c8] sm:$0xff]
    %v6696 = vld [vmem:[%s6637 + $0x1d0] sm:$0xff]
    %v6697 = vld [vmem:[%s6637 + $0x1d8] sm:$0xff]
    %v6698 = vld [vmem:[%s6637 + $0x1e0] sm:$0xff]
    %v6699 = vld [vmem:[%s6637 + $0x1e8] sm:$0xff]
    %v6700 = vld [vmem:[%s6637 + $0x1f0] sm:$0xff]
    %v6701 = vld [vmem:[%s6637 + $0x1f8] sm:$0xff]
    %v6702 = vld [vmem:[%s6637 + $0x200] sm:$0xff]
    %v6703 = vld [vmem:[%s6637 + $0x208] sm:$0xff]
    %v6704 = vld [vmem:[%s6637 + $0x210] sm:$0xff]
    %v6705 = vld [vmem:[%s6637 + $0x218] sm:$0xff]
    %v6706 = vld [vmem:[%s6637 + $0x220] sm:$0xff]
    %v6707 = vld [vmem:[%s6637 + $0x228] sm:$0xff]
    %v6708 = vld [vmem:[%s6637 + $0x230] sm:$0xff]
    %v6709 = vld [vmem:[%s6637 + $0x238] sm:$0xff]
    %v6710 = vcombine.low %v4464, %v4508
    %v6711 = vcombine.high %v4464, %v4508
    %v6712 = vcombine.low %v4471, %v4515
    %v6713 = vcombine.low %v4498, %v5256
    %v6714 = vcombine.high %v4498, %v5256
    %v6715 = vcombine.high %v4418, %v4418
    %v6717 = vunpack.c.l.s4 1966171168
    %v6718 = vunpack.c.0.s8 %v6717
    %v6719 = vlaneseq
    %v6720 = vshrl.u32 %v6719, 7
    %v6721 = vsub.s32 %v6718, %v6720
    %v6722 = vrot.slane %v6713, %v6721
    %v6724 = vunpack.c.l.s4 1966171168
    %v6725 = vunpack.c.0.s8 %v6724
    %v6726 = vlaneseq
    %v6727 = vshrl.u32 %v6726, 7
    %v6728 = vsub.s32 %v6725, %v6727
    %v6729 = vrot.slane %v6714, %v6728
    %v6731 = vunpack.c.l.s4 1966171168
    %v6732 = vunpack.c.0.s8 %v6731
    %v6733 = vlaneseq
    %v6734 = vshrl.u32 %v6733, 7
    %v6735 = vsub.s32 %v6732, %v6734
    %v6736 = vrot.slane %v4418, %v6735
    %v6738 = vunpack.c.l.s4 1966171168
    %v6739 = vunpack.c.0.s8 %v6738
    %v6740 = vlaneseq
    %v6741 = vshrl.u32 %v6740, 7
    %v6742 = vsub.s32 %v6739, %v6741
    %v6743 = vrot.slane %v6715, %v6742
    %v6744 = vcombine.low %v6722, %v6736
    %v6745 = vcombine.high %v6722, %v6736
    %v6746 = vcombine.low %v6729, %v6743
    %v6823 = vunpack.c.l.b16 %v6638
    %v6824 = vunpack.c.h.b16 %v6638
    %v6825 = vunpack.c.l.b16 %v6639
    %v6826 = vunpack.c.h.b16 %v6639
    %v6827 = vunpack.c.l.b16 %v6640
    %v6828 = vunpack.c.h.b16 %v6640
    %v6829 = vunpack.c.l.b16 %v6641
    %v6830 = vunpack.c.h.b16 %v6641
    %v6831 = vunpack.c.l.b16 %v6642
    %v6832 = vunpack.c.h.b16 %v6642
    %v6833 = vunpack.c.l.b16 %v6643
    %v6834 = vunpack.c.h.b16 %v6643
    %v6835 = vunpack.c.l.b16 %v6644
    %v6836 = vunpack.c.h.b16 %v6644
    %v6837 = vunpack.c.l.b16 %v6645
    %v6838 = vunpack.c.h.b16 %v6645
    %v6839 = vunpack.c.l.b16 %v6646
    %v6840 = vunpack.c.h.b16 %v6646
    %v6841 = vunpack.c.l.b16 %v6647
    %v6842 = vunpack.c.h.b16 %v6647
    %v6843 = vunpack.c.l.b16 %v6648
    %v6844 = vunpack.c.h.b16 %v6648
    %v6845 = vunpack.c.l.b16 %v6649
    %v6846 = vunpack.c.h.b16 %v6649
    %v6847 = vunpack.c.l.b16 %v6650
    %v6848 = vunpack.c.h.b16 %v6650
    %v6849 = vunpack.c.l.b16 %v6651
    %v6850 = vunpack.c.h.b16 %v6651
    %v6851 = vunpack.c.l.b16 %v6652
    %v6852 = vunpack.c.h.b16 %v6652
    %v6853 = vunpack.c.l.b16 %v6653
    %v6854 = vunpack.c.h.b16 %v6653
    %v6855 = vunpack.c.l.b16 %v6654
    %v6856 = vunpack.c.h.b16 %v6654
    %v6857 = vunpack.c.l.b16 %v6655
    %v6858 = vunpack.c.h.b16 %v6655
    %v6859 = vunpack.c.l.b16 %v6656
    %v6860 = vunpack.c.h.b16 %v6656
    %v6861 = vunpack.c.l.b16 %v6657
    %v6862 = vunpack.c.h.b16 %v6657
    %v6863 = vunpack.c.l.b16 %v6658
    %v6864 = vunpack.c.h.b16 %v6658
    %v6865 = vunpack.c.l.b16 %v6659
    %v6866 = vunpack.c.h.b16 %v6659
    %v6867 = vunpack.c.l.b16 %v6660
    %v6868 = vunpack.c.h.b16 %v6660
    %v6869 = vunpack.c.l.b16 %v6661
    %v6870 = vunpack.c.h.b16 %v6661
    %v6871 = vunpack.c.l.b16 %v6662
    %v6872 = vunpack.c.h.b16 %v6662
    %v6873 = vunpack.c.l.b16 %v6663
    %v6874 = vunpack.c.h.b16 %v6663
    %v6875 = vunpack.c.l.b16 %v6664
    %v6876 = vunpack.c.h.b16 %v6664
    %v6877 = vunpack.c.l.b16 %v6665
    %v6878 = vunpack.c.h.b16 %v6665
    %v6879 = vunpack.c.l.b16 %v6666
    %v6880 = vunpack.c.h.b16 %v6666
    %v6881 = vunpack.c.l.b16 %v6667
    %v6882 = vunpack.c.h.b16 %v6667
    %v6883 = vunpack.c.l.b16 %v6668
    %v6884 = vunpack.c.h.b16 %v6668
    %v6885 = vunpack.c.l.b16 %v6669
    %v6886 = vunpack.c.h.b16 %v6669
    %v6887 = vunpack.c.l.b16 %v6670
    %v6888 = vunpack.c.h.b16 %v6670
    %v6889 = vunpack.c.l.b16 %v6671
    %v6890 = vunpack.c.h.b16 %v6671
    %v6891 = vunpack.c.l.b16 %v6672
    %v6892 = vunpack.c.h.b16 %v6672
    %v6893 = vunpack.c.l.b16 %v6673
    %v6894 = vunpack.c.h.b16 %v6673
    %v6895 = vunpack.c.l.b16 %v6674
    %v6896 = vunpack.c.h.b16 %v6674
    %v6897 = vunpack.c.l.b16 %v6675
    %v6898 = vunpack.c.h.b16 %v6675
    %v6899 = vunpack.c.l.b16 %v6676
    %v6900 = vunpack.c.h.b16 %v6676
    %v6901 = vunpack.c.l.b16 %v6677
    %v6902 = vunpack.c.h.b16 %v6677
    %v6903 = vunpack.c.l.b16 %v6678
    %v6904 = vunpack.c.h.b16 %v6678
    %v6905 = vunpack.c.l.b16 %v6679
    %v6906 = vunpack.c.h.b16 %v6679
    %v6907 = vunpack.c.l.b16 %v6680
    %v6908 = vunpack.c.h.b16 %v6680
    %v6909 = vunpack.c.l.b16 %v6681
    %v6910 = vunpack.c.h.b16 %v6681
    %v6911 = vunpack.c.l.b16 %v6682
    %v6912 = vunpack.c.h.b16 %v6682
    %v6913 = vunpack.c.l.b16 %v6683
    %v6914 = vunpack.c.h.b16 %v6683
    %v6915 = vunpack.c.l.b16 %v6684
    %v6916 = vunpack.c.h.b16 %v6684
    %v6917 = vunpack.c.l.b16 %v6685
    %v6918 = vunpack.c.h.b16 %v6685
    %v6919 = vunpack.c.l.b16 %v6686
    %v6920 = vunpack.c.h.b16 %v6686
    %v6921 = vunpack.c.l.b16 %v6687
    %v6922 = vunpack.c.h.b16 %v6687
    %v6923 = vunpack.c.l.b16 %v6688
    %v6924 = vunpack.c.h.b16 %v6688
    %v6925 = vunpack.c.l.b16 %v6689
    %v6926 = vunpack.c.h.b16 %v6689
    %v6927 = vunpack.c.l.b16 %v6690
    %v6928 = vunpack.c.h.b16 %v6690
    %v6929 = vunpack.c.l.b16 %v6691
    %v6930 = vunpack.c.h.b16 %v6691
    %v6931 = vunpack.c.l.b16 %v6692
    %v6932 = vunpack.c.h.b16 %v6692
    %v6933 = vunpack.c.l.b16 %v6693
    %v6934 = vunpack.c.h.b16 %v6693
    %v6935 = vunpack.c.l.b16 %v6694
    %v6936 = vunpack.c.h.b16 %v6694
    %v6937 = vunpack.c.l.b16 %v6695
    %v6938 = vunpack.c.h.b16 %v6695
    %v6939 = vunpack.c.l.b16 %v6696
    %v6940 = vunpack.c.h.b16 %v6696
    %v6941 = vunpack.c.l.b16 %v6697
    %v6942 = vunpack.c.h.b16 %v6697
    %v6943 = vunpack.c.l.b16 %v6698
    %v6944 = vunpack.c.h.b16 %v6698
    %v6945 = vunpack.c.l.b16 %v6699
    %v6946 = vunpack.c.h.b16 %v6699
    %v6947 = vunpack.c.l.b16 %v6700
    %v6948 = vunpack.c.h.b16 %v6700
    %v6949 = vunpack.c.l.b16 %v6701
    %v6950 = vunpack.c.h.b16 %v6701
    %v6951 = vunpack.c.l.b16 %v6702
    %v6952 = vunpack.c.h.b16 %v6702
    %v6953 = vunpack.c.l.b16 %v6703
    %v6954 = vunpack.c.h.b16 %v6703
    %v6955 = vunpack.c.l.b16 %v6704
    %v6956 = vunpack.c.h.b16 %v6704
    %v6957 = vunpack.c.l.b16 %v6705
    %v6958 = vunpack.c.h.b16 %v6705
    %v6959 = vunpack.c.l.b16 %v6706
    %v6960 = vunpack.c.h.b16 %v6706
    %v6961 = vunpack.c.l.b16 %v6707
    %v6962 = vunpack.c.h.b16 %v6707
    %v6963 = vunpack.c.l.b16 %v6708
    %v6964 = vunpack.c.h.b16 %v6708
    %v6965 = vunpack.c.l.b16 %v6709
    %v6966 = vunpack.c.h.b16 %v6709
    %v6967 = vpack.c.b16 %v6827, %v6823
    %v6968 = vpack.c.b16 %v6828, %v6824
    %v6969 = vpack.c.b16 %v6829, %v6825
    %v6970 = vpack.c.b16 %v6830, %v6826
    %v6971 = vpack.c.b16 %v6835, %v6831
    %v6972 = vpack.c.b16 %v6836, %v6832
    %v6973 = vpack.c.b16 %v6837, %v6833
    %v6974 = vpack.c.b16 %v6838, %v6834
    %v6975 = vpack.c.b16 %v6843, %v6839
    %v6976 = vpack.c.b16 %v6844, %v6840
    %v6977 = vpack.c.b16 %v6845, %v6841
    %v6978 = vpack.c.b16 %v6846, %v6842
    %v6979 = vpack.c.b16 %v6851, %v6847
    %v6980 = vpack.c.b16 %v6852, %v6848
    %v6981 = vpack.c.b16 %v6853, %v6849
    %v6982 = vpack.c.b16 %v6854, %v6850
    %v6983 = vpack.c.b16 %v6859, %v6855
    %v6984 = vpack.c.b16 %v6860, %v6856
    %v6985 = vpack.c.b16 %v6861, %v6857
    %v6986 = vpack.c.b16 %v6862, %v6858
    %v6987 = vpack.c.b16 %v6867, %v6863
    %v6988 = vpack.c.b16 %v6868, %v6864
    %v6989 = vpack.c.b16 %v6869, %v6865
    %v6990 = vpack.c.b16 %v6870, %v6866
    %v6991 = vpack.c.b16 %v6875, %v6871
    %v6992 = vpack.c.b16 %v6876, %v6872
    %v6993 = vpack.c.b16 %v6877, %v6873
    %v6994 = vpack.c.b16 %v6878, %v6874
    %v6995 = vpack.c.b16 %v6883, %v6879
    %v6996 = vpack.c.b16 %v6884, %v6880
    %v6997 = vpack.c.b16 %v6885, %v6881
    %v6998 = vpack.c.b16 %v6886, %v6882
    %v6999 = vpack.c.b16 %v6891, %v6887
    %v7000 = vpack.c.b16 %v6892, %v6888
    %v7001 = vpack.c.b16 %v6893, %v6889
    %v7002 = vpack.c.b16 %v6894, %v6890
    %v7003 = vpack.c.b16 %v6899, %v6895
    %v7004 = vpack.c.b16 %v6900, %v6896
    %v7005 = vpack.c.b16 %v6901, %v6897
    %v7006 = vpack.c.b16 %v6902, %v6898
    %v7007 = vpack.c.b16 %v6907, %v6903
    %v7008 = vpack.c.b16 %v6908, %v6904
    %v7009 = vpack.c.b16 %v6909, %v6905
    %v7010 = vpack.c.b16 %v6910, %v6906
    %v7011 = vpack.c.b16 %v6915, %v6911
    %v7012 = vpack.c.b16 %v6916, %v6912
    %v7013 = vpack.c.b16 %v6917, %v6913
    %v7014 = vpack.c.b16 %v6918, %v6914
    %v7015 = vpack.c.b16 %v6923, %v6919
    %v7016 = vpack.c.b16 %v6924, %v6920
    %v7017 = vpack.c.b16 %v6925, %v6921
    %v7018 = vpack.c.b16 %v6926, %v6922
    %v7019 = vpack.c.b16 %v6931, %v6927
    %v7020 = vpack.c.b16 %v6932, %v6928
    %v7021 = vpack.c.b16 %v6933, %v6929
    %v7022 = vpack.c.b16 %v6934, %v6930
    %v7023 = vpack.c.b16 %v6939, %v6935
    %v7024 = vpack.c.b16 %v6940, %v6936
    %v7025 = vpack.c.b16 %v6941, %v6937
    %v7026 = vpack.c.b16 %v6942, %v6938
    %v7027 = vpack.c.b16 %v6947, %v6943
    %v7028 = vpack.c.b16 %v6948, %v6944
    %v7029 = vpack.c.b16 %v6949, %v6945
    %v7030 = vpack.c.b16 %v6950, %v6946
    %v7031 = vpack.c.b16 %v6955, %v6951
    %v7032 = vpack.c.b16 %v6956, %v6952
    %v7033 = vpack.c.b16 %v6957, %v6953
    %v7034 = vpack.c.b16 %v6958, %v6954
    %v7035 = vpack.c.b16 %v6963, %v6959
    %v7036 = vpack.c.b16 %v6964, %v6960
    %v7037 = vpack.c.b16 %v6965, %v6961
    %v7038 = vpack.c.b16 %v6966, %v6962
    %v7112 = vsel %vm328, %v6711, 0
    %v7115 = vsel %vm328, %v6745, 0
    %7117 = vmatprep.subr.bf16.mxu0 %v6968
    %7118 = vmatpush1.bf16.msra.mxu0 %v6967
    %7119 = vmatprep.subr.bf16.mxu0 %v6972
    %7120 = vmatpush1.bf16.msra.mxu0 %v6971
    %7121 = vmatprep.subr.bf16.mxu0 %v6976
    %7122 = vmatpush1.bf16.msra.mxu0 %v6975
    %7123 = vmatprep.subr.bf16.mxu0 %v6980
    %7124 = vmatpush1.bf16.msra.mxu0 %v6979
    %7125 = vmatprep.subr.bf16.mxu0 %v6984
    %7126 = vmatpush1.bf16.msra.mxu0 %v6983
    %7127 = vmatprep.subr.bf16.mxu0 %v6988
    %7128 = vmatpush1.bf16.msra.mxu0 %v6987
    %7129 = vmatprep.subr.bf16.mxu0 %v6992
    %7130 = vmatpush1.bf16.msra.mxu0 %v6991
    %7131 = vmatprep.subr.bf16.mxu0 %v6996
    %7132 = vmatpush1.bf16.msra.mxu0 %v6995
    %7133 = vmatprep.subr.bf16.mxu0 %v7000
    %7134 = vmatpush1.bf16.msra.mxu0 %v6999
    %7135 = vmatprep.subr.bf16.mxu0 %v7004
    %7136 = vmatpush1.bf16.msra.mxu0 %v7003
    %7137 = vmatprep.subr.bf16.mxu0 %v7008
    %7138 = vmatpush1.bf16.msra.mxu0 %v7007
    %7139 = vmatprep.subr.bf16.mxu0 %v7012
    %7140 = vmatpush1.bf16.msra.mxu0 %v7011
    %7141 = vmatprep.subr.bf16.mxu0 %v7016
    %7142 = vmatpush1.bf16.msra.mxu0 %v7015
    %7143 = vmatprep.subr.bf16.mxu0 %v7020
    %7144 = vmatpush1.bf16.msra.mxu0 %v7019
    %7145 = vmatprep.subr.bf16.mxu0 %v7024
    %7146 = vmatpush1.bf16.msra.mxu0 %v7023
    %7147 = vmatprep.subr.bf16.mxu0 %v7028
    %7148 = vmatpush1.bf16.msra.mxu0 %v7027
    %7149 = vmatprep.mubr.bf16.mxu0 %v6712
    %7150 = vmatmul.mubr.bf16.gmra.mrb[0].mxu0 %v6710
    %v7151 = vpop.f32.mrb[0].mxu0
    %v7152 = vadd.f32 0.0, %v7151
    %v7153 = vpop.f32.mrb[0].mxu0
    %v7154 = vadd.f32 0.0, %v7153
    %v7155 = vpop.f32.mrb[0].mxu0
    %v7156 = vadd.f32 0.0, %v7155
    %v7157 = vpop.f32.mrb[0].mxu0
    %v7158 = vadd.f32 0.0, %v7157
    %7159 = vmatprep.mubr.bf16.mxu0 %v6746
    %7160 = vmatmul.mubr.bf16.gmra.mrb[0].mxu0 %v6744
    %v7161 = vpop.f32.mrb[0].mxu0
    %v7162 = vadd.f32 0.0, %v7161
    %v7163 = vpop.f32.mrb[0].mxu0
    %v7164 = vadd.f32 0.0, %v7163
    %v7165 = vpop.f32.mrb[0].mxu0
    %v7166 = vadd.f32 0.0, %v7165
    %v7167 = vpop.f32.mrb[0].mxu0
    %v7168 = vadd.f32 0.0, %v7167
    %7169 = vdwg.mxu0
    %7170 = vmatprep.subr.bf16.mxu0 %v7032
    %7171 = vmatpush1.bf16.msra.mxu0 %v7031
    %7172 = vmatprep.subr.bf16.mxu0 %v7036
    %7173 = vmatpush1.bf16.msra.mxu0 %v7035
    %7174 = vmatprep.subr.bf16.mxu0 0
    %7175 = vmatpush1.bf16.msra.mxu0 0
    %7176 = vmatprep.subr.bf16.mxu0 0
    %7177 = vmatpush1.bf16.msra.mxu0 0
    %7178 = vmatprep.subr.bf16.mxu0 0
    %7179 = vmatpush1.bf16.msra.mxu0 0
    %7180 = vmatprep.subr.bf16.mxu0 0
    %7181 = vmatpush1.bf16.msra.mxu0 0
    %7182 = vmatprep.subr.bf16.mxu0 0
    %7183 = vmatpush1.bf16.msra.mxu0 0
    %7184 = vmatprep.subr.bf16.mxu0 0
    %7185 = vmatpush1.bf16.msra.mxu0 0
    %7186 = vmatprep.subr.bf16.mxu0 0
    %7187 = vmatpush1.bf16.msra.mxu0 0
    %7188 = vmatprep.subr.bf16.mxu0 0
    %7189 = vmatpush1.bf16.msra.mxu0 0
    %7190 = vmatprep.subr.bf16.mxu0 0
    %7191 = vmatpush1.bf16.msra.mxu0 0
    %7192 = vmatprep.subr.bf16.mxu0 0
    %7193 = vmatpush1.bf16.msra.mxu0 0
    %7194 = vmatprep.subr.bf16.mxu0 0
    %7195 = vmatpush1.bf16.msra.mxu0 0
    %7196 = vmatprep.subr.bf16.mxu0 0
    %7197 = vmatpush1.bf16.msra.mxu0 0
    %7198 = vmatprep.subr.bf16.mxu0 0
    %7199 = vmatpush1.bf16.msra.mxu0 0
    %7200 = vmatprep.subr.bf16.mxu0 0
    %7201 = vmatpush1.bf16.msra.mxu0 0
    %7202 = vmatprep.mubr.bf16.mxu0 0
    %7203 = vmatmul.mubr.bf16.gmra.mrb[0].mxu0 %v7112
    %v7204 = vpop.f32.mrb[0].mxu0
    %v7205 = vadd.f32 %v7152, %v7204
    %v7206 = vpop.f32.mrb[0].mxu0
    %v7207 = vadd.f32 %v7154, %v7206
    %v7208 = vpop.f32.mrb[0].mxu0
    %v7209 = vadd.f32 %v7156, %v7208
    %v7210 = vpop.f32.mrb[0].mxu0
    %v7211 = vadd.f32 %v7158, %v7210
    %7212 = vmatprep.mubr.bf16.mxu0 0
    %7213 = vmatmul.mubr.bf16.gmra.mrb[0].mxu0 %v7115
    %v7214 = vpop.f32.mrb[0].mxu0
    %v7215 = vadd.f32 %v7162, %v7214
    %v7216 = vpop.f32.mrb[0].mxu0
    %v7217 = vadd.f32 %v7164, %v7216
    %v7218 = vpop.f32.mrb[0].mxu0
    %v7219 = vadd.f32 %v7166, %v7218
    %v7220 = vpop.f32.mrb[0].mxu0
    %v7221 = vadd.f32 %v7168, %v7220
    %7222 = vdwg.mxu0
    %7223 = vmatprep.subr.bf16.mxu0 %v6970
    %7224 = vmatpush1.bf16.msra.mxu0 %v6969
    %7225 = vmatprep.subr.bf16.mxu0 %v6974
    %7226 = vmatpush1.bf16.msra.mxu0 %v6973
    %7227 = vmatprep.subr.bf16.mxu0 %v6978
    %7228 = vmatpush1.bf16.msra.mxu0 %v6977
    %7229 = vmatprep.subr.bf16.mxu0 %v6982
    %7230 = vmatpush1.bf16.msra.mxu0 %v6981
    %7231 = vmatprep.subr.bf16.mxu0 %v6986
    %7232 = vmatpush1.bf16.msra.mxu0 %v6985
    %7233 = vmatprep.subr.bf16.mxu0 %v6990
    %7234 = vmatpush1.bf16.msra.mxu0 %v6989
    %7235 = vmatprep.subr.bf16.mxu0 %v6994
    %7236 = vmatpush1.bf16.msra.mxu0 %v6993
    %7237 = vmatprep.subr.bf16.mxu0 %v6998
    %7238 = vmatpush1.bf16.msra.mxu0 %v6997
    %7239 = vmatprep.subr.bf16.mxu0 %v7002
    %7240 = vmatpush1.bf16.msra.mxu0 %v7001
    %7241 = vmatprep.subr.bf16.mxu0 %v7006
    %7242 = vmatpush1.bf16.msra.mxu0 %v7005
    %7243 = vmatprep.subr.bf16.mxu0 %v7010
    %7244 = vmatpush1.bf16.msra.mxu0 %v7009
    %7245 = vmatprep.subr.bf16.mxu0 %v7014
    %7246 = vmatpush1.bf16.msra.mxu0 %v7013
    %7247 = vmatprep.subr.bf16.mxu0 %v7018
    %7248 = vmatpush1.bf16.msra.mxu0 %v7017
    %7249 = vmatprep.subr.bf16.mxu0 %v7022
    %7250 = vmatpush1.bf16.msra.mxu0 %v7021
    %7251 = vmatprep.subr.bf16.mxu0 %v7026
    %7252 = vmatpush1.bf16.msra.mxu0 %v7025
    %7253 = vmatprep.subr.bf16.mxu0 %v7030
    %7254 = vmatpush1.bf16.msra.mxu0 %v7029
    %7255 = vmatprep.mubr.bf16.mxu0 %v6712
    %7256 = vmatmul.mubr.bf16.gmra.mrb[0].mxu0 %v6710
    %v7257 = vpop.f32.mrb[0].mxu0
    %v7258 = vadd.f32 0.0, %v7257
    %v7259 = vpop.f32.mrb[0].mxu0
    %v7260 = vadd.f32 0.0, %v7259
    %v7261 = vpop.f32.mrb[0].mxu0
    %v7262 = vadd.f32 0.0, %v7261
    %v7263 = vpop.f32.mrb[0].mxu0
    %v7264 = vadd.f32 0.0, %v7263
    %7265 = vmatprep.mubr.bf16.mxu0 %v6746
    %7266 = vmatmul.mubr.bf16.gmra.mrb[0].mxu0 %v6744
    %v7267 = vpop.f32.mrb[0].mxu0
    %v7268 = vadd.f32 0.0, %v7267
    %v7269 = vpop.f32.mrb[0].mxu0
    %v7270 = vadd.f32 0.0, %v7269
    %v7271 = vpop.f32.mrb[0].mxu0
    %v7272 = vadd.f32 0.0, %v7271
    %v7273 = vpop.f32.mrb[0].mxu0
    %v7274 = vadd.f32 0.0, %v7273
    %7275 = vdwg.mxu0
    %7276 = vmatprep.subr.bf16.mxu0 %v7034
    %7277 = vmatpush1.bf16.msra.mxu0 %v7033
    %7278 = vmatprep.subr.bf16.mxu0 %v7038
    %7279 = vmatpush1.bf16.msra.mxu0 %v7037
    %7280 = vmatprep.subr.bf16.mxu0 0
    %7281 = vmatpush1.bf16.msra.mxu0 0
    %7282 = vmatprep.subr.bf16.mxu0 0
    %7283 = vmatpush1.bf16.msra.mxu0 0
    %7284 = vmatprep.subr.bf16.mxu0 0
    %7285 = vmatpush1.bf16.msra.mxu0 0
    %7286 = vmatprep.subr.bf16.mxu0 0
    %7287 = vmatpush1.bf16.msra.mxu0 0
    %7288 = vmatprep.subr.bf16.mxu0 0
    %7289 = vmatpush1.bf16.msra.mxu0 0
    %7290 = vmatprep.subr.bf16.mxu0 0
    %7291 = vmatpush1.bf16.msra.mxu0 0
    %7292 = vmatprep.subr.bf16.mxu0 0
    %7293 = vmatpush1.bf16.msra.mxu0 0
    %7294 = vmatprep.subr.bf16.mxu0 0
    %7295 = vmatpush1.bf16.msra.mxu0 0
    %7296 = vmatprep.subr.bf16.mxu0 0
    %7297 = vmatpush1.bf16.msra.mxu0 0
    %7298 = vmatprep.subr.bf16.mxu0 0
    %7299 = vmatpush1.bf16.msra.mxu0 0
    %7300 = vmatprep.subr.bf16.mxu0 0
    %7301 = vmatpush1.bf16.msra.mxu0 0
    %7302 = vmatprep.subr.bf16.mxu0 0
    %7303 = vmatpush1.bf16.msra.mxu0 0
    %7304 = vmatprep.subr.bf16.mxu0 0
    %7305 = vmatpush1.bf16.msra.mxu0 0
    %7306 = vmatprep.subr.bf16.mxu0 0
    %7307 = vmatpush1.bf16.msra.mxu0 0
    %7308 = vmatprep.mubr.bf16.mxu0 0
    %7309 = vmatmul.mubr.bf16.gmra.mrb[0].mxu0 %v7112
    %v7310 = vpop.f32.mrb[0].mxu0
    %v7311 = vadd.f32 %v7258, %v7310
    %v7312 = vpop.f32.mrb[0].mxu0
    %v7313 = vadd.f32 %v7260, %v7312
    %v7314 = vpop.f32.mrb[0].mxu0
    %v7315 = vadd.f32 %v7262, %v7314
    %v7316 = vpop.f32.mrb[0].mxu0
    %v7317 = vadd.f32 %v7264, %v7316
    %7318 = vmatprep.mubr.bf16.mxu0 0
    %7319 = vmatmul.mubr.bf16.gmra.mrb[0].mxu0 %v7115
    %v7320 = vpop.f32.mrb[0].mxu0
    %v7321 = vadd.f32 %v7268, %v7320
    %v7322 = vpop.f32.mrb[0].mxu0
    %v7323 = vadd.f32 %v7270, %v7322
    %v7324 = vpop.f32.mrb[0].mxu0
    %v7325 = vadd.f32 %v7272, %v7324
    %v7326 = vpop.f32.mrb[0].mxu0
    %v7327 = vadd.f32 %v7274, %v7326
    %7328 = vdwg.mxu0
    %v7329 = vadd.f32 %v6621, %v7205
    %v7330 = vadd.f32 %v6622, %v7207
    %v7331 = vadd.f32 %v6623, %v7311
    %v7332 = vadd.f32 %v6624, %v7313
    %v7333 = vadd.f32 %v6625, %v7209
    %v7334 = vadd.f32 %v6626, %v7211
    %v7335 = vadd.f32 %v6627, %v7315
    %v7336 = vadd.f32 %v6628, %v7317
    %v7337 = vadd.f32 %v6629, %v7215
    %v7338 = vadd.f32 %v6630, %v7217
    %v7339 = vadd.f32 %v6631, %v7321
    %v7340 = vadd.f32 %v6632, %v7323
    %v7341 = vadd.f32 %v6633, %v7219
    %v7342 = vadd.f32 %v6634, %v7221
    %v7343 = vadd.f32 %v6635, %v7325
    %v7344 = vadd.f32 %v6636, %v7327
    %v7345 = vld [vmem:[%s8] sm:$0xff]
    %v7346 = vld [vmem:[%s8 + $0x8] sm:$0xff]
    %v7347 = vld [vmem:[%s8 + $0x10] sm:$0xff]
    %v7348 = vld [vmem:[%s8 + $0x18] sm:$0xff]
    %v7349 = vld [vmem:[%s8 + $0x20] sm:$0xff]
    %v7350 = vld [vmem:[%s8 + $0x28] sm:$0xff]
    %v7351 = vld [vmem:[%s8 + $0x30] sm:$0xff]
    %v7352 = vld [vmem:[%s8 + $0x38] sm:$0xff]
    %v7353 = vld [vmem:[%s8 + $0x40] sm:$0xff]
    %v7354 = vld [vmem:[%s8 + $0x48] sm:$0xff]
    %v7355 = vld [vmem:[%s8 + $0x50] sm:$0xff]
    %v7356 = vld [vmem:[%s8 + $0x58] sm:$0xff]
    %v7357 = vld [vmem:[%s8 + $0x60] sm:$0xff]
    %v7358 = vld [vmem:[%s8 + $0x68] sm:$0xff]
    %v7359 = vld [vmem:[%s8 + $0x70] sm:$0xff]
    %v7360 = vld [vmem:[%s8 + $0x78] sm:$0xff]
    %v7361 = vld [vmem:[%s8 + $0x80] sm:$0xff]
    %v7362 = vld [vmem:[%s8 + $0x88] sm:$0xff]
    %v7363 = vld [vmem:[%s8 + $0x90] sm:$0xff]
    %v7364 = vld [vmem:[%s8 + $0x98] sm:$0xff]
    %v7365 = vld [vmem:[%s8 + $0xa0] sm:$0xff]
    %v7366 = vld [vmem:[%s8 + $0xa8] sm:$0xff]
    %v7367 = vld [vmem:[%s8 + $0xb0] sm:$0xff]
    %v7368 = vld [vmem:[%s8 + $0xb8] sm:$0xff]
    %v7369 = vld [vmem:[%s8 + $0xc0] sm:$0xff]
    %v7370 = vld [vmem:[%s8 + $0xc8] sm:$0xff]
    %v7371 = vld [vmem:[%s8 + $0xd0] sm:$0xff]
    %v7372 = vld [vmem:[%s8 + $0xd8] sm:$0xff]
    %v7373 = vld [vmem:[%s8 + $0xe0] sm:$0xff]
    %v7374 = vld [vmem:[%s8 + $0xe8] sm:$0xff]
    %v7375 = vld [vmem:[%s8 + $0xf0] sm:$0xff]
    %v7376 = vld [vmem:[%s8 + $0xf8] sm:$0xff]
    %v7377 = vld [vmem:[%s8 + $0x100] sm:$0xff]
    %v7378 = vld [vmem:[%s8 + $0x108] sm:$0xff]
    %v7379 = vld [vmem:[%s8 + $0x110] sm:$0xff]
    %v7380 = vld [vmem:[%s8 + $0x118] sm:$0xff]
    %v7381 = vld [vmem:[%s8 + $0x120] sm:$0xff]
    %v7382 = vld [vmem:[%s8 + $0x128] sm:$0xff]
    %v7383 = vld [vmem:[%s8 + $0x130] sm:$0xff]
    %v7384 = vld [vmem:[%s8 + $0x138] sm:$0xff]
    %v7385 = vld [vmem:[%s8 + $0x140] sm:$0xff]
    %v7386 = vld [vmem:[%s8 + $0x148] sm:$0xff]
    %v7387 = vld [vmem:[%s8 + $0x150] sm:$0xff]
    %v7388 = vld [vmem:[%s8 + $0x158] sm:$0xff]
    %v7389 = vld [vmem:[%s8 + $0x160] sm:$0xff]
    %v7390 = vld [vmem:[%s8 + $0x168] sm:$0xff]
    %v7391 = vld [vmem:[%s8 + $0x170] sm:$0xff]
    %v7392 = vld [vmem:[%s8 + $0x178] sm:$0xff]
    %v7393 = vld [vmem:[%s8 + $0x180] sm:$0xff]
    %v7394 = vld [vmem:[%s8 + $0x188] sm:$0xff]
    %v7395 = vld [vmem:[%s8 + $0x190] sm:$0xff]
    %v7396 = vld [vmem:[%s8 + $0x198] sm:$0xff]
    %v7397 = vld [vmem:[%s8 + $0x1a0] sm:$0xff]
    %v7398 = vld [vmem:[%s8 + $0x1a8] sm:$0xff]
    %v7399 = vld [vmem:[%s8 + $0x1b0] sm:$0xff]
    %v7400 = vld [vmem:[%s8 + $0x1b8] sm:$0xff]
    %v7401 = vld [vmem:[%s8 + $0x1c0] sm:$0xff]
    %v7402 = vld [vmem:[%s8 + $0x1c8] sm:$0xff]
    %v7403 = vld [vmem:[%s8 + $0x1d0] sm:$0xff]
    %v7404 = vld [vmem:[%s8 + $0x1d8] sm:$0xff]
    %v7405 = vld [vmem:[%s8 + $0x1e0] sm:$0xff]
    %v7406 = vld [vmem:[%s8 + $0x1e8] sm:$0xff]
    %v7407 = vld [vmem:[%s8 + $0x1f0] sm:$0xff]
    %v7408 = vld [vmem:[%s8 + $0x1f8] sm:$0xff]
    %7409 = vmatprep.subr.mxu0 0.0
    %7410 = vmatpush1.msra.mxu0 %v7345
    %7411 = vmatprep.subr.mxu0 0.0
    %7412 = vmatpush1.msra.mxu0 %v7346
    %7413 = vmatprep.subr.mxu0 0.0
    %7414 = vmatpush1.msra.mxu0 %v7347
    %7415 = vmatprep.subr.mxu0 0.0
    %7416 = vmatpush1.msra.mxu0 %v7348
    %7417 = vmatprep.subr.mxu0 0.0
    %7418 = vmatpush1.msra.mxu0 %v7349
    %7419 = vmatprep.subr.mxu0 0.0
    %7420 = vmatpush1.msra.mxu0 %v7350
    %7421 = vmatprep.subr.mxu0 0.0
    %7422 = vmatpush1.msra.mxu0 %v7351
    %7423 = vmatprep.subr.mxu0 0.0
    %7424 = vmatpush1.msra.mxu0 %v7352
    %7425 = vmatprep.subr.mxu0 0.0
    %7426 = vmatpush1.msra.mxu0 %v7353
    %7427 = vmatprep.subr.mxu0 0.0
    %7428 = vmatpush1.msra.mxu0 %v7354
    %7429 = vmatprep.subr.mxu0 0.0
    %7430 = vmatpush1.msra.mxu0 %v7355
    %7431 = vmatprep.subr.mxu0 0.0
    %7432 = vmatpush1.msra.mxu0 %v7356
    %7433 = vmatprep.subr.mxu0 0.0
    %7434 = vmatpush1.msra.mxu0 %v7357
    %7435 = vmatprep.subr.mxu0 0.0
    %7436 = vmatpush1.msra.mxu0 %v7358
    %7437 = vmatprep.subr.mxu0 0.0
    %7438 = vmatpush1.msra.mxu0 %v7359
    %7439 = vmatprep.subr.mxu0 0.0
    %7440 = vmatpush1.msra.mxu0 %v7360
    %7441 = vmatprep.subr.mxu0 0.0
    %7442 = vmatpush1.msra.mxu0 %v7361
    %7443 = vmatprep.subr.mxu0 0.0
    %7444 = vmatpush1.msra.mxu0 %v7362
    %7445 = vmatprep.subr.mxu0 0.0
    %7446 = vmatpush1.msra.mxu0 %v7363
    %7447 = vmatprep.subr.mxu0 0.0
    %7448 = vmatpush1.msra.mxu0 %v7364
    %7449 = vmatprep.subr.mxu0 0.0
    %7450 = vmatpush1.msra.mxu0 %v7365
    %7451 = vmatprep.subr.mxu0 0.0
    %7452 = vmatpush1.msra.mxu0 %v7366
    %7453 = vmatprep.subr.mxu0 0.0
    %7454 = vmatpush1.msra.mxu0 %v7367
    %7455 = vmatprep.subr.mxu0 0.0
    %7456 = vmatpush1.msra.mxu0 %v7368
    %7457 = vmatprep.subr.mxu0 0.0
    %7458 = vmatpush1.msra.mxu0 %v7369
    %7459 = vmatprep.subr.mxu0 0.0
    %7460 = vmatpush1.msra.mxu0 %v7370
    %7461 = vmatprep.subr.mxu0 0.0
    %7462 = vmatpush1.msra.mxu0 %v7371
    %7463 = vmatprep.subr.mxu0 0.0
    %7464 = vmatpush1.msra.mxu0 %v7372
    %7465 = vmatprep.subr.mxu0 0.0
    %7466 = vmatpush1.msra.mxu0 %v7373
    %7467 = vmatprep.subr.mxu0 0.0
    %7468 = vmatpush1.msra.mxu0 %v7374
    %7469 = vmatprep.subr.mxu0 0.0
    %7470 = vmatpush1.msra.mxu0 %v7375
    %7471 = vmatprep.subr.mxu0 0.0
    %7472 = vmatpush1.msra.mxu0 %v7376
    %7473 = vmatprep.mubr.f32.mxu0 %v7330
    %7474 = vmatmul.mubr.f32.gmra.mrb[0].mxu0 %v7329
    %v7475 = vpop.f32.mrb[0].mxu0
    %v7476 = vadd.f32 0.0, %v7475
    %v7477 = vpop.f32.mrb[0].mxu0
    %7478 = vmatprep.mubr.f32.mxu0 %v7334
    %7479 = vmatmul.mubr.f32.gmra.mrb[0].mxu0 %v7333
    %v7480 = vpop.f32.mrb[0].mxu0
    %v7481 = vadd.f32 0.0, %v7480
    %v7482 = vpop.f32.mrb[0].mxu0
    %7483 = vmatprep.mubr.f32.mxu0 %v7338
    %7484 = vmatmul.mubr.f32.gmra.mrb[0].mxu0 %v7337
    %v7485 = vpop.f32.mrb[0].mxu0
    %v7486 = vadd.f32 0.0, %v7485
    %v7487 = vpop.f32.mrb[0].mxu0
    %7488 = vmatprep.mubr.f32.mxu0 %v7342
    %7489 = vmatmul.mubr.f32.gmra.mrb[0].mxu0 %v7341
    %v7490 = vpop.f32.mrb[0].mxu0
    %v7491 = vadd.f32 0.0, %v7490
    %v7492 = vpop.f32.mrb[0].mxu0
    %7493 = vdwg.mxu0
    %7494 = vmatprep.subr.mxu0 0.0
    %7495 = vmatpush1.msra.mxu0 %v7377
    %7496 = vmatprep.subr.mxu0 0.0
    %7497 = vmatpush1.msra.mxu0 %v7378
    %7498 = vmatprep.subr.mxu0 0.0
    %7499 = vmatpush1.msra.mxu0 %v7379
    %7500 = vmatprep.subr.mxu0 0.0
    %7501 = vmatpush1.msra.mxu0 %v7380
    %7502 = vmatprep.subr.mxu0 0.0
    %7503 = vmatpush1.msra.mxu0 %v7381
    %7504 = vmatprep.subr.mxu0 0.0
    %7505 = vmatpush1.msra.mxu0 %v7382
    %7506 = vmatprep.subr.mxu0 0.0
    %7507 = vmatpush1.msra.mxu0 %v7383
    %7508 = vmatprep.subr.mxu0 0.0
    %7509 = vmatpush1.msra.mxu0 %v7384
    %7510 = vmatprep.subr.mxu0 0.0
    %7511 = vmatpush1.msra.mxu0 %v7385
    %7512 = vmatprep.subr.mxu0 0.0
    %7513 = vmatpush1.msra.mxu0 %v7386
    %7514 = vmatprep.subr.mxu0 0.0
    %7515 = vmatpush1.msra.mxu0 %v7387
    %7516 = vmatprep.subr.mxu0 0.0
    %7517 = vmatpush1.msra.mxu0 %v7388
    %7518 = vmatprep.subr.mxu0 0.0
    %7519 = vmatpush1.msra.mxu0 %v7389
    %7520 = vmatprep.subr.mxu0 0.0
    %7521 = vmatpush1.msra.mxu0 %v7390
    %7522 = vmatprep.subr.mxu0 0.0
    %7523 = vmatpush1.msra.mxu0 %v7391
    %7524 = vmatprep.subr.mxu0 0.0
    %7525 = vmatpush1.msra.mxu0 %v7392
    %7526 = vmatprep.subr.mxu0 0.0
    %7527 = vmatpush1.msra.mxu0 %v7393
    %7528 = vmatprep.subr.mxu0 0.0
    %7529 = vmatpush1.msra.mxu0 %v7394
    %7530 = vmatprep.subr.mxu0 0.0
    %7531 = vmatpush1.msra.mxu0 %v7395
    %7532 = vmatprep.subr.mxu0 0.0
    %7533 = vmatpush1.msra.mxu0 %v7396
    %7534 = vmatprep.subr.mxu0 0.0
    %7535 = vmatpush1.msra.mxu0 %v7397
    %7536 = vmatprep.subr.mxu0 0.0
    %7537 = vmatpush1.msra.mxu0 %v7398
    %7538 = vmatprep.subr.mxu0 0.0
    %7539 = vmatpush1.msra.mxu0 %v7399
    %7540 = vmatprep.subr.mxu0 0.0
    %7541 = vmatpush1.msra.mxu0 %v7400
    %7542 = vmatprep.subr.mxu0 0.0
    %7543 = vmatpush1.msra.mxu0 %v7401
    %7544 = vmatprep.subr.mxu0 0.0
    %7545 = vmatpush1.msra.mxu0 %v7402
    %7546 = vmatprep.subr.mxu0 0.0
    %7547 = vmatpush1.msra.mxu0 %v7403
    %7548 = vmatprep.subr.mxu0 0.0
    %7549 = vmatpush1.msra.mxu0 %v7404
    %7550 = vmatprep.subr.mxu0 0.0
    %7551 = vmatpush1.msra.mxu0 %v7405
    %7552 = vmatprep.subr.mxu0 0.0
    %7553 = vmatpush1.msra.mxu0 %v7406
    %7554 = vmatprep.subr.mxu0 0.0
    %7555 = vmatpush1.msra.mxu0 %v7407
    %7556 = vmatprep.subr.mxu0 0.0
    %7557 = vmatpush1.msra.mxu0 %v7408
    %7558 = vmatprep.mubr.f32.mxu0 %v7332
    %7559 = vmatmul.mubr.f32.gmra.mrb[0].mxu0 %v7331
    %v7560 = vpop.f32.mrb[0].mxu0
    %v7561 = vadd.f32 %v7476, %v7560
    %v7562 = vpop.f32.mrb[0].mxu0
    %7563 = vmatprep.mubr.f32.mxu0 %v7336
    %7564 = vmatmul.mubr.f32.gmra.mrb[0].mxu0 %v7335
    %v7565 = vpop.f32.mrb[0].mxu0
    %v7566 = vadd.f32 %v7481, %v7565
    %v7567 = vpop.f32.mrb[0].mxu0
    %7568 = vmatprep.mubr.f32.mxu0 %v7340
    %7569 = vmatmul.mubr.f32.gmra.mrb[0].mxu0 %v7339
    %v7570 = vpop.f32.mrb[0].mxu0
    %v7571 = vadd.f32 %v7486, %v7570
    %v7572 = vpop.f32.mrb[0].mxu0
    %7573 = vmatprep.mubr.f32.mxu0 %v7344
    %7574 = vmatmul.mubr.f32.gmra.mrb[0].mxu0 %v7343
    %v7575 = vpop.f32.mrb[0].mxu0
    %v7576 = vadd.f32 %v7491, %v7575
    %v7577 = vpop.f32.mrb[0].mxu0
    %7578 = vdwg.mxu0
    %v7579 = vsel %vm328, %v7561, 0.0
    %v7580 = vsel %vm328, %v7566, 0.0
    %v7581 = vadd.f32 %v7579, %v7580
    %v7582 = vsel %vm328, %v7571, 0.0
    %v7583 = vadd.f32 %v7581, %v7582
    %vm7584 = vcmask 257024
    %v7585 = vsel %vm7584, %v7576, 0.0
    %v7586 = vadd.f32 %v7583, %v7585
    %v7587 = vrot.slane %v7586, 4
    %v7588 = vadd.f32 %v7586, %v7587
    %v7589 = vrot.slane %v7588, 2
    %v7590 = vadd.f32 %v7588, %v7589
    %v7591 = vrot.slane %v7590, 1
    %v7592 = vadd.f32 %v7590, %v7591
    %v7593 = vmul.f32 %v7329, %v7329
    %v7594 = vmul.f32 %v7330, %v7330
    %v7595 = vmul.f32 %v7331, %v7331
    %v7596 = vmul.f32 %v7332, %v7332
    %v7597 = vmul.f32 %v7333, %v7333
    %v7598 = vmul.f32 %v7334, %v7334
    %v7599 = vmul.f32 %v7335, %v7335
    %v7600 = vmul.f32 %v7336, %v7336
    %v7601 = vmul.f32 %v7337, %v7337
    %v7602 = vmul.f32 %v7338, %v7338
    %v7603 = vmul.f32 %v7339, %v7339
    %v7604 = vmul.f32 %v7340, %v7340
    %v7605 = vmul.f32 %v7341, %v7341
    %v7606 = vmul.f32 %v7342, %v7342
    %v7607 = vmul.f32 %v7343, %v7343
    %v7608 = vmul.f32 %v7344, %v7344
    %7609 = vmatprep.subr.mxu0 0.0
    %7610 = vmatpush1.msra.mxu0 %v7345
    %7611 = vmatprep.subr.mxu0 0.0
    %7612 = vmatpush1.msra.mxu0 %v7346
    %7613 = vmatprep.subr.mxu0 0.0
    %7614 = vmatpush1.msra.mxu0 %v7347
    %7615 = vmatprep.subr.mxu0 0.0
    %7616 = vmatpush1.msra.mxu0 %v7348
    %7617 = vmatprep.subr.mxu0 0.0
    %7618 = vmatpush1.msra.mxu0 %v7349
    %7619 = vmatprep.subr.mxu0 0.0
    %7620 = vmatpush1.msra.mxu0 %v7350
    %7621 = vmatprep.subr.mxu0 0.0
    %7622 = vmatpush1.msra.mxu0 %v7351
    %7623 = vmatprep.subr.mxu0 0.0
    %7624 = vmatpush1.msra.mxu0 %v7352
    %7625 = vmatprep.subr.mxu0 0.0
    %7626 = vmatpush1.msra.mxu0 %v7353
    %7627 = vmatprep.subr.mxu0 0.0
    %7628 = vmatpush1.msra.mxu0 %v7354
    %7629 = vmatprep.subr.mxu0 0.0
    %7630 = vmatpush1.msra.mxu0 %v7355
    %7631 = vmatprep.subr.mxu0 0.0
    %7632 = vmatpush1.msra.mxu0 %v7356
    %7633 = vmatprep.subr.mxu0 0.0
    %7634 = vmatpush1.msra.mxu0 %v7357
    %7635 = vmatprep.subr.mxu0 0.0
    %7636 = vmatpush1.msra.mxu0 %v7358
    %7637 = vmatprep.subr.mxu0 0.0
    %7638 = vmatpush1.msra.mxu0 %v7359
    %7639 = vmatprep.subr.mxu0 0.0
    %7640 = vmatpush1.msra.mxu0 %v7360
    %7641 = vmatprep.subr.mxu0 0.0
    %7642 = vmatpush1.msra.mxu0 %v7361
    %7643 = vmatprep.subr.mxu0 0.0
    %7644 = vmatpush1.msra.mxu0 %v7362
    %7645 = vmatprep.subr.mxu0 0.0
    %7646 = vmatpush1.msra.mxu0 %v7363
    %7647 = vmatprep.subr.mxu0 0.0
    %7648 = vmatpush1.msra.mxu0 %v7364
    %7649 = vmatprep.subr.mxu0 0.0
    %7650 = vmatpush1.msra.mxu0 %v7365
    %7651 = vmatprep.subr.mxu0 0.0
    %7652 = vmatpush1.msra.mxu0 %v7366
    %7653 = vmatprep.subr.mxu0 0.0
    %7654 = vmatpush1.msra.mxu0 %v7367
    %7655 = vmatprep.subr.mxu0 0.0
    %7656 = vmatpush1.msra.mxu0 %v7368
    %7657 = vmatprep.subr.mxu0 0.0
    %7658 = vmatpush1.msra.mxu0 %v7369
    %7659 = vmatprep.subr.mxu0 0.0
    %7660 = vmatpush1.msra.mxu0 %v7370
    %7661 = vmatprep.subr.mxu0 0.0
    %7662 = vmatpush1.msra.mxu0 %v7371
    %7663 = vmatprep.subr.mxu0 0.0
    %7664 = vmatpush1.msra.mxu0 %v7372
    %7665 = vmatprep.subr.mxu0 0.0
    %7666 = vmatpush1.msra.mxu0 %v7373
    %7667 = vmatprep.subr.mxu0 0.0
    %7668 = vmatpush1.msra.mxu0 %v7374
    %7669 = vmatprep.subr.mxu0 0.0
    %7670 = vmatpush1.msra.mxu0 %v7375
    %7671 = vmatprep.subr.mxu0 0.0
    %7672 = vmatpush1.msra.mxu0 %v7376
    %7673 = vmatprep.mubr.f32.mxu0 %v7594
    %7674 = vmatmul.mubr.f32.gmra.mrb[0].mxu0 %v7593
    %v7675 = vpop.f32.mrb[0].mxu0
    %v7676 = vadd.f32 0.0, %v7675
    %v7677 = vpop.f32.mrb[0].mxu0
    %7678 = vmatprep.mubr.f32.mxu0 %v7598
    %7679 = vmatmul.mubr.f32.gmra.mrb[0].mxu0 %v7597
    %v7680 = vpop.f32.mrb[0].mxu0
    %v7681 = vadd.f32 0.0, %v7680
    %v7682 = vpop.f32.mrb[0].mxu0
    %7683 = vmatprep.mubr.f32.mxu0 %v7602
    %7684 = vmatmul.mubr.f32.gmra.mrb[0].mxu0 %v7601
    %v7685 = vpop.f32.mrb[0].mxu0
    %v7686 = vadd.f32 0.0, %v7685
    %v7687 = vpop.f32.mrb[0].mxu0
    %7688 = vmatprep.mubr.f32.mxu0 %v7606
    %7689 = vmatmul.mubr.f32.gmra.mrb[0].mxu0 %v7605
    %v7690 = vpop.f32.mrb[0].mxu0
    %v7691 = vadd.f32 0.0, %v7690
    %v7692 = vpop.f32.mrb[0].mxu0
    %7693 = vdwg.mxu0
    %7694 = vmatprep.subr.mxu0 0.0
    %7695 = vmatpush1.msra.mxu0 %v7377
    %7696 = vmatprep.subr.mxu0 0.0
    %7697 = vmatpush1.msra.mxu0 %v7378
    %7698 = vmatprep.subr.mxu0 0.0
    %7699 = vmatpush1.msra.mxu0 %v7379
    %7700 = vmatprep.subr.mxu0 0.0
    %7701 = vmatpush1.msra.mxu0 %v7380
    %7702 = vmatprep.subr.mxu0 0.0
    %7703 = vmatpush1.msra.mxu0 %v7381
    %7704 = vmatprep.subr.mxu0 0.0
    %7705 = vmatpush1.msra.mxu0 %v7382
    %7706 = vmatprep.subr.mxu0 0.0
    %7707 = vmatpush1.msra.mxu0 %v7383
    %7708 = vmatprep.subr.mxu0 0.0
    %7709 = vmatpush1.msra.mxu0 %v7384
    %7710 = vmatprep.subr.mxu0 0.0
    %7711 = vmatpush1.msra.mxu0 %v7385
    %7712 = vmatprep.subr.mxu0 0.0
    %7713 = vmatpush1.msra.mxu0 %v7386
    %7714 = vmatprep.subr.mxu0 0.0
    %7715 = vmatpush1.msra.mxu0 %v7387
    %7716 = vmatprep.subr.mxu0 0.0
    %7717 = vmatpush1.msra.mxu0 %v7388
    %7718 = vmatprep.subr.mxu0 0.0
    %7719 = vmatpush1.msra.mxu0 %v7389
    %7720 = vmatprep.subr.mxu0 0.0
    %7721 = vmatpush1.msra.mxu0 %v7390
    %7722 = vmatprep.subr.mxu0 0.0
    %7723 = vmatpush1.msra.mxu0 %v7391
    %7724 = vmatprep.subr.mxu0 0.0
    %7725 = vmatpush1.msra.mxu0 %v7392
    %7726 = vmatprep.subr.mxu0 0.0
    %7727 = vmatpush1.msra.mxu0 %v7393
    %7728 = vmatprep.subr.mxu0 0.0
    %7729 = vmatpush1.msra.mxu0 %v7394
    %7730 = vmatprep.subr.mxu0 0.0
    %7731 = vmatpush1.msra.mxu0 %v7395
    %7732 = vmatprep.subr.mxu0 0.0
    %7733 = vmatpush1.msra.mxu0 %v7396
    %7734 = vmatprep.subr.mxu0 0.0
    %7735 = vmatpush1.msra.mxu0 %v7397
    %7736 = vmatprep.subr.mxu0 0.0
    %7737 = vmatpush1.msra.mxu0 %v7398
    %7738 = vmatprep.subr.mxu0 0.0
    %7739 = vmatpush1.msra.mxu0 %v7399
    %7740 = vmatprep.subr.mxu0 0.0
    %7741 = vmatpush1.msra.mxu0 %v7400
    %7742 = vmatprep.subr.mxu0 0.0
    %7743 = vmatpush1.msra.mxu0 %v7401
    %7744 = vmatprep.subr.mxu0 0.0
    %7745 = vmatpush1.msra.mxu0 %v7402
    %7746 = vmatprep.subr.mxu0 0.0
    %7747 = vmatpush1.msra.mxu0 %v7403
    %7748 = vmatprep.subr.mxu0 0.0
    %7749 = vmatpush1.msra.mxu0 %v7404
    %7750 = vmatprep.subr.mxu0 0.0
    %7751 = vmatpush1.msra.mxu0 %v7405
    %7752 = vmatprep.subr.mxu0 0.0
    %7753 = vmatpush1.msra.mxu0 %v7406
    %7754 = vmatprep.subr.mxu0 0.0
    %7755 = vmatpush1.msra.mxu0 %v7407
    %7756 = vmatprep.subr.mxu0 0.0
    %7757 = vmatpush1.msra.mxu0 %v7408
    %7758 = vmatprep.mubr.f32.mxu0 %v7596
    %7759 = vmatmul.mubr.f32.gmra.mrb[0].mxu0 %v7595
    %v7760 = vpop.f32.mrb[0].mxu0
    %v7761 = vadd.f32 %v7676, %v7760
    %v7762 = vpop.f32.mrb[0].mxu0
    %7763 = vmatprep.mubr.f32.mxu0 %v7600
    %7764 = vmatmul.mubr.f32.gmra.mrb[0].mxu0 %v7599
    %v7765 = vpop.f32.mrb[0].mxu0
    %v7766 = vadd.f32 %v7681, %v7765
    %v7767 = vpop.f32.mrb[0].mxu0
    %7768 = vmatprep.mubr.f32.mxu0 %v7604
    %7769 = vmatmul.mubr.f32.gmra.mrb[0].mxu0 %v7603
    %v7770 = vpop.f32.mrb[0].mxu0
    %v7771 = vadd.f32 %v7686, %v7770
    %v7772 = vpop.f32.mrb[0].mxu0
    %7773 = vmatprep.mubr.f32.mxu0 %v7608
    %7774 = vmatmul.mubr.f32.gmra.mrb[0].mxu0 %v7607
    %v7775 = vpop.f32.mrb[0].mxu0
    %v7776 = vadd.f32 %v7691, %v7775
    %v7777 = vpop.f32.mrb[0].mxu0
    %7778 = vdwg.mxu0
    %v7779 = vsel %vm328, %v7761, 0.0
    %v7780 = vsel %vm328, %v7766, 0.0
    %v7781 = vadd.f32 %v7779, %v7780
    %v7782 = vsel %vm328, %v7771, 0.0
    %v7783 = vadd.f32 %v7781, %v7782
    %v7784 = vsel %vm7584, %v7776, 0.0
    %v7785 = vadd.f32 %v7783, %v7784
    %v7786 = vrot.slane %v7785, 4
    %v7787 = vadd.f32 %v7785, %v7786
    %v7788 = vrot.slane %v7787, 2
    %v7789 = vadd.f32 %v7787, %v7788
    %v7790 = vrot.slane %v7789, 1
    %v7791 = vadd.f32 %v7789, %v7790
    %v7792 = vrcp.pop 392.0
    %v7793 = vmul.f32 %v7592, %v7792
    %v7794 = vmul.f32 %v7791, %v7792
    %v7795 = vmul.f32 %v7793, %v7793
    %v7796 = vsub.f32 %v7794, %v7795
    %v7797 = vadd.f32 %v7796, 1e-05
    %v7798 = vrsqrt.pop %v7797
    %v7799 = vld [vmem:[%s6] sm:$0x1]
    %v7800 = vmul.f32 %v7798, %v7799
    %v7801 = vld [vmem:[%s7] sm:$0x1]
    %v7802 = vmul.f32 %v7793, %v7800
    %v7803 = vsub.f32 %v7801, %v7802
    %7805 = vrot.lane.b32.xlu0 %v7800, 32
    %v7806 = vpop.permute.xlu0 %7805
    %7808 = vrot.lane.b32.xlu0 %v7800, 64
    %v7809 = vpop.permute.xlu0 %7808
    %7811 = vrot.lane.b32.xlu0 %v7800, 96
    %v7812 = vpop.permute.xlu0 %7811
    %v7814 = vsel %vm328, %v7800, %v7806
    %v7815 = vsel %vm2264, %v7814, %v7809
    %v7816 = vsel %vm2268, %v7815, %v7812
    %v7817 = vsel %vm2268, %v7815, 0.0
    %v7819 = vlaneseq
    %v7820 = vshrl.u32 %v7819, 7
    %v7821 = vsub.s32 0, %v7820
    %v7822 = vrot.slane %v7803, %v7821
    %7823 = vrot.lane.b32.xlu0 %v7822, 32
    %v7824 = vpop.permute.xlu0 %7823
    %7826 = vrot.lane.b32.xlu0 %v7822, 64
    %v7827 = vpop.permute.xlu0 %7826
    %7829 = vrot.lane.b32.xlu0 %v7822, 96
    %v7830 = vpop.permute.xlu0 %7829
    %v7832 = vsel %vm328, %v7803, %v7824
    %v7833 = vsel %vm2264, %v7832, %v7827
    %v7834 = vsel %vm2268, %v7833, %v7830
    %v7835 = vsel %vm2268, %v7833, 0.0
    %v7836 = vlaneseq
    %v7837 = vshrl.u32 %v7836, 7
    %v7838 = vsub.s32 0, %v7837
    %v7839 = vrot.slane %v7816, %v7838
    %v7840 = vlaneseq
    %v7841 = vshrl.u32 %v7840, 7
    %v7842 = vsub.s32 0, %v7841
    %v7843 = vrot.slane %v7817, %v7842
    %v7844 = vmul.f32 %v7329, %v7839
    %v7845 = vmul.f32 %v7330, %v7843
    %v7846 = vmul.f32 %v7331, %v7839
    %v7847 = vmul.f32 %v7332, %v7843
    %v7848 = vmul.f32 %v7333, %v7839
    %v7849 = vmul.f32 %v7334, %v7843
    %v7850 = vmul.f32 %v7335, %v7839
    %v7851 = vmul.f32 %v7336, %v7843
    %v7852 = vmul.f32 %v7337, %v7839
    %v7853 = vmul.f32 %v7338, %v7843
    %v7854 = vmul.f32 %v7339, %v7839
    %v7855 = vmul.f32 %v7340, %v7843
    %v7856 = vmul.f32 %v7341, %v7839
    %v7857 = vmul.f32 %v7342, %v7843
    %v7858 = vmul.f32 %v7343, %v7839
    %v7859 = vmul.f32 %v7344, %v7843
    %v7860 = vlaneseq
    %v7861 = vshrl.u32 %v7860, 7
    %v7862 = vsub.s32 0, %v7861
    %v7863 = vrot.slane %v7834, %v7862
    %v7864 = vlaneseq
    %v7865 = vshrl.u32 %v7864, 7
    %v7866 = vsub.s32 0, %v7865
    %v7867 = vrot.slane %v7835, %v7866
    %v7868 = vadd.f32 %v7844, %v7863
    %v7869 = vadd.f32 %v7845, %v7867
    %v7870 = vadd.f32 %v7846, %v7863
    %v7871 = vadd.f32 %v7847, %v7867
    %v7872 = vadd.f32 %v7848, %v7863
    %v7873 = vadd.f32 %v7849, %v7867
    %v7874 = vadd.f32 %v7850, %v7863
    %v7875 = vadd.f32 %v7851, %v7867
    %v7876 = vadd.f32 %v7852, %v7863
    %v7877 = vadd.f32 %v7853, %v7867
    %v7878 = vadd.f32 %v7854, %v7863
    %v7879 = vadd.f32 %v7855, %v7867
    %v7880 = vadd.f32 %v7856, %v7863
    %v7881 = vadd.f32 %v7857, %v7867
    %v7882 = vadd.f32 %v7858, %v7863
    %v7883 = vadd.f32 %v7859, %v7867
    %v7884 = vmax.f32 %v7868, 0.0
    %v7885 = vmax.f32 %v7869, 0.0
    %v7886 = vmax.f32 %v7870, 0.0
    %v7887 = vmax.f32 %v7871, 0.0
    %v7888 = vmax.f32 %v7872, 0.0
    %v7889 = vmax.f32 %v7873, 0.0
    %v7890 = vmax.f32 %v7874, 0.0
    %v7891 = vmax.f32 %v7875, 0.0
    %v7892 = vmax.f32 %v7876, 0.0
    %v7893 = vmax.f32 %v7877, 0.0
    %v7894 = vmax.f32 %v7878, 0.0
    %v7895 = vmax.f32 %v7879, 0.0
    %v7896 = vmax.f32 %v7880, 0.0
    %v7897 = vmax.f32 %v7881, 0.0
    %v7898 = vmax.f32 %v7882, 0.0
    %v7899 = vmax.f32 %v7883, 0.0
    %v7900 = vmax.f32 %v7884, %v7886
    %v7901 = vmax.f32 %v7885, %v7887
    %v7902 = vmax.f32 %v7888, %v7890
    %v7903 = vmax.f32 %v7889, %v7891
    %v7904 = vmax.f32 %v7892, %v7894
    %v7905 = vmax.f32 %v7893, %v7895
    %v7906 = vmax.f32 %v7896, %v7898
    %v7907 = vmax.f32 %v7897, %v7899
    %v7916 = vcombine.low %v7900, %v7901
    %v7917 = vcombine.high %v7900, %v7901
    %v7919 = vunpack.c.l.s4 1983009808
    %v7920 = vunpack.c.0.s8 %v7919
    %v7921 = vlaneseq
    %v7922 = vshrl.u32 %v7921, 7
    %v7923 = vsub.s32 %v7920, %v7922
    %v7924 = vrot.slane %v7916, %v7923
    %v7926 = vunpack.c.l.s4 1983009808
    %v7927 = vunpack.c.0.s8 %v7926
    %v7928 = vlaneseq
    %v7929 = vshrl.u32 %v7928, 7
    %v7930 = vsub.s32 %v7927, %v7929
    %v7931 = vrot.slane %v7917, %v7930
    %v7932 = vcombine.high %v7924, %v7924
    %v7933 = vcombine.high %v7931, %v7931
    %v7934 = vcombine.low %v7902, %v7903
    %v7935 = vcombine.high %v7902, %v7903
    %v7937 = vunpack.c.l.s4 1983009808
    %v7938 = vunpack.c.0.s8 %v7937
    %v7939 = vlaneseq
    %v7940 = vshrl.u32 %v7939, 7
    %v7941 = vsub.s32 %v7938, %v7940
    %v7942 = vrot.slane %v7934, %v7941
    %v7944 = vunpack.c.l.s4 1983009808
    %v7945 = vunpack.c.0.s8 %v7944
    %v7946 = vlaneseq
    %v7947 = vshrl.u32 %v7946, 7
    %v7948 = vsub.s32 %v7945, %v7947
    %v7949 = vrot.slane %v7935, %v7948
    %v7950 = vcombine.high %v7942, %v7942
    %v7951 = vcombine.high %v7949, %v7949
    %v7952 = vcombine.low %v7904, %v7905
    %v7953 = vcombine.high %v7904, %v7905
    %v7955 = vunpack.c.l.s4 1983009808
    %v7956 = vunpack.c.0.s8 %v7955
    %v7957 = vlaneseq
    %v7958 = vshrl.u32 %v7957, 7
    %v7959 = vsub.s32 %v7956, %v7958
    %v7960 = vrot.slane %v7952, %v7959
    %v7962 = vunpack.c.l.s4 1983009808
    %v7963 = vunpack.c.0.s8 %v7962
    %v7964 = vlaneseq
    %v7965 = vshrl.u32 %v7964, 7
    %v7966 = vsub.s32 %v7963, %v7965
    %v7967 = vrot.slane %v7953, %v7966
    %v7968 = vcombine.high %v7960, %v7960
    %v7969 = vcombine.high %v7967, %v7967
    %v7970 = vcombine.low %v7906, %v7907
    %v7972 = vunpack.c.l.s4 1983009808
    %v7973 = vunpack.c.0.s8 %v7972
    %v7974 = vlaneseq
    %v7975 = vshrl.u32 %v7974, 7
    %v7976 = vsub.s32 %v7973, %v7975
    %v7977 = vrot.slane %v7970, %v7976
    %v7978 = vcombine.high %v7977, %v7977
    %vm7993 = vcmask 1043458
    %vm7994 = vmor %vm7993, %vm2562
    %v7995 = vsel %vm7994, %v7924, -inf
    %v7996 = vsel %vm7994, %v7932, -inf
    %v7997 = vmax.f32 %v7995, %v7996
    %v7998 = vsel %vm7994, %v7931, -inf
    %v7999 = vsel %vm7994, %v7933, -inf
    %v8000 = vmax.f32 %v7998, %v7999
    %v8001 = vsel %vm7994, %v7942, -inf
    %v8002 = vsel %vm7994, %v7950, -inf
    %v8003 = vmax.f32 %v8001, %v8002
    %v8004 = vsel %vm7994, %v7949, -inf
    %v8005 = vsel %vm7994, %v7951, -inf
    %v8006 = vmax.f32 %v8004, %v8005
    %v8007 = vsel %vm7994, %v7960, -inf
    %v8008 = vsel %vm7994, %v7968, -inf
    %v8009 = vmax.f32 %v8007, %v8008
    %v8010 = vsel %vm7994, %v7967, -inf
    %v8011 = vsel %vm7994, %v7969, -inf
    %v8012 = vmax.f32 %v8010, %v8011
    %v8013 = vsel %vm7994, %v7977, -inf
    %v8014 = vsel %vm7994, %v7978, -inf
    %v8015 = vmax.f32 %v8013, %v8014
    %v8018 = vunpack.c.l.s4 1983009808
    %v8019 = vunpack.c.0.s8 %v8018
    %v8020 = vlaneseq
    %v8021 = vshrl.u32 %v8020, 7
    %v8022 = vsub.s32 %v8019, %v8021
    %v8023 = vrot.slane %v7997, %v8022
    %v8024 = vcombine.high %v8023, %v8023
    %v8029 = vunpack.c.l.s4 1983009808
    %v8030 = vunpack.c.0.s8 %v8029
    %v8031 = vlaneseq
    %v8032 = vshrl.u32 %v8031, 7
    %v8033 = vsub.s32 %v8030, %v8032
    %v8034 = vrot.slane %v8000, %v8033
    %v8035 = vcombine.high %v8034, %v8034
    %v8040 = vunpack.c.l.s4 1983009808
    %v8041 = vunpack.c.0.s8 %v8040
    %v8042 = vlaneseq
    %v8043 = vshrl.u32 %v8042, 7
    %v8044 = vsub.s32 %v8041, %v8043
    %v8045 = vrot.slane %v8003, %v8044
    %v8046 = vcombine.high %v8045, %v8045
    %v8051 = vunpack.c.l.s4 1983009808
    %v8052 = vunpack.c.0.s8 %v8051
    %v8053 = vlaneseq
    %v8054 = vshrl.u32 %v8053, 7
    %v8055 = vsub.s32 %v8052, %v8054
    %v8056 = vrot.slane %v8006, %v8055
    %v8057 = vcombine.high %v8056, %v8056
    %v8062 = vunpack.c.l.s4 1983009808
    %v8063 = vunpack.c.0.s8 %v8062
    %v8064 = vlaneseq
    %v8065 = vshrl.u32 %v8064, 7
    %v8066 = vsub.s32 %v8063, %v8065
    %v8067 = vrot.slane %v8009, %v8066
    %v8068 = vcombine.high %v8067, %v8067
    %v8073 = vunpack.c.l.s4 1983009808
    %v8074 = vunpack.c.0.s8 %v8073
    %v8075 = vlaneseq
    %v8076 = vshrl.u32 %v8075, 7
    %v8077 = vsub.s32 %v8074, %v8076
    %v8078 = vrot.slane %v8012, %v8077
    %v8079 = vcombine.high %v8078, %v8078
    %v8084 = vunpack.c.l.s4 1983009808
    %v8085 = vunpack.c.0.s8 %v8084
    %v8086 = vlaneseq
    %v8087 = vshrl.u32 %v8086, 7
    %v8088 = vsub.s32 %v8085, %v8087
    %v8089 = vrot.slane %v8015, %v8088
    %v8090 = vcombine.high %v8089, %v8089
    %v8093 = vpack.c.bf16 %v8023, %v8023
    %v8094 = vpack.c.bf16 %v8024, %v8024
    %v8095 = vpack.c.bf16 %v8034, %v8034
    %v8096 = vpack.c.bf16 %v8035, %v8035
    %v8097 = vpack.c.bf16 %v8045, %v8045
    %v8098 = vpack.c.bf16 %v8046, %v8046
    %v8099 = vpack.c.bf16 %v8056, %v8056
    %v8100 = vpack.c.bf16 %v8057, %v8057
    %v8101 = vpack.c.bf16 %v8067, %v8067
    %v8102 = vpack.c.bf16 %v8068, %v8068
    %v8103 = vpack.c.bf16 %v8078, %v8078
    %v8104 = vpack.c.bf16 %v8079, %v8079
    %v8105 = vpack.c.bf16 %v8089, %v8089
    %v8106 = vpack.c.bf16 %v8090, %v8090
    %v8107 = vld [vmem:[%s9] sm:$0xf]
    %v8108 = vld [vmem:[%s9 + $0x4] sm:$0xf]
    %v8109 = vld [vmem:[%s9 + $0x8] sm:$0xf]
    %v8110 = vld [vmem:[%s9 + $0xc] sm:$0xf]
    %v8111 = vld [vmem:[%s9 + $0x10] sm:$0xf]
    %v8112 = vld [vmem:[%s9 + $0x14] sm:$0xf]
    %v8113 = vld [vmem:[%s9 + $0x18] sm:$0xf]
    %v8114 = vld [vmem:[%s9 + $0x1c] sm:$0xf]
    %v8115 = vld [vmem:[%s9 + $0x20] sm:$0xf]
    %v8116 = vld [vmem:[%s9 + $0x24] sm:$0xf]
    %v8117 = vld [vmem:[%s9 + $0x28] sm:$0xf]
    %v8118 = vld [vmem:[%s9 + $0x2c] sm:$0xf]
    %v8119 = vld [vmem:[%s9 + $0x30] sm:$0xf]
    %v8120 = vld [vmem:[%s9 + $0x34] sm:$0xf]
    %v8121 = vld [vmem:[%s9 + $0x38] sm:$0xf]
    %v8122 = vld [vmem:[%s9 + $0x3c] sm:$0xf]
    %v8123 = vld [vmem:[%s9 + $0x40] sm:$0xf]
    %v8124 = vld [vmem:[%s9 + $0x44] sm:$0xf]
    %v8125 = vld [vmem:[%s9 + $0x48] sm:$0xf]
    %v8126 = vld [vmem:[%s9 + $0x4c] sm:$0xf]
    %v8127 = vld [vmem:[%s9 + $0x50] sm:$0xf]
    %v8128 = vld [vmem:[%s9 + $0x54] sm:$0xf]
    %v8129 = vld [vmem:[%s9 + $0x58] sm:$0xf]
    %v8130 = vld [vmem:[%s9 + $0x5c] sm:$0xf]
    %v8131 = vld [vmem:[%s9 + $0x60] sm:$0xf]
    %v8132 = vld [vmem:[%s9 + $0x64] sm:$0xf]
    %v8133 = vld [vmem:[%s9 + $0x68] sm:$0xf]
    %v8134 = vld [vmem:[%s9 + $0x6c] sm:$0xf]
    %v8135 = vld [vmem:[%s9 + $0x70] sm:$0xf]
    %v8136 = vld [vmem:[%s9 + $0x74] sm:$0xf]
    %v8137 = vld [vmem:[%s9 + $0x78] sm:$0xf]
    %v8138 = vld [vmem:[%s9 + $0x7c] sm:$0xf]
    %v8139 = vld [vmem:[%s9 + $0x80] sm:$0xf]
    %v8140 = vld [vmem:[%s9 + $0x84] sm:$0xf]
    %v8141 = vld [vmem:[%s9 + $0x88] sm:$0xf]
    %v8142 = vld [vmem:[%s9 + $0x8c] sm:$0xf]
    %v8143 = vld [vmem:[%s9 + $0x90] sm:$0xf]
    %v8144 = vld [vmem:[%s9 + $0x94] sm:$0xf]
    %v8145 = vld [vmem:[%s9 + $0x98] sm:$0xf]
    %v8146 = vld [vmem:[%s9 + $0x9c] sm:$0xf]
    %v8147 = vld [vmem:[%s9 + $0xa0] sm:$0xf]
    %v8148 = vld [vmem:[%s9 + $0xa4] sm:$0xf]
    %v8149 = vld [vmem:[%s9 + $0xa8] sm:$0xf]
    %v8150 = vld [vmem:[%s9 + $0xac] sm:$0xf]
    %v8151 = vld [vmem:[%s9 + $0xb0] sm:$0xf]
    %v8152 = vld [vmem:[%s9 + $0xb4] sm:$0xf]
    %v8153 = vld [vmem:[%s9 + $0xb8] sm:$0xf]
    %v8154 = vld [vmem:[%s9 + $0xbc] sm:$0xf]
    %v8155 = vld [vmem:[%s9 + $0xc0] sm:$0xf]
    %v8156 = vld [vmem:[%s9 + $0xc4] sm:$0xf]
    %v8157 = vld [vmem:[%s9 + $0xc8] sm:$0xf]
    %v8158 = vld [vmem:[%s9 + $0xcc] sm:$0xf]
    %v8159 = vld [vmem:[%s9 + $0xd0] sm:$0xf]
    %v8160 = vld [vmem:[%s9 + $0xd4] sm:$0xf]
    %v8161 = vld [vmem:[%s9 + $0xd8] sm:$0xf]
    %v8162 = vld [vmem:[%s9 + $0xdc] sm:$0xf]
    %v8163 = vld [vmem:[%s9 + $0xe0] sm:$0xf]
    %v8164 = vld [vmem:[%s9 + $0xe4] sm:$0xf]
    %v8165 = vld [vmem:[%s9 + $0xe8] sm:$0xf]
    %v8166 = vld [vmem:[%s9 + $0xec] sm:$0xf]
    %v8167 = vld [vmem:[%s9 + $0xf0] sm:$0xf]
    %v8168 = vld [vmem:[%s9 + $0xf4] sm:$0xf]
    %v8169 = vld [vmem:[%s9 + $0xf8] sm:$0xf]
    %v8170 = vld [vmem:[%s9 + $0xfc] sm:$0xf]
    %v8171 = vld [vmem:[%s9 + $0x100] sm:$0xf]
    %v8172 = vld [vmem:[%s9 + $0x104] sm:$0xf]
    %v8173 = vld [vmem:[%s9 + $0x108] sm:$0xf]
    %v8174 = vld [vmem:[%s9 + $0x10c] sm:$0xf]
    %v8175 = vld [vmem:[%s9 + $0x110] sm:$0xf]
    %v8176 = vld [vmem:[%s9 + $0x114] sm:$0xf]
    %v8177 = vld [vmem:[%s9 + $0x118] sm:$0xf]
    %v8178 = vld [vmem:[%s9 + $0x11c] sm:$0xf]
    %v8179 = vld [vmem:[%s9 + $0x120] sm:$0xf]
    %v8180 = vld [vmem:[%s9 + $0x124] sm:$0xf]
    %v8181 = vld [vmem:[%s9 + $0x128] sm:$0xf]
    %v8182 = vld [vmem:[%s9 + $0x12c] sm:$0xf]
    %v8183 = vld [vmem:[%s9 + $0x130] sm:$0xf]
    %v8184 = vld [vmem:[%s9 + $0x134] sm:$0xf]
    %v8185 = vld [vmem:[%s9 + $0x138] sm:$0xf]
    %v8186 = vld [vmem:[%s9 + $0x13c] sm:$0xf]
    %v8187 = vld [vmem:[%s9 + $0x140] sm:$0xf]
    %v8188 = vld [vmem:[%s9 + $0x144] sm:$0xf]
    %v8189 = vld [vmem:[%s9 + $0x148] sm:$0xf]
    %v8190 = vld [vmem:[%s9 + $0x14c] sm:$0xf]
    %v8191 = vld [vmem:[%s9 + $0x150] sm:$0xf]
    %v8192 = vld [vmem:[%s9 + $0x154] sm:$0xf]
    %v8193 = vld [vmem:[%s9 + $0x158] sm:$0xf]
    %v8194 = vld [vmem:[%s9 + $0x15c] sm:$0xf]
    %v8195 = vld [vmem:[%s9 + $0x160] sm:$0xf]
    %v8196 = vld [vmem:[%s9 + $0x164] sm:$0xf]
    %v8197 = vld [vmem:[%s9 + $0x168] sm:$0xf]
    %v8198 = vld [vmem:[%s9 + $0x16c] sm:$0xf]
    %v8199 = vld [vmem:[%s9 + $0x170] sm:$0xf]
    %v8200 = vld [vmem:[%s9 + $0x174] sm:$0xf]
    %v8201 = vld [vmem:[%s9 + $0x178] sm:$0xf]
    %v8202 = vld [vmem:[%s9 + $0x17c] sm:$0xf]
    %v8203 = vld [vmem:[%s9 + $0x180] sm:$0xf]
    %v8204 = vld [vmem:[%s9 + $0x184] sm:$0xf]
    %v8205 = vld [vmem:[%s9 + $0x188] sm:$0xf]
    %v8206 = vld [vmem:[%s9 + $0x18c] sm:$0xf]
    %v8207 = vld [vmem:[%s9 + $0x190] sm:$0xf]
    %v8208 = vld [vmem:[%s9 + $0x194] sm:$0xf]
    %v8209 = vld [vmem:[%s9 + $0x198] sm:$0xf]
    %v8210 = vld [vmem:[%s9 + $0x19c] sm:$0xf]
    %v8211 = vld [vmem:[%s9 + $0x1a0] sm:$0xf]
    %v8212 = vld [vmem:[%s9 + $0x1a4] sm:$0xf]
    %v8213 = vld [vmem:[%s9 + $0x1a8] sm:$0xf]
    %v8214 = vld [vmem:[%s9 + $0x1ac] sm:$0xf]
    %v8215 = vld [vmem:[%s9 + $0x1b0] sm:$0xf]
    %v8216 = vld [vmem:[%s9 + $0x1b4] sm:$0xf]
    %v8217 = vld [vmem:[%s9 + $0x1b8] sm:$0xf]
    %v8218 = vld [vmem:[%s9 + $0x1bc] sm:$0xf]
    %v8219 = vld [vmem:[%s9 + $0x1c0] sm:$0xf]
    %v8220 = vld [vmem:[%s9 + $0x1c4] sm:$0xf]
    %v8221 = vld [vmem:[%s9 + $0x1c8] sm:$0xf]
    %v8222 = vld [vmem:[%s9 + $0x1cc] sm:$0xf]
    %v8223 = vld [vmem:[%s9 + $0x1d0] sm:$0xf]
    %v8224 = vld [vmem:[%s9 + $0x1d4] sm:$0xf]
    %v8225 = vld [vmem:[%s9 + $0x1d8] sm:$0xf]
    %v8226 = vld [vmem:[%s9 + $0x1dc] sm:$0xf]
    %v8227 = vld [vmem:[%s9 + $0x1e0] sm:$0xf]
    %v8228 = vld [vmem:[%s9 + $0x1e4] sm:$0xf]
    %v8229 = vld [vmem:[%s9 + $0x1e8] sm:$0xf]
    %v8230 = vld [vmem:[%s9 + $0x1ec] sm:$0xf]
    %v8231 = vld [vmem:[%s9 + $0x1f0] sm:$0xf]
    %v8232 = vld [vmem:[%s9 + $0x1f4] sm:$0xf]
    %v8233 = vld [vmem:[%s9 + $0x1f8] sm:$0xf]
    %v8234 = vld [vmem:[%s9 + $0x1fc] sm:$0xf]
    %v8235 = vld [vmem:[%s9 + $0x200] sm:$0xf]
    %v8236 = vld [vmem:[%s9 + $0x204] sm:$0xf]
    %v8237 = vld [vmem:[%s9 + $0x208] sm:$0xf]
    %v8238 = vld [vmem:[%s9 + $0x20c] sm:$0xf]
    %v8239 = vld [vmem:[%s9 + $0x210] sm:$0xf]
    %v8240 = vld [vmem:[%s9 + $0x214] sm:$0xf]
    %v8241 = vld [vmem:[%s9 + $0x218] sm:$0xf]
    %v8242 = vld [vmem:[%s9 + $0x21c] sm:$0xf]
    %v8243 = vld [vmem:[%s9 + $0x220] sm:$0xf]
    %v8244 = vld [vmem:[%s9 + $0x224] sm:$0xf]
    %v8245 = vld [vmem:[%s9 + $0x228] sm:$0xf]
    %v8246 = vld [vmem:[%s9 + $0x22c] sm:$0xf]
    %v8247 = vld [vmem:[%s9 + $0x230] sm:$0xf]
    %v8248 = vld [vmem:[%s9 + $0x234] sm:$0xf]
    %v8249 = vld [vmem:[%s9 + $0x238] sm:$0xf]
    %v8250 = vld [vmem:[%s9 + $0x23c] sm:$0xf]
    %v8251 = vld [vmem:[%s9 + $0x240] sm:$0xf]
    %v8252 = vld [vmem:[%s9 + $0x244] sm:$0xf]
    %v8253 = vld [vmem:[%s9 + $0x248] sm:$0xf]
    %v8254 = vld [vmem:[%s9 + $0x24c] sm:$0xf]
    %v8255 = vld [vmem:[%s9 + $0x250] sm:$0xf]
    %v8256 = vld [vmem:[%s9 + $0x254] sm:$0xf]
    %v8257 = vld [vmem:[%s9 + $0x258] sm:$0xf]
    %v8258 = vld [vmem:[%s9 + $0x25c] sm:$0xf]
    %v8259 = vld [vmem:[%s9 + $0x260] sm:$0xf]
    %v8260 = vld [vmem:[%s9 + $0x264] sm:$0xf]
    %v8261 = vld [vmem:[%s9 + $0x268] sm:$0xf]
    %v8262 = vld [vmem:[%s9 + $0x26c] sm:$0xf]
    %v8263 = vld [vmem:[%s9 + $0x270] sm:$0xf]
    %v8264 = vld [vmem:[%s9 + $0x274] sm:$0xf]
    %v8265 = vld [vmem:[%s9 + $0x278] sm:$0xf]
    %v8266 = vld [vmem:[%s9 + $0x27c] sm:$0xf]
    %v8267 = vld [vmem:[%s9 + $0x280] sm:$0xf]
    %v8268 = vld [vmem:[%s9 + $0x284] sm:$0xf]
    %v8269 = vld [vmem:[%s9 + $0x288] sm:$0xf]
    %v8270 = vld [vmem:[%s9 + $0x28c] sm:$0xf]
    %v8271 = vld [vmem:[%s9 + $0x290] sm:$0xf]
    %v8272 = vld [vmem:[%s9 + $0x294] sm:$0xf]
    %v8273 = vld [vmem:[%s9 + $0x298] sm:$0xf]
    %v8274 = vld [vmem:[%s9 + $0x29c] sm:$0xf]
    %v8275 = vld [vmem:[%s9 + $0x2a0] sm:$0xf]
    %v8276 = vld [vmem:[%s9 + $0x2a4] sm:$0xf]
    %v8277 = vld [vmem:[%s9 + $0x2a8] sm:$0xf]
    %v8278 = vld [vmem:[%s9 + $0x2ac] sm:$0xf]
    %v8279 = vld [vmem:[%s9 + $0x2b0] sm:$0xf]
    %v8280 = vld [vmem:[%s9 + $0x2b4] sm:$0xf]
    %v8281 = vld [vmem:[%s9 + $0x2b8] sm:$0xf]
    %v8282 = vld [vmem:[%s9 + $0x2bc] sm:$0xf]
    %v8283 = vld [vmem:[%s9 + $0x2c0] sm:$0xf]
    %v8284 = vld [vmem:[%s9 + $0x2c4] sm:$0xf]
    %v8285 = vld [vmem:[%s9 + $0x2c8] sm:$0xf]
    %v8286 = vld [vmem:[%s9 + $0x2cc] sm:$0xf]
    %v8287 = vld [vmem:[%s9 + $0x2d0] sm:$0xf]
    %v8288 = vld [vmem:[%s9 + $0x2d4] sm:$0xf]
    %v8289 = vld [vmem:[%s9 + $0x2d8] sm:$0xf]
    %v8290 = vld [vmem:[%s9 + $0x2dc] sm:$0xf]
    %v8291 = vld [vmem:[%s9 + $0x2e0] sm:$0xf]
    %v8292 = vld [vmem:[%s9 + $0x2e4] sm:$0xf]
    %v8293 = vld [vmem:[%s9 + $0x2e8] sm:$0xf]
    %v8294 = vld [vmem:[%s9 + $0x2ec] sm:$0xf]
    %v8295 = vld [vmem:[%s9 + $0x2f0] sm:$0xf]
    %v8296 = vld [vmem:[%s9 + $0x2f4] sm:$0xf]
    %v8297 = vld [vmem:[%s9 + $0x2f8] sm:$0xf]
    %v8298 = vld [vmem:[%s9 + $0x2fc] sm:$0xf]
    %v8299 = vld [vmem:[%s9 + $0x300] sm:$0xf]
    %v8300 = vld [vmem:[%s9 + $0x304] sm:$0xf]
    %v8301 = vld [vmem:[%s9 + $0x308] sm:$0xf]
    %v8302 = vld [vmem:[%s9 + $0x30c] sm:$0xf]
    %v8303 = vld [vmem:[%s9 + $0x310] sm:$0xf]
    %v8304 = vld [vmem:[%s9 + $0x314] sm:$0xf]
    %v8305 = vld [vmem:[%s9 + $0x318] sm:$0xf]
    %v8306 = vld [vmem:[%s9 + $0x31c] sm:$0xf]
    %v8307 = vld [vmem:[%s9 + $0x320] sm:$0xf]
    %v8308 = vld [vmem:[%s9 + $0x324] sm:$0xf]
    %v8309 = vld [vmem:[%s9 + $0x328] sm:$0xf]
    %v8310 = vld [vmem:[%s9 + $0x32c] sm:$0xf]
    %v8311 = vld [vmem:[%s9 + $0x330] sm:$0xf]
    %v8312 = vld [vmem:[%s9 + $0x334] sm:$0xf]
    %v8313 = vld [vmem:[%s9 + $0x338] sm:$0xf]
    %v8314 = vld [vmem:[%s9 + $0x33c] sm:$0xf]
    %v8315 = vld [vmem:[%s9 + $0x340] sm:$0xf]
    %v8316 = vld [vmem:[%s9 + $0x344] sm:$0xf]
    %v8317 = vld [vmem:[%s9 + $0x348] sm:$0xf]
    %v8318 = vld [vmem:[%s9 + $0x34c] sm:$0xf]
    %v8319 = vld [vmem:[%s9 + $0x350] sm:$0xf]
    %v8320 = vld [vmem:[%s9 + $0x354] sm:$0xf]
    %v8321 = vld [vmem:[%s9 + $0x358] sm:$0xf]
    %v8322 = vld [vmem:[%s9 + $0x35c] sm:$0xf]
    %v8323 = vld [vmem:[%s9 + $0x360] sm:$0xf]
    %v8324 = vld [vmem:[%s9 + $0x364] sm:$0xf]
    %v8325 = vld [vmem:[%s9 + $0x368] sm:$0xf]
    %v8326 = vld [vmem:[%s9 + $0x36c] sm:$0xf]
    %v8327 = vld [vmem:[%s9 + $0x370] sm:$0xf]
    %v8328 = vld [vmem:[%s9 + $0x374] sm:$0xf]
    %v8329 = vld [vmem:[%s9 + $0x378] sm:$0xf]
    %v8330 = vld [vmem:[%s9 + $0x37c] sm:$0xf]
    %v8331 = vld [vmem:[%s10] sm:$0x1]
    %v8333 = vlaneseq
    %v8334 = vshrl.u32 %v8333, 7
    %v8335 = vsub.s32 0, %v8334
    %v8336 = vrot.slane %v8331, %v8335
    %v8562 = vunpack.c.l.b16 %v8107
    %v8563 = vunpack.c.l.b16 %v8108
    %v8564 = vunpack.c.l.b16 %v8109
    %v8565 = vunpack.c.l.b16 %v8110
    %v8566 = vunpack.c.l.b16 %v8111
    %v8567 = vunpack.c.l.b16 %v8112
    %v8568 = vunpack.c.l.b16 %v8113
    %v8569 = vunpack.c.l.b16 %v8114
    %v8570 = vunpack.c.l.b16 %v8115
    %v8571 = vunpack.c.l.b16 %v8116
    %v8572 = vunpack.c.l.b16 %v8117
    %v8573 = vunpack.c.l.b16 %v8118
    %v8574 = vunpack.c.l.b16 %v8119
    %v8575 = vunpack.c.l.b16 %v8120
    %v8576 = vunpack.c.l.b16 %v8121
    %v8577 = vunpack.c.l.b16 %v8122
    %v8578 = vunpack.c.l.b16 %v8123
    %v8579 = vunpack.c.l.b16 %v8124
    %v8580 = vunpack.c.l.b16 %v8125
    %v8581 = vunpack.c.l.b16 %v8126
    %v8582 = vunpack.c.l.b16 %v8127
    %v8583 = vunpack.c.l.b16 %v8128
    %v8584 = vunpack.c.l.b16 %v8129
    %v8585 = vunpack.c.l.b16 %v8130
    %v8586 = vunpack.c.l.b16 %v8131
    %v8587 = vunpack.c.l.b16 %v8132
    %v8588 = vunpack.c.l.b16 %v8133
    %v8589 = vunpack.c.l.b16 %v8134
    %v8590 = vunpack.c.l.b16 %v8135
    %v8591 = vunpack.c.l.b16 %v8136
    %v8592 = vunpack.c.l.b16 %v8137
    %v8593 = vunpack.c.l.b16 %v8138
    %v8594 = vunpack.c.l.b16 %v8139
    %v8595 = vunpack.c.l.b16 %v8140
    %v8596 = vunpack.c.l.b16 %v8141
    %v8597 = vunpack.c.l.b16 %v8142
    %v8598 = vunpack.c.l.b16 %v8143
    %v8599 = vunpack.c.l.b16 %v8144
    %v8600 = vunpack.c.l.b16 %v8145
    %v8601 = vunpack.c.l.b16 %v8146
    %v8602 = vunpack.c.l.b16 %v8147
    %v8603 = vunpack.c.l.b16 %v8148
    %v8604 = vunpack.c.l.b16 %v8149
    %v8605 = vunpack.c.l.b16 %v8150
    %v8606 = vunpack.c.l.b16 %v8151
    %v8607 = vunpack.c.l.b16 %v8152
    %v8608 = vunpack.c.l.b16 %v8153
    %v8609 = vunpack.c.l.b16 %v8154
    %v8610 = vunpack.c.l.b16 %v8155
    %v8611 = vunpack.c.l.b16 %v8156
    %v8612 = vunpack.c.l.b16 %v8157
    %v8613 = vunpack.c.l.b16 %v8158
    %v8614 = vunpack.c.l.b16 %v8159
    %v8615 = vunpack.c.l.b16 %v8160
    %v8616 = vunpack.c.l.b16 %v8161
    %v8617 = vunpack.c.l.b16 %v8162
    %v8618 = vunpack.c.l.b16 %v8163
    %v8619 = vunpack.c.l.b16 %v8164
    %v8620 = vunpack.c.l.b16 %v8165
    %v8621 = vunpack.c.l.b16 %v8166
    %v8622 = vunpack.c.l.b16 %v8167
    %v8623 = vunpack.c.l.b16 %v8168
    %v8624 = vunpack.c.l.b16 %v8169
    %v8625 = vunpack.c.l.b16 %v8170
    %v8626 = vunpack.c.l.b16 %v8171
    %v8627 = vunpack.c.l.b16 %v8172
    %v8628 = vunpack.c.l.b16 %v8173
    %v8629 = vunpack.c.l.b16 %v8174
    %v8630 = vunpack.c.l.b16 %v8175
    %v8631 = vunpack.c.l.b16 %v8176
    %v8632 = vunpack.c.l.b16 %v8177
    %v8633 = vunpack.c.l.b16 %v8178
    %v8634 = vunpack.c.l.b16 %v8179
    %v8635 = vunpack.c.l.b16 %v8180
    %v8636 = vunpack.c.l.b16 %v8181
    %v8637 = vunpack.c.l.b16 %v8182
    %v8638 = vunpack.c.l.b16 %v8183
    %v8639 = vunpack.c.l.b16 %v8184
    %v8640 = vunpack.c.l.b16 %v8185
    %v8641 = vunpack.c.l.b16 %v8186
    %v8642 = vunpack.c.l.b16 %v8187
    %v8643 = vunpack.c.l.b16 %v8188
    %v8644 = vunpack.c.l.b16 %v8189
    %v8645 = vunpack.c.l.b16 %v8190
    %v8646 = vunpack.c.l.b16 %v8191
    %v8647 = vunpack.c.l.b16 %v8192
    %v8648 = vunpack.c.l.b16 %v8193
    %v8649 = vunpack.c.l.b16 %v8194
    %v8650 = vunpack.c.l.b16 %v8195
    %v8651 = vunpack.c.l.b16 %v8196
    %v8652 = vunpack.c.l.b16 %v8197
    %v8653 = vunpack.c.l.b16 %v8198
    %v8654 = vunpack.c.l.b16 %v8199
    %v8655 = vunpack.c.l.b16 %v8200
    %v8656 = vunpack.c.l.b16 %v8201
    %v8657 = vunpack.c.l.b16 %v8202
    %v8658 = vunpack.c.l.b16 %v8203
    %v8659 = vunpack.c.l.b16 %v8204
    %v8660 = vunpack.c.l.b16 %v8205
    %v8661 = vunpack.c.l.b16 %v8206
    %v8662 = vunpack.c.l.b16 %v8207
    %v8663 = vunpack.c.l.b16 %v8208
    %v8664 = vunpack.c.l.b16 %v8209
    %v8665 = vunpack.c.l.b16 %v8210
    %v8666 = vunpack.c.l.b16 %v8211
    %v8667 = vunpack.c.l.b16 %v8212
    %v8668 = vunpack.c.l.b16 %v8213
    %v8669 = vunpack.c.l.b16 %v8214
    %v8670 = vunpack.c.l.b16 %v8215
    %v8671 = vunpack.c.l.b16 %v8216
    %v8672 = vunpack.c.l.b16 %v8217
    %v8673 = vunpack.c.l.b16 %v8218
    %v8674 = vunpack.c.l.b16 %v8219
    %v8675 = vunpack.c.l.b16 %v8220
    %v8676 = vunpack.c.l.b16 %v8221
    %v8677 = vunpack.c.l.b16 %v8222
    %v8678 = vunpack.c.l.b16 %v8223
    %v8679 = vunpack.c.l.b16 %v8224
    %v8680 = vunpack.c.l.b16 %v8225
    %v8681 = vunpack.c.l.b16 %v8226
    %v8682 = vunpack.c.l.b16 %v8227
    %v8683 = vunpack.c.l.b16 %v8228
    %v8684 = vunpack.c.l.b16 %v8229
    %v8685 = vunpack.c.l.b16 %v8230
    %v8686 = vunpack.c.l.b16 %v8231
    %v8687 = vunpack.c.l.b16 %v8232
    %v8688 = vunpack.c.l.b16 %v8233
    %v8689 = vunpack.c.l.b16 %v8234
    %v8690 = vunpack.c.l.b16 %v8235
    %v8691 = vunpack.c.l.b16 %v8236
    %v8692 = vunpack.c.l.b16 %v8237
    %v8693 = vunpack.c.l.b16 %v8238
    %v8694 = vunpack.c.l.b16 %v8239
    %v8695 = vunpack.c.l.b16 %v8240
    %v8696 = vunpack.c.l.b16 %v8241
    %v8697 = vunpack.c.l.b16 %v8242
    %v8698 = vunpack.c.l.b16 %v8243
    %v8699 = vunpack.c.l.b16 %v8244
    %v8700 = vunpack.c.l.b16 %v8245
    %v8701 = vunpack.c.l.b16 %v8246
    %v8702 = vunpack.c.l.b16 %v8247
    %v8703 = vunpack.c.l.b16 %v8248
    %v8704 = vunpack.c.l.b16 %v8249
    %v8705 = vunpack.c.l.b16 %v8250
    %v8706 = vunpack.c.l.b16 %v8251
    %v8707 = vunpack.c.l.b16 %v8252
    %v8708 = vunpack.c.l.b16 %v8253
    %v8709 = vunpack.c.l.b16 %v8254
    %v8710 = vunpack.c.l.b16 %v8255
    %v8711 = vunpack.c.l.b16 %v8256
    %v8712 = vunpack.c.l.b16 %v8257
    %v8713 = vunpack.c.l.b16 %v8258
    %v8714 = vunpack.c.l.b16 %v8259
    %v8715 = vunpack.c.l.b16 %v8260
    %v8716 = vunpack.c.l.b16 %v8261
    %v8717 = vunpack.c.l.b16 %v8262
    %v8718 = vunpack.c.l.b16 %v8263
    %v8719 = vunpack.c.l.b16 %v8264
    %v8720 = vunpack.c.l.b16 %v8265
    %v8721 = vunpack.c.l.b16 %v8266
    %v8722 = vunpack.c.l.b16 %v8267
    %v8723 = vunpack.c.l.b16 %v8268
    %v8724 = vunpack.c.l.b16 %v8269
    %v8725 = vunpack.c.l.b16 %v8270
    %v8726 = vunpack.c.l.b16 %v8271
    %v8727 = vunpack.c.l.b16 %v8272
    %v8728 = vunpack.c.l.b16 %v8273
    %v8729 = vunpack.c.l.b16 %v8274
    %v8730 = vunpack.c.l.b16 %v8275
    %v8731 = vunpack.c.l.b16 %v8276
    %v8732 = vunpack.c.l.b16 %v8277
    %v8733 = vunpack.c.l.b16 %v8278
    %v8734 = vunpack.c.l.b16 %v8279
    %v8735 = vunpack.c.l.b16 %v8280
    %v8736 = vunpack.c.l.b16 %v8281
    %v8737 = vunpack.c.l.b16 %v8282
    %v8738 = vunpack.c.l.b16 %v8283
    %v8739 = vunpack.c.l.b16 %v8284
    %v8740 = vunpack.c.l.b16 %v8285
    %v8741 = vunpack.c.l.b16 %v8286
    %v8742 = vunpack.c.l.b16 %v8287
    %v8743 = vunpack.c.l.b16 %v8288
    %v8744 = vunpack.c.l.b16 %v8289
    %v8745 = vunpack.c.l.b16 %v8290
    %v8746 = vunpack.c.l.b16 %v8291
    %v8747 = vunpack.c.l.b16 %v8292
    %v8748 = vunpack.c.l.b16 %v8293
    %v8749 = vunpack.c.l.b16 %v8294
    %v8750 = vunpack.c.l.b16 %v8295
    %v8751 = vunpack.c.l.b16 %v8296
    %v8752 = vunpack.c.l.b16 %v8297
    %v8753 = vunpack.c.l.b16 %v8298
    %v8754 = vunpack.c.l.b16 %v8299
    %v8755 = vunpack.c.l.b16 %v8300
    %v8756 = vunpack.c.l.b16 %v8301
    %v8757 = vunpack.c.l.b16 %v8302
    %v8758 = vunpack.c.l.b16 %v8303
    %v8759 = vunpack.c.l.b16 %v8304
    %v8760 = vunpack.c.l.b16 %v8305
    %v8761 = vunpack.c.l.b16 %v8306
    %v8762 = vunpack.c.l.b16 %v8307
    %v8763 = vunpack.c.l.b16 %v8308
    %v8764 = vunpack.c.l.b16 %v8309
    %v8765 = vunpack.c.l.b16 %v8310
    %v8766 = vunpack.c.l.b16 %v8311
    %v8767 = vunpack.c.l.b16 %v8312
    %v8768 = vunpack.c.l.b16 %v8313
    %v8769 = vunpack.c.l.b16 %v8314
    %v8770 = vunpack.c.l.b16 %v8315
    %v8771 = vunpack.c.l.b16 %v8316
    %v8772 = vunpack.c.l.b16 %v8317
    %v8773 = vunpack.c.l.b16 %v8318
    %v8774 = vunpack.c.l.b16 %v8319
    %v8775 = vunpack.c.l.b16 %v8320
    %v8776 = vunpack.c.l.b16 %v8321
    %v8777 = vunpack.c.l.b16 %v8322
    %v8778 = vunpack.c.l.b16 %v8323
    %v8779 = vunpack.c.l.b16 %v8324
    %v8780 = vunpack.c.l.b16 %v8325
    %v8781 = vunpack.c.l.b16 %v8326
    %v8782 = vunpack.c.l.b16 %v8327
    %v8783 = vunpack.c.l.b16 %v8328
    %v8784 = vunpack.c.l.b16 %v8329
    %v8785 = vunpack.c.l.b16 %v8330
    %v8786 = vpack.c.b16 %v8563, %v8562
    %v8787 = vpack.c.b16 %v8565, %v8564
    %v8788 = vpack.c.b16 %v8567, %v8566
    %v8789 = vpack.c.b16 %v8569, %v8568
    %v8790 = vpack.c.b16 %v8571, %v8570
    %v8791 = vpack.c.b16 %v8573, %v8572
    %v8792 = vpack.c.b16 %v8575, %v8574
    %v8793 = vpack.c.b16 %v8577, %v8576
    %v8794 = vpack.c.b16 %v8579, %v8578
    %v8795 = vpack.c.b16 %v8581, %v8580
    %v8796 = vpack.c.b16 %v8583, %v8582
    %v8797 = vpack.c.b16 %v8585, %v8584
    %v8798 = vpack.c.b16 %v8587, %v8586
    %v8799 = vpack.c.b16 %v8589, %v8588
    %v8800 = vpack.c.b16 %v8591, %v8590
    %v8801 = vpack.c.b16 %v8593, %v8592
    %v8802 = vpack.c.b16 %v8595, %v8594
    %v8803 = vpack.c.b16 %v8597, %v8596
    %v8804 = vpack.c.b16 %v8599, %v8598
    %v8805 = vpack.c.b16 %v8601, %v8600
    %v8806 = vpack.c.b16 %v8603, %v8602
    %v8807 = vpack.c.b16 %v8605, %v8604
    %v8808 = vpack.c.b16 %v8607, %v8606
    %v8809 = vpack.c.b16 %v8609, %v8608
    %v8810 = vpack.c.b16 %v8611, %v8610
    %v8811 = vpack.c.b16 %v8613, %v8612
    %v8812 = vpack.c.b16 %v8615, %v8614
    %v8813 = vpack.c.b16 %v8617, %v8616
    %v8814 = vpack.c.b16 %v8619, %v8618
    %v8815 = vpack.c.b16 %v8621, %v8620
    %v8816 = vpack.c.b16 %v8623, %v8622
    %v8817 = vpack.c.b16 %v8625, %v8624
    %v8818 = vpack.c.b16 %v8627, %v8626
    %v8819 = vpack.c.b16 %v8629, %v8628
    %v8820 = vpack.c.b16 %v8631, %v8630
    %v8821 = vpack.c.b16 %v8633, %v8632
    %v8822 = vpack.c.b16 %v8635, %v8634
    %v8823 = vpack.c.b16 %v8637, %v8636
    %v8824 = vpack.c.b16 %v8639, %v8638
    %v8825 = vpack.c.b16 %v8641, %v8640
    %v8826 = vpack.c.b16 %v8643, %v8642
    %v8827 = vpack.c.b16 %v8645, %v8644
    %v8828 = vpack.c.b16 %v8647, %v8646
    %v8829 = vpack.c.b16 %v8649, %v8648
    %v8830 = vpack.c.b16 %v8651, %v8650
    %v8831 = vpack.c.b16 %v8653, %v8652
    %v8832 = vpack.c.b16 %v8655, %v8654
    %v8833 = vpack.c.b16 %v8657, %v8656
    %v8834 = vpack.c.b16 %v8659, %v8658
    %v8835 = vpack.c.b16 %v8661, %v8660
    %v8836 = vpack.c.b16 %v8663, %v8662
    %v8837 = vpack.c.b16 %v8665, %v8664
    %v8838 = vpack.c.b16 %v8667, %v8666
    %v8839 = vpack.c.b16 %v8669, %v8668
    %v8840 = vpack.c.b16 %v8671, %v8670
    %v8841 = vpack.c.b16 %v8673, %v8672
    %v8842 = vpack.c.b16 %v8675, %v8674
    %v8843 = vpack.c.b16 %v8677, %v8676
    %v8844 = vpack.c.b16 %v8679, %v8678
    %v8845 = vpack.c.b16 %v8681, %v8680
    %v8846 = vpack.c.b16 %v8683, %v8682
    %v8847 = vpack.c.b16 %v8685, %v8684
    %v8848 = vpack.c.b16 %v8687, %v8686
    %v8849 = vpack.c.b16 %v8689, %v8688
    %v8850 = vpack.c.b16 %v8691, %v8690
    %v8851 = vpack.c.b16 %v8693, %v8692
    %v8852 = vpack.c.b16 %v8695, %v8694
    %v8853 = vpack.c.b16 %v8697, %v8696
    %v8854 = vpack.c.b16 %v8699, %v8698
    %v8855 = vpack.c.b16 %v8701, %v8700
    %v8856 = vpack.c.b16 %v8703, %v8702
    %v8857 = vpack.c.b16 %v8705, %v8704
    %v8858 = vpack.c.b16 %v8707, %v8706
    %v8859 = vpack.c.b16 %v8709, %v8708
    %v8860 = vpack.c.b16 %v8711, %v8710
    %v8861 = vpack.c.b16 %v8713, %v8712
    %v8862 = vpack.c.b16 %v8715, %v8714
    %v8863 = vpack.c.b16 %v8717, %v8716
    %v8864 = vpack.c.b16 %v8719, %v8718
    %v8865 = vpack.c.b16 %v8721, %v8720
    %v8866 = vpack.c.b16 %v8723, %v8722
    %v8867 = vpack.c.b16 %v8725, %v8724
    %v8868 = vpack.c.b16 %v8727, %v8726
    %v8869 = vpack.c.b16 %v8729, %v8728
    %v8870 = vpack.c.b16 %v8731, %v8730
    %v8871 = vpack.c.b16 %v8733, %v8732
    %v8872 = vpack.c.b16 %v8735, %v8734
    %v8873 = vpack.c.b16 %v8737, %v8736
    %v8874 = vpack.c.b16 %v8739, %v8738
    %v8875 = vpack.c.b16 %v8741, %v8740
    %v8876 = vpack.c.b16 %v8743, %v8742
    %v8877 = vpack.c.b16 %v8745, %v8744
    %v8878 = vpack.c.b16 %v8747, %v8746
    %v8879 = vpack.c.b16 %v8749, %v8748
    %v8880 = vpack.c.b16 %v8751, %v8750
    %v8881 = vpack.c.b16 %v8753, %v8752
    %v8882 = vpack.c.b16 %v8755, %v8754
    %v8883 = vpack.c.b16 %v8757, %v8756
    %v8884 = vpack.c.b16 %v8759, %v8758
    %v8885 = vpack.c.b16 %v8761, %v8760
    %v8886 = vpack.c.b16 %v8763, %v8762
    %v8887 = vpack.c.b16 %v8765, %v8764
    %v8888 = vpack.c.b16 %v8767, %v8766
    %v8889 = vpack.c.b16 %v8769, %v8768
    %v8890 = vpack.c.b16 %v8771, %v8770
    %v8891 = vpack.c.b16 %v8773, %v8772
    %v8892 = vpack.c.b16 %v8775, %v8774
    %v8893 = vpack.c.b16 %v8777, %v8776
    %v8894 = vpack.c.b16 %v8779, %v8778
    %v8895 = vpack.c.b16 %v8781, %v8780
    %v8896 = vpack.c.b16 %v8783, %v8782
    %v8897 = vpack.c.b16 %v8785, %v8784
    %9010 = vmatprep.subr.bf16.mxu0 0
    %9011 = vmatpush1.bf16.msra.mxu0 %v8786
    %9012 = vmatprep.subr.bf16.mxu0 0
    %9013 = vmatpush1.bf16.msra.mxu0 %v8787
    %9014 = vmatprep.subr.bf16.mxu0 0
    %9015 = vmatpush1.bf16.msra.mxu0 %v8788
    %9016 = vmatprep.subr.bf16.mxu0 0
    %9017 = vmatpush1.bf16.msra.mxu0 %v8789
    %9018 = vmatprep.subr.bf16.mxu0 0
    %9019 = vmatpush1.bf16.msra.mxu0 %v8790
    %9020 = vmatprep.subr.bf16.mxu0 0
    %9021 = vmatpush1.bf16.msra.mxu0 %v8791
    %9022 = vmatprep.subr.bf16.mxu0 0
    %9023 = vmatpush1.bf16.msra.mxu0 %v8792
    %9024 = vmatprep.subr.bf16.mxu0 0
    %9025 = vmatpush1.bf16.msra.mxu0 %v8793
    %9026 = vmatprep.subr.bf16.mxu0 0
    %9027 = vmatpush1.bf16.msra.mxu0 %v8794
    %9028 = vmatprep.subr.bf16.mxu0 0
    %9029 = vmatpush1.bf16.msra.mxu0 %v8795
    %9030 = vmatprep.subr.bf16.mxu0 0
    %9031 = vmatpush1.bf16.msra.mxu0 %v8796
    %9032 = vmatprep.subr.bf16.mxu0 0
    %9033 = vmatpush1.bf16.msra.mxu0 %v8797
    %9034 = vmatprep.subr.bf16.mxu0 0
    %9035 = vmatpush1.bf16.msra.mxu0 %v8798
    %9036 = vmatprep.subr.bf16.mxu0 0
    %9037 = vmatpush1.bf16.msra.mxu0 %v8799
    %9038 = vmatprep.subr.bf16.mxu0 0
    %9039 = vmatpush1.bf16.msra.mxu0 %v8800
    %9040 = vmatprep.subr.bf16.mxu0 0
    %9041 = vmatpush1.bf16.msra.mxu0 %v8801
    %9042 = vmatprep.mubr.bf16.mxu0 %v8094
    %9043 = vmatmul.mubr.bf16.gmra.mrb[0].mxu0 %v8093
    %v9044 = vpop.f32.mrb[0].mxu0
    %v9045 = vadd.f32 %v8336, %v9044
    %v9046 = vpop.f32.mrb[0].mxu0
    %v9047 = vpop.f32.mrb[0].mxu0
    %v9048 = vpop.f32.mrb[0].mxu0
    %9049 = vdwg.mxu0
    %9050 = vmatprep.subr.bf16.mxu0 0
    %9051 = vmatpush1.bf16.msra.mxu0 %v8802
    %9052 = vmatprep.subr.bf16.mxu0 0
    %9053 = vmatpush1.bf16.msra.mxu0 %v8803
    %9054 = vmatprep.subr.bf16.mxu0 0
    %9055 = vmatpush1.bf16.msra.mxu0 %v8804
    %9056 = vmatprep.subr.bf16.mxu0 0
    %9057 = vmatpush1.bf16.msra.mxu0 %v8805
    %9058 = vmatprep.subr.bf16.mxu0 0
    %9059 = vmatpush1.bf16.msra.mxu0 %v8806
    %9060 = vmatprep.subr.bf16.mxu0 0
    %9061 = vmatpush1.bf16.msra.mxu0 %v8807
    %9062 = vmatprep.subr.bf16.mxu0 0
    %9063 = vmatpush1.bf16.msra.mxu0 %v8808
    %9064 = vmatprep.subr.bf16.mxu0 0
    %9065 = vmatpush1.bf16.msra.mxu0 %v8809
    %9066 = vmatprep.subr.bf16.mxu0 0
    %9067 = vmatpush1.bf16.msra.mxu0 %v8810
    %9068 = vmatprep.subr.bf16.mxu0 0
    %9069 = vmatpush1.bf16.msra.mxu0 %v8811
    %9070 = vmatprep.subr.bf16.mxu0 0
    %9071 = vmatpush1.bf16.msra.mxu0 %v8812
    %9072 = vmatprep.subr.bf16.mxu0 0
    %9073 = vmatpush1.bf16.msra.mxu0 %v8813
    %9074 = vmatprep.subr.bf16.mxu0 0
    %9075 = vmatpush1.bf16.msra.mxu0 %v8814
    %9076 = vmatprep.subr.bf16.mxu0 0
    %9077 = vmatpush1.bf16.msra.mxu0 %v8815
    %9078 = vmatprep.subr.bf16.mxu0 0
    %9079 = vmatpush1.bf16.msra.mxu0 %v8816
    %9080 = vmatprep.subr.bf16.mxu0 0
    %9081 = vmatpush1.bf16.msra.mxu0 %v8817
    %9082 = vmatprep.mubr.bf16.mxu0 %v8096
    %9083 = vmatmul.mubr.bf16.gmra.mrb[0].mxu0 %v8095
    %v9084 = vpop.f32.mrb[0].mxu0
    %v9085 = vadd.f32 %v9045, %v9084
    %v9086 = vpop.f32.mrb[0].mxu0
    %v9087 = vpop.f32.mrb[0].mxu0
    %v9088 = vpop.f32.mrb[0].mxu0
    %9089 = vdwg.mxu0
    %9090 = vmatprep.subr.bf16.mxu0 0
    %9091 = vmatpush1.bf16.msra.mxu0 %v8818
    %9092 = vmatprep.subr.bf16.mxu0 0
    %9093 = vmatpush1.bf16.msra.mxu0 %v8819
    %9094 = vmatprep.subr.bf16.mxu0 0
    %9095 = vmatpush1.bf16.msra.mxu0 %v8820
    %9096 = vmatprep.subr.bf16.mxu0 0
    %9097 = vmatpush1.bf16.msra.mxu0 %v8821
    %9098 = vmatprep.subr.bf16.mxu0 0
    %9099 = vmatpush1.bf16.msra.mxu0 %v8822
    %9100 = vmatprep.subr.bf16.mxu0 0
    %9101 = vmatpush1.bf16.msra.mxu0 %v8823
    %9102 = vmatprep.subr.bf16.mxu0 0
    %9103 = vmatpush1.bf16.msra.mxu0 %v8824
    %9104 = vmatprep.subr.bf16.mxu0 0
    %9105 = vmatpush1.bf16.msra.mxu0 %v8825
    %9106 = vmatprep.subr.bf16.mxu0 0
    %9107 = vmatpush1.bf16.msra.mxu0 %v8826
    %9108 = vmatprep.subr.bf16.mxu0 0
    %9109 = vmatpush1.bf16.msra.mxu0 %v8827
    %9110 = vmatprep.subr.bf16.mxu0 0
    %9111 = vmatpush1.bf16.msra.mxu0 %v8828
    %9112 = vmatprep.subr.bf16.mxu0 0
    %9113 = vmatpush1.bf16.msra.mxu0 %v8829
    %9114 = vmatprep.subr.bf16.mxu0 0
    %9115 = vmatpush1.bf16.msra.mxu0 %v8830
    %9116 = vmatprep.subr.bf16.mxu0 0
    %9117 = vmatpush1.bf16.msra.mxu0 %v8831
    %9118 = vmatprep.subr.bf16.mxu0 0
    %9119 = vmatpush1.bf16.msra.mxu0 %v8832
    %9120 = vmatprep.subr.bf16.mxu0 0
    %9121 = vmatpush1.bf16.msra.mxu0 %v8833
    %9122 = vmatprep.mubr.bf16.mxu0 %v8098
    %9123 = vmatmul.mubr.bf16.gmra.mrb[0].mxu0 %v8097
    %v9124 = vpop.f32.mrb[0].mxu0
    %v9125 = vadd.f32 %v9085, %v9124
    %v9126 = vpop.f32.mrb[0].mxu0
    %v9127 = vpop.f32.mrb[0].mxu0
    %v9128 = vpop.f32.mrb[0].mxu0
    %9129 = vdwg.mxu0
    %9130 = vmatprep.subr.bf16.mxu0 0
    %9131 = vmatpush1.bf16.msra.mxu0 %v8834
    %9132 = vmatprep.subr.bf16.mxu0 0
    %9133 = vmatpush1.bf16.msra.mxu0 %v8835
    %9134 = vmatprep.subr.bf16.mxu0 0
    %9135 = vmatpush1.bf16.msra.mxu0 %v8836
    %9136 = vmatprep.subr.bf16.mxu0 0
    %9137 = vmatpush1.bf16.msra.mxu0 %v8837
    %9138 = vmatprep.subr.bf16.mxu0 0
    %9139 = vmatpush1.bf16.msra.mxu0 %v8838
    %9140 = vmatprep.subr.bf16.mxu0 0
    %9141 = vmatpush1.bf16.msra.mxu0 %v8839
    %9142 = vmatprep.subr.bf16.mxu0 0
    %9143 = vmatpush1.bf16.msra.mxu0 %v8840
    %9144 = vmatprep.subr.bf16.mxu0 0
    %9145 = vmatpush1.bf16.msra.mxu0 %v8841
    %9146 = vmatprep.subr.bf16.mxu0 0
    %9147 = vmatpush1.bf16.msra.mxu0 %v8842
    %9148 = vmatprep.subr.bf16.mxu0 0
    %9149 = vmatpush1.bf16.msra.mxu0 %v8843
    %9150 = vmatprep.subr.bf16.mxu0 0
    %9151 = vmatpush1.bf16.msra.mxu0 %v8844
    %9152 = vmatprep.subr.bf16.mxu0 0
    %9153 = vmatpush1.bf16.msra.mxu0 %v8845
    %9154 = vmatprep.subr.bf16.mxu0 0
    %9155 = vmatpush1.bf16.msra.mxu0 %v8846
    %9156 = vmatprep.subr.bf16.mxu0 0
    %9157 = vmatpush1.bf16.msra.mxu0 %v8847
    %9158 = vmatprep.subr.bf16.mxu0 0
    %9159 = vmatpush1.bf16.msra.mxu0 %v8848
    %9160 = vmatprep.subr.bf16.mxu0 0
    %9161 = vmatpush1.bf16.msra.mxu0 %v8849
    %9162 = vmatprep.mubr.bf16.mxu0 %v8100
    %9163 = vmatmul.mubr.bf16.gmra.mrb[0].mxu0 %v8099
    %v9164 = vpop.f32.mrb[0].mxu0
    %v9165 = vadd.f32 %v9125, %v9164
    %v9166 = vpop.f32.mrb[0].mxu0
    %v9167 = vpop.f32.mrb[0].mxu0
    %v9168 = vpop.f32.mrb[0].mxu0
    %9169 = vdwg.mxu0
    %9170 = vmatprep.subr.bf16.mxu0 0
    %9171 = vmatpush1.bf16.msra.mxu0 %v8850
    %9172 = vmatprep.subr.bf16.mxu0 0
    %9173 = vmatpush1.bf16.msra.mxu0 %v8851
    %9174 = vmatprep.subr.bf16.mxu0 0
    %9175 = vmatpush1.bf16.msra.mxu0 %v8852
    %9176 = vmatprep.subr.bf16.mxu0 0
    %9177 = vmatpush1.bf16.msra.mxu0 %v8853
    %9178 = vmatprep.subr.bf16.mxu0 0
    %9179 = vmatpush1.bf16.msra.mxu0 %v8854
    %9180 = vmatprep.subr.bf16.mxu0 0
    %9181 = vmatpush1.bf16.msra.mxu0 %v8855
    %9182 = vmatprep.subr.bf16.mxu0 0
    %9183 = vmatpush1.bf16.msra.mxu0 %v8856
    %9184 = vmatprep.subr.bf16.mxu0 0
    %9185 = vmatpush1.bf16.msra.mxu0 %v8857
    %9186 = vmatprep.subr.bf16.mxu0 0
    %9187 = vmatpush1.bf16.msra.mxu0 %v8858
    %9188 = vmatprep.subr.bf16.mxu0 0
    %9189 = vmatpush1.bf16.msra.mxu0 %v8859
    %9190 = vmatprep.subr.bf16.mxu0 0
    %9191 = vmatpush1.bf16.msra.mxu0 %v8860
    %9192 = vmatprep.subr.bf16.mxu0 0
    %9193 = vmatpush1.bf16.msra.mxu0 %v8861
    %9194 = vmatprep.subr.bf16.mxu0 0
    %9195 = vmatpush1.bf16.msra.mxu0 %v8862
    %9196 = vmatprep.subr.bf16.mxu0 0
    %9197 = vmatpush1.bf16.msra.mxu0 %v8863
    %9198 = vmatprep.subr.bf16.mxu0 0
    %9199 = vmatpush1.bf16.msra.mxu0 %v8864
    %9200 = vmatprep.subr.bf16.mxu0 0
    %9201 = vmatpush1.bf16.msra.mxu0 %v8865
    %9202 = vmatprep.mubr.bf16.mxu0 %v8102
    %9203 = vmatmul.mubr.bf16.gmra.mrb[0].mxu0 %v8101
    %v9204 = vpop.f32.mrb[0].mxu0
    %v9205 = vadd.f32 %v9165, %v9204
    %v9206 = vpop.f32.mrb[0].mxu0
    %v9207 = vpop.f32.mrb[0].mxu0
    %v9208 = vpop.f32.mrb[0].mxu0
    %9209 = vdwg.mxu0
    %9210 = vmatprep.subr.bf16.mxu0 0
    %9211 = vmatpush1.bf16.msra.mxu0 %v8866
    %9212 = vmatprep.subr.bf16.mxu0 0
    %9213 = vmatpush1.bf16.msra.mxu0 %v8867
    %9214 = vmatprep.subr.bf16.mxu0 0
    %9215 = vmatpush1.bf16.msra.mxu0 %v8868
    %9216 = vmatprep.subr.bf16.mxu0 0
    %9217 = vmatpush1.bf16.msra.mxu0 %v8869
    %9218 = vmatprep.subr.bf16.mxu0 0
    %9219 = vmatpush1.bf16.msra.mxu0 %v8870
    %9220 = vmatprep.subr.bf16.mxu0 0
    %9221 = vmatpush1.bf16.msra.mxu0 %v8871
    %9222 = vmatprep.subr.bf16.mxu0 0
    %9223 = vmatpush1.bf16.msra.mxu0 %v8872
    %9224 = vmatprep.subr.bf16.mxu0 0
    %9225 = vmatpush1.bf16.msra.mxu0 %v8873
    %9226 = vmatprep.subr.bf16.mxu0 0
    %9227 = vmatpush1.bf16.msra.mxu0 %v8874
    %9228 = vmatprep.subr.bf16.mxu0 0
    %9229 = vmatpush1.bf16.msra.mxu0 %v8875
    %9230 = vmatprep.subr.bf16.mxu0 0
    %9231 = vmatpush1.bf16.msra.mxu0 %v8876
    %9232 = vmatprep.subr.bf16.mxu0 0
    %9233 = vmatpush1.bf16.msra.mxu0 %v8877
    %9234 = vmatprep.subr.bf16.mxu0 0
    %9235 = vmatpush1.bf16.msra.mxu0 %v8878
    %9236 = vmatprep.subr.bf16.mxu0 0
    %9237 = vmatpush1.bf16.msra.mxu0 %v8879
    %9238 = vmatprep.subr.bf16.mxu0 0
    %9239 = vmatpush1.bf16.msra.mxu0 %v8880
    %9240 = vmatprep.subr.bf16.mxu0 0
    %9241 = vmatpush1.bf16.msra.mxu0 %v8881
    %9242 = vmatprep.mubr.bf16.mxu0 %v8104
    %9243 = vmatmul.mubr.bf16.gmra.mrb[0].mxu0 %v8103
    %v9244 = vpop.f32.mrb[0].mxu0
    %v9245 = vadd.f32 %v9205, %v9244
    %v9246 = vpop.f32.mrb[0].mxu0
    %v9247 = vpop.f32.mrb[0].mxu0
    %v9248 = vpop.f32.mrb[0].mxu0
    %9249 = vdwg.mxu0
    %9250 = vmatprep.subr.bf16.mxu0 0
    %9251 = vmatpush1.bf16.msra.mxu0 %v8882
    %9252 = vmatprep.subr.bf16.mxu0 0
    %9253 = vmatpush1.bf16.msra.mxu0 %v8883
    %9254 = vmatprep.subr.bf16.mxu0 0
    %9255 = vmatpush1.bf16.msra.mxu0 %v8884
    %9256 = vmatprep.subr.bf16.mxu0 0
    %9257 = vmatpush1.bf16.msra.mxu0 %v8885
    %9258 = vmatprep.subr.bf16.mxu0 0
    %9259 = vmatpush1.bf16.msra.mxu0 %v8886
    %9260 = vmatprep.subr.bf16.mxu0 0
    %9261 = vmatpush1.bf16.msra.mxu0 %v8887
    %9262 = vmatprep.subr.bf16.mxu0 0
    %9263 = vmatpush1.bf16.msra.mxu0 %v8888
    %9264 = vmatprep.subr.bf16.mxu0 0
    %9265 = vmatpush1.bf16.msra.mxu0 %v8889
    %9266 = vmatprep.subr.bf16.mxu0 0
    %9267 = vmatpush1.bf16.msra.mxu0 %v8890
    %9268 = vmatprep.subr.bf16.mxu0 0
    %9269 = vmatpush1.bf16.msra.mxu0 %v8891
    %9270 = vmatprep.subr.bf16.mxu0 0
    %9271 = vmatpush1.bf16.msra.mxu0 %v8892
    %9272 = vmatprep.subr.bf16.mxu0 0
    %9273 = vmatpush1.bf16.msra.mxu0 %v8893
    %9274 = vmatprep.subr.bf16.mxu0 0
    %9275 = vmatpush1.bf16.msra.mxu0 %v8894
    %9276 = vmatprep.subr.bf16.mxu0 0
    %9277 = vmatpush1.bf16.msra.mxu0 %v8895
    %9278 = vmatprep.subr.bf16.mxu0 0
    %9279 = vmatpush1.bf16.msra.mxu0 %v8896
    %9280 = vmatprep.subr.bf16.mxu0 0
    %9281 = vmatpush1.bf16.msra.mxu0 %v8897
    %9282 = vmatprep.mubr.bf16.mxu0 %v8106
    %9283 = vmatmul.mubr.bf16.gmra.mrb[0].mxu0 %v8105
    %v9284 = vpop.f32.mrb[0].mxu0
    %v9285 = vadd.f32 %v9245, %v9284
    %v9286 = vpop.f32.mrb[0].mxu0
    %v9287 = vpop.f32.mrb[0].mxu0
    %v9288 = vpop.f32.mrb[0].mxu0
    %9289 = vdwg.mxu0
    %vm9290 = vcmask 74752
    %9291 = vst.msk [vmem:[#allocation2] sm:$0x3] %vm9290, %v9285
    // Predicated region
    $region46: #{fashion_mnist_cnn_forward.1} parent=1 // pred_check
      _
    $region47: #{fashion_mnist_cnn_forward.1} parent=1 // pred_check_branch
      %9293 = sbr.rel (0) target = $region49
    $region48: #{fashion_mnist_cnn_forward.1} parent=1 // pred_region
      %s9295 = ssub.s32 32, 32
      %9296 = vsyncadd [#allocation3], %s9295
      %s9298 = sshll.u32 [#allocation2], 4
      %s9299 = int_to_ptr.vmem [resolvable:$true] %s9298
      %9301 = dma.vmem_to_hbm [thread:$0]  %s9299, 32, %s11, [#allocation3]
    $region49: #{fashion_mnist_cnn_forward.1} parent=1 // pred_fallthru
      _
    // Predicated region
    $region50: #{fashion_mnist_cnn_forward.1} parent=1 // pred_check
      _
    $region51: #{fashion_mnist_cnn_forward.1} parent=1 // pred_check_branch
      %9303 = sbr.rel (0) target = $region53
    $region52: #{fashion_mnist_cnn_forward.1} parent=1 // pred_region
      %9304 = dma.done [#allocation3], 32
    $region53: #{fashion_mnist_cnn_forward.1} parent=1 // pred_fallthru
      _
    %9305 = vsyncpa [#allocation3], 1

</llo_original>
